<compile_context>
chip_gen: v5e
topology: v5e:2x2
jax: 0.10.0
libtpu: 0.0.40
codegen_flags: <defaults>
</compile_context>

<pallas_src>
import jax
import jax.numpy as jnp
from jax.experimental import pallas as pl
from jax.experimental.pallas import tpu as pltpu

LANE = 128
DROPOUT_P = 0.5
_VMEM_LIMIT = 32 * 1024 * 1024    # scoped-VMEM request: safe on v5e/v6e/v7x
_PIPE_BUDGET = 22 * 1024 * 1024   # tiled-path working set (incl. double-buffering)
_FUSED_BUDGET = 20 * 1024 * 1024  # single-block fused-path budget


def _round_up(n, m):
    return ((n + m - 1) // m) * m


# ---------------------------------------------------------------------------
# Hoisted feature transform: xw = x @ W + b  (small, row-tiled)
# ---------------------------------------------------------------------------
def _xw_bias_kernel(x_ref, w_ref, b_ref, o_ref):
    xw = jnp.dot(x_ref[...], w_ref[...], preferred_element_type=jnp.float32)
    o_ref[...] = (xw + b_ref[...]).astype(o_ref.dtype)


def _xw_bias(x, w, b, tm):
    n_p, k = x.shape
    f = w.shape[1]
    return pl.pallas_call(
        _xw_bias_kernel,
        out_shape=jax.ShapeDtypeStruct((n_p, f), jnp.bfloat16),
        grid=(n_p // tm,),
        in_specs=[
            pl.BlockSpec((tm, k), lambda i: (i, 0)),
            pl.BlockSpec((k, f), lambda i: (0, 0)),
            pl.BlockSpec((1, f), lambda i: (0, 0)),
        ],
        out_specs=pl.BlockSpec((tm, f), lambda i: (i, 0)),
        compiler_params=pltpu.CompilerParams(
            dimension_semantics=("parallel",),
            vmem_limit_bytes=_VMEM_LIMIT,
        ),
    )(x, w, b)


# ---------------------------------------------------------------------------
# Main streaming kernel: out = G @ XW  (+ optional fused relu * dropout-mask)
# ---------------------------------------------------------------------------
def _gconv_body(g_ref, xw_ref, m_ref, o_ref, acc_ref):
    k = pl.program_id(1)
    tk = g_ref.shape[1]

    @pl.when(k == 0)
    def _init():
        acc_ref[...] = jnp.zeros_like(acc_ref)

    off = pl.multiple_of(k * tk, tk)
    acc_ref[...] += jnp.dot(g_ref[...], xw_ref[pl.ds(off, tk), :],
                            preferred_element_type=jnp.float32)

    @pl.when(k == pl.num_programs(1) - 1)
    def _finalize():
        h = acc_ref[...]
        if m_ref is not None:                        # static (trace-time) branch
            h = jnp.maximum(h, 0.0) * m_ref[...].astype(jnp.float32)
        o_ref[...] = h.astype(o_ref.dtype)


def _make_gconv_kernel(with_relu_dropout):
    if with_relu_dropout:
        def kernel(g_ref, xw_ref, m_ref, o_ref, acc_ref):
            _gconv_body(g_ref, xw_ref, m_ref, o_ref, acc_ref)
    else:
        def kernel(g_ref, xw_ref, o_ref, acc_ref):
            _gconv_body(g_ref, xw_ref, None, o_ref, acc_ref)
    return kernel


def _conv_tile_bytes(tm, tk, n_p, f):
    return (2 * tm * tk * 2        # streamed G tile, double-buffered, bf16
            + 2 * n_p * f * 2      # resident XW (worst case: double-buffered)
            + 2 * tm * f * 2       # mask tile (bf16)
            + 2 * tm * f * 4       # output tile (f32)
            + tm * f * 4           # f32 accumulator scratch
            + tk * f * 2)          # dynamic-slice staging


def _choose_conv_tiles(n128, f):
    # Row tile: as big as sensible, but keep >= 2 row tiles whenever possible
    # so the "parallel" axis still shards across v7x's two TensorCores.
    if n128 >= 4096:
        tm = 1024
    elif n128 >= 1024:
        tm = 512
    else:
        tm = n128
    n_p = _round_up(n128, tm)
    gm = n_p // tm
    best_d = 1
    for d in range(1, min(4, gm) + 1):
        if gm % d == 0 and _conv_tile_bytes(tm, tm * d, n_p, f) <= _PIPE_BUDGET:
            best_d = d
    return tm, tm * best_d, n_p


def _g_conv(g, xw, mask, *, out_dtype, tm, tk):
    n_p = g.shape[0]
    f = xw.shape[1]
    grid = (n_p // tm, n_p // tk)

    in_specs = [
        pl.BlockSpec((tm, tk), lambda i, k: (i, k)),   # streamed G tile
        pl.BlockSpec((n_p, f), lambda i, k: (0, 0)),   # resident XW (fetched once)
    ]
    args = [g, xw]
    if mask is not None:
        in_specs.append(pl.BlockSpec((tm, f), lambda i, k: (i, 0)))
        args.append(mask)

    return pl.pallas_call(
        _make_gconv_kernel(mask is not None),
        out_shape=jax.ShapeDtypeStruct((n_p, f), out_dtype),
        grid=grid,
        in_specs=in_specs,
        out_specs=pl.BlockSpec((tm, f), lambda i, k: (i, 0)),
        scratch_shapes=[pltpu.VMEM((tm, f), jnp.float32)],
        compiler_params=pltpu.CompilerParams(
            dimension_semantics=("parallel", "arbitrary"),
            vmem_limit_bytes=_VMEM_LIMIT,
        ),
    )(*args)


# ---------------------------------------------------------------------------
# Fully fused two-layer kernel for small N: G stays resident in VMEM and is
# read from HBM exactly once while being swept twice.
# ---------------------------------------------------------------------------
def _fused_kernel(g_ref, x_ref, w1_ref, b1_ref, m_ref, w2_ref, b2_ref, o_ref):
    xw1 = jnp.dot(x_ref[...], w1_ref[...], preferred_element_type=jnp.float32)
    xw1 = (xw1 + b1_ref[...]).astype(jnp.bfloat16)
    h = jnp.dot(g_ref[...], xw1, preferred_element_type=jnp.float32)
    h = (jnp.maximum(h, 0.0) * m_ref[...].astype(jnp.float32)).astype(jnp.bfloat16)
    xw2 = jnp.dot(h, w2_ref[...], preferred_element_type=jnp.float32)
    xw2 = (xw2 + b2_ref[...]).astype(jnp.bfloat16)
    o_ref[...] = jnp.dot(g_ref[...], xw2,
                         preferred_element_type=jnp.float32).astype(o_ref.dtype)


def _fused_vmem_bytes(n_p, in_f, hid_p, cls_p):
    return (n_p * n_p * 2                       # G (bf16)
            + n_p * in_f * 2                    # x (bf16)
            + n_p * hid_p * 16                  # xw1 f32/bf16, mask, h f32/bf16
            + n_p * cls_p * 12                  # xw2 f32/bf16, out f32
            + (in_f * hid_p + hid_p * cls_p) * 2
            + (hid_p + cls_p) * 4)


def _fused_forward(g, x, w1, b1, mask, w2, b2):
    n_p = g.shape[0]
    cls_p = w2.shape[1]
    return pl.pallas_call(
        _fused_kernel,
        out_shape=jax.ShapeDtypeStruct((n_p, cls_p), jnp.float32),
        in_specs=[pl.BlockSpec(memory_space=pltpu.MemorySpace.VMEM)
                  for _ in range(7)],
        out_specs=pl.BlockSpec(memory_space=pltpu.MemorySpace.VMEM),
        compiler_params=pltpu.CompilerParams(vmem_limit_bytes=_VMEM_LIMIT),
    )(g, x, w1, b1, mask, w2, b2)


# ---------------------------------------------------------------------------
# Full HGNN forward.
# ---------------------------------------------------------------------------
def hgnn_forward(x, G, w1, b1, w2, b2, *, dropout_key=None, dropout_mask=None,
                 dropout_p=DROPOUT_P, training=True, force_tiled=False):
    """out = G @ (dropout(relu(G @ (x@W1+b1))) @ W2 + b2), matching HGNN.forward."""
    N, in_ch = x.shape
    n_hid = w1.shape[1]
    n_class = w2.shape[1]
    hid_p = _round_up(n_hid, LANE)
    cls_p = _round_up(n_class, LANE)
    n128 = _round_up(N, LANE)

    fused = (not force_tiled) and (
        _fused_vmem_bytes(n128, in_ch, hid_p, cls_p) <= _FUSED_BUDGET)
    if fused:
        tm = tk = None
        n_p = n128
    else:
        tm, tk, n_p = _choose_conv_tiles(n128, max(hid_p, cls_p))

    pad_n = n_p - N
    # bf16 MXU inputs; zero padding keeps every padded row/col inert (padded G
    # rows/cols are zero, so padded rows of the intermediates never contribute).
    g_bf = jnp.pad(G, ((0, pad_n), (0, pad_n))).astype(jnp.bfloat16)
    x_bf = jnp.pad(x, ((0, pad_n), (0, 0))).astype(jnp.bfloat16)
    w1_p = jnp.pad(w1, ((0, 0), (0, hid_p - n_hid))).astype(jnp.bfloat16)
    b1_p = jnp.pad(b1.reshape(1, -1), ((0, 0), (0, hid_p - n_hid))).astype(jnp.float32)
    w2_p = jnp.pad(w2, ((0, hid_p - n_hid), (0, cls_p - n_class))).astype(jnp.bfloat16)
    b2_p = jnp.pad(b2.reshape(1, -1), ((0, 0), (0, cls_p - n_class))).astype(jnp.float32)

    # Dropout keep-mask pre-scaled to {0, 1/(1-p)}; bf16 halves its HBM traffic
    # ({0, 2.0} is exact in bf16 for p=0.5).
    if training and dropout_p > 0.0:
        if dropout_mask is None:
            keep = jax.random.bernoulli(dropout_key, 1.0 - dropout_p, (N, n_hid))
            dropout_mask = keep.astype(jnp.float32) * (1.0 / (1.0 - dropout_p))
        mask = jnp.pad(dropout_mask.astype(jnp.bfloat16),
                       ((0, pad_n), (0, hid_p - n_hid)))
    else:
        mask = jnp.ones((n_p, hid_p), jnp.bfloat16)

    if fused:
        out_p = _fused_forward(g_bf, x_bf, w1_p, b1_p, mask, w2_p, b2_p)
    else:
        # Layer 1: hoisted feature transform, then streamed G @ XW1 with the
        # relu + dropout epilogue fused into the last contraction step.
        xw1 = _xw_bias(x_bf, w1_p, b1_p, tm)
        h = _g_conv(g_bf, xw1, mask, out_dtype=jnp.bfloat16, tm=tm, tk=tk)
        # Layer 2: hoisted h @ W2 + b2, then a pure streamed G @ XW2.
        xw2 = _xw_bias(h, w2_p, b2_p, tm)
        out_p = _g_conv(g_bf, xw2, None, out_dtype=jnp.float32, tm=tm, tk=tk)

    return out_p[:N, :n_class]


if __name__ == "__main__":
    # 1024 nodes, 16 input features, 32 hidden units, 4 classes.
    N, in_ch, n_hid, n_class = 1024, 16, 32, 4

    key = jax.random.PRNGKey(0)
    kx, kg, kw1, kb1, kw2, kb2, kdrop = jax.random.split(key, 7)

    x = jax.random.normal(kx, (N, in_ch), dtype=jnp.float32)
    G = jax.random.normal(kg, (N, N), dtype=jnp.float32)

    # PyTorch HGNN_conv.reset_parameters: uniform(-stdv, stdv), stdv=1/sqrt(out_ft)
    stdv1 = 1.0 / (n_hid ** 0.5)
    stdv2 = 1.0 / (n_class ** 0.5)
    w1 = jax.random.uniform(kw1, (in_ch, n_hid), jnp.float32, -stdv1, stdv1)
    b1 = jax.random.uniform(kb1, (n_hid,), jnp.float32, -stdv1, stdv1)
    w2 = jax.random.uniform(kw2, (n_hid, n_class), jnp.float32, -stdv2, stdv2)
    b2 = jax.random.uniform(kb2, (n_class,), jnp.float32, -stdv2, stdv2)

    # Shared deterministic dropout keep-mask (values {0, 2}), matching
    # F.dropout's training=True default.
    keep = jax.random.bernoulli(kdrop, 1.0 - DROPOUT_P, (N, n_hid))
    drop_mask = keep.astype(jnp.float32) * (1.0 / (1.0 - DROPOUT_P))

    fwd = jax.jit(hgnn_forward,
                  static_argnames=("dropout_p", "training", "force_tiled"))

    # Small-N fused path: G resident in VMEM, read from HBM once.
    out_fused = fwd(x, G, w1, b1, w2, b2, dropout_mask=drop_mask,
                    training=True, force_tiled=False)
    # General tiled path: hoisted XW + big-tile streamed G @ XW kernels.
    out_tiled = fwd(x, G, w1, b1, w2, b2, dropout_mask=drop_mask,
                    training=True, force_tiled=True)
    jax.block_until_ready((out_fused, out_tiled))

    assert out_fused.shape == (N, n_class) and out_tiled.shape == (N, n_class)
    assert bool(jnp.all(jnp.isfinite(out_fused)))
    assert bool(jnp.all(jnp.isfinite(out_tiled)))

    # f32 reference with identical semantics (bf16 kernel inputs => loose tol).
    h_ref = jnp.maximum(G @ (x @ w1 + b1), 0.0) * drop_mask
    out_ref = G @ (h_ref @ w2 + b2)

    def nerr(a, b):
        return float(jnp.max(jnp.abs(a - b)) /
                     jnp.maximum(jnp.max(jnp.abs(b)), 1e-6))

    assert nerr(out_fused, out_ref) < 5e-2
    assert nerr(out_tiled, out_ref) < 5e-2
    assert nerr(out_fused, out_tiled) < 1e-2

    print("KERNEL_OK")
</pallas_src>

<mosaic_0001>
module attributes {stable_mosaic.version = 11 : i64} {
  func.func @_fused_kernel(%arg0: memref<1024x1024xbf16, #tpu.memory_space<vmem>>, %arg1: memref<1024x16xbf16, #tpu.memory_space<vmem>>, %arg2: memref<16x128xbf16, #tpu.memory_space<vmem>>, %arg3: memref<1x128xf32, #tpu.memory_space<vmem>>, %arg4: memref<1024x128xbf16, #tpu.memory_space<vmem>>, %arg5: memref<128x128xbf16, #tpu.memory_space<vmem>>, %arg6: memref<1x128xf32, #tpu.memory_space<vmem>>, %arg7: memref<1024x128xf32, #tpu.memory_space<vmem>>) attributes {dimension_semantics = [], scalar_prefetch = 0 : i64, scratch_operands = 0 : i64, tpu.core_type = #tpu.core_type<tc>} {
    %c0 = arith.constant 0 : index
    %c0_0 = arith.constant 0 : index
    %0 = vector.load %arg1[%c0, %c0_0] : memref<1024x16xbf16, #tpu.memory_space<vmem>>, vector<1024x16xbf16>
    %c0_1 = arith.constant 0 : index
    %c0_2 = arith.constant 0 : index
    %1 = vector.load %arg2[%c0_1, %c0_2] : memref<16x128xbf16, #tpu.memory_space<vmem>>, vector<16x128xbf16>
    %cst = arith.constant dense<0.000000e+00> : vector<1024x128xf32>
    %2 = tpu.matmul %0, %1, %cst {dimension_numbers = #tpu.dot_dimension_numbers<[1], [0], [0], [1], [0, 0, 1, 1], [], []>} : vector<1024x16xbf16>, vector<16x128xbf16>, vector<1024x128xf32> -> vector<1024x128xf32>
    %c0_3 = arith.constant 0 : index
    %c0_4 = arith.constant 0 : index
    %3 = vector.load %arg3[%c0_3, %c0_4] : memref<1x128xf32, #tpu.memory_space<vmem>>, vector<1x128xf32>
    %4 = vector.broadcast %3 : vector<1x128xf32> to vector<1024x128xf32>
    %5 = arith.addf %2, %4 : vector<1024x128xf32>
    %6 = arith.truncf %5 : vector<1024x128xf32> to vector<1024x128xbf16>
    %c0_5 = arith.constant 0 : index
    %c0_6 = arith.constant 0 : index
    %7 = vector.load %arg0[%c0_5, %c0_6] : memref<1024x1024xbf16, #tpu.memory_space<vmem>>, vector<1024x1024xbf16>
    %cst_7 = arith.constant dense<0.000000e+00> : vector<1024x128xf32>
    %8 = tpu.matmul %7, %6, %cst_7 {dimension_numbers = #tpu.dot_dimension_numbers<[1], [0], [0], [1], [0, 0, 1, 1], [], []>} : vector<1024x1024xbf16>, vector<1024x128xbf16>, vector<1024x128xf32> -> vector<1024x128xf32>
    %cst_8 = arith.constant 0.000000e+00 : f32
    %9 = vector.broadcast %cst_8 : f32 to vector<1024x128xf32>
    %10 = arith.maximumf %8, %9 : vector<1024x128xf32>
    %c0_9 = arith.constant 0 : index
    %c0_10 = arith.constant 0 : index
    %11 = vector.load %arg4[%c0_9, %c0_10] : memref<1024x128xbf16, #tpu.memory_space<vmem>>, vector<1024x128xbf16>
    %12 = arith.extf %11 : vector<1024x128xbf16> to vector<1024x128xf32>
    %13 = arith.mulf %10, %12 : vector<1024x128xf32>
    %14 = arith.truncf %13 : vector<1024x128xf32> to vector<1024x128xbf16>
    %c0_11 = arith.constant 0 : index
    %c0_12 = arith.constant 0 : index
    %15 = vector.load %arg5[%c0_11, %c0_12] : memref<128x128xbf16, #tpu.memory_space<vmem>>, vector<128x128xbf16>
    %cst_13 = arith.constant dense<0.000000e+00> : vector<1024x128xf32>
    %16 = tpu.matmul %14, %15, %cst_13 {dimension_numbers = #tpu.dot_dimension_numbers<[1], [0], [0], [1], [0, 0, 1, 1], [], []>} : vector<1024x128xbf16>, vector<128x128xbf16>, vector<1024x128xf32> -> vector<1024x128xf32>
    %c0_14 = arith.constant 0 : index
    %c0_15 = arith.constant 0 : index
    %17 = vector.load %arg6[%c0_14, %c0_15] : memref<1x128xf32, #tpu.memory_space<vmem>>, vector<1x128xf32>
    %18 = vector.broadcast %17 : vector<1x128xf32> to vector<1024x128xf32>
    %19 = arith.addf %16, %18 : vector<1024x128xf32>
    %20 = arith.truncf %19 : vector<1024x128xf32> to vector<1024x128xbf16>
    %c0_16 = arith.constant 0 : index
    %c0_17 = arith.constant 0 : index
    %21 = vector.load %arg0[%c0_16, %c0_17] : memref<1024x1024xbf16, #tpu.memory_space<vmem>>, vector<1024x1024xbf16>
    %cst_18 = arith.constant dense<0.000000e+00> : vector<1024x128xf32>
    %22 = tpu.matmul %21, %20, %cst_18 {dimension_numbers = #tpu.dot_dimension_numbers<[1], [0], [0], [1], [0, 0, 1, 1], [], []>} : vector<1024x1024xbf16>, vector<1024x128xbf16>, vector<1024x128xf32> -> vector<1024x128xf32>
    %c0_19 = arith.constant 0 : index
    %c0_20 = arith.constant 0 : index
    %23 = vector.load %arg7[%c0_19, %c0_20] : memref<1024x128xf32, #tpu.memory_space<vmem>>, vector<1024x128xf32>
    tpu.vector_store %arg7[%c0_19, %c0_20], %22 {strides = array<i32>} : memref<1024x128xf32, #tpu.memory_space<vmem>>, vector<1024x128xf32>,
    return
  }
}

</mosaic_0001>

<llo_original>
// kernel: hgnn_forward.1
$region0: #{hgnn_forward.1}
  #allocation0 [shape = 'u32[]', space=smem, size = 0x4, offset = 0x4, fixed_abs, tag = 'smem constant byte address 0x4 - core index']
  #allocation1 [shape = 'u32[72,128]{1,0:T(1,128)}', space=vmem, size = 0x9000, scoped, tag = 'internal scratch']
  %s0 = inlined_call_operand.vmem [shape: bf16[1024,1024], index: 0, kind: input, shape index: {}]
  %s1 = inlined_call_operand.vmem [shape: bf16[1024,16], index: 1, kind: input, shape index: {}]
  %s2 = inlined_call_operand.vmem [shape: bf16[16,128], index: 2, kind: input, shape index: {}]
  %s3 = inlined_call_operand.vmem [shape: f32[1,128], index: 3, kind: input, shape index: {}]
  %s4 = inlined_call_operand.vmem [shape: bf16[1024,128], index: 4, kind: input, shape index: {}]
  %s5 = inlined_call_operand.vmem [shape: bf16[128,128], index: 5, kind: input, shape index: {}]
  %s6 = inlined_call_operand.vmem [shape: f32[1,128], index: 6, kind: input, shape index: {}]
  %s7 = inlined_call_operand.vmem [shape: f32[1024,128], index: 7, kind: output, shape index: {}]
  %s8 = sld [smem:[#allocation0]]
  $region38: #{hgnn_forward.1} parent=0
    _
  %s10 = ssub.s32 1, %s8
  %s11 = scalar_select 0, %s10, %s8
  // Predicated region
  $region2: #{hgnn_forward.1} parent=0 // pred_check
    _
  $region3: #{hgnn_forward.1} parent=0 // pred_check_branch
    %13 = sbr.rel (0) target = $region5
  $region4: #{hgnn_forward.1} parent=0 // pred_region
    _
  $region5: #{hgnn_forward.1} parent=0 // pred_fallthru
    _
  // Predicated region
  $region6: #{hgnn_forward.1} parent=0 // pred_check
    _
  $region7: #{hgnn_forward.1} parent=0 // pred_check_branch
    %15 = sbr.rel (0) target = $region9
  $region8: #{hgnn_forward.1} parent=0 // pred_region
    _
  $region9: #{hgnn_forward.1} parent=0 // pred_fallthru
    _
  // Predicated region
  $region10: #{hgnn_forward.1} parent=0 // pred_check
    _
  $region11: #{hgnn_forward.1} parent=0 // pred_check_branch
    %17 = sbr.rel (0) target = $region13
  $region12: #{hgnn_forward.1} parent=0 // pred_region
    _
  $region13: #{hgnn_forward.1} parent=0 // pred_fallthru
    _
  // Predicated region
  $region14: #{hgnn_forward.1} parent=0 // pred_check
    _
  $region15: #{hgnn_forward.1} parent=0 // pred_check_branch
    %19 = sbr.rel (0) target = $region17
  $region16: #{hgnn_forward.1} parent=0 // pred_region
    _
  $region17: #{hgnn_forward.1} parent=0 // pred_fallthru
    _
  // Predicated region
  $region18: #{hgnn_forward.1} parent=0 // pred_check
    _
  $region19: #{hgnn_forward.1} parent=0 // pred_check_branch
    %21 = sbr.rel (0) target = $region21
  $region20: #{hgnn_forward.1} parent=0 // pred_region
    _
  $region21: #{hgnn_forward.1} parent=0 // pred_fallthru
    _
  // Predicated region
  $region22: #{hgnn_forward.1} parent=0 // pred_check
    _
  $region23: #{hgnn_forward.1} parent=0 // pred_check_branch
    %23 = sbr.rel (0) target = $region25
  $region24: #{hgnn_forward.1} parent=0 // pred_region
    _
  $region25: #{hgnn_forward.1} parent=0 // pred_fallthru
    _
  // Predicated region
  $region26: #{hgnn_forward.1} parent=0 // pred_check
    _
  $region27: #{hgnn_forward.1} parent=0 // pred_check_branch
    %25 = sbr.rel (0) target = $region29
  $region28: #{hgnn_forward.1} parent=0 // pred_region
    _
  $region29: #{hgnn_forward.1} parent=0 // pred_fallthru
    _
  %v27 = vld [vmem:[%s1] sm:$0xf]
  %v28 = vld [vmem:[%s1 + $0x4] sm:$0xf]
  %v29 = vld [vmem:[%s1 + $0x8] sm:$0xf]
  %v30 = vld [vmem:[%s1 + $0xc] sm:$0xf]
  %v31 = vld [vmem:[%s1 + $0x10] sm:$0xf]
  %v32 = vld [vmem:[%s1 + $0x14] sm:$0xf]
  %v33 = vld [vmem:[%s1 + $0x18] sm:$0xf]
  %v34 = vld [vmem:[%s1 + $0x1c] sm:$0xf]
  %v35 = vld [vmem:[%s1 + $0x20] sm:$0xf]
  %v36 = vld [vmem:[%s1 + $0x24] sm:$0xf]
  %v37 = vld [vmem:[%s1 + $0x28] sm:$0xf]
  %v38 = vld [vmem:[%s1 + $0x2c] sm:$0xf]
  %v39 = vld [vmem:[%s1 + $0x30] sm:$0xf]
  %v40 = vld [vmem:[%s1 + $0x34] sm:$0xf]
  %v41 = vld [vmem:[%s1 + $0x38] sm:$0xf]
  %v42 = vld [vmem:[%s1 + $0x3c] sm:$0xf]
  %v43 = vld [vmem:[%s1 + $0x40] sm:$0xf]
  %v44 = vld [vmem:[%s1 + $0x44] sm:$0xf]
  %v45 = vld [vmem:[%s1 + $0x48] sm:$0xf]
  %v46 = vld [vmem:[%s1 + $0x4c] sm:$0xf]
  %v47 = vld [vmem:[%s1 + $0x50] sm:$0xf]
  %v48 = vld [vmem:[%s1 + $0x54] sm:$0xf]
  %v49 = vld [vmem:[%s1 + $0x58] sm:$0xf]
  %v50 = vld [vmem:[%s1 + $0x5c] sm:$0xf]
  %v51 = vld [vmem:[%s1 + $0x60] sm:$0xf]
  %v52 = vld [vmem:[%s1 + $0x64] sm:$0xf]
  %v53 = vld [vmem:[%s1 + $0x68] sm:$0xf]
  %v54 = vld [vmem:[%s1 + $0x6c] sm:$0xf]
  %v55 = vld [vmem:[%s1 + $0x70] sm:$0xf]
  %v56 = vld [vmem:[%s1 + $0x74] sm:$0xf]
  %v57 = vld [vmem:[%s1 + $0x78] sm:$0xf]
  %v58 = vld [vmem:[%s1 + $0x7c] sm:$0xf]
  %v59 = vld [vmem:[%s1 + $0x80] sm:$0xf]
  %v60 = vld [vmem:[%s1 + $0x84] sm:$0xf]
  %v61 = vld [vmem:[%s1 + $0x88] sm:$0xf]
  %v62 = vld [vmem:[%s1 + $0x8c] sm:$0xf]
  %v63 = vld [vmem:[%s1 + $0x90] sm:$0xf]
  %v64 = vld [vmem:[%s1 + $0x94] sm:$0xf]
  %v65 = vld [vmem:[%s1 + $0x98] sm:$0xf]
  %v66 = vld [vmem:[%s1 + $0x9c] sm:$0xf]
  %v67 = vld [vmem:[%s1 + $0xa0] sm:$0xf]
  %v68 = vld [vmem:[%s1 + $0xa4] sm:$0xf]
  %v69 = vld [vmem:[%s1 + $0xa8] sm:$0xf]
  %v70 = vld [vmem:[%s1 + $0xac] sm:$0xf]
  %v71 = vld [vmem:[%s1 + $0xb0] sm:$0xf]
  %v72 = vld [vmem:[%s1 + $0xb4] sm:$0xf]
  %v73 = vld [vmem:[%s1 + $0xb8] sm:$0xf]
  %v74 = vld [vmem:[%s1 + $0xbc] sm:$0xf]
  %v75 = vld [vmem:[%s1 + $0xc0] sm:$0xf]
  %v76 = vld [vmem:[%s1 + $0xc4] sm:$0xf]
  %v77 = vld [vmem:[%s1 + $0xc8] sm:$0xf]
  %v78 = vld [vmem:[%s1 + $0xcc] sm:$0xf]
  %v79 = vld [vmem:[%s1 + $0xd0] sm:$0xf]
  %v80 = vld [vmem:[%s1 + $0xd4] sm:$0xf]
  %v81 = vld [vmem:[%s1 + $0xd8] sm:$0xf]
  %v82 = vld [vmem:[%s1 + $0xdc] sm:$0xf]
  %v83 = vld [vmem:[%s1 + $0xe0] sm:$0xf]
  %v84 = vld [vmem:[%s1 + $0xe4] sm:$0xf]
  %v85 = vld [vmem:[%s1 + $0xe8] sm:$0xf]
  %v86 = vld [vmem:[%s1 + $0xec] sm:$0xf]
  %v87 = vld [vmem:[%s1 + $0xf0] sm:$0xf]
  %v88 = vld [vmem:[%s1 + $0xf4] sm:$0xf]
  %v89 = vld [vmem:[%s1 + $0xf8] sm:$0xf]
  %v90 = vld [vmem:[%s1 + $0xfc] sm:$0xf]
  %v91 = vld [vmem:[%s1 + $0x100] sm:$0xf]
  %v92 = vld [vmem:[%s1 + $0x104] sm:$0xf]
  %v93 = vld [vmem:[%s1 + $0x108] sm:$0xf]
  %v94 = vld [vmem:[%s1 + $0x10c] sm:$0xf]
  %v95 = vld [vmem:[%s1 + $0x110] sm:$0xf]
  %v96 = vld [vmem:[%s1 + $0x114] sm:$0xf]
  %v97 = vld [vmem:[%s1 + $0x118] sm:$0xf]
  %v98 = vld [vmem:[%s1 + $0x11c] sm:$0xf]
  %v99 = vld [vmem:[%s1 + $0x120] sm:$0xf]
  %v100 = vld [vmem:[%s1 + $0x124] sm:$0xf]
  %v101 = vld [vmem:[%s1 + $0x128] sm:$0xf]
  %v102 = vld [vmem:[%s1 + $0x12c] sm:$0xf]
  %v103 = vld [vmem:[%s1 + $0x130] sm:$0xf]
  %v104 = vld [vmem:[%s1 + $0x134] sm:$0xf]
  %v105 = vld [vmem:[%s1 + $0x138] sm:$0xf]
  %v106 = vld [vmem:[%s1 + $0x13c] sm:$0xf]
  %v107 = vld [vmem:[%s1 + $0x140] sm:$0xf]
  %v108 = vld [vmem:[%s1 + $0x144] sm:$0xf]
  %v109 = vld [vmem:[%s1 + $0x148] sm:$0xf]
  %v110 = vld [vmem:[%s1 + $0x14c] sm:$0xf]
  %v111 = vld [vmem:[%s1 + $0x150] sm:$0xf]
  %v112 = vld [vmem:[%s1 + $0x154] sm:$0xf]
  %v113 = vld [vmem:[%s1 + $0x158] sm:$0xf]
  %v114 = vld [vmem:[%s1 + $0x15c] sm:$0xf]
  %v115 = vld [vmem:[%s1 + $0x160] sm:$0xf]
  %v116 = vld [vmem:[%s1 + $0x164] sm:$0xf]
  %v117 = vld [vmem:[%s1 + $0x168] sm:$0xf]
  %v118 = vld [vmem:[%s1 + $0x16c] sm:$0xf]
  %v119 = vld [vmem:[%s1 + $0x170] sm:$0xf]
  %v120 = vld [vmem:[%s1 + $0x174] sm:$0xf]
  %v121 = vld [vmem:[%s1 + $0x178] sm:$0xf]
  %v122 = vld [vmem:[%s1 + $0x17c] sm:$0xf]
  %v123 = vld [vmem:[%s1 + $0x180] sm:$0xf]
  %v124 = vld [vmem:[%s1 + $0x184] sm:$0xf]
  %v125 = vld [vmem:[%s1 + $0x188] sm:$0xf]
  %v126 = vld [vmem:[%s1 + $0x18c] sm:$0xf]
  %v127 = vld [vmem:[%s1 + $0x190] sm:$0xf]
  %v128 = vld [vmem:[%s1 + $0x194] sm:$0xf]
  %v129 = vld [vmem:[%s1 + $0x198] sm:$0xf]
  %v130 = vld [vmem:[%s1 + $0x19c] sm:$0xf]
  %v131 = vld [vmem:[%s1 + $0x1a0] sm:$0xf]
  %v132 = vld [vmem:[%s1 + $0x1a4] sm:$0xf]
  %v133 = vld [vmem:[%s1 + $0x1a8] sm:$0xf]
  %v134 = vld [vmem:[%s1 + $0x1ac] sm:$0xf]
  %v135 = vld [vmem:[%s1 + $0x1b0] sm:$0xf]
  %v136 = vld [vmem:[%s1 + $0x1b4] sm:$0xf]
  %v137 = vld [vmem:[%s1 + $0x1b8] sm:$0xf]
  %v138 = vld [vmem:[%s1 + $0x1bc] sm:$0xf]
  %v139 = vld [vmem:[%s1 + $0x1c0] sm:$0xf]
  %v140 = vld [vmem:[%s1 + $0x1c4] sm:$0xf]
  %v141 = vld [vmem:[%s1 + $0x1c8] sm:$0xf]
  %v142 = vld [vmem:[%s1 + $0x1cc] sm:$0xf]
  %v143 = vld [vmem:[%s1 + $0x1d0] sm:$0xf]
  %v144 = vld [vmem:[%s1 + $0x1d4] sm:$0xf]
  %v145 = vld [vmem:[%s1 + $0x1d8] sm:$0xf]
  %v146 = vld [vmem:[%s1 + $0x1dc] sm:$0xf]
  %v147 = vld [vmem:[%s1 + $0x1e0] sm:$0xf]
  %v148 = vld [vmem:[%s1 + $0x1e4] sm:$0xf]
  %v149 = vld [vmem:[%s1 + $0x1e8] sm:$0xf]
  %v150 = vld [vmem:[%s1 + $0x1ec] sm:$0xf]
  %v151 = vld [vmem:[%s1 + $0x1f0] sm:$0xf]
  %v152 = vld [vmem:[%s1 + $0x1f4] sm:$0xf]
  %v153 = vld [vmem:[%s1 + $0x1f8] sm:$0xf]
  %v154 = vld [vmem:[%s1 + $0x1fc] sm:$0xf]
  %v155 = vld [vmem:[%s2] sm:$0xf]
  %v156 = vld [vmem:[%s2 + $0x4] sm:$0xf]
  %v157 = vld [vmem:[%s3] sm:$0x1]
  %v159 = vperm.slane %v157, 0
  %v289 = vunpack.c.l.b16 %v27
  %v290 = vunpack.c.l.b16 %v28
  %v291 = vunpack.c.l.b16 %v29
  %v292 = vunpack.c.l.b16 %v30
  %v293 = vunpack.c.l.b16 %v31
  %v294 = vunpack.c.l.b16 %v32
  %v295 = vunpack.c.l.b16 %v33
  %v296 = vunpack.c.l.b16 %v34
  %v297 = vunpack.c.l.b16 %v35
  %v298 = vunpack.c.l.b16 %v36
  %v299 = vunpack.c.l.b16 %v37
  %v300 = vunpack.c.l.b16 %v38
  %v301 = vunpack.c.l.b16 %v39
  %v302 = vunpack.c.l.b16 %v40
  %v303 = vunpack.c.l.b16 %v41
  %v304 = vunpack.c.l.b16 %v42
  %v305 = vunpack.c.l.b16 %v43
  %v306 = vunpack.c.l.b16 %v44
  %v307 = vunpack.c.l.b16 %v45
  %v308 = vunpack.c.l.b16 %v46
  %v309 = vunpack.c.l.b16 %v47
  %v310 = vunpack.c.l.b16 %v48
  %v311 = vunpack.c.l.b16 %v49
  %v312 = vunpack.c.l.b16 %v50
  %v313 = vunpack.c.l.b16 %v51
  %v314 = vunpack.c.l.b16 %v52
  %v315 = vunpack.c.l.b16 %v53
  %v316 = vunpack.c.l.b16 %v54
  %v317 = vunpack.c.l.b16 %v55
  %v318 = vunpack.c.l.b16 %v56
  %v319 = vunpack.c.l.b16 %v57
  %v320 = vunpack.c.l.b16 %v58
  %v321 = vunpack.c.l.b16 %v59
  %v322 = vunpack.c.l.b16 %v60
  %v323 = vunpack.c.l.b16 %v61
  %v324 = vunpack.c.l.b16 %v62
  %v325 = vunpack.c.l.b16 %v63
  %v326 = vunpack.c.l.b16 %v64
  %v327 = vunpack.c.l.b16 %v65
  %v328 = vunpack.c.l.b16 %v66
  %v329 = vunpack.c.l.b16 %v67
  %v330 = vunpack.c.l.b16 %v68
  %v331 = vunpack.c.l.b16 %v69
  %v332 = vunpack.c.l.b16 %v70
  %v333 = vunpack.c.l.b16 %v71
  %v334 = vunpack.c.l.b16 %v72
  %v335 = vunpack.c.l.b16 %v73
  %v336 = vunpack.c.l.b16 %v74
  %v337 = vunpack.c.l.b16 %v75
  %v338 = vunpack.c.l.b16 %v76
  %v339 = vunpack.c.l.b16 %v77
  %v340 = vunpack.c.l.b16 %v78
  %v341 = vunpack.c.l.b16 %v79
  %v342 = vunpack.c.l.b16 %v80
  %v343 = vunpack.c.l.b16 %v81
  %v344 = vunpack.c.l.b16 %v82
  %v345 = vunpack.c.l.b16 %v83
  %v346 = vunpack.c.l.b16 %v84
  %v347 = vunpack.c.l.b16 %v85
  %v348 = vunpack.c.l.b16 %v86
  %v349 = vunpack.c.l.b16 %v87
  %v350 = vunpack.c.l.b16 %v88
  %v351 = vunpack.c.l.b16 %v89
  %v352 = vunpack.c.l.b16 %v90
  %v353 = vunpack.c.l.b16 %v91
  %v354 = vunpack.c.l.b16 %v92
  %v355 = vunpack.c.l.b16 %v93
  %v356 = vunpack.c.l.b16 %v94
  %v357 = vunpack.c.l.b16 %v95
  %v358 = vunpack.c.l.b16 %v96
  %v359 = vunpack.c.l.b16 %v97
  %v360 = vunpack.c.l.b16 %v98
  %v361 = vunpack.c.l.b16 %v99
  %v362 = vunpack.c.l.b16 %v100
  %v363 = vunpack.c.l.b16 %v101
  %v364 = vunpack.c.l.b16 %v102
  %v365 = vunpack.c.l.b16 %v103
  %v366 = vunpack.c.l.b16 %v104
  %v367 = vunpack.c.l.b16 %v105
  %v368 = vunpack.c.l.b16 %v106
  %v369 = vunpack.c.l.b16 %v107
  %v370 = vunpack.c.l.b16 %v108
  %v371 = vunpack.c.l.b16 %v109
  %v372 = vunpack.c.l.b16 %v110
  %v373 = vunpack.c.l.b16 %v111
  %v374 = vunpack.c.l.b16 %v112
  %v375 = vunpack.c.l.b16 %v113
  %v376 = vunpack.c.l.b16 %v114
  %v377 = vunpack.c.l.b16 %v115
  %v378 = vunpack.c.l.b16 %v116
  %v379 = vunpack.c.l.b16 %v117
  %v380 = vunpack.c.l.b16 %v118
  %v381 = vunpack.c.l.b16 %v119
  %v382 = vunpack.c.l.b16 %v120
  %v383 = vunpack.c.l.b16 %v121
  %v384 = vunpack.c.l.b16 %v122
  %v385 = vunpack.c.l.b16 %v123
  %v386 = vunpack.c.l.b16 %v124
  %v387 = vunpack.c.l.b16 %v125
  %v388 = vunpack.c.l.b16 %v126
  %v389 = vunpack.c.l.b16 %v127
  %v390 = vunpack.c.l.b16 %v128
  %v391 = vunpack.c.l.b16 %v129
  %v392 = vunpack.c.l.b16 %v130
  %v393 = vunpack.c.l.b16 %v131
  %v394 = vunpack.c.l.b16 %v132
  %v395 = vunpack.c.l.b16 %v133
  %v396 = vunpack.c.l.b16 %v134
  %v397 = vunpack.c.l.b16 %v135
  %v398 = vunpack.c.l.b16 %v136
  %v399 = vunpack.c.l.b16 %v137
  %v400 = vunpack.c.l.b16 %v138
  %v401 = vunpack.c.l.b16 %v139
  %v402 = vunpack.c.l.b16 %v140
  %v403 = vunpack.c.l.b16 %v141
  %v404 = vunpack.c.l.b16 %v142
  %v405 = vunpack.c.l.b16 %v143
  %v406 = vunpack.c.l.b16 %v144
  %v407 = vunpack.c.l.b16 %v145
  %v408 = vunpack.c.l.b16 %v146
  %v409 = vunpack.c.l.b16 %v147
  %v410 = vunpack.c.l.b16 %v148
  %v411 = vunpack.c.l.b16 %v149
  %v412 = vunpack.c.l.b16 %v150
  %v413 = vunpack.c.l.b16 %v151
  %v414 = vunpack.c.l.b16 %v152
  %v415 = vunpack.c.l.b16 %v153
  %v416 = vunpack.c.l.b16 %v154
  %v417 = vpack.c.b16 %v290, %v289
  %v418 = vpack.c.b16 %v292, %v291
  %v419 = vpack.c.b16 %v294, %v293
  %v420 = vpack.c.b16 %v296, %v295
  %v421 = vpack.c.b16 %v298, %v297
  %v422 = vpack.c.b16 %v300, %v299
  %v423 = vpack.c.b16 %v302, %v301
  %v424 = vpack.c.b16 %v304, %v303
  %v425 = vpack.c.b16 %v306, %v305
  %v426 = vpack.c.b16 %v308, %v307
  %v427 = vpack.c.b16 %v310, %v309
  %v428 = vpack.c.b16 %v312, %v311
  %v429 = vpack.c.b16 %v314, %v313
  %v430 = vpack.c.b16 %v316, %v315
  %v431 = vpack.c.b16 %v318, %v317
  %v432 = vpack.c.b16 %v320, %v319
  %v433 = vpack.c.b16 %v322, %v321
  %v434 = vpack.c.b16 %v324, %v323
  %v435 = vpack.c.b16 %v326, %v325
  %v436 = vpack.c.b16 %v328, %v327
  %v437 = vpack.c.b16 %v330, %v329
  %v438 = vpack.c.b16 %v332, %v331
  %v439 = vpack.c.b16 %v334, %v333
  %v440 = vpack.c.b16 %v336, %v335
  %v441 = vpack.c.b16 %v338, %v337
  %v442 = vpack.c.b16 %v340, %v339
  %v443 = vpack.c.b16 %v342, %v341
  %v444 = vpack.c.b16 %v344, %v343
  %v445 = vpack.c.b16 %v346, %v345
  %v446 = vpack.c.b16 %v348, %v347
  %v447 = vpack.c.b16 %v350, %v349
  %v448 = vpack.c.b16 %v352, %v351
  %v449 = vpack.c.b16 %v354, %v353
  %v450 = vpack.c.b16 %v356, %v355
  %v451 = vpack.c.b16 %v358, %v357
  %v452 = vpack.c.b16 %v360, %v359
  %v453 = vpack.c.b16 %v362, %v361
  %v454 = vpack.c.b16 %v364, %v363
  %v455 = vpack.c.b16 %v366, %v365
  %v456 = vpack.c.b16 %v368, %v367
  %v457 = vpack.c.b16 %v370, %v369
  %v458 = vpack.c.b16 %v372, %v371
  %v459 = vpack.c.b16 %v374, %v373
  %v460 = vpack.c.b16 %v376, %v375
  %v461 = vpack.c.b16 %v378, %v377
  %v462 = vpack.c.b16 %v380, %v379
  %v463 = vpack.c.b16 %v382, %v381
  %v464 = vpack.c.b16 %v384, %v383
  %v465 = vpack.c.b16 %v386, %v385
  %v466 = vpack.c.b16 %v388, %v387
  %v467 = vpack.c.b16 %v390, %v389
  %v468 = vpack.c.b16 %v392, %v391
  %v469 = vpack.c.b16 %v394, %v393
  %v470 = vpack.c.b16 %v396, %v395
  %v471 = vpack.c.b16 %v398, %v397
  %v472 = vpack.c.b16 %v400, %v399
  %v473 = vpack.c.b16 %v402, %v401
  %v474 = vpack.c.b16 %v404, %v403
  %v475 = vpack.c.b16 %v406, %v405
  %v476 = vpack.c.b16 %v408, %v407
  %v477 = vpack.c.b16 %v410, %v409
  %v478 = vpack.c.b16 %v412, %v411
  %v479 = vpack.c.b16 %v414, %v413
  %v480 = vpack.c.b16 %v416, %v415
  %v483 = vunpack.c.l.b16 %v155
  %v484 = vunpack.c.l.b16 %v156
  %v485 = vpack.c.b16 %v484, %v483
  %vm487 = vcmask 130048
  %v489 = vsel %vm487, %v417, 0
  %v492 = vsel %vm487, %v418, 0
  %v495 = vsel %vm487, %v419, 0
  %v498 = vsel %vm487, %v420, 0
  %v501 = vsel %vm487, %v421, 0
  %v504 = vsel %vm487, %v422, 0
  %v507 = vsel %vm487, %v423, 0
  %v510 = vsel %vm487, %v424, 0
  %v513 = vsel %vm487, %v425, 0
  %v516 = vsel %vm487, %v426, 0
  %v519 = vsel %vm487, %v427, 0
  %v522 = vsel %vm487, %v428, 0
  %v525 = vsel %vm487, %v429, 0
  %v528 = vsel %vm487, %v430, 0
  %v531 = vsel %vm487, %v431, 0
  %v534 = vsel %vm487, %v432, 0
  %v537 = vsel %vm487, %v433, 0
  %v540 = vsel %vm487, %v434, 0
  %v543 = vsel %vm487, %v435, 0
  %v546 = vsel %vm487, %v436, 0
  %v549 = vsel %vm487, %v437, 0
  %v552 = vsel %vm487, %v438, 0
  %v555 = vsel %vm487, %v439, 0
  %v558 = vsel %vm487, %v440, 0
  %v561 = vsel %vm487, %v441, 0
  %v564 = vsel %vm487, %v442, 0
  %v567 = vsel %vm487, %v443, 0
  %v570 = vsel %vm487, %v444, 0
  %v573 = vsel %vm487, %v445, 0
  %v576 = vsel %vm487, %v446, 0
  %v579 = vsel %vm487, %v447, 0
  %v582 = vsel %vm487, %v448, 0
  %v585 = vsel %vm487, %v449, 0
  %v588 = vsel %vm487, %v450, 0
  %v591 = vsel %vm487, %v451, 0
  %v594 = vsel %vm487, %v452, 0
  %v597 = vsel %vm487, %v453, 0
  %v600 = vsel %vm487, %v454, 0
  %v603 = vsel %vm487, %v455, 0
  %v606 = vsel %vm487, %v456, 0
  %v609 = vsel %vm487, %v457, 0
  %v612 = vsel %vm487, %v458, 0
  %v615 = vsel %vm487, %v459, 0
  %v618 = vsel %vm487, %v460, 0
  %v621 = vsel %vm487, %v461, 0
  %v624 = vsel %vm487, %v462, 0
  %v627 = vsel %vm487, %v463, 0
  %v630 = vsel %vm487, %v464, 0
  %v633 = vsel %vm487, %v465, 0
  %v636 = vsel %vm487, %v466, 0
  %v639 = vsel %vm487, %v467, 0
  %v642 = vsel %vm487, %v468, 0
  %v645 = vsel %vm487, %v469, 0
  %v648 = vsel %vm487, %v470, 0
  %v651 = vsel %vm487, %v471, 0
  %v654 = vsel %vm487, %v472, 0
  %v657 = vsel %vm487, %v473, 0
  %v660 = vsel %vm487, %v474, 0
  %v663 = vsel %vm487, %v475, 0
  %v666 = vsel %vm487, %v476, 0
  %v669 = vsel %vm487, %v477, 0
  %v672 = vsel %vm487, %v478, 0
  %v675 = vsel %vm487, %v479, 0
  %v678 = vsel %vm487, %v480, 0
  %680 = vmatpush.bf16.msra.mxu0 0
  %681 = vmatpush.bf16.msra.mxu0 0
  %682 = vmatpush.bf16.msra.mxu0 0
  %683 = vmatpush.bf16.msra.mxu0 0
  %684 = vmatpush.bf16.msra.mxu0 0
  %685 = vmatpush.bf16.msra.mxu0 0
  %686 = vmatpush.bf16.msra.mxu0 0
  %687 = vmatpush.bf16.msra.mxu0 %v485
  %688 = vmatmul.bf16.gmra.mxu0 %v489
  %v689 = vpop.f32.mrf.mxu0
  %v690 = vadd.f32 %v159, %v689
  %v691 = vpop.f32.mrf.mxu0
  %v692 = vadd.f32 %v159, %v691
  %693 = vmatmul.bf16.gmra.mxu0 %v492
  %v694 = vpop.f32.mrf.mxu0
  %v695 = vadd.f32 %v159, %v694
  %v696 = vpop.f32.mrf.mxu0
  %v697 = vadd.f32 %v159, %v696
  %698 = vmatmul.bf16.gmra.mxu0 %v495
  %v699 = vpop.f32.mrf.mxu0
  %v700 = vadd.f32 %v159, %v699
  %v701 = vpop.f32.mrf.mxu0
  %v702 = vadd.f32 %v159, %v701
  %703 = vmatmul.bf16.gmra.mxu0 %v498
  %v704 = vpop.f32.mrf.mxu0
  %v705 = vadd.f32 %v159, %v704
  %v706 = vpop.f32.mrf.mxu0
  %v707 = vadd.f32 %v159, %v706
  %708 = vmatmul.bf16.gmra.mxu0 %v501
  %v709 = vpop.f32.mrf.mxu0
  %v710 = vadd.f32 %v159, %v709
  %v711 = vpop.f32.mrf.mxu0
  %v712 = vadd.f32 %v159, %v711
  %713 = vmatmul.bf16.gmra.mxu0 %v504
  %v714 = vpop.f32.mrf.mxu0
  %v715 = vadd.f32 %v159, %v714
  %v716 = vpop.f32.mrf.mxu0
  %v717 = vadd.f32 %v159, %v716
  %718 = vmatmul.bf16.gmra.mxu0 %v507
  %v719 = vpop.f32.mrf.mxu0
  %v720 = vadd.f32 %v159, %v719
  %v721 = vpop.f32.mrf.mxu0
  %v722 = vadd.f32 %v159, %v721
  %723 = vmatmul.bf16.gmra.mxu0 %v510
  %v724 = vpop.f32.mrf.mxu0
  %v725 = vadd.f32 %v159, %v724
  %v726 = vpop.f32.mrf.mxu0
  %v727 = vadd.f32 %v159, %v726
  %728 = vmatmul.bf16.gmra.mxu0 %v513
  %v729 = vpop.f32.mrf.mxu0
  %v730 = vadd.f32 %v159, %v729
  %v731 = vpop.f32.mrf.mxu0
  %v732 = vadd.f32 %v159, %v731
  %733 = vmatmul.bf16.gmra.mxu0 %v516
  %v734 = vpop.f32.mrf.mxu0
  %v735 = vadd.f32 %v159, %v734
  %v736 = vpop.f32.mrf.mxu0
  %v737 = vadd.f32 %v159, %v736
  %738 = vmatmul.bf16.gmra.mxu0 %v519
  %v739 = vpop.f32.mrf.mxu0
  %v740 = vadd.f32 %v159, %v739
  %v741 = vpop.f32.mrf.mxu0
  %v742 = vadd.f32 %v159, %v741
  %743 = vmatmul.bf16.gmra.mxu0 %v522
  %v744 = vpop.f32.mrf.mxu0
  %v745 = vadd.f32 %v159, %v744
  %v746 = vpop.f32.mrf.mxu0
  %v747 = vadd.f32 %v159, %v746
  %748 = vmatmul.bf16.gmra.mxu0 %v525
  %v749 = vpop.f32.mrf.mxu0
  %v750 = vadd.f32 %v159, %v749
  %v751 = vpop.f32.mrf.mxu0
  %v752 = vadd.f32 %v159, %v751
  %753 = vmatmul.bf16.gmra.mxu0 %v528
  %v754 = vpop.f32.mrf.mxu0
  %v755 = vadd.f32 %v159, %v754
  %v756 = vpop.f32.mrf.mxu0
  %v757 = vadd.f32 %v159, %v756
  %758 = vmatmul.bf16.gmra.mxu0 %v531
  %v759 = vpop.f32.mrf.mxu0
  %v760 = vadd.f32 %v159, %v759
  %v761 = vpop.f32.mrf.mxu0
  %v762 = vadd.f32 %v159, %v761
  %763 = vmatmul.bf16.gmra.mxu0 %v534
  %v764 = vpop.f32.mrf.mxu0
  %v765 = vadd.f32 %v159, %v764
  %v766 = vpop.f32.mrf.mxu0
  %v767 = vadd.f32 %v159, %v766
  %768 = vmatmul.bf16.gmra.mxu0 %v537
  %v769 = vpop.f32.mrf.mxu0
  %v770 = vadd.f32 %v159, %v769
  %v771 = vpop.f32.mrf.mxu0
  %v772 = vadd.f32 %v159, %v771
  %773 = vmatmul.bf16.gmra.mxu0 %v540
  %v774 = vpop.f32.mrf.mxu0
  %v775 = vadd.f32 %v159, %v774
  %v776 = vpop.f32.mrf.mxu0
  %v777 = vadd.f32 %v159, %v776
  %778 = vmatmul.bf16.gmra.mxu0 %v543
  %v779 = vpop.f32.mrf.mxu0
  %v780 = vadd.f32 %v159, %v779
  %v781 = vpop.f32.mrf.mxu0
  %v782 = vadd.f32 %v159, %v781
  %783 = vmatmul.bf16.gmra.mxu0 %v546
  %v784 = vpop.f32.mrf.mxu0
  %v785 = vadd.f32 %v159, %v784
  %v786 = vpop.f32.mrf.mxu0
  %v787 = vadd.f32 %v159, %v786
  %788 = vmatmul.bf16.gmra.mxu0 %v549
  %v789 = vpop.f32.mrf.mxu0
  %v790 = vadd.f32 %v159, %v789
  %v791 = vpop.f32.mrf.mxu0
  %v792 = vadd.f32 %v159, %v791
  %793 = vmatmul.bf16.gmra.mxu0 %v552
  %v794 = vpop.f32.mrf.mxu0
  %v795 = vadd.f32 %v159, %v794
  %v796 = vpop.f32.mrf.mxu0
  %v797 = vadd.f32 %v159, %v796
  %798 = vmatmul.bf16.gmra.mxu0 %v555
  %v799 = vpop.f32.mrf.mxu0
  %v800 = vadd.f32 %v159, %v799
  %v801 = vpop.f32.mrf.mxu0
  %v802 = vadd.f32 %v159, %v801
  %803 = vmatmul.bf16.gmra.mxu0 %v558
  %v804 = vpop.f32.mrf.mxu0
  %v805 = vadd.f32 %v159, %v804
  %v806 = vpop.f32.mrf.mxu0
  %v807 = vadd.f32 %v159, %v806
  %808 = vmatmul.bf16.gmra.mxu0 %v561
  %v809 = vpop.f32.mrf.mxu0
  %v810 = vadd.f32 %v159, %v809
  %v811 = vpop.f32.mrf.mxu0
  %v812 = vadd.f32 %v159, %v811
  %813 = vmatmul.bf16.gmra.mxu0 %v564
  %v814 = vpop.f32.mrf.mxu0
  %v815 = vadd.f32 %v159, %v814
  %v816 = vpop.f32.mrf.mxu0
  %v817 = vadd.f32 %v159, %v816
  %818 = vmatmul.bf16.gmra.mxu0 %v567
  %v819 = vpop.f32.mrf.mxu0
  %v820 = vadd.f32 %v159, %v819
  %v821 = vpop.f32.mrf.mxu0
  %v822 = vadd.f32 %v159, %v821
  %823 = vmatmul.bf16.gmra.mxu0 %v570
  %v824 = vpop.f32.mrf.mxu0
  %v825 = vadd.f32 %v159, %v824
  %v826 = vpop.f32.mrf.mxu0
  %v827 = vadd.f32 %v159, %v826
  %828 = vmatmul.bf16.gmra.mxu0 %v573
  %v829 = vpop.f32.mrf.mxu0
  %v830 = vadd.f32 %v159, %v829
  %v831 = vpop.f32.mrf.mxu0
  %v832 = vadd.f32 %v159, %v831
  %833 = vmatmul.bf16.gmra.mxu0 %v576
  %v834 = vpop.f32.mrf.mxu0
  %v835 = vadd.f32 %v159, %v834
  %v836 = vpop.f32.mrf.mxu0
  %v837 = vadd.f32 %v159, %v836
  %838 = vmatmul.bf16.gmra.mxu0 %v579
  %v839 = vpop.f32.mrf.mxu0
  %v840 = vadd.f32 %v159, %v839
  %v841 = vpop.f32.mrf.mxu0
  %v842 = vadd.f32 %v159, %v841
  %843 = vmatmul.bf16.gmra.mxu0 %v582
  %v844 = vpop.f32.mrf.mxu0
  %v845 = vadd.f32 %v159, %v844
  %v846 = vpop.f32.mrf.mxu0
  %v847 = vadd.f32 %v159, %v846
  %848 = vmatmul.bf16.gmra.mxu0 %v585
  %v849 = vpop.f32.mrf.mxu0
  %v850 = vadd.f32 %v159, %v849
  %v851 = vpop.f32.mrf.mxu0
  %v852 = vadd.f32 %v159, %v851
  %853 = vmatmul.bf16.gmra.mxu0 %v588
  %v854 = vpop.f32.mrf.mxu0
  %v855 = vadd.f32 %v159, %v854
  %v856 = vpop.f32.mrf.mxu0
  %v857 = vadd.f32 %v159, %v856
  %858 = vmatmul.bf16.gmra.mxu0 %v591
  %v859 = vpop.f32.mrf.mxu0
  %v860 = vadd.f32 %v159, %v859
  %v861 = vpop.f32.mrf.mxu0
  %v862 = vadd.f32 %v159, %v861
  %863 = vmatmul.bf16.gmra.mxu0 %v594
  %v864 = vpop.f32.mrf.mxu0
  %v865 = vadd.f32 %v159, %v864
  %v866 = vpop.f32.mrf.mxu0
  %v867 = vadd.f32 %v159, %v866
  %868 = vmatmul.bf16.gmra.mxu0 %v597
  %v869 = vpop.f32.mrf.mxu0
  %v870 = vadd.f32 %v159, %v869
  %v871 = vpop.f32.mrf.mxu0
  %v872 = vadd.f32 %v159, %v871
  %873 = vmatmul.bf16.gmra.mxu0 %v600
  %v874 = vpop.f32.mrf.mxu0
  %v875 = vadd.f32 %v159, %v874
  %v876 = vpop.f32.mrf.mxu0
  %v877 = vadd.f32 %v159, %v876
  %878 = vmatmul.bf16.gmra.mxu0 %v603
  %v879 = vpop.f32.mrf.mxu0
  %v880 = vadd.f32 %v159, %v879
  %v881 = vpop.f32.mrf.mxu0
  %v882 = vadd.f32 %v159, %v881
  %883 = vmatmul.bf16.gmra.mxu0 %v606
  %v884 = vpop.f32.mrf.mxu0
  %v885 = vadd.f32 %v159, %v884
  %v886 = vpop.f32.mrf.mxu0
  %v887 = vadd.f32 %v159, %v886
  %888 = vmatmul.bf16.gmra.mxu0 %v609
  %v889 = vpop.f32.mrf.mxu0
  %v890 = vadd.f32 %v159, %v889
  %v891 = vpop.f32.mrf.mxu0
  %v892 = vadd.f32 %v159, %v891
  %893 = vmatmul.bf16.gmra.mxu0 %v612
  %v894 = vpop.f32.mrf.mxu0
  %v895 = vadd.f32 %v159, %v894
  %v896 = vpop.f32.mrf.mxu0
  %v897 = vadd.f32 %v159, %v896
  %898 = vmatmul.bf16.gmra.mxu0 %v615
  %v899 = vpop.f32.mrf.mxu0
  %v900 = vadd.f32 %v159, %v899
  %v901 = vpop.f32.mrf.mxu0
  %v902 = vadd.f32 %v159, %v901
  %903 = vmatmul.bf16.gmra.mxu0 %v618
  %v904 = vpop.f32.mrf.mxu0
  %v905 = vadd.f32 %v159, %v904
  %v906 = vpop.f32.mrf.mxu0
  %v907 = vadd.f32 %v159, %v906
  %908 = vmatmul.bf16.gmra.mxu0 %v621
  %v909 = vpop.f32.mrf.mxu0
  %v910 = vadd.f32 %v159, %v909
  %v911 = vpop.f32.mrf.mxu0
  %v912 = vadd.f32 %v159, %v911
  %913 = vmatmul.bf16.gmra.mxu0 %v624
  %v914 = vpop.f32.mrf.mxu0
  %v915 = vadd.f32 %v159, %v914
  %v916 = vpop.f32.mrf.mxu0
  %v917 = vadd.f32 %v159, %v916
  %918 = vmatmul.bf16.gmra.mxu0 %v627
  %v919 = vpop.f32.mrf.mxu0
  %v920 = vadd.f32 %v159, %v919
  %v921 = vpop.f32.mrf.mxu0
  %v922 = vadd.f32 %v159, %v921
  %923 = vmatmul.bf16.gmra.mxu0 %v630
  %v924 = vpop.f32.mrf.mxu0
  %v925 = vadd.f32 %v159, %v924
  %v926 = vpop.f32.mrf.mxu0
  %v927 = vadd.f32 %v159, %v926
  %928 = vmatmul.bf16.gmra.mxu0 %v633
  %v929 = vpop.f32.mrf.mxu0
  %v930 = vadd.f32 %v159, %v929
  %v931 = vpop.f32.mrf.mxu0
  %v932 = vadd.f32 %v159, %v931
  %933 = vmatmul.bf16.gmra.mxu0 %v636
  %v934 = vpop.f32.mrf.mxu0
  %v935 = vadd.f32 %v159, %v934
  %v936 = vpop.f32.mrf.mxu0
  %v937 = vadd.f32 %v159, %v936
  %938 = vmatmul.bf16.gmra.mxu0 %v639
  %v939 = vpop.f32.mrf.mxu0
  %v940 = vadd.f32 %v159, %v939
  %v941 = vpop.f32.mrf.mxu0
  %v942 = vadd.f32 %v159, %v941
  %943 = vmatmul.bf16.gmra.mxu0 %v642
  %v944 = vpop.f32.mrf.mxu0
  %v945 = vadd.f32 %v159, %v944
  %v946 = vpop.f32.mrf.mxu0
  %v947 = vadd.f32 %v159, %v946
  %948 = vmatmul.bf16.gmra.mxu0 %v645
  %v949 = vpop.f32.mrf.mxu0
  %v950 = vadd.f32 %v159, %v949
  %v951 = vpop.f32.mrf.mxu0
  %v952 = vadd.f32 %v159, %v951
  %953 = vmatmul.bf16.gmra.mxu0 %v648
  %v954 = vpop.f32.mrf.mxu0
  %v955 = vadd.f32 %v159, %v954
  %v956 = vpop.f32.mrf.mxu0
  %v957 = vadd.f32 %v159, %v956
  %958 = vmatmul.bf16.gmra.mxu0 %v651
  %v959 = vpop.f32.mrf.mxu0
  %v960 = vadd.f32 %v159, %v959
  %v961 = vpop.f32.mrf.mxu0
  %v962 = vadd.f32 %v159, %v961
  %963 = vmatmul.bf16.gmra.mxu0 %v654
  %v964 = vpop.f32.mrf.mxu0
  %v965 = vadd.f32 %v159, %v964
  %v966 = vpop.f32.mrf.mxu0
  %v967 = vadd.f32 %v159, %v966
  %968 = vmatmul.bf16.gmra.mxu0 %v657
  %v969 = vpop.f32.mrf.mxu0
  %v970 = vadd.f32 %v159, %v969
  %v971 = vpop.f32.mrf.mxu0
  %v972 = vadd.f32 %v159, %v971
  %973 = vmatmul.bf16.gmra.mxu0 %v660
  %v974 = vpop.f32.mrf.mxu0
  %v975 = vadd.f32 %v159, %v974
  %v976 = vpop.f32.mrf.mxu0
  %v977 = vadd.f32 %v159, %v976
  %978 = vmatmul.bf16.gmra.mxu0 %v663
  %v979 = vpop.f32.mrf.mxu0
  %v980 = vadd.f32 %v159, %v979
  %v981 = vpop.f32.mrf.mxu0
  %v982 = vadd.f32 %v159, %v981
  %983 = vmatmul.bf16.gmra.mxu0 %v666
  %v984 = vpop.f32.mrf.mxu0
  %v985 = vadd.f32 %v159, %v984
  %v986 = vpop.f32.mrf.mxu0
  %v987 = vadd.f32 %v159, %v986
  %988 = vmatmul.bf16.gmra.mxu0 %v669
  %v989 = vpop.f32.mrf.mxu0
  %v990 = vadd.f32 %v159, %v989
  %v991 = vpop.f32.mrf.mxu0
  %v992 = vadd.f32 %v159, %v991
  %993 = vmatmul.bf16.gmra.mxu0 %v672
  %v994 = vpop.f32.mrf.mxu0
  %v995 = vadd.f32 %v159, %v994
  %v996 = vpop.f32.mrf.mxu0
  %v997 = vadd.f32 %v159, %v996
  %998 = vmatmul.bf16.gmra.mxu0 %v675
  %v999 = vpop.f32.mrf.mxu0
  %v1000 = vadd.f32 %v159, %v999
  %v1001 = vpop.f32.mrf.mxu0
  %v1002 = vadd.f32 %v159, %v1001
  %1003 = vmatmul.bf16.gmra.mxu0 %v678
  %v1004 = vpop.f32.mrf.mxu0
  %v1005 = vadd.f32 %v159, %v1004
  %v1006 = vpop.f32.mrf.mxu0
  %v1007 = vadd.f32 %v159, %v1006
  %1008 = vdwg.mxu0
  %v1009 = vpack.c.bf16 %v692, %v690
  %v1010 = vpack.c.bf16 %v697, %v695
  %v1011 = vpack.c.bf16 %v702, %v700
  %v1012 = vpack.c.bf16 %v707, %v705
  %v1013 = vpack.c.bf16 %v712, %v710
  %v1014 = vpack.c.bf16 %v717, %v715
  %v1015 = vpack.c.bf16 %v722, %v720
  %v1016 = vpack.c.bf16 %v727, %v725
  %v1017 = vpack.c.bf16 %v732, %v730
  %v1018 = vpack.c.bf16 %v737, %v735
  %v1019 = vpack.c.bf16 %v742, %v740
  %v1020 = vpack.c.bf16 %v747, %v745
  %v1021 = vpack.c.bf16 %v752, %v750
  %v1022 = vpack.c.bf16 %v757, %v755
  %v1023 = vpack.c.bf16 %v762, %v760
  %v1024 = vpack.c.bf16 %v767, %v765
  %v1025 = vpack.c.bf16 %v772, %v770
  %v1026 = vpack.c.bf16 %v777, %v775
  %v1027 = vpack.c.bf16 %v782, %v780
  %v1028 = vpack.c.bf16 %v787, %v785
  %v1029 = vpack.c.bf16 %v792, %v790
  %v1030 = vpack.c.bf16 %v797, %v795
  %v1031 = vpack.c.bf16 %v802, %v800
  %v1032 = vpack.c.bf16 %v807, %v805
  %v1033 = vpack.c.bf16 %v812, %v810
  %v1034 = vpack.c.bf16 %v817, %v815
  %v1035 = vpack.c.bf16 %v822, %v820
  %v1036 = vpack.c.bf16 %v827, %v825
  %v1037 = vpack.c.bf16 %v832, %v830
  %v1038 = vpack.c.bf16 %v837, %v835
  %v1039 = vpack.c.bf16 %v842, %v840
  %v1040 = vpack.c.bf16 %v847, %v845
  %v1041 = vpack.c.bf16 %v852, %v850
  %v1042 = vpack.c.bf16 %v857, %v855
  %v1043 = vpack.c.bf16 %v862, %v860
  %v1044 = vpack.c.bf16 %v867, %v865
  %v1045 = vpack.c.bf16 %v872, %v870
  %v1046 = vpack.c.bf16 %v877, %v875
  %v1047 = vpack.c.bf16 %v882, %v880
  %v1048 = vpack.c.bf16 %v887, %v885
  %v1049 = vpack.c.bf16 %v892, %v890
  %v1050 = vpack.c.bf16 %v897, %v895
  %v1051 = vpack.c.bf16 %v902, %v900
  %v1052 = vpack.c.bf16 %v907, %v905
  %v1053 = vpack.c.bf16 %v912, %v910
  %v1054 = vpack.c.bf16 %v917, %v915
  %v1055 = vpack.c.bf16 %v922, %v920
  %v1056 = vpack.c.bf16 %v927, %v925
  %v1057 = vpack.c.bf16 %v932, %v930
  %v1058 = vpack.c.bf16 %v937, %v935
  %v1059 = vpack.c.bf16 %v942, %v940
  %v1060 = vpack.c.bf16 %v947, %v945
  %v1061 = vpack.c.bf16 %v952, %v950
  %v1062 = vpack.c.bf16 %v957, %v955
  %v1063 = vpack.c.bf16 %v962, %v960
  %v1064 = vpack.c.bf16 %v967, %v965
  %v1065 = vpack.c.bf16 %v972, %v970
  %v1066 = vpack.c.bf16 %v977, %v975
  %v1067 = vpack.c.bf16 %v982, %v980
  %v1068 = vpack.c.bf16 %v987, %v985
  %v1069 = vpack.c.bf16 %v992, %v990
  %v1070 = vpack.c.bf16 %v997, %v995
  %v1071 = vpack.c.bf16 %v1002, %v1000
  %v1072 = vpack.c.bf16 %v1007, %v1005
  %v1073 = vld [vmem:[%s0] sm:$0xff]
  %v1074 = vld [vmem:[%s0 + $0x8] sm:$0xff]
  %v1075 = vld [vmem:[%s0 + $0x10] sm:$0xff]
  %v1076 = vld [vmem:[%s0 + $0x18] sm:$0xff]
  %v1077 = vld [vmem:[%s0 + $0x20] sm:$0xff]
  %v1078 = vld [vmem:[%s0 + $0x28] sm:$0xff]
  %v1079 = vld [vmem:[%s0 + $0x30] sm:$0xff]
  %v1080 = vld [vmem:[%s0 + $0x38] sm:$0xff]
  %v1081 = vld [vmem:[%s0 + $0x40] sm:$0xff]
  %v1082 = vld [vmem:[%s0 + $0x48] sm:$0xff]
  %v1083 = vld [vmem:[%s0 + $0x50] sm:$0xff]
  %v1084 = vld [vmem:[%s0 + $0x58] sm:$0xff]
  %v1085 = vld [vmem:[%s0 + $0x60] sm:$0xff]
  %v1086 = vld [vmem:[%s0 + $0x68] sm:$0xff]
  %v1087 = vld [vmem:[%s0 + $0x70] sm:$0xff]
  %v1088 = vld [vmem:[%s0 + $0x78] sm:$0xff]
  %v1089 = vld [vmem:[%s0 + $0x80] sm:$0xff]
  %v1090 = vld [vmem:[%s0 + $0x88] sm:$0xff]
  %v1091 = vld [vmem:[%s0 + $0x90] sm:$0xff]
  %v1092 = vld [vmem:[%s0 + $0x98] sm:$0xff]
  %v1093 = vld [vmem:[%s0 + $0xa0] sm:$0xff]
  %v1094 = vld [vmem:[%s0 + $0xa8] sm:$0xff]
  %v1095 = vld [vmem:[%s0 + $0xb0] sm:$0xff]
  %v1096 = vld [vmem:[%s0 + $0xb8] sm:$0xff]
  %v1097 = vld [vmem:[%s0 + $0xc0] sm:$0xff]
  %v1098 = vld [vmem:[%s0 + $0xc8] sm:$0xff]
  %v1099 = vld [vmem:[%s0 + $0xd0] sm:$0xff]
  %v1100 = vld [vmem:[%s0 + $0xd8] sm:$0xff]
  %v1101 = vld [vmem:[%s0 + $0xe0] sm:$0xff]
  %v1102 = vld [vmem:[%s0 + $0xe8] sm:$0xff]
  %v1103 = vld [vmem:[%s0 + $0xf0] sm:$0xff]
  %v1104 = vld [vmem:[%s0 + $0xf8] sm:$0xff]
  %v1105 = vld [vmem:[%s0 + $0x100] sm:$0xff]
  %v1106 = vld [vmem:[%s0 + $0x108] sm:$0xff]
  %v1107 = vld [vmem:[%s0 + $0x110] sm:$0xff]
  %v1108 = vld [vmem:[%s0 + $0x118] sm:$0xff]
  %v1109 = vld [vmem:[%s0 + $0x120] sm:$0xff]
  %v1110 = vld [vmem:[%s0 + $0x128] sm:$0xff]
  %v1111 = vld [vmem:[%s0 + $0x130] sm:$0xff]
  %v1112 = vld [vmem:[%s0 + $0x138] sm:$0xff]
  %v1113 = vld [vmem:[%s0 + $0x140] sm:$0xff]
  %v1114 = vld [vmem:[%s0 + $0x148] sm:$0xff]
  %v1115 = vld [vmem:[%s0 + $0x150] sm:$0xff]
  %v1116 = vld [vmem:[%s0 + $0x158] sm:$0xff]
  %v1117 = vld [vmem:[%s0 + $0x160] sm:$0xff]
  %v1118 = vld [vmem:[%s0 + $0x168] sm:$0xff]
  %v1119 = vld [vmem:[%s0 + $0x170] sm:$0xff]
  %v1120 = vld [vmem:[%s0 + $0x178] sm:$0xff]
  %v1121 = vld [vmem:[%s0 + $0x180] sm:$0xff]
  %v1122 = vld [vmem:[%s0 + $0x188] sm:$0xff]
  %v1123 = vld [vmem:[%s0 + $0x190] sm:$0xff]
  %v1124 = vld [vmem:[%s0 + $0x198] sm:$0xff]
  %v1125 = vld [vmem:[%s0 + $0x1a0] sm:$0xff]
  %v1126 = vld [vmem:[%s0 + $0x1a8] sm:$0xff]
  %v1127 = vld [vmem:[%s0 + $0x1b0] sm:$0xff]
  %v1128 = vld [vmem:[%s0 + $0x1b8] sm:$0xff]
  %v1129 = vld [vmem:[%s0 + $0x1c0] sm:$0xff]
  %v1130 = vld [vmem:[%s0 + $0x1c8] sm:$0xff]
  %v1131 = vld [vmem:[%s0 + $0x1d0] sm:$0xff]
  %v1132 = vld [vmem:[%s0 + $0x1d8] sm:$0xff]
  %v1133 = vld [vmem:[%s0 + $0x1e0] sm:$0xff]
  %v1134 = vld [vmem:[%s0 + $0x1e8] sm:$0xff]
  %v1135 = vld [vmem:[%s0 + $0x1f0] sm:$0xff]
  %v1136 = vld [vmem:[%s0 + $0x1f8] sm:$0xff]
  %v1137 = vld [vmem:[%s0 + $0x200] sm:$0xff]
  %v1138 = vld [vmem:[%s0 + $0x208] sm:$0xff]
  %v1139 = vld [vmem:[%s0 + $0x210] sm:$0xff]
  %v1140 = vld [vmem:[%s0 + $0x218] sm:$0xff]
  %v1141 = vld [vmem:[%s0 + $0x220] sm:$0xff]
  %v1142 = vld [vmem:[%s0 + $0x228] sm:$0xff]
  %v1143 = vld [vmem:[%s0 + $0x230] sm:$0xff]
  %v1144 = vld [vmem:[%s0 + $0x238] sm:$0xff]
  %v1145 = vld [vmem:[%s0 + $0x240] sm:$0xff]
  %v1146 = vld [vmem:[%s0 + $0x248] sm:$0xff]
  %v1147 = vld [vmem:[%s0 + $0x250] sm:$0xff]
  %v1148 = vld [vmem:[%s0 + $0x258] sm:$0xff]
  %v1149 = vld [vmem:[%s0 + $0x260] sm:$0xff]
  %v1150 = vld [vmem:[%s0 + $0x268] sm:$0xff]
  %v1151 = vld [vmem:[%s0 + $0x270] sm:$0xff]
  %v1152 = vld [vmem:[%s0 + $0x278] sm:$0xff]
  %v1153 = vld [vmem:[%s0 + $0x280] sm:$0xff]
  %v1154 = vld [vmem:[%s0 + $0x288] sm:$0xff]
  %v1155 = vld [vmem:[%s0 + $0x290] sm:$0xff]
  %v1156 = vld [vmem:[%s0 + $0x298] sm:$0xff]
  %v1157 = vld [vmem:[%s0 + $0x2a0] sm:$0xff]
  %v1158 = vld [vmem:[%s0 + $0x2a8] sm:$0xff]
  %v1159 = vld [vmem:[%s0 + $0x2b0] sm:$0xff]
  %v1160 = vld [vmem:[%s0 + $0x2b8] sm:$0xff]
  %v1161 = vld [vmem:[%s0 + $0x2c0] sm:$0xff]
  %v1162 = vld [vmem:[%s0 + $0x2c8] sm:$0xff]
  %v1163 = vld [vmem:[%s0 + $0x2d0] sm:$0xff]
  %v1164 = vld [vmem:[%s0 + $0x2d8] sm:$0xff]
  %v1165 = vld [vmem:[%s0 + $0x2e0] sm:$0xff]
  %v1166 = vld [vmem:[%s0 + $0x2e8] sm:$0xff]
  %v1167 = vld [vmem:[%s0 + $0x2f0] sm:$0xff]
  %v1168 = vld [vmem:[%s0 + $0x2f8] sm:$0xff]
  %v1169 = vld [vmem:[%s0 + $0x300] sm:$0xff]
  %v1170 = vld [vmem:[%s0 + $0x308] sm:$0xff]
  %v1171 = vld [vmem:[%s0 + $0x310] sm:$0xff]
  %v1172 = vld [vmem:[%s0 + $0x318] sm:$0xff]
  %v1173 = vld [vmem:[%s0 + $0x320] sm:$0xff]
  %v1174 = vld [vmem:[%s0 + $0x328] sm:$0xff]
  %v1175 = vld [vmem:[%s0 + $0x330] sm:$0xff]
  %v1176 = vld [vmem:[%s0 + $0x338] sm:$0xff]
  %v1177 = vld [vmem:[%s0 + $0x340] sm:$0xff]
  %v1178 = vld [vmem:[%s0 + $0x348] sm:$0xff]
  %v1179 = vld [vmem:[%s0 + $0x350] sm:$0xff]
  %v1180 = vld [vmem:[%s0 + $0x358] sm:$0xff]
  %v1181 = vld [vmem:[%s0 + $0x360] sm:$0xff]
  %v1182 = vld [vmem:[%s0 + $0x368] sm:$0xff]
  %v1183 = vld [vmem:[%s0 + $0x370] sm:$0xff]
  %v1184 = vld [vmem:[%s0 + $0x378] sm:$0xff]
  %v1185 = vld [vmem:[%s0 + $0x380] sm:$0xff]
  %v1186 = vld [vmem:[%s0 + $0x388] sm:$0xff]
  %v1187 = vld [vmem:[%s0 + $0x390] sm:$0xff]
  %v1188 = vld [vmem:[%s0 + $0x398] sm:$0xff]
  %v1189 = vld [vmem:[%s0 + $0x3a0] sm:$0xff]
  %v1190 = vld [vmem:[%s0 + $0x3a8] sm:$0xff]
  %v1191 = vld [vmem:[%s0 + $0x3b0] sm:$0xff]
  %v1192 = vld [vmem:[%s0 + $0x3b8] sm:$0xff]
  %v1193 = vld [vmem:[%s0 + $0x3c0] sm:$0xff]
  %v1194 = vld [vmem:[%s0 + $0x3c8] sm:$0xff]
  %v1195 = vld [vmem:[%s0 + $0x3d0] sm:$0xff]
  %v1196 = vld [vmem:[%s0 + $0x3d8] sm:$0xff]
  %v1197 = vld [vmem:[%s0 + $0x3e0] sm:$0xff]
  %v1198 = vld [vmem:[%s0 + $0x3e8] sm:$0xff]
  %v1199 = vld [vmem:[%s0 + $0x3f0] sm:$0xff]
  %v1200 = vld [vmem:[%s0 + $0x3f8] sm:$0xff]
  %v1201 = vld [vmem:[%s0 + $0x400] sm:$0xff]
  %v1202 = vld [vmem:[%s0 + $0x408] sm:$0xff]
  %v1203 = vld [vmem:[%s0 + $0x410] sm:$0xff]
  %v1204 = vld [vmem:[%s0 + $0x418] sm:$0xff]
  %v1205 = vld [vmem:[%s0 + $0x420] sm:$0xff]
  %v1206 = vld [vmem:[%s0 + $0x428] sm:$0xff]
  %v1207 = vld [vmem:[%s0 + $0x430] sm:$0xff]
  %v1208 = vld [vmem:[%s0 + $0x438] sm:$0xff]
  %v1209 = vld [vmem:[%s0 + $0x440] sm:$0xff]
  %v1210 = vld [vmem:[%s0 + $0x448] sm:$0xff]
  %v1211 = vld [vmem:[%s0 + $0x450] sm:$0xff]
  %v1212 = vld [vmem:[%s0 + $0x458] sm:$0xff]
  %v1213 = vld [vmem:[%s0 + $0x460] sm:$0xff]
  %v1214 = vld [vmem:[%s0 + $0x468] sm:$0xff]
  %v1215 = vld [vmem:[%s0 + $0x470] sm:$0xff]
  %v1216 = vld [vmem:[%s0 + $0x478] sm:$0xff]
  %v1217 = vld [vmem:[%s0 + $0x480] sm:$0xff]
  %v1218 = vld [vmem:[%s0 + $0x488] sm:$0xff]
  %v1219 = vld [vmem:[%s0 + $0x490] sm:$0xff]
  %v1220 = vld [vmem:[%s0 + $0x498] sm:$0xff]
  %v1221 = vld [vmem:[%s0 + $0x4a0] sm:$0xff]
  %v1222 = vld [vmem:[%s0 + $0x4a8] sm:$0xff]
  %v1223 = vld [vmem:[%s0 + $0x4b0] sm:$0xff]
  %v1224 = vld [vmem:[%s0 + $0x4b8] sm:$0xff]
  %v1225 = vld [vmem:[%s0 + $0x4c0] sm:$0xff]
  %v1226 = vld [vmem:[%s0 + $0x4c8] sm:$0xff]
  %v1227 = vld [vmem:[%s0 + $0x4d0] sm:$0xff]
  %v1228 = vld [vmem:[%s0 + $0x4d8] sm:$0xff]
  %v1229 = vld [vmem:[%s0 + $0x4e0] sm:$0xff]
  %v1230 = vld [vmem:[%s0 + $0x4e8] sm:$0xff]
  %v1231 = vld [vmem:[%s0 + $0x4f0] sm:$0xff]
  %v1232 = vld [vmem:[%s0 + $0x4f8] sm:$0xff]
  %v1233 = vld [vmem:[%s0 + $0x500] sm:$0xff]
  %v1234 = vld [vmem:[%s0 + $0x508] sm:$0xff]
  %v1235 = vld [vmem:[%s0 + $0x510] sm:$0xff]
  %v1236 = vld [vmem:[%s0 + $0x518] sm:$0xff]
  %v1237 = vld [vmem:[%s0 + $0x520] sm:$0xff]
  %v1238 = vld [vmem:[%s0 + $0x528] sm:$0xff]
  %v1239 = vld [vmem:[%s0 + $0x530] sm:$0xff]
  %v1240 = vld [vmem:[%s0 + $0x538] sm:$0xff]
  %v1241 = vld [vmem:[%s0 + $0x540] sm:$0xff]
  %v1242 = vld [vmem:[%s0 + $0x548] sm:$0xff]
  %v1243 = vld [vmem:[%s0 + $0x550] sm:$0xff]
  %v1244 = vld [vmem:[%s0 + $0x558] sm:$0xff]
  %v1245 = vld [vmem:[%s0 + $0x560] sm:$0xff]
  %v1246 = vld [vmem:[%s0 + $0x568] sm:$0xff]
  %v1247 = vld [vmem:[%s0 + $0x570] sm:$0xff]
  %v1248 = vld [vmem:[%s0 + $0x578] sm:$0xff]
  %v1249 = vld [vmem:[%s0 + $0x580] sm:$0xff]
  %v1250 = vld [vmem:[%s0 + $0x588] sm:$0xff]
  %v1251 = vld [vmem:[%s0 + $0x590] sm:$0xff]
  %v1252 = vld [vmem:[%s0 + $0x598] sm:$0xff]
  %v1253 = vld [vmem:[%s0 + $0x5a0] sm:$0xff]
  %v1254 = vld [vmem:[%s0 + $0x5a8] sm:$0xff]
  %v1255 = vld [vmem:[%s0 + $0x5b0] sm:$0xff]
  %v1256 = vld [vmem:[%s0 + $0x5b8] sm:$0xff]
  %v1257 = vld [vmem:[%s0 + $0x5c0] sm:$0xff]
  %v1258 = vld [vmem:[%s0 + $0x5c8] sm:$0xff]
  %v1259 = vld [vmem:[%s0 + $0x5d0] sm:$0xff]
  %v1260 = vld [vmem:[%s0 + $0x5d8] sm:$0xff]
  %v1261 = vld [vmem:[%s0 + $0x5e0] sm:$0xff]
  %v1262 = vld [vmem:[%s0 + $0x5e8] sm:$0xff]
  %v1263 = vld [vmem:[%s0 + $0x5f0] sm:$0xff]
  %v1264 = vld [vmem:[%s0 + $0x5f8] sm:$0xff]
  %v1265 = vld [vmem:[%s0 + $0x600] sm:$0xff]
  %v1266 = vld [vmem:[%s0 + $0x608] sm:$0xff]
  %v1267 = vld [vmem:[%s0 + $0x610] sm:$0xff]
  %v1268 = vld [vmem:[%s0 + $0x618] sm:$0xff]
  %v1269 = vld [vmem:[%s0 + $0x620] sm:$0xff]
  %v1270 = vld [vmem:[%s0 + $0x628] sm:$0xff]
  %v1271 = vld [vmem:[%s0 + $0x630] sm:$0xff]
  %v1272 = vld [vmem:[%s0 + $0x638] sm:$0xff]
  %v1273 = vld [vmem:[%s0 + $0x640] sm:$0xff]
  %v1274 = vld [vmem:[%s0 + $0x648] sm:$0xff]
  %v1275 = vld [vmem:[%s0 + $0x650] sm:$0xff]
  %v1276 = vld [vmem:[%s0 + $0x658] sm:$0xff]
  %v1277 = vld [vmem:[%s0 + $0x660] sm:$0xff]
  %v1278 = vld [vmem:[%s0 + $0x668] sm:$0xff]
  %v1279 = vld [vmem:[%s0 + $0x670] sm:$0xff]
  %v1280 = vld [vmem:[%s0 + $0x678] sm:$0xff]
  %v1281 = vld [vmem:[%s0 + $0x680] sm:$0xff]
  %v1282 = vld [vmem:[%s0 + $0x688] sm:$0xff]
  %v1283 = vld [vmem:[%s0 + $0x690] sm:$0xff]
  %v1284 = vld [vmem:[%s0 + $0x698] sm:$0xff]
  %v1285 = vld [vmem:[%s0 + $0x6a0] sm:$0xff]
  %v1286 = vld [vmem:[%s0 + $0x6a8] sm:$0xff]
  %v1287 = vld [vmem:[%s0 + $0x6b0] sm:$0xff]
  %v1288 = vld [vmem:[%s0 + $0x6b8] sm:$0xff]
  %v1289 = vld [vmem:[%s0 + $0x6c0] sm:$0xff]
  %v1290 = vld [vmem:[%s0 + $0x6c8] sm:$0xff]
  %v1291 = vld [vmem:[%s0 + $0x6d0] sm:$0xff]
  %v1292 = vld [vmem:[%s0 + $0x6d8] sm:$0xff]
  %v1293 = vld [vmem:[%s0 + $0x6e0] sm:$0xff]
  %v1294 = vld [vmem:[%s0 + $0x6e8] sm:$0xff]
  %v1295 = vld [vmem:[%s0 + $0x6f0] sm:$0xff]
  %v1296 = vld [vmem:[%s0 + $0x6f8] sm:$0xff]
  %v1297 = vld [vmem:[%s0 + $0x700] sm:$0xff]
  %v1298 = vld [vmem:[%s0 + $0x708] sm:$0xff]
  %v1299 = vld [vmem:[%s0 + $0x710] sm:$0xff]
  %v1300 = vld [vmem:[%s0 + $0x718] sm:$0xff]
  %v1301 = vld [vmem:[%s0 + $0x720] sm:$0xff]
  %v1302 = vld [vmem:[%s0 + $0x728] sm:$0xff]
  %v1303 = vld [vmem:[%s0 + $0x730] sm:$0xff]
  %v1304 = vld [vmem:[%s0 + $0x738] sm:$0xff]
  %v1305 = vld [vmem:[%s0 + $0x740] sm:$0xff]
  %v1306 = vld [vmem:[%s0 + $0x748] sm:$0xff]
  %v1307 = vld [vmem:[%s0 + $0x750] sm:$0xff]
  %v1308 = vld [vmem:[%s0 + $0x758] sm:$0xff]
  %v1309 = vld [vmem:[%s0 + $0x760] sm:$0xff]
  %v1310 = vld [vmem:[%s0 + $0x768] sm:$0xff]
  %v1311 = vld [vmem:[%s0 + $0x770] sm:$0xff]
  %v1312 = vld [vmem:[%s0 + $0x778] sm:$0xff]
  %v1313 = vld [vmem:[%s0 + $0x780] sm:$0xff]
  %v1314 = vld [vmem:[%s0 + $0x788] sm:$0xff]
  %v1315 = vld [vmem:[%s0 + $0x790] sm:$0xff]
  %v1316 = vld [vmem:[%s0 + $0x798] sm:$0xff]
  %v1317 = vld [vmem:[%s0 + $0x7a0] sm:$0xff]
  %v1318 = vld [vmem:[%s0 + $0x7a8] sm:$0xff]
  %v1319 = vld [vmem:[%s0 + $0x7b0] sm:$0xff]
  %v1320 = vld [vmem:[%s0 + $0x7b8] sm:$0xff]
  %v1321 = vld [vmem:[%s0 + $0x7c0] sm:$0xff]
  %v1322 = vld [vmem:[%s0 + $0x7c8] sm:$0xff]
  %v1323 = vld [vmem:[%s0 + $0x7d0] sm:$0xff]
  %v1324 = vld [vmem:[%s0 + $0x7d8] sm:$0xff]
  %v1325 = vld [vmem:[%s0 + $0x7e0] sm:$0xff]
  %v1326 = vld [vmem:[%s0 + $0x7e8] sm:$0xff]
  %v1327 = vld [vmem:[%s0 + $0x7f0] sm:$0xff]
  %v1328 = vld [vmem:[%s0 + $0x7f8] sm:$0xff]
  %v1329 = vld [vmem:[%s0 + $0x800] sm:$0xff]
  %v1330 = vld [vmem:[%s0 + $0x808] sm:$0xff]
  %v1331 = vld [vmem:[%s0 + $0x810] sm:$0xff]
  %v1332 = vld [vmem:[%s0 + $0x818] sm:$0xff]
  %v1333 = vld [vmem:[%s0 + $0x820] sm:$0xff]
  %v1334 = vld [vmem:[%s0 + $0x828] sm:$0xff]
  %v1335 = vld [vmem:[%s0 + $0x830] sm:$0xff]
  %v1336 = vld [vmem:[%s0 + $0x838] sm:$0xff]
  %v1337 = vld [vmem:[%s0 + $0x840] sm:$0xff]
  %v1338 = vld [vmem:[%s0 + $0x848] sm:$0xff]
  %v1339 = vld [vmem:[%s0 + $0x850] sm:$0xff]
  %v1340 = vld [vmem:[%s0 + $0x858] sm:$0xff]
  %v1341 = vld [vmem:[%s0 + $0x860] sm:$0xff]
  %v1342 = vld [vmem:[%s0 + $0x868] sm:$0xff]
  %v1343 = vld [vmem:[%s0 + $0x870] sm:$0xff]
  %v1344 = vld [vmem:[%s0 + $0x878] sm:$0xff]
  %v1345 = vld [vmem:[%s0 + $0x880] sm:$0xff]
  %v1346 = vld [vmem:[%s0 + $0x888] sm:$0xff]
  %v1347 = vld [vmem:[%s0 + $0x890] sm:$0xff]
  %v1348 = vld [vmem:[%s0 + $0x898] sm:$0xff]
  %v1349 = vld [vmem:[%s0 + $0x8a0] sm:$0xff]
  %v1350 = vld [vmem:[%s0 + $0x8a8] sm:$0xff]
  %v1351 = vld [vmem:[%s0 + $0x8b0] sm:$0xff]
  %v1352 = vld [vmem:[%s0 + $0x8b8] sm:$0xff]
  %v1353 = vld [vmem:[%s0 + $0x8c0] sm:$0xff]
  %v1354 = vld [vmem:[%s0 + $0x8c8] sm:$0xff]
  %v1355 = vld [vmem:[%s0 + $0x8d0] sm:$0xff]
  %v1356 = vld [vmem:[%s0 + $0x8d8] sm:$0xff]
  %v1357 = vld [vmem:[%s0 + $0x8e0] sm:$0xff]
  %v1358 = vld [vmem:[%s0 + $0x8e8] sm:$0xff]
  %v1359 = vld [vmem:[%s0 + $0x8f0] sm:$0xff]
  %v1360 = vld [vmem:[%s0 + $0x8f8] sm:$0xff]
  %v1361 = vld [vmem:[%s0 + $0x900] sm:$0xff]
  %v1362 = vld [vmem:[%s0 + $0x908] sm:$0xff]
  %v1363 = vld [vmem:[%s0 + $0x910] sm:$0xff]
  %v1364 = vld [vmem:[%s0 + $0x918] sm:$0xff]
  %v1365 = vld [vmem:[%s0 + $0x920] sm:$0xff]
  %v1366 = vld [vmem:[%s0 + $0x928] sm:$0xff]
  %v1367 = vld [vmem:[%s0 + $0x930] sm:$0xff]
  %v1368 = vld [vmem:[%s0 + $0x938] sm:$0xff]
  %v1369 = vld [vmem:[%s0 + $0x940] sm:$0xff]
  %v1370 = vld [vmem:[%s0 + $0x948] sm:$0xff]
  %v1371 = vld [vmem:[%s0 + $0x950] sm:$0xff]
  %v1372 = vld [vmem:[%s0 + $0x958] sm:$0xff]
  %v1373 = vld [vmem:[%s0 + $0x960] sm:$0xff]
  %v1374 = vld [vmem:[%s0 + $0x968] sm:$0xff]
  %v1375 = vld [vmem:[%s0 + $0x970] sm:$0xff]
  %v1376 = vld [vmem:[%s0 + $0x978] sm:$0xff]
  %v1377 = vld [vmem:[%s0 + $0x980] sm:$0xff]
  %v1378 = vld [vmem:[%s0 + $0x988] sm:$0xff]
  %v1379 = vld [vmem:[%s0 + $0x990] sm:$0xff]
  %v1380 = vld [vmem:[%s0 + $0x998] sm:$0xff]
  %v1381 = vld [vmem:[%s0 + $0x9a0] sm:$0xff]
  %v1382 = vld [vmem:[%s0 + $0x9a8] sm:$0xff]
  %v1383 = vld [vmem:[%s0 + $0x9b0] sm:$0xff]
  %v1384 = vld [vmem:[%s0 + $0x9b8] sm:$0xff]
  %v1385 = vld [vmem:[%s0 + $0x9c0] sm:$0xff]
  %v1386 = vld [vmem:[%s0 + $0x9c8] sm:$0xff]
  %v1387 = vld [vmem:[%s0 + $0x9d0] sm:$0xff]
  %v1388 = vld [vmem:[%s0 + $0x9d8] sm:$0xff]
  %v1389 = vld [vmem:[%s0 + $0x9e0] sm:$0xff]
  %v1390 = vld [vmem:[%s0 + $0x9e8] sm:$0xff]
  %v1391 = vld [vmem:[%s0 + $0x9f0] sm:$0xff]
  %v1392 = vld [vmem:[%s0 + $0x9f8] sm:$0xff]
  %v1393 = vld [vmem:[%s0 + $0xa00] sm:$0xff]
  %v1394 = vld [vmem:[%s0 + $0xa08] sm:$0xff]
  %v1395 = vld [vmem:[%s0 + $0xa10] sm:$0xff]
  %v1396 = vld [vmem:[%s0 + $0xa18] sm:$0xff]
  %v1397 = vld [vmem:[%s0 + $0xa20] sm:$0xff]
  %v1398 = vld [vmem:[%s0 + $0xa28] sm:$0xff]
  %v1399 = vld [vmem:[%s0 + $0xa30] sm:$0xff]
  %v1400 = vld [vmem:[%s0 + $0xa38] sm:$0xff]
  %v1401 = vld [vmem:[%s0 + $0xa40] sm:$0xff]
  %v1402 = vld [vmem:[%s0 + $0xa48] sm:$0xff]
  %v1403 = vld [vmem:[%s0 + $0xa50] sm:$0xff]
  %v1404 = vld [vmem:[%s0 + $0xa58] sm:$0xff]
  %v1405 = vld [vmem:[%s0 + $0xa60] sm:$0xff]
  %v1406 = vld [vmem:[%s0 + $0xa68] sm:$0xff]
  %v1407 = vld [vmem:[%s0 + $0xa70] sm:$0xff]
  %v1408 = vld [vmem:[%s0 + $0xa78] sm:$0xff]
  %v1409 = vld [vmem:[%s0 + $0xa80] sm:$0xff]
  %v1410 = vld [vmem:[%s0 + $0xa88] sm:$0xff]
  %v1411 = vld [vmem:[%s0 + $0xa90] sm:$0xff]
  %v1412 = vld [vmem:[%s0 + $0xa98] sm:$0xff]
  %v1413 = vld [vmem:[%s0 + $0xaa0] sm:$0xff]
  %v1414 = vld [vmem:[%s0 + $0xaa8] sm:$0xff]
  %v1415 = vld [vmem:[%s0 + $0xab0] sm:$0xff]
  %v1416 = vld [vmem:[%s0 + $0xab8] sm:$0xff]
  %v1417 = vld [vmem:[%s0 + $0xac0] sm:$0xff]
  %v1418 = vld [vmem:[%s0 + $0xac8] sm:$0xff]
  %v1419 = vld [vmem:[%s0 + $0xad0] sm:$0xff]
  %v1420 = vld [vmem:[%s0 + $0xad8] sm:$0xff]
  %v1421 = vld [vmem:[%s0 + $0xae0] sm:$0xff]
  %v1422 = vld [vmem:[%s0 + $0xae8] sm:$0xff]
  %v1423 = vld [vmem:[%s0 + $0xaf0] sm:$0xff]
  %v1424 = vld [vmem:[%s0 + $0xaf8] sm:$0xff]
  %v1425 = vld [vmem:[%s0 + $0xb00] sm:$0xff]
  %v1426 = vld [vmem:[%s0 + $0xb08] sm:$0xff]
  %v1427 = vld [vmem:[%s0 + $0xb10] sm:$0xff]
  %v1428 = vld [vmem:[%s0 + $0xb18] sm:$0xff]
  %v1429 = vld [vmem:[%s0 + $0xb20] sm:$0xff]
  %v1430 = vld [vmem:[%s0 + $0xb28] sm:$0xff]
  %v1431 = vld [vmem:[%s0 + $0xb30] sm:$0xff]
  %v1432 = vld [vmem:[%s0 + $0xb38] sm:$0xff]
  %v1433 = vld [vmem:[%s0 + $0xb40] sm:$0xff]
  %v1434 = vld [vmem:[%s0 + $0xb48] sm:$0xff]
  %v1435 = vld [vmem:[%s0 + $0xb50] sm:$0xff]
  %v1436 = vld [vmem:[%s0 + $0xb58] sm:$0xff]
  %v1437 = vld [vmem:[%s0 + $0xb60] sm:$0xff]
  %v1438 = vld [vmem:[%s0 + $0xb68] sm:$0xff]
  %v1439 = vld [vmem:[%s0 + $0xb70] sm:$0xff]
  %v1440 = vld [vmem:[%s0 + $0xb78] sm:$0xff]
  %v1441 = vld [vmem:[%s0 + $0xb80] sm:$0xff]
  %v1442 = vld [vmem:[%s0 + $0xb88] sm:$0xff]
  %v1443 = vld [vmem:[%s0 + $0xb90] sm:$0xff]
  %v1444 = vld [vmem:[%s0 + $0xb98] sm:$0xff]
  %v1445 = vld [vmem:[%s0 + $0xba0] sm:$0xff]
  %v1446 = vld [vmem:[%s0 + $0xba8] sm:$0xff]
  %v1447 = vld [vmem:[%s0 + $0xbb0] sm:$0xff]
  %v1448 = vld [vmem:[%s0 + $0xbb8] sm:$0xff]
  %v1449 = vld [vmem:[%s0 + $0xbc0] sm:$0xff]
  %v1450 = vld [vmem:[%s0 + $0xbc8] sm:$0xff]
  %v1451 = vld [vmem:[%s0 + $0xbd0] sm:$0xff]
  %v1452 = vld [vmem:[%s0 + $0xbd8] sm:$0xff]
  %v1453 = vld [vmem:[%s0 + $0xbe0] sm:$0xff]
  %v1454 = vld [vmem:[%s0 + $0xbe8] sm:$0xff]
  %v1455 = vld [vmem:[%s0 + $0xbf0] sm:$0xff]
  %v1456 = vld [vmem:[%s0 + $0xbf8] sm:$0xff]
  %v1457 = vld [vmem:[%s0 + $0xc00] sm:$0xff]
  %v1458 = vld [vmem:[%s0 + $0xc08] sm:$0xff]
  %v1459 = vld [vmem:[%s0 + $0xc10] sm:$0xff]
  %v1460 = vld [vmem:[%s0 + $0xc18] sm:$0xff]
  %v1461 = vld [vmem:[%s0 + $0xc20] sm:$0xff]
  %v1462 = vld [vmem:[%s0 + $0xc28] sm:$0xff]
  %v1463 = vld [vmem:[%s0 + $0xc30] sm:$0xff]
  %v1464 = vld [vmem:[%s0 + $0xc38] sm:$0xff]
  %v1465 = vld [vmem:[%s0 + $0xc40] sm:$0xff]
  %v1466 = vld [vmem:[%s0 + $0xc48] sm:$0xff]
  %v1467 = vld [vmem:[%s0 + $0xc50] sm:$0xff]
  %v1468 = vld [vmem:[%s0 + $0xc58] sm:$0xff]
  %v1469 = vld [vmem:[%s0 + $0xc60] sm:$0xff]
  %v1470 = vld [vmem:[%s0 + $0xc68] sm:$0xff]
  %v1471 = vld [vmem:[%s0 + $0xc70] sm:$0xff]
  %v1472 = vld [vmem:[%s0 + $0xc78] sm:$0xff]
  %v1473 = vld [vmem:[%s0 + $0xc80] sm:$0xff]
  %v1474 = vld [vmem:[%s0 + $0xc88] sm:$0xff]
  %v1475 = vld [vmem:[%s0 + $0xc90] sm:$0xff]
  %v1476 = vld [vmem:[%s0 + $0xc98] sm:$0xff]
  %v1477 = vld [vmem:[%s0 + $0xca0] sm:$0xff]
  %v1478 = vld [vmem:[%s0 + $0xca8] sm:$0xff]
  %v1479 = vld [vmem:[%s0 + $0xcb0] sm:$0xff]
  %v1480 = vld [vmem:[%s0 + $0xcb8] sm:$0xff]
  %v1481 = vld [vmem:[%s0 + $0xcc0] sm:$0xff]
  %v1482 = vld [vmem:[%s0 + $0xcc8] sm:$0xff]
  %v1483 = vld [vmem:[%s0 + $0xcd0] sm:$0xff]
  %v1484 = vld [vmem:[%s0 + $0xcd8] sm:$0xff]
  %v1485 = vld [vmem:[%s0 + $0xce0] sm:$0xff]
  %v1486 = vld [vmem:[%s0 + $0xce8] sm:$0xff]
  %v1487 = vld [vmem:[%s0 + $0xcf0] sm:$0xff]
  %v1488 = vld [vmem:[%s0 + $0xcf8] sm:$0xff]
  %v1489 = vld [vmem:[%s0 + $0xd00] sm:$0xff]
  %v1490 = vld [vmem:[%s0 + $0xd08] sm:$0xff]
  %v1491 = vld [vmem:[%s0 + $0xd10] sm:$0xff]
  %v1492 = vld [vmem:[%s0 + $0xd18] sm:$0xff]
  %v1493 = vld [vmem:[%s0 + $0xd20] sm:$0xff]
  %v1494 = vld [vmem:[%s0 + $0xd28] sm:$0xff]
  %v1495 = vld [vmem:[%s0 + $0xd30] sm:$0xff]
  %v1496 = vld [vmem:[%s0 + $0xd38] sm:$0xff]
  %v1497 = vld [vmem:[%s0 + $0xd40] sm:$0xff]
  %v1498 = vld [vmem:[%s0 + $0xd48] sm:$0xff]
  %v1499 = vld [vmem:[%s0 + $0xd50] sm:$0xff]
  %v1500 = vld [vmem:[%s0 + $0xd58] sm:$0xff]
  %v1501 = vld [vmem:[%s0 + $0xd60] sm:$0xff]
  %v1502 = vld [vmem:[%s0 + $0xd68] sm:$0xff]
  %v1503 = vld [vmem:[%s0 + $0xd70] sm:$0xff]
  %v1504 = vld [vmem:[%s0 + $0xd78] sm:$0xff]
  %v1505 = vld [vmem:[%s0 + $0xd80] sm:$0xff]
  %v1506 = vld [vmem:[%s0 + $0xd88] sm:$0xff]
  %v1507 = vld [vmem:[%s0 + $0xd90] sm:$0xff]
  %v1508 = vld [vmem:[%s0 + $0xd98] sm:$0xff]
  %v1509 = vld [vmem:[%s0 + $0xda0] sm:$0xff]
  %v1510 = vld [vmem:[%s0 + $0xda8] sm:$0xff]
  %v1511 = vld [vmem:[%s0 + $0xdb0] sm:$0xff]
  %v1512 = vld [vmem:[%s0 + $0xdb8] sm:$0xff]
  %v1513 = vld [vmem:[%s0 + $0xdc0] sm:$0xff]
  %v1514 = vld [vmem:[%s0 + $0xdc8] sm:$0xff]
  %v1515 = vld [vmem:[%s0 + $0xdd0] sm:$0xff]
  %v1516 = vld [vmem:[%s0 + $0xdd8] sm:$0xff]
  %v1517 = vld [vmem:[%s0 + $0xde0] sm:$0xff]
  %v1518 = vld [vmem:[%s0 + $0xde8] sm:$0xff]
  %v1519 = vld [vmem:[%s0 + $0xdf0] sm:$0xff]
  %v1520 = vld [vmem:[%s0 + $0xdf8] sm:$0xff]
  %v1521 = vld [vmem:[%s0 + $0xe00] sm:$0xff]
  %v1522 = vld [vmem:[%s0 + $0xe08] sm:$0xff]
  %v1523 = vld [vmem:[%s0 + $0xe10] sm:$0xff]
  %v1524 = vld [vmem:[%s0 + $0xe18] sm:$0xff]
  %v1525 = vld [vmem:[%s0 + $0xe20] sm:$0xff]
  %v1526 = vld [vmem:[%s0 + $0xe28] sm:$0xff]
  %v1527 = vld [vmem:[%s0 + $0xe30] sm:$0xff]
  %v1528 = vld [vmem:[%s0 + $0xe38] sm:$0xff]
  %v1529 = vld [vmem:[%s0 + $0xe40] sm:$0xff]
  %v1530 = vld [vmem:[%s0 + $0xe48] sm:$0xff]
  %v1531 = vld [vmem:[%s0 + $0xe50] sm:$0xff]
  %v1532 = vld [vmem:[%s0 + $0xe58] sm:$0xff]
  %v1533 = vld [vmem:[%s0 + $0xe60] sm:$0xff]
  %v1534 = vld [vmem:[%s0 + $0xe68] sm:$0xff]
  %v1535 = vld [vmem:[%s0 + $0xe70] sm:$0xff]
  %v1536 = vld [vmem:[%s0 + $0xe78] sm:$0xff]
  %v1537 = vld [vmem:[%s0 + $0xe80] sm:$0xff]
  %v1538 = vld [vmem:[%s0 + $0xe88] sm:$0xff]
  %v1539 = vld [vmem:[%s0 + $0xe90] sm:$0xff]
  %v1540 = vld [vmem:[%s0 + $0xe98] sm:$0xff]
  %v1541 = vld [vmem:[%s0 + $0xea0] sm:$0xff]
  %v1542 = vld [vmem:[%s0 + $0xea8] sm:$0xff]
  %v1543 = vld [vmem:[%s0 + $0xeb0] sm:$0xff]
  %v1544 = vld [vmem:[%s0 + $0xeb8] sm:$0xff]
  %v1545 = vld [vmem:[%s0 + $0xec0] sm:$0xff]
  %v1546 = vld [vmem:[%s0 + $0xec8] sm:$0xff]
  %v1547 = vld [vmem:[%s0 + $0xed0] sm:$0xff]
  %v1548 = vld [vmem:[%s0 + $0xed8] sm:$0xff]
  %v1549 = vld [vmem:[%s0 + $0xee0] sm:$0xff]
  %v1550 = vld [vmem:[%s0 + $0xee8] sm:$0xff]
  %v1551 = vld [vmem:[%s0 + $0xef0] sm:$0xff]
  %v1552 = vld [vmem:[%s0 + $0xef8] sm:$0xff]
  %v1553 = vld [vmem:[%s0 + $0xf00] sm:$0xff]
  %v1554 = vld [vmem:[%s0 + $0xf08] sm:$0xff]
  %v1555 = vld [vmem:[%s0 + $0xf10] sm:$0xff]
  %v1556 = vld [vmem:[%s0 + $0xf18] sm:$0xff]
  %v1557 = vld [vmem:[%s0 + $0xf20] sm:$0xff]
  %v1558 = vld [vmem:[%s0 + $0xf28] sm:$0xff]
  %v1559 = vld [vmem:[%s0 + $0xf30] sm:$0xff]
  %v1560 = vld [vmem:[%s0 + $0xf38] sm:$0xff]
  %v1561 = vld [vmem:[%s0 + $0xf40] sm:$0xff]
  %v1562 = vld [vmem:[%s0 + $0xf48] sm:$0xff]
  %v1563 = vld [vmem:[%s0 + $0xf50] sm:$0xff]
  %v1564 = vld [vmem:[%s0 + $0xf58] sm:$0xff]
  %v1565 = vld [vmem:[%s0 + $0xf60] sm:$0xff]
  %v1566 = vld [vmem:[%s0 + $0xf68] sm:$0xff]
  %v1567 = vld [vmem:[%s0 + $0xf70] sm:$0xff]
  %v1568 = vld [vmem:[%s0 + $0xf78] sm:$0xff]
  %v1569 = vld [vmem:[%s0 + $0xf80] sm:$0xff]
  %v1570 = vld [vmem:[%s0 + $0xf88] sm:$0xff]
  %v1571 = vld [vmem:[%s0 + $0xf90] sm:$0xff]
  %v1572 = vld [vmem:[%s0 + $0xf98] sm:$0xff]
  %v1573 = vld [vmem:[%s0 + $0xfa0] sm:$0xff]
  %v1574 = vld [vmem:[%s0 + $0xfa8] sm:$0xff]
  %v1575 = vld [vmem:[%s0 + $0xfb0] sm:$0xff]
  %v1576 = vld [vmem:[%s0 + $0xfb8] sm:$0xff]
  %v1577 = vld [vmem:[%s0 + $0xfc0] sm:$0xff]
  %v1578 = vld [vmem:[%s0 + $0xfc8] sm:$0xff]
  %v1579 = vld [vmem:[%s0 + $0xfd0] sm:$0xff]
  %v1580 = vld [vmem:[%s0 + $0xfd8] sm:$0xff]
  %v1581 = vld [vmem:[%s0 + $0xfe0] sm:$0xff]
  %v1582 = vld [vmem:[%s0 + $0xfe8] sm:$0xff]
  %v1583 = vld [vmem:[%s0 + $0xff0] sm:$0xff]
  %v1584 = vld [vmem:[%s0 + $0xff8] sm:$0xff]
  %v2097 = vunpack.c.l.b16 %v1073
  %v2098 = vunpack.c.h.b16 %v1073
  %v2099 = vunpack.c.l.b16 %v1074
  %v2100 = vunpack.c.h.b16 %v1074
  %v2101 = vunpack.c.l.b16 %v1075
  %v2102 = vunpack.c.h.b16 %v1075
  %v2103 = vunpack.c.l.b16 %v1076
  %v2104 = vunpack.c.h.b16 %v1076
  %v2105 = vunpack.c.l.b16 %v1077
  %v2106 = vunpack.c.h.b16 %v1077
  %v2107 = vunpack.c.l.b16 %v1078
  %v2108 = vunpack.c.h.b16 %v1078
  %v2109 = vunpack.c.l.b16 %v1079
  %v2110 = vunpack.c.h.b16 %v1079
  %v2111 = vunpack.c.l.b16 %v1080
  %v2112 = vunpack.c.h.b16 %v1080
  %v2113 = vunpack.c.l.b16 %v1081
  %v2114 = vunpack.c.h.b16 %v1081
  %v2115 = vunpack.c.l.b16 %v1082
  %v2116 = vunpack.c.h.b16 %v1082
  %v2117 = vunpack.c.l.b16 %v1083
  %v2118 = vunpack.c.h.b16 %v1083
  %v2119 = vunpack.c.l.b16 %v1084
  %v2120 = vunpack.c.h.b16 %v1084
  %v2121 = vunpack.c.l.b16 %v1085
  %v2122 = vunpack.c.h.b16 %v1085
  %v2123 = vunpack.c.l.b16 %v1086
  %v2124 = vunpack.c.h.b16 %v1086
  %v2125 = vunpack.c.l.b16 %v1087
  %v2126 = vunpack.c.h.b16 %v1087
  %v2127 = vunpack.c.l.b16 %v1088
  %v2128 = vunpack.c.h.b16 %v1088
  %v2129 = vunpack.c.l.b16 %v1089
  %v2130 = vunpack.c.h.b16 %v1089
  %v2131 = vunpack.c.l.b16 %v1090
  %v2132 = vunpack.c.h.b16 %v1090
  %v2133 = vunpack.c.l.b16 %v1091
  %v2134 = vunpack.c.h.b16 %v1091
  %v2135 = vunpack.c.l.b16 %v1092
  %v2136 = vunpack.c.h.b16 %v1092
  %v2137 = vunpack.c.l.b16 %v1093
  %v2138 = vunpack.c.h.b16 %v1093
  %v2139 = vunpack.c.l.b16 %v1094
  %v2140 = vunpack.c.h.b16 %v1094
  %v2141 = vunpack.c.l.b16 %v1095
  %v2142 = vunpack.c.h.b16 %v1095
  %v2143 = vunpack.c.l.b16 %v1096
  %v2144 = vunpack.c.h.b16 %v1096
  %v2145 = vunpack.c.l.b16 %v1097
  %v2146 = vunpack.c.h.b16 %v1097
  %v2147 = vunpack.c.l.b16 %v1098
  %v2148 = vunpack.c.h.b16 %v1098
  %v2149 = vunpack.c.l.b16 %v1099
  %v2150 = vunpack.c.h.b16 %v1099
  %v2151 = vunpack.c.l.b16 %v1100
  %v2152 = vunpack.c.h.b16 %v1100
  %v2153 = vunpack.c.l.b16 %v1101
  %v2154 = vunpack.c.h.b16 %v1101
  %v2155 = vunpack.c.l.b16 %v1102
  %v2156 = vunpack.c.h.b16 %v1102
  %v2157 = vunpack.c.l.b16 %v1103
  %v2158 = vunpack.c.h.b16 %v1103
  %v2159 = vunpack.c.l.b16 %v1104
  %v2160 = vunpack.c.h.b16 %v1104
  %v2161 = vunpack.c.l.b16 %v1105
  %v2162 = vunpack.c.h.b16 %v1105
  %v2163 = vunpack.c.l.b16 %v1106
  %v2164 = vunpack.c.h.b16 %v1106
  %v2165 = vunpack.c.l.b16 %v1107
  %v2166 = vunpack.c.h.b16 %v1107
  %v2167 = vunpack.c.l.b16 %v1108
  %v2168 = vunpack.c.h.b16 %v1108
  %v2169 = vunpack.c.l.b16 %v1109
  %v2170 = vunpack.c.h.b16 %v1109
  %v2171 = vunpack.c.l.b16 %v1110
  %v2172 = vunpack.c.h.b16 %v1110
  %v2173 = vunpack.c.l.b16 %v1111
  %v2174 = vunpack.c.h.b16 %v1111
  %v2175 = vunpack.c.l.b16 %v1112
  %v2176 = vunpack.c.h.b16 %v1112
  %v2177 = vunpack.c.l.b16 %v1113
  %v2178 = vunpack.c.h.b16 %v1113
  %v2179 = vunpack.c.l.b16 %v1114
  %v2180 = vunpack.c.h.b16 %v1114
  %v2181 = vunpack.c.l.b16 %v1115
  %v2182 = vunpack.c.h.b16 %v1115
  %v2183 = vunpack.c.l.b16 %v1116
  %v2184 = vunpack.c.h.b16 %v1116
  %v2185 = vunpack.c.l.b16 %v1117
  %v2186 = vunpack.c.h.b16 %v1117
  %v2187 = vunpack.c.l.b16 %v1118
  %v2188 = vunpack.c.h.b16 %v1118
  %v2189 = vunpack.c.l.b16 %v1119
  %v2190 = vunpack.c.h.b16 %v1119
  %v2191 = vunpack.c.l.b16 %v1120
  %v2192 = vunpack.c.h.b16 %v1120
  %v2193 = vunpack.c.l.b16 %v1121
  %v2194 = vunpack.c.h.b16 %v1121
  %v2195 = vunpack.c.l.b16 %v1122
  %v2196 = vunpack.c.h.b16 %v1122
  %v2197 = vunpack.c.l.b16 %v1123
  %v2198 = vunpack.c.h.b16 %v1123
  %v2199 = vunpack.c.l.b16 %v1124
  %v2200 = vunpack.c.h.b16 %v1124
  %v2201 = vunpack.c.l.b16 %v1125
  %v2202 = vunpack.c.h.b16 %v1125
  %v2203 = vunpack.c.l.b16 %v1126
  %v2204 = vunpack.c.h.b16 %v1126
  %v2205 = vunpack.c.l.b16 %v1127
  %v2206 = vunpack.c.h.b16 %v1127
  %v2207 = vunpack.c.l.b16 %v1128
  %v2208 = vunpack.c.h.b16 %v1128
  %v2209 = vunpack.c.l.b16 %v1129
  %v2210 = vunpack.c.h.b16 %v1129
  %v2211 = vunpack.c.l.b16 %v1130
  %v2212 = vunpack.c.h.b16 %v1130
  %v2213 = vunpack.c.l.b16 %v1131
  %v2214 = vunpack.c.h.b16 %v1131
  %v2215 = vunpack.c.l.b16 %v1132
  %v2216 = vunpack.c.h.b16 %v1132
  %v2217 = vunpack.c.l.b16 %v1133
  %v2218 = vunpack.c.h.b16 %v1133
  %v2219 = vunpack.c.l.b16 %v1134
  %v2220 = vunpack.c.h.b16 %v1134
  %v2221 = vunpack.c.l.b16 %v1135
  %v2222 = vunpack.c.h.b16 %v1135
  %v2223 = vunpack.c.l.b16 %v1136
  %v2224 = vunpack.c.h.b16 %v1136
  %v2225 = vunpack.c.l.b16 %v1137
  %v2226 = vunpack.c.h.b16 %v1137
  %v2227 = vunpack.c.l.b16 %v1138
  %v2228 = vunpack.c.h.b16 %v1138
  %v2229 = vunpack.c.l.b16 %v1139
  %v2230 = vunpack.c.h.b16 %v1139
  %v2231 = vunpack.c.l.b16 %v1140
  %v2232 = vunpack.c.h.b16 %v1140
  %v2233 = vunpack.c.l.b16 %v1141
  %v2234 = vunpack.c.h.b16 %v1141
  %v2235 = vunpack.c.l.b16 %v1142
  %v2236 = vunpack.c.h.b16 %v1142
  %v2237 = vunpack.c.l.b16 %v1143
  %v2238 = vunpack.c.h.b16 %v1143
  %v2239 = vunpack.c.l.b16 %v1144
  %v2240 = vunpack.c.h.b16 %v1144
  %v2241 = vunpack.c.l.b16 %v1145
  %v2242 = vunpack.c.h.b16 %v1145
  %v2243 = vunpack.c.l.b16 %v1146
  %v2244 = vunpack.c.h.b16 %v1146
  %v2245 = vunpack.c.l.b16 %v1147
  %v2246 = vunpack.c.h.b16 %v1147
  %v2247 = vunpack.c.l.b16 %v1148
  %v2248 = vunpack.c.h.b16 %v1148
  %v2249 = vunpack.c.l.b16 %v1149
  %v2250 = vunpack.c.h.b16 %v1149
  %v2251 = vunpack.c.l.b16 %v1150
  %v2252 = vunpack.c.h.b16 %v1150
  %v2253 = vunpack.c.l.b16 %v1151
  %v2254 = vunpack.c.h.b16 %v1151
  %v2255 = vunpack.c.l.b16 %v1152
  %v2256 = vunpack.c.h.b16 %v1152
  %v2257 = vunpack.c.l.b16 %v1153
  %v2258 = vunpack.c.h.b16 %v1153
  %v2259 = vunpack.c.l.b16 %v1154
  %v2260 = vunpack.c.h.b16 %v1154
  %v2261 = vunpack.c.l.b16 %v1155
  %v2262 = vunpack.c.h.b16 %v1155
  %v2263 = vunpack.c.l.b16 %v1156
  %v2264 = vunpack.c.h.b16 %v1156
  %v2265 = vunpack.c.l.b16 %v1157
  %v2266 = vunpack.c.h.b16 %v1157
  %v2267 = vunpack.c.l.b16 %v1158
  %v2268 = vunpack.c.h.b16 %v1158
  %v2269 = vunpack.c.l.b16 %v1159
  %v2270 = vunpack.c.h.b16 %v1159
  %v2271 = vunpack.c.l.b16 %v1160
  %v2272 = vunpack.c.h.b16 %v1160
  %v2273 = vunpack.c.l.b16 %v1161
  %v2274 = vunpack.c.h.b16 %v1161
  %v2275 = vunpack.c.l.b16 %v1162
  %v2276 = vunpack.c.h.b16 %v1162
  %v2277 = vunpack.c.l.b16 %v1163
  %v2278 = vunpack.c.h.b16 %v1163
  %v2279 = vunpack.c.l.b16 %v1164
  %v2280 = vunpack.c.h.b16 %v1164
  %v2281 = vunpack.c.l.b16 %v1165
  %v2282 = vunpack.c.h.b16 %v1165
  %v2283 = vunpack.c.l.b16 %v1166
  %v2284 = vunpack.c.h.b16 %v1166
  %v2285 = vunpack.c.l.b16 %v1167
  %v2286 = vunpack.c.h.b16 %v1167
  %v2287 = vunpack.c.l.b16 %v1168
  %v2288 = vunpack.c.h.b16 %v1168
  %v2289 = vunpack.c.l.b16 %v1169
  %v2290 = vunpack.c.h.b16 %v1169
  %v2291 = vunpack.c.l.b16 %v1170
  %v2292 = vunpack.c.h.b16 %v1170
  %v2293 = vunpack.c.l.b16 %v1171
  %v2294 = vunpack.c.h.b16 %v1171
  %v2295 = vunpack.c.l.b16 %v1172
  %v2296 = vunpack.c.h.b16 %v1172
  %v2297 = vunpack.c.l.b16 %v1173
  %v2298 = vunpack.c.h.b16 %v1173
  %v2299 = vunpack.c.l.b16 %v1174
  %v2300 = vunpack.c.h.b16 %v1174
  %v2301 = vunpack.c.l.b16 %v1175
  %v2302 = vunpack.c.h.b16 %v1175
  %v2303 = vunpack.c.l.b16 %v1176
  %v2304 = vunpack.c.h.b16 %v1176
  %v2305 = vunpack.c.l.b16 %v1177
  %v2306 = vunpack.c.h.b16 %v1177
  %v2307 = vunpack.c.l.b16 %v1178
  %v2308 = vunpack.c.h.b16 %v1178
  %v2309 = vunpack.c.l.b16 %v1179
  %v2310 = vunpack.c.h.b16 %v1179
  %v2311 = vunpack.c.l.b16 %v1180
  %v2312 = vunpack.c.h.b16 %v1180
  %v2313 = vunpack.c.l.b16 %v1181
  %v2314 = vunpack.c.h.b16 %v1181
  %v2315 = vunpack.c.l.b16 %v1182
  %v2316 = vunpack.c.h.b16 %v1182
  %v2317 = vunpack.c.l.b16 %v1183
  %v2318 = vunpack.c.h.b16 %v1183
  %v2319 = vunpack.c.l.b16 %v1184
  %v2320 = vunpack.c.h.b16 %v1184
  %v2321 = vunpack.c.l.b16 %v1185
  %v2322 = vunpack.c.h.b16 %v1185
  %v2323 = vunpack.c.l.b16 %v1186
  %v2324 = vunpack.c.h.b16 %v1186
  %v2325 = vunpack.c.l.b16 %v1187
  %v2326 = vunpack.c.h.b16 %v1187
  %v2327 = vunpack.c.l.b16 %v1188
  %v2328 = vunpack.c.h.b16 %v1188
  %v2329 = vunpack.c.l.b16 %v1189
  %v2330 = vunpack.c.h.b16 %v1189
  %v2331 = vunpack.c.l.b16 %v1190
  %v2332 = vunpack.c.h.b16 %v1190
  %v2333 = vunpack.c.l.b16 %v1191
  %v2334 = vunpack.c.h.b16 %v1191
  %v2335 = vunpack.c.l.b16 %v1192
  %v2336 = vunpack.c.h.b16 %v1192
  %v2337 = vunpack.c.l.b16 %v1193
  %v2338 = vunpack.c.h.b16 %v1193
  %v2339 = vunpack.c.l.b16 %v1194
  %v2340 = vunpack.c.h.b16 %v1194
  %v2341 = vunpack.c.l.b16 %v1195
  %v2342 = vunpack.c.h.b16 %v1195
  %v2343 = vunpack.c.l.b16 %v1196
  %v2344 = vunpack.c.h.b16 %v1196
  %v2345 = vunpack.c.l.b16 %v1197
  %v2346 = vunpack.c.h.b16 %v1197
  %v2347 = vunpack.c.l.b16 %v1198
  %v2348 = vunpack.c.h.b16 %v1198
  %v2349 = vunpack.c.l.b16 %v1199
  %v2350 = vunpack.c.h.b16 %v1199
  %v2351 = vunpack.c.l.b16 %v1200
  %v2352 = vunpack.c.h.b16 %v1200
  %v2353 = vunpack.c.l.b16 %v1201
  %v2354 = vunpack.c.h.b16 %v1201
  %v2355 = vunpack.c.l.b16 %v1202
  %v2356 = vunpack.c.h.b16 %v1202
  %v2357 = vunpack.c.l.b16 %v1203
  %v2358 = vunpack.c.h.b16 %v1203
  %v2359 = vunpack.c.l.b16 %v1204
  %v2360 = vunpack.c.h.b16 %v1204
  %v2361 = vunpack.c.l.b16 %v1205
  %v2362 = vunpack.c.h.b16 %v1205
  %v2363 = vunpack.c.l.b16 %v1206
  %v2364 = vunpack.c.h.b16 %v1206
  %v2365 = vunpack.c.l.b16 %v1207
  %v2366 = vunpack.c.h.b16 %v1207
  %v2367 = vunpack.c.l.b16 %v1208
  %v2368 = vunpack.c.h.b16 %v1208
  %v2369 = vunpack.c.l.b16 %v1209
  %v2370 = vunpack.c.h.b16 %v1209
  %v2371 = vunpack.c.l.b16 %v1210
  %v2372 = vunpack.c.h.b16 %v1210
  %v2373 = vunpack.c.l.b16 %v1211
  %v2374 = vunpack.c.h.b16 %v1211
  %v2375 = vunpack.c.l.b16 %v1212
  %v2376 = vunpack.c.h.b16 %v1212
  %v2377 = vunpack.c.l.b16 %v1213
  %v2378 = vunpack.c.h.b16 %v1213
  %v2379 = vunpack.c.l.b16 %v1214
  %v2380 = vunpack.c.h.b16 %v1214
  %v2381 = vunpack.c.l.b16 %v1215
  %v2382 = vunpack.c.h.b16 %v1215
  %v2383 = vunpack.c.l.b16 %v1216
  %v2384 = vunpack.c.h.b16 %v1216
  %v2385 = vunpack.c.l.b16 %v1217
  %v2386 = vunpack.c.h.b16 %v1217
  %v2387 = vunpack.c.l.b16 %v1218
  %v2388 = vunpack.c.h.b16 %v1218
  %v2389 = vunpack.c.l.b16 %v1219
  %v2390 = vunpack.c.h.b16 %v1219
  %v2391 = vunpack.c.l.b16 %v1220
  %v2392 = vunpack.c.h.b16 %v1220
  %v2393 = vunpack.c.l.b16 %v1221
  %v2394 = vunpack.c.h.b16 %v1221
  %v2395 = vunpack.c.l.b16 %v1222
  %v2396 = vunpack.c.h.b16 %v1222
  %v2397 = vunpack.c.l.b16 %v1223
  %v2398 = vunpack.c.h.b16 %v1223
  %v2399 = vunpack.c.l.b16 %v1224
  %v2400 = vunpack.c.h.b16 %v1224
  %v2401 = vunpack.c.l.b16 %v1225
  %v2402 = vunpack.c.h.b16 %v1225
  %v2403 = vunpack.c.l.b16 %v1226
  %v2404 = vunpack.c.h.b16 %v1226
  %v2405 = vunpack.c.l.b16 %v1227
  %v2406 = vunpack.c.h.b16 %v1227
  %v2407 = vunpack.c.l.b16 %v1228
  %v2408 = vunpack.c.h.b16 %v1228
  %v2409 = vunpack.c.l.b16 %v1229
  %v2410 = vunpack.c.h.b16 %v1229
  %v2411 = vunpack.c.l.b16 %v1230
  %v2412 = vunpack.c.h.b16 %v1230
  %v2413 = vunpack.c.l.b16 %v1231
  %v2414 = vunpack.c.h.b16 %v1231
  %v2415 = vunpack.c.l.b16 %v1232
  %v2416 = vunpack.c.h.b16 %v1232
  %v2417 = vunpack.c.l.b16 %v1233
  %v2418 = vunpack.c.h.b16 %v1233
  %v2419 = vunpack.c.l.b16 %v1234
  %v2420 = vunpack.c.h.b16 %v1234
  %v2421 = vunpack.c.l.b16 %v1235
  %v2422 = vunpack.c.h.b16 %v1235
  %v2423 = vunpack.c.l.b16 %v1236
  %v2424 = vunpack.c.h.b16 %v1236
  %v2425 = vunpack.c.l.b16 %v1237
  %v2426 = vunpack.c.h.b16 %v1237
  %v2427 = vunpack.c.l.b16 %v1238
  %v2428 = vunpack.c.h.b16 %v1238
  %v2429 = vunpack.c.l.b16 %v1239
  %v2430 = vunpack.c.h.b16 %v1239
  %v2431 = vunpack.c.l.b16 %v1240
  %v2432 = vunpack.c.h.b16 %v1240
  %v2433 = vunpack.c.l.b16 %v1241
  %v2434 = vunpack.c.h.b16 %v1241
  %v2435 = vunpack.c.l.b16 %v1242
  %v2436 = vunpack.c.h.b16 %v1242
  %v2437 = vunpack.c.l.b16 %v1243
  %v2438 = vunpack.c.h.b16 %v1243
  %v2439 = vunpack.c.l.b16 %v1244
  %v2440 = vunpack.c.h.b16 %v1244
  %v2441 = vunpack.c.l.b16 %v1245
  %v2442 = vunpack.c.h.b16 %v1245
  %v2443 = vunpack.c.l.b16 %v1246
  %v2444 = vunpack.c.h.b16 %v1246
  %v2445 = vunpack.c.l.b16 %v1247
  %v2446 = vunpack.c.h.b16 %v1247
  %v2447 = vunpack.c.l.b16 %v1248
  %v2448 = vunpack.c.h.b16 %v1248
  %v2449 = vunpack.c.l.b16 %v1249
  %v2450 = vunpack.c.h.b16 %v1249
  %v2451 = vunpack.c.l.b16 %v1250
  %v2452 = vunpack.c.h.b16 %v1250
  %v2453 = vunpack.c.l.b16 %v1251
  %v2454 = vunpack.c.h.b16 %v1251
  %v2455 = vunpack.c.l.b16 %v1252
  %v2456 = vunpack.c.h.b16 %v1252
  %v2457 = vunpack.c.l.b16 %v1253
  %v2458 = vunpack.c.h.b16 %v1253
  %v2459 = vunpack.c.l.b16 %v1254
  %v2460 = vunpack.c.h.b16 %v1254
  %v2461 = vunpack.c.l.b16 %v1255
  %v2462 = vunpack.c.h.b16 %v1255
  %v2463 = vunpack.c.l.b16 %v1256
  %v2464 = vunpack.c.h.b16 %v1256
  %v2465 = vunpack.c.l.b16 %v1257
  %v2466 = vunpack.c.h.b16 %v1257
  %v2467 = vunpack.c.l.b16 %v1258
  %v2468 = vunpack.c.h.b16 %v1258
  %v2469 = vunpack.c.l.b16 %v1259
  %v2470 = vunpack.c.h.b16 %v1259
  %v2471 = vunpack.c.l.b16 %v1260
  %v2472 = vunpack.c.h.b16 %v1260
  %v2473 = vunpack.c.l.b16 %v1261
  %v2474 = vunpack.c.h.b16 %v1261
  %v2475 = vunpack.c.l.b16 %v1262
  %v2476 = vunpack.c.h.b16 %v1262
  %v2477 = vunpack.c.l.b16 %v1263
  %v2478 = vunpack.c.h.b16 %v1263
  %v2479 = vunpack.c.l.b16 %v1264
  %v2480 = vunpack.c.h.b16 %v1264
  %v2481 = vunpack.c.l.b16 %v1265
  %v2482 = vunpack.c.h.b16 %v1265
  %v2483 = vunpack.c.l.b16 %v1266
  %v2484 = vunpack.c.h.b16 %v1266
  %v2485 = vunpack.c.l.b16 %v1267
  %v2486 = vunpack.c.h.b16 %v1267
  %v2487 = vunpack.c.l.b16 %v1268
  %v2488 = vunpack.c.h.b16 %v1268
  %v2489 = vunpack.c.l.b16 %v1269
  %v2490 = vunpack.c.h.b16 %v1269
  %v2491 = vunpack.c.l.b16 %v1270
  %v2492 = vunpack.c.h.b16 %v1270
  %v2493 = vunpack.c.l.b16 %v1271
  %v2494 = vunpack.c.h.b16 %v1271
  %v2495 = vunpack.c.l.b16 %v1272
  %v2496 = vunpack.c.h.b16 %v1272
  %v2497 = vunpack.c.l.b16 %v1273
  %v2498 = vunpack.c.h.b16 %v1273
  %v2499 = vunpack.c.l.b16 %v1274
  %v2500 = vunpack.c.h.b16 %v1274
  %v2501 = vunpack.c.l.b16 %v1275
  %v2502 = vunpack.c.h.b16 %v1275
  %v2503 = vunpack.c.l.b16 %v1276
  %v2504 = vunpack.c.h.b16 %v1276
  %v2505 = vunpack.c.l.b16 %v1277
  %v2506 = vunpack.c.h.b16 %v1277
  %v2507 = vunpack.c.l.b16 %v1278
  %v2508 = vunpack.c.h.b16 %v1278
  %v2509 = vunpack.c.l.b16 %v1279
  %v2510 = vunpack.c.h.b16 %v1279
  %v2511 = vunpack.c.l.b16 %v1280
  %v2512 = vunpack.c.h.b16 %v1280
  %v2513 = vunpack.c.l.b16 %v1281
  %v2514 = vunpack.c.h.b16 %v1281
  %v2515 = vunpack.c.l.b16 %v1282
  %v2516 = vunpack.c.h.b16 %v1282
  %v2517 = vunpack.c.l.b16 %v1283
  %v2518 = vunpack.c.h.b16 %v1283
  %v2519 = vunpack.c.l.b16 %v1284
  %v2520 = vunpack.c.h.b16 %v1284
  %v2521 = vunpack.c.l.b16 %v1285
  %v2522 = vunpack.c.h.b16 %v1285
  %v2523 = vunpack.c.l.b16 %v1286
  %v2524 = vunpack.c.h.b16 %v1286
  %v2525 = vunpack.c.l.b16 %v1287
  %v2526 = vunpack.c.h.b16 %v1287
  %v2527 = vunpack.c.l.b16 %v1288
  %v2528 = vunpack.c.h.b16 %v1288
  %v2529 = vunpack.c.l.b16 %v1289
  %v2530 = vunpack.c.h.b16 %v1289
  %v2531 = vunpack.c.l.b16 %v1290
  %v2532 = vunpack.c.h.b16 %v1290
  %v2533 = vunpack.c.l.b16 %v1291
  %v2534 = vunpack.c.h.b16 %v1291
  %v2535 = vunpack.c.l.b16 %v1292
  %v2536 = vunpack.c.h.b16 %v1292
  %v2537 = vunpack.c.l.b16 %v1293
  %v2538 = vunpack.c.h.b16 %v1293
  %v2539 = vunpack.c.l.b16 %v1294
  %v2540 = vunpack.c.h.b16 %v1294
  %v2541 = vunpack.c.l.b16 %v1295
  %v2542 = vunpack.c.h.b16 %v1295
  %v2543 = vunpack.c.l.b16 %v1296
  %v2544 = vunpack.c.h.b16 %v1296
  %v2545 = vunpack.c.l.b16 %v1297
  %v2546 = vunpack.c.h.b16 %v1297
  %v2547 = vunpack.c.l.b16 %v1298
  %v2548 = vunpack.c.h.b16 %v1298
  %v2549 = vunpack.c.l.b16 %v1299
  %v2550 = vunpack.c.h.b16 %v1299
  %v2551 = vunpack.c.l.b16 %v1300
  %v2552 = vunpack.c.h.b16 %v1300
  %v2553 = vunpack.c.l.b16 %v1301
  %v2554 = vunpack.c.h.b16 %v1301
  %v2555 = vunpack.c.l.b16 %v1302
  %v2556 = vunpack.c.h.b16 %v1302
  %v2557 = vunpack.c.l.b16 %v1303
  %v2558 = vunpack.c.h.b16 %v1303
  %v2559 = vunpack.c.l.b16 %v1304
  %v2560 = vunpack.c.h.b16 %v1304
  %v2561 = vunpack.c.l.b16 %v1305
  %v2562 = vunpack.c.h.b16 %v1305
  %v2563 = vunpack.c.l.b16 %v1306
  %v2564 = vunpack.c.h.b16 %v1306
  %v2565 = vunpack.c.l.b16 %v1307
  %v2566 = vunpack.c.h.b16 %v1307
  %v2567 = vunpack.c.l.b16 %v1308
  %v2568 = vunpack.c.h.b16 %v1308
  %v2569 = vunpack.c.l.b16 %v1309
  %v2570 = vunpack.c.h.b16 %v1309
  %v2571 = vunpack.c.l.b16 %v1310
  %v2572 = vunpack.c.h.b16 %v1310
  %v2573 = vunpack.c.l.b16 %v1311
  %v2574 = vunpack.c.h.b16 %v1311
  %v2575 = vunpack.c.l.b16 %v1312
  %v2576 = vunpack.c.h.b16 %v1312
  %v2577 = vunpack.c.l.b16 %v1313
  %v2578 = vunpack.c.h.b16 %v1313
  %v2579 = vunpack.c.l.b16 %v1314
  %v2580 = vunpack.c.h.b16 %v1314
  %v2581 = vunpack.c.l.b16 %v1315
  %v2582 = vunpack.c.h.b16 %v1315
  %v2583 = vunpack.c.l.b16 %v1316
  %v2584 = vunpack.c.h.b16 %v1316
  %v2585 = vunpack.c.l.b16 %v1317
  %v2586 = vunpack.c.h.b16 %v1317
  %v2587 = vunpack.c.l.b16 %v1318
  %v2588 = vunpack.c.h.b16 %v1318
  %v2589 = vunpack.c.l.b16 %v1319
  %v2590 = vunpack.c.h.b16 %v1319
  %v2591 = vunpack.c.l.b16 %v1320
  %v2592 = vunpack.c.h.b16 %v1320
  %v2593 = vunpack.c.l.b16 %v1321
  %v2594 = vunpack.c.h.b16 %v1321
  %v2595 = vunpack.c.l.b16 %v1322
  %v2596 = vunpack.c.h.b16 %v1322
  %v2597 = vunpack.c.l.b16 %v1323
  %v2598 = vunpack.c.h.b16 %v1323
  %v2599 = vunpack.c.l.b16 %v1324
  %v2600 = vunpack.c.h.b16 %v1324
  %v2601 = vunpack.c.l.b16 %v1325
  %v2602 = vunpack.c.h.b16 %v1325
  %v2603 = vunpack.c.l.b16 %v1326
  %v2604 = vunpack.c.h.b16 %v1326
  %v2605 = vunpack.c.l.b16 %v1327
  %v2606 = vunpack.c.h.b16 %v1327
  %v2607 = vunpack.c.l.b16 %v1328
  %v2608 = vunpack.c.h.b16 %v1328
  %v2609 = vunpack.c.l.b16 %v1329
  %v2610 = vunpack.c.h.b16 %v1329
  %v2611 = vunpack.c.l.b16 %v1330
  %v2612 = vunpack.c.h.b16 %v1330
  %v2613 = vunpack.c.l.b16 %v1331
  %v2614 = vunpack.c.h.b16 %v1331
  %v2615 = vunpack.c.l.b16 %v1332
  %v2616 = vunpack.c.h.b16 %v1332
  %v2617 = vunpack.c.l.b16 %v1333
  %v2618 = vunpack.c.h.b16 %v1333
  %v2619 = vunpack.c.l.b16 %v1334
  %v2620 = vunpack.c.h.b16 %v1334
  %v2621 = vunpack.c.l.b16 %v1335
  %v2622 = vunpack.c.h.b16 %v1335
  %v2623 = vunpack.c.l.b16 %v1336
  %v2624 = vunpack.c.h.b16 %v1336
  %v2625 = vunpack.c.l.b16 %v1337
  %v2626 = vunpack.c.h.b16 %v1337
  %v2627 = vunpack.c.l.b16 %v1338
  %v2628 = vunpack.c.h.b16 %v1338
  %v2629 = vunpack.c.l.b16 %v1339
  %v2630 = vunpack.c.h.b16 %v1339
  %v2631 = vunpack.c.l.b16 %v1340
  %v2632 = vunpack.c.h.b16 %v1340
  %v2633 = vunpack.c.l.b16 %v1341
  %v2634 = vunpack.c.h.b16 %v1341
  %v2635 = vunpack.c.l.b16 %v1342
  %v2636 = vunpack.c.h.b16 %v1342
  %v2637 = vunpack.c.l.b16 %v1343
  %v2638 = vunpack.c.h.b16 %v1343
  %v2639 = vunpack.c.l.b16 %v1344
  %v2640 = vunpack.c.h.b16 %v1344
  %v2641 = vunpack.c.l.b16 %v1345
  %v2642 = vunpack.c.h.b16 %v1345
  %v2643 = vunpack.c.l.b16 %v1346
  %v2644 = vunpack.c.h.b16 %v1346
  %v2645 = vunpack.c.l.b16 %v1347
  %v2646 = vunpack.c.h.b16 %v1347
  %v2647 = vunpack.c.l.b16 %v1348
  %v2648 = vunpack.c.h.b16 %v1348
  %v2649 = vunpack.c.l.b16 %v1349
  %v2650 = vunpack.c.h.b16 %v1349
  %v2651 = vunpack.c.l.b16 %v1350
  %v2652 = vunpack.c.h.b16 %v1350
  %v2653 = vunpack.c.l.b16 %v1351
  %v2654 = vunpack.c.h.b16 %v1351
  %v2655 = vunpack.c.l.b16 %v1352
  %v2656 = vunpack.c.h.b16 %v1352
  %v2657 = vunpack.c.l.b16 %v1353
  %v2658 = vunpack.c.h.b16 %v1353
  %v2659 = vunpack.c.l.b16 %v1354
  %v2660 = vunpack.c.h.b16 %v1354
  %v2661 = vunpack.c.l.b16 %v1355
  %v2662 = vunpack.c.h.b16 %v1355
  %v2663 = vunpack.c.l.b16 %v1356
  %v2664 = vunpack.c.h.b16 %v1356
  %v2665 = vunpack.c.l.b16 %v1357
  %v2666 = vunpack.c.h.b16 %v1357
  %v2667 = vunpack.c.l.b16 %v1358
  %v2668 = vunpack.c.h.b16 %v1358
  %v2669 = vunpack.c.l.b16 %v1359
  %v2670 = vunpack.c.h.b16 %v1359
  %v2671 = vunpack.c.l.b16 %v1360
  %v2672 = vunpack.c.h.b16 %v1360
  %v2673 = vunpack.c.l.b16 %v1361
  %v2674 = vunpack.c.h.b16 %v1361
  %v2675 = vunpack.c.l.b16 %v1362
  %v2676 = vunpack.c.h.b16 %v1362
  %v2677 = vunpack.c.l.b16 %v1363
  %v2678 = vunpack.c.h.b16 %v1363
  %v2679 = vunpack.c.l.b16 %v1364
  %v2680 = vunpack.c.h.b16 %v1364
  %v2681 = vunpack.c.l.b16 %v1365
  %v2682 = vunpack.c.h.b16 %v1365
  %v2683 = vunpack.c.l.b16 %v1366
  %v2684 = vunpack.c.h.b16 %v1366
  %v2685 = vunpack.c.l.b16 %v1367
  %v2686 = vunpack.c.h.b16 %v1367
  %v2687 = vunpack.c.l.b16 %v1368
  %v2688 = vunpack.c.h.b16 %v1368
  %v2689 = vunpack.c.l.b16 %v1369
  %v2690 = vunpack.c.h.b16 %v1369
  %v2691 = vunpack.c.l.b16 %v1370
  %v2692 = vunpack.c.h.b16 %v1370
  %v2693 = vunpack.c.l.b16 %v1371
  %v2694 = vunpack.c.h.b16 %v1371
  %v2695 = vunpack.c.l.b16 %v1372
  %v2696 = vunpack.c.h.b16 %v1372
  %v2697 = vunpack.c.l.b16 %v1373
  %v2698 = vunpack.c.h.b16 %v1373
  %v2699 = vunpack.c.l.b16 %v1374
  %v2700 = vunpack.c.h.b16 %v1374
  %v2701 = vunpack.c.l.b16 %v1375
  %v2702 = vunpack.c.h.b16 %v1375
  %v2703 = vunpack.c.l.b16 %v1376
  %v2704 = vunpack.c.h.b16 %v1376
  %v2705 = vunpack.c.l.b16 %v1377
  %v2706 = vunpack.c.h.b16 %v1377
  %v2707 = vunpack.c.l.b16 %v1378
  %v2708 = vunpack.c.h.b16 %v1378
  %v2709 = vunpack.c.l.b16 %v1379
  %v2710 = vunpack.c.h.b16 %v1379
  %v2711 = vunpack.c.l.b16 %v1380
  %v2712 = vunpack.c.h.b16 %v1380
  %v2713 = vunpack.c.l.b16 %v1381
  %v2714 = vunpack.c.h.b16 %v1381
  %v2715 = vunpack.c.l.b16 %v1382
  %v2716 = vunpack.c.h.b16 %v1382
  %v2717 = vunpack.c.l.b16 %v1383
  %v2718 = vunpack.c.h.b16 %v1383
  %v2719 = vunpack.c.l.b16 %v1384
  %v2720 = vunpack.c.h.b16 %v1384
  %v2721 = vunpack.c.l.b16 %v1385
  %v2722 = vunpack.c.h.b16 %v1385
  %v2723 = vunpack.c.l.b16 %v1386
  %v2724 = vunpack.c.h.b16 %v1386
  %v2725 = vunpack.c.l.b16 %v1387
  %v2726 = vunpack.c.h.b16 %v1387
  %v2727 = vunpack.c.l.b16 %v1388
  %v2728 = vunpack.c.h.b16 %v1388
  %v2729 = vunpack.c.l.b16 %v1389
  %v2730 = vunpack.c.h.b16 %v1389
  %v2731 = vunpack.c.l.b16 %v1390
  %v2732 = vunpack.c.h.b16 %v1390
  %v2733 = vunpack.c.l.b16 %v1391
  %v2734 = vunpack.c.h.b16 %v1391
  %v2735 = vunpack.c.l.b16 %v1392
  %v2736 = vunpack.c.h.b16 %v1392
  %v2737 = vunpack.c.l.b16 %v1393
  %v2738 = vunpack.c.h.b16 %v1393
  %v2739 = vunpack.c.l.b16 %v1394
  %v2740 = vunpack.c.h.b16 %v1394
  %v2741 = vunpack.c.l.b16 %v1395
  %v2742 = vunpack.c.h.b16 %v1395
  %v2743 = vunpack.c.l.b16 %v1396
  %v2744 = vunpack.c.h.b16 %v1396
  %v2745 = vunpack.c.l.b16 %v1397
  %v2746 = vunpack.c.h.b16 %v1397
  %v2747 = vunpack.c.l.b16 %v1398
  %v2748 = vunpack.c.h.b16 %v1398
  %v2749 = vunpack.c.l.b16 %v1399
  %v2750 = vunpack.c.h.b16 %v1399
  %v2751 = vunpack.c.l.b16 %v1400
  %v2752 = vunpack.c.h.b16 %v1400
  %v2753 = vunpack.c.l.b16 %v1401
  %v2754 = vunpack.c.h.b16 %v1401
  %v2755 = vunpack.c.l.b16 %v1402
  %v2756 = vunpack.c.h.b16 %v1402
  %v2757 = vunpack.c.l.b16 %v1403
  %v2758 = vunpack.c.h.b16 %v1403
  %v2759 = vunpack.c.l.b16 %v1404
  %v2760 = vunpack.c.h.b16 %v1404
  %v2761 = vunpack.c.l.b16 %v1405
  %v2762 = vunpack.c.h.b16 %v1405
  %v2763 = vunpack.c.l.b16 %v1406
  %v2764 = vunpack.c.h.b16 %v1406
  %v2765 = vunpack.c.l.b16 %v1407
  %v2766 = vunpack.c.h.b16 %v1407
  %v2767 = vunpack.c.l.b16 %v1408
  %v2768 = vunpack.c.h.b16 %v1408
  %v2769 = vunpack.c.l.b16 %v1409
  %v2770 = vunpack.c.h.b16 %v1409
  %v2771 = vunpack.c.l.b16 %v1410
  %v2772 = vunpack.c.h.b16 %v1410
  %v2773 = vunpack.c.l.b16 %v1411
  %v2774 = vunpack.c.h.b16 %v1411
  %v2775 = vunpack.c.l.b16 %v1412
  %v2776 = vunpack.c.h.b16 %v1412
  %v2777 = vunpack.c.l.b16 %v1413
  %v2778 = vunpack.c.h.b16 %v1413
  %v2779 = vunpack.c.l.b16 %v1414
  %v2780 = vunpack.c.h.b16 %v1414
  %v2781 = vunpack.c.l.b16 %v1415
  %v2782 = vunpack.c.h.b16 %v1415
  %v2783 = vunpack.c.l.b16 %v1416
  %v2784 = vunpack.c.h.b16 %v1416
  %v2785 = vunpack.c.l.b16 %v1417
  %v2786 = vunpack.c.h.b16 %v1417
  %v2787 = vunpack.c.l.b16 %v1418
  %v2788 = vunpack.c.h.b16 %v1418
  %v2789 = vunpack.c.l.b16 %v1419
  %v2790 = vunpack.c.h.b16 %v1419
  %v2791 = vunpack.c.l.b16 %v1420
  %v2792 = vunpack.c.h.b16 %v1420
  %v2793 = vunpack.c.l.b16 %v1421
  %v2794 = vunpack.c.h.b16 %v1421
  %v2795 = vunpack.c.l.b16 %v1422
  %v2796 = vunpack.c.h.b16 %v1422
  %v2797 = vunpack.c.l.b16 %v1423
  %v2798 = vunpack.c.h.b16 %v1423
  %v2799 = vunpack.c.l.b16 %v1424
  %v2800 = vunpack.c.h.b16 %v1424
  %v2801 = vunpack.c.l.b16 %v1425
  %v2802 = vunpack.c.h.b16 %v1425
  %v2803 = vunpack.c.l.b16 %v1426
  %v2804 = vunpack.c.h.b16 %v1426
  %v2805 = vunpack.c.l.b16 %v1427
  %v2806 = vunpack.c.h.b16 %v1427
  %v2807 = vunpack.c.l.b16 %v1428
  %v2808 = vunpack.c.h.b16 %v1428
  %v2809 = vunpack.c.l.b16 %v1429
  %v2810 = vunpack.c.h.b16 %v1429
  %v2811 = vunpack.c.l.b16 %v1430
  %v2812 = vunpack.c.h.b16 %v1430
  %v2813 = vunpack.c.l.b16 %v1431
  %v2814 = vunpack.c.h.b16 %v1431
  %v2815 = vunpack.c.l.b16 %v1432
  %v2816 = vunpack.c.h.b16 %v1432
  %v2817 = vunpack.c.l.b16 %v1433
  %v2818 = vunpack.c.h.b16 %v1433
  %v2819 = vunpack.c.l.b16 %v1434
  %v2820 = vunpack.c.h.b16 %v1434
  %v2821 = vunpack.c.l.b16 %v1435
  %v2822 = vunpack.c.h.b16 %v1435
  %v2823 = vunpack.c.l.b16 %v1436
  %v2824 = vunpack.c.h.b16 %v1436
  %v2825 = vunpack.c.l.b16 %v1437
  %v2826 = vunpack.c.h.b16 %v1437
  %v2827 = vunpack.c.l.b16 %v1438
  %v2828 = vunpack.c.h.b16 %v1438
  %v2829 = vunpack.c.l.b16 %v1439
  %v2830 = vunpack.c.h.b16 %v1439
  %v2831 = vunpack.c.l.b16 %v1440
  %v2832 = vunpack.c.h.b16 %v1440
  %v2833 = vunpack.c.l.b16 %v1441
  %v2834 = vunpack.c.h.b16 %v1441
  %v2835 = vunpack.c.l.b16 %v1442
  %v2836 = vunpack.c.h.b16 %v1442
  %v2837 = vunpack.c.l.b16 %v1443
  %v2838 = vunpack.c.h.b16 %v1443
  %v2839 = vunpack.c.l.b16 %v1444
  %v2840 = vunpack.c.h.b16 %v1444
  %v2841 = vunpack.c.l.b16 %v1445
  %v2842 = vunpack.c.h.b16 %v1445
  %v2843 = vunpack.c.l.b16 %v1446
  %v2844 = vunpack.c.h.b16 %v1446
  %v2845 = vunpack.c.l.b16 %v1447
  %v2846 = vunpack.c.h.b16 %v1447
  %v2847 = vunpack.c.l.b16 %v1448
  %v2848 = vunpack.c.h.b16 %v1448
  %v2849 = vunpack.c.l.b16 %v1449
  %v2850 = vunpack.c.h.b16 %v1449
  %v2851 = vunpack.c.l.b16 %v1450
  %v2852 = vunpack.c.h.b16 %v1450
  %v2853 = vunpack.c.l.b16 %v1451
  %v2854 = vunpack.c.h.b16 %v1451
  %v2855 = vunpack.c.l.b16 %v1452
  %v2856 = vunpack.c.h.b16 %v1452
  %v2857 = vunpack.c.l.b16 %v1453
  %v2858 = vunpack.c.h.b16 %v1453
  %v2859 = vunpack.c.l.b16 %v1454
  %v2860 = vunpack.c.h.b16 %v1454
  %v2861 = vunpack.c.l.b16 %v1455
  %v2862 = vunpack.c.h.b16 %v1455
  %v2863 = vunpack.c.l.b16 %v1456
  %v2864 = vunpack.c.h.b16 %v1456
  %v2865 = vunpack.c.l.b16 %v1457
  %v2866 = vunpack.c.h.b16 %v1457
  %v2867 = vunpack.c.l.b16 %v1458
  %v2868 = vunpack.c.h.b16 %v1458
  %v2869 = vunpack.c.l.b16 %v1459
  %v2870 = vunpack.c.h.b16 %v1459
  %v2871 = vunpack.c.l.b16 %v1460
  %v2872 = vunpack.c.h.b16 %v1460
  %v2873 = vunpack.c.l.b16 %v1461
  %v2874 = vunpack.c.h.b16 %v1461
  %v2875 = vunpack.c.l.b16 %v1462
  %v2876 = vunpack.c.h.b16 %v1462
  %v2877 = vunpack.c.l.b16 %v1463
  %v2878 = vunpack.c.h.b16 %v1463
  %v2879 = vunpack.c.l.b16 %v1464
  %v2880 = vunpack.c.h.b16 %v1464
  %v2881 = vunpack.c.l.b16 %v1465
  %v2882 = vunpack.c.h.b16 %v1465
  %v2883 = vunpack.c.l.b16 %v1466
  %v2884 = vunpack.c.h.b16 %v1466
  %v2885 = vunpack.c.l.b16 %v1467
  %v2886 = vunpack.c.h.b16 %v1467
  %v2887 = vunpack.c.l.b16 %v1468
  %v2888 = vunpack.c.h.b16 %v1468
  %v2889 = vunpack.c.l.b16 %v1469
  %v2890 = vunpack.c.h.b16 %v1469
  %v2891 = vunpack.c.l.b16 %v1470
  %v2892 = vunpack.c.h.b16 %v1470
  %v2893 = vunpack.c.l.b16 %v1471
  %v2894 = vunpack.c.h.b16 %v1471
  %v2895 = vunpack.c.l.b16 %v1472
  %v2896 = vunpack.c.h.b16 %v1472
  %v2897 = vunpack.c.l.b16 %v1473
  %v2898 = vunpack.c.h.b16 %v1473
  %v2899 = vunpack.c.l.b16 %v1474
  %v2900 = vunpack.c.h.b16 %v1474
  %v2901 = vunpack.c.l.b16 %v1475
  %v2902 = vunpack.c.h.b16 %v1475
  %v2903 = vunpack.c.l.b16 %v1476
  %v2904 = vunpack.c.h.b16 %v1476
  %v2905 = vunpack.c.l.b16 %v1477
  %v2906 = vunpack.c.h.b16 %v1477
  %v2907 = vunpack.c.l.b16 %v1478
  %v2908 = vunpack.c.h.b16 %v1478
  %v2909 = vunpack.c.l.b16 %v1479
  %v2910 = vunpack.c.h.b16 %v1479
  %v2911 = vunpack.c.l.b16 %v1480
  %v2912 = vunpack.c.h.b16 %v1480
  %v2913 = vunpack.c.l.b16 %v1481
  %v2914 = vunpack.c.h.b16 %v1481
  %v2915 = vunpack.c.l.b16 %v1482
  %v2916 = vunpack.c.h.b16 %v1482
  %v2917 = vunpack.c.l.b16 %v1483
  %v2918 = vunpack.c.h.b16 %v1483
  %v2919 = vunpack.c.l.b16 %v1484
  %v2920 = vunpack.c.h.b16 %v1484
  %v2921 = vunpack.c.l.b16 %v1485
  %v2922 = vunpack.c.h.b16 %v1485
  %v2923 = vunpack.c.l.b16 %v1486
  %v2924 = vunpack.c.h.b16 %v1486
  %v2925 = vunpack.c.l.b16 %v1487
  %v2926 = vunpack.c.h.b16 %v1487
  %v2927 = vunpack.c.l.b16 %v1488
  %v2928 = vunpack.c.h.b16 %v1488
  %v2929 = vunpack.c.l.b16 %v1489
  %v2930 = vunpack.c.h.b16 %v1489
  %v2931 = vunpack.c.l.b16 %v1490
  %v2932 = vunpack.c.h.b16 %v1490
  %v2933 = vunpack.c.l.b16 %v1491
  %v2934 = vunpack.c.h.b16 %v1491
  %v2935 = vunpack.c.l.b16 %v1492
  %v2936 = vunpack.c.h.b16 %v1492
  %v2937 = vunpack.c.l.b16 %v1493
  %v2938 = vunpack.c.h.b16 %v1493
  %v2939 = vunpack.c.l.b16 %v1494
  %v2940 = vunpack.c.h.b16 %v1494
  %v2941 = vunpack.c.l.b16 %v1495
  %v2942 = vunpack.c.h.b16 %v1495
  %v2943 = vunpack.c.l.b16 %v1496
  %v2944 = vunpack.c.h.b16 %v1496
  %v2945 = vunpack.c.l.b16 %v1497
  %v2946 = vunpack.c.h.b16 %v1497
  %v2947 = vunpack.c.l.b16 %v1498
  %v2948 = vunpack.c.h.b16 %v1498
  %v2949 = vunpack.c.l.b16 %v1499
  %v2950 = vunpack.c.h.b16 %v1499
  %v2951 = vunpack.c.l.b16 %v1500
  %v2952 = vunpack.c.h.b16 %v1500
  %v2953 = vunpack.c.l.b16 %v1501
  %v2954 = vunpack.c.h.b16 %v1501
  %v2955 = vunpack.c.l.b16 %v1502
  %v2956 = vunpack.c.h.b16 %v1502
  %v2957 = vunpack.c.l.b16 %v1503
  %v2958 = vunpack.c.h.b16 %v1503
  %v2959 = vunpack.c.l.b16 %v1504
  %v2960 = vunpack.c.h.b16 %v1504
  %v2961 = vunpack.c.l.b16 %v1505
  %v2962 = vunpack.c.h.b16 %v1505
  %v2963 = vunpack.c.l.b16 %v1506
  %v2964 = vunpack.c.h.b16 %v1506
  %v2965 = vunpack.c.l.b16 %v1507
  %v2966 = vunpack.c.h.b16 %v1507
  %v2967 = vunpack.c.l.b16 %v1508
  %v2968 = vunpack.c.h.b16 %v1508
  %v2969 = vunpack.c.l.b16 %v1509
  %v2970 = vunpack.c.h.b16 %v1509
  %v2971 = vunpack.c.l.b16 %v1510
  %v2972 = vunpack.c.h.b16 %v1510
  %v2973 = vunpack.c.l.b16 %v1511
  %v2974 = vunpack.c.h.b16 %v1511
  %v2975 = vunpack.c.l.b16 %v1512
  %v2976 = vunpack.c.h.b16 %v1512
  %v2977 = vunpack.c.l.b16 %v1513
  %v2978 = vunpack.c.h.b16 %v1513
  %v2979 = vunpack.c.l.b16 %v1514
  %v2980 = vunpack.c.h.b16 %v1514
  %v2981 = vunpack.c.l.b16 %v1515
  %v2982 = vunpack.c.h.b16 %v1515
  %v2983 = vunpack.c.l.b16 %v1516
  %v2984 = vunpack.c.h.b16 %v1516
  %v2985 = vunpack.c.l.b16 %v1517
  %v2986 = vunpack.c.h.b16 %v1517
  %v2987 = vunpack.c.l.b16 %v1518
  %v2988 = vunpack.c.h.b16 %v1518
  %v2989 = vunpack.c.l.b16 %v1519
  %v2990 = vunpack.c.h.b16 %v1519
  %v2991 = vunpack.c.l.b16 %v1520
  %v2992 = vunpack.c.h.b16 %v1520
  %v2993 = vunpack.c.l.b16 %v1521
  %v2994 = vunpack.c.h.b16 %v1521
  %v2995 = vunpack.c.l.b16 %v1522
  %v2996 = vunpack.c.h.b16 %v1522
  %v2997 = vunpack.c.l.b16 %v1523
  %v2998 = vunpack.c.h.b16 %v1523
  %v2999 = vunpack.c.l.b16 %v1524
  %v3000 = vunpack.c.h.b16 %v1524
  %v3001 = vunpack.c.l.b16 %v1525
  %v3002 = vunpack.c.h.b16 %v1525
  %v3003 = vunpack.c.l.b16 %v1526
  %v3004 = vunpack.c.h.b16 %v1526
  %v3005 = vunpack.c.l.b16 %v1527
  %v3006 = vunpack.c.h.b16 %v1527
  %v3007 = vunpack.c.l.b16 %v1528
  %v3008 = vunpack.c.h.b16 %v1528
  %v3009 = vunpack.c.l.b16 %v1529
  %v3010 = vunpack.c.h.b16 %v1529
  %v3011 = vunpack.c.l.b16 %v1530
  %v3012 = vunpack.c.h.b16 %v1530
  %v3013 = vunpack.c.l.b16 %v1531
  %v3014 = vunpack.c.h.b16 %v1531
  %v3015 = vunpack.c.l.b16 %v1532
  %v3016 = vunpack.c.h.b16 %v1532
  %v3017 = vunpack.c.l.b16 %v1533
  %v3018 = vunpack.c.h.b16 %v1533
  %v3019 = vunpack.c.l.b16 %v1534
  %v3020 = vunpack.c.h.b16 %v1534
  %v3021 = vunpack.c.l.b16 %v1535
  %v3022 = vunpack.c.h.b16 %v1535
  %v3023 = vunpack.c.l.b16 %v1536
  %v3024 = vunpack.c.h.b16 %v1536
  %v3025 = vunpack.c.l.b16 %v1537
  %v3026 = vunpack.c.h.b16 %v1537
  %v3027 = vunpack.c.l.b16 %v1538
  %v3028 = vunpack.c.h.b16 %v1538
  %v3029 = vunpack.c.l.b16 %v1539
  %v3030 = vunpack.c.h.b16 %v1539
  %v3031 = vunpack.c.l.b16 %v1540
  %v3032 = vunpack.c.h.b16 %v1540
  %v3033 = vunpack.c.l.b16 %v1541
  %v3034 = vunpack.c.h.b16 %v1541
  %v3035 = vunpack.c.l.b16 %v1542
  %v3036 = vunpack.c.h.b16 %v1542
  %v3037 = vunpack.c.l.b16 %v1543
  %v3038 = vunpack.c.h.b16 %v1543
  %v3039 = vunpack.c.l.b16 %v1544
  %v3040 = vunpack.c.h.b16 %v1544
  %v3041 = vunpack.c.l.b16 %v1545
  %v3042 = vunpack.c.h.b16 %v1545
  %v3043 = vunpack.c.l.b16 %v1546
  %v3044 = vunpack.c.h.b16 %v1546
  %v3045 = vunpack.c.l.b16 %v1547
  %v3046 = vunpack.c.h.b16 %v1547
  %v3047 = vunpack.c.l.b16 %v1548
  %v3048 = vunpack.c.h.b16 %v1548
  %v3049 = vunpack.c.l.b16 %v1549
  %v3050 = vunpack.c.h.b16 %v1549
  %v3051 = vunpack.c.l.b16 %v1550
  %v3052 = vunpack.c.h.b16 %v1550
  %v3053 = vunpack.c.l.b16 %v1551
  %v3054 = vunpack.c.h.b16 %v1551
  %v3055 = vunpack.c.l.b16 %v1552
  %v3056 = vunpack.c.h.b16 %v1552
  %v3057 = vunpack.c.l.b16 %v1553
  %v3058 = vunpack.c.h.b16 %v1553
  %v3059 = vunpack.c.l.b16 %v1554
  %v3060 = vunpack.c.h.b16 %v1554
  %v3061 = vunpack.c.l.b16 %v1555
  %v3062 = vunpack.c.h.b16 %v1555
  %v3063 = vunpack.c.l.b16 %v1556
  %v3064 = vunpack.c.h.b16 %v1556
  %v3065 = vunpack.c.l.b16 %v1557
  %v3066 = vunpack.c.h.b16 %v1557
  %v3067 = vunpack.c.l.b16 %v1558
  %v3068 = vunpack.c.h.b16 %v1558
  %v3069 = vunpack.c.l.b16 %v1559
  %v3070 = vunpack.c.h.b16 %v1559
  %v3071 = vunpack.c.l.b16 %v1560
  %v3072 = vunpack.c.h.b16 %v1560
  %v3073 = vunpack.c.l.b16 %v1561
  %v3074 = vunpack.c.h.b16 %v1561
  %v3075 = vunpack.c.l.b16 %v1562
  %v3076 = vunpack.c.h.b16 %v1562
  %v3077 = vunpack.c.l.b16 %v1563
  %v3078 = vunpack.c.h.b16 %v1563
  %v3079 = vunpack.c.l.b16 %v1564
  %v3080 = vunpack.c.h.b16 %v1564
  %v3081 = vunpack.c.l.b16 %v1565
  %v3082 = vunpack.c.h.b16 %v1565
  %v3083 = vunpack.c.l.b16 %v1566
  %v3084 = vunpack.c.h.b16 %v1566
  %v3085 = vunpack.c.l.b16 %v1567
  %v3086 = vunpack.c.h.b16 %v1567
  %v3087 = vunpack.c.l.b16 %v1568
  %v3088 = vunpack.c.h.b16 %v1568
  %v3089 = vunpack.c.l.b16 %v1569
  %v3090 = vunpack.c.h.b16 %v1569
  %v3091 = vunpack.c.l.b16 %v1570
  %v3092 = vunpack.c.h.b16 %v1570
  %v3093 = vunpack.c.l.b16 %v1571
  %v3094 = vunpack.c.h.b16 %v1571
  %v3095 = vunpack.c.l.b16 %v1572
  %v3096 = vunpack.c.h.b16 %v1572
  %v3097 = vunpack.c.l.b16 %v1573
  %v3098 = vunpack.c.h.b16 %v1573
  %v3099 = vunpack.c.l.b16 %v1574
  %v3100 = vunpack.c.h.b16 %v1574
  %v3101 = vunpack.c.l.b16 %v1575
  %v3102 = vunpack.c.h.b16 %v1575
  %v3103 = vunpack.c.l.b16 %v1576
  %v3104 = vunpack.c.h.b16 %v1576
  %v3105 = vunpack.c.l.b16 %v1577
  %v3106 = vunpack.c.h.b16 %v1577
  %v3107 = vunpack.c.l.b16 %v1578
  %v3108 = vunpack.c.h.b16 %v1578
  %v3109 = vunpack.c.l.b16 %v1579
  %v3110 = vunpack.c.h.b16 %v1579
  %v3111 = vunpack.c.l.b16 %v1580
  %v3112 = vunpack.c.h.b16 %v1580
  %v3113 = vunpack.c.l.b16 %v1581
  %v3114 = vunpack.c.h.b16 %v1581
  %v3115 = vunpack.c.l.b16 %v1582
  %v3116 = vunpack.c.h.b16 %v1582
  %v3117 = vunpack.c.l.b16 %v1583
  %v3118 = vunpack.c.h.b16 %v1583
  %v3119 = vunpack.c.l.b16 %v1584
  %v3120 = vunpack.c.h.b16 %v1584
  %v3121 = vpack.c.b16 %v2105, %v2097
  %v3122 = vpack.c.b16 %v2106, %v2098
  %v3123 = vpack.c.b16 %v2107, %v2099
  %v3124 = vpack.c.b16 %v2108, %v2100
  %v3125 = vpack.c.b16 %v2109, %v2101
  %v3126 = vpack.c.b16 %v2110, %v2102
  %v3127 = vpack.c.b16 %v2111, %v2103
  %v3128 = vpack.c.b16 %v2112, %v2104
  %v3129 = vpack.c.b16 %v2121, %v2113
  %v3130 = vpack.c.b16 %v2122, %v2114
  %v3131 = vpack.c.b16 %v2123, %v2115
  %v3132 = vpack.c.b16 %v2124, %v2116
  %v3133 = vpack.c.b16 %v2125, %v2117
  %v3134 = vpack.c.b16 %v2126, %v2118
  %v3135 = vpack.c.b16 %v2127, %v2119
  %v3136 = vpack.c.b16 %v2128, %v2120
  %v3137 = vpack.c.b16 %v2137, %v2129
  %v3138 = vpack.c.b16 %v2138, %v2130
  %v3139 = vpack.c.b16 %v2139, %v2131
  %v3140 = vpack.c.b16 %v2140, %v2132
  %v3141 = vpack.c.b16 %v2141, %v2133
  %v3142 = vpack.c.b16 %v2142, %v2134
  %v3143 = vpack.c.b16 %v2143, %v2135
  %v3144 = vpack.c.b16 %v2144, %v2136
  %v3145 = vpack.c.b16 %v2153, %v2145
  %v3146 = vpack.c.b16 %v2154, %v2146
  %v3147 = vpack.c.b16 %v2155, %v2147
  %v3148 = vpack.c.b16 %v2156, %v2148
  %v3149 = vpack.c.b16 %v2157, %v2149
  %v3150 = vpack.c.b16 %v2158, %v2150
  %v3151 = vpack.c.b16 %v2159, %v2151
  %v3152 = vpack.c.b16 %v2160, %v2152
  %v3153 = vpack.c.b16 %v2169, %v2161
  %v3154 = vpack.c.b16 %v2170, %v2162
  %v3155 = vpack.c.b16 %v2171, %v2163
  %v3156 = vpack.c.b16 %v2172, %v2164
  %v3157 = vpack.c.b16 %v2173, %v2165
  %v3158 = vpack.c.b16 %v2174, %v2166
  %v3159 = vpack.c.b16 %v2175, %v2167
  %v3160 = vpack.c.b16 %v2176, %v2168
  %v3161 = vpack.c.b16 %v2185, %v2177
  %v3162 = vpack.c.b16 %v2186, %v2178
  %v3163 = vpack.c.b16 %v2187, %v2179
  %v3164 = vpack.c.b16 %v2188, %v2180
  %v3165 = vpack.c.b16 %v2189, %v2181
  %v3166 = vpack.c.b16 %v2190, %v2182
  %v3167 = vpack.c.b16 %v2191, %v2183
  %v3168 = vpack.c.b16 %v2192, %v2184
  %v3169 = vpack.c.b16 %v2201, %v2193
  %v3170 = vpack.c.b16 %v2202, %v2194
  %v3171 = vpack.c.b16 %v2203, %v2195
  %v3172 = vpack.c.b16 %v2204, %v2196
  %v3173 = vpack.c.b16 %v2205, %v2197
  %v3174 = vpack.c.b16 %v2206, %v2198
  %v3175 = vpack.c.b16 %v2207, %v2199
  %v3176 = vpack.c.b16 %v2208, %v2200
  %v3177 = vpack.c.b16 %v2217, %v2209
  %v3178 = vpack.c.b16 %v2218, %v2210
  %v3179 = vpack.c.b16 %v2219, %v2211
  %v3180 = vpack.c.b16 %v2220, %v2212
  %v3181 = vpack.c.b16 %v2221, %v2213
  %v3182 = vpack.c.b16 %v2222, %v2214
  %v3183 = vpack.c.b16 %v2223, %v2215
  %v3184 = vpack.c.b16 %v2224, %v2216
  %v3185 = vpack.c.b16 %v2233, %v2225
  %v3186 = vpack.c.b16 %v2234, %v2226
  %v3187 = vpack.c.b16 %v2235, %v2227
  %v3188 = vpack.c.b16 %v2236, %v2228
  %v3189 = vpack.c.b16 %v2237, %v2229
  %v3190 = vpack.c.b16 %v2238, %v2230
  %v3191 = vpack.c.b16 %v2239, %v2231
  %v3192 = vpack.c.b16 %v2240, %v2232
  %v3193 = vpack.c.b16 %v2249, %v2241
  %v3194 = vpack.c.b16 %v2250, %v2242
  %v3195 = vpack.c.b16 %v2251, %v2243
  %v3196 = vpack.c.b16 %v2252, %v2244
  %v3197 = vpack.c.b16 %v2253, %v2245
  %v3198 = vpack.c.b16 %v2254, %v2246
  %v3199 = vpack.c.b16 %v2255, %v2247
  %v3200 = vpack.c.b16 %v2256, %v2248
  %v3201 = vpack.c.b16 %v2265, %v2257
  %v3202 = vpack.c.b16 %v2266, %v2258
  %v3203 = vpack.c.b16 %v2267, %v2259
  %v3204 = vpack.c.b16 %v2268, %v2260
  %v3205 = vpack.c.b16 %v2269, %v2261
  %v3206 = vpack.c.b16 %v2270, %v2262
  %v3207 = vpack.c.b16 %v2271, %v2263
  %v3208 = vpack.c.b16 %v2272, %v2264
  %v3209 = vpack.c.b16 %v2281, %v2273
  %v3210 = vpack.c.b16 %v2282, %v2274
  %v3211 = vpack.c.b16 %v2283, %v2275
  %v3212 = vpack.c.b16 %v2284, %v2276
  %v3213 = vpack.c.b16 %v2285, %v2277
  %v3214 = vpack.c.b16 %v2286, %v2278
  %v3215 = vpack.c.b16 %v2287, %v2279
  %v3216 = vpack.c.b16 %v2288, %v2280
  %v3217 = vpack.c.b16 %v2297, %v2289
  %v3218 = vpack.c.b16 %v2298, %v2290
  %v3219 = vpack.c.b16 %v2299, %v2291
  %v3220 = vpack.c.b16 %v2300, %v2292
  %v3221 = vpack.c.b16 %v2301, %v2293
  %v3222 = vpack.c.b16 %v2302, %v2294
  %v3223 = vpack.c.b16 %v2303, %v2295
  %v3224 = vpack.c.b16 %v2304, %v2296
  %v3225 = vpack.c.b16 %v2313, %v2305
  %v3226 = vpack.c.b16 %v2314, %v2306
  %v3227 = vpack.c.b16 %v2315, %v2307
  %v3228 = vpack.c.b16 %v2316, %v2308
  %v3229 = vpack.c.b16 %v2317, %v2309
  %v3230 = vpack.c.b16 %v2318, %v2310
  %v3231 = vpack.c.b16 %v2319, %v2311
  %v3232 = vpack.c.b16 %v2320, %v2312
  %v3233 = vpack.c.b16 %v2329, %v2321
  %v3234 = vpack.c.b16 %v2330, %v2322
  %v3235 = vpack.c.b16 %v2331, %v2323
  %v3236 = vpack.c.b16 %v2332, %v2324
  %v3237 = vpack.c.b16 %v2333, %v2325
  %v3238 = vpack.c.b16 %v2334, %v2326
  %v3239 = vpack.c.b16 %v2335, %v2327
  %v3240 = vpack.c.b16 %v2336, %v2328
  %v3241 = vpack.c.b16 %v2345, %v2337
  %v3242 = vpack.c.b16 %v2346, %v2338
  %v3243 = vpack.c.b16 %v2347, %v2339
  %v3244 = vpack.c.b16 %v2348, %v2340
  %v3245 = vpack.c.b16 %v2349, %v2341
  %v3246 = vpack.c.b16 %v2350, %v2342
  %v3247 = vpack.c.b16 %v2351, %v2343
  %v3248 = vpack.c.b16 %v2352, %v2344
  %v3249 = vpack.c.b16 %v2361, %v2353
  %v3250 = vpack.c.b16 %v2362, %v2354
  %v3251 = vpack.c.b16 %v2363, %v2355
  %v3252 = vpack.c.b16 %v2364, %v2356
  %v3253 = vpack.c.b16 %v2365, %v2357
  %v3254 = vpack.c.b16 %v2366, %v2358
  %v3255 = vpack.c.b16 %v2367, %v2359
  %v3256 = vpack.c.b16 %v2368, %v2360
  %v3257 = vpack.c.b16 %v2377, %v2369
  %v3258 = vpack.c.b16 %v2378, %v2370
  %v3259 = vpack.c.b16 %v2379, %v2371
  %v3260 = vpack.c.b16 %v2380, %v2372
  %v3261 = vpack.c.b16 %v2381, %v2373
  %v3262 = vpack.c.b16 %v2382, %v2374
  %v3263 = vpack.c.b16 %v2383, %v2375
  %v3264 = vpack.c.b16 %v2384, %v2376
  %v3265 = vpack.c.b16 %v2393, %v2385
  %v3266 = vpack.c.b16 %v2394, %v2386
  %v3267 = vpack.c.b16 %v2395, %v2387
  %v3268 = vpack.c.b16 %v2396, %v2388
  %v3269 = vpack.c.b16 %v2397, %v2389
  %v3270 = vpack.c.b16 %v2398, %v2390
  %v3271 = vpack.c.b16 %v2399, %v2391
  %v3272 = vpack.c.b16 %v2400, %v2392
  %v3273 = vpack.c.b16 %v2409, %v2401
  %v3274 = vpack.c.b16 %v2410, %v2402
  %v3275 = vpack.c.b16 %v2411, %v2403
  %v3276 = vpack.c.b16 %v2412, %v2404
  %v3277 = vpack.c.b16 %v2413, %v2405
  %v3278 = vpack.c.b16 %v2414, %v2406
  %v3279 = vpack.c.b16 %v2415, %v2407
  %v3280 = vpack.c.b16 %v2416, %v2408
  %v3281 = vpack.c.b16 %v2425, %v2417
  %v3282 = vpack.c.b16 %v2426, %v2418
  %v3283 = vpack.c.b16 %v2427, %v2419
  %v3284 = vpack.c.b16 %v2428, %v2420
  %v3285 = vpack.c.b16 %v2429, %v2421
  %v3286 = vpack.c.b16 %v2430, %v2422
  %v3287 = vpack.c.b16 %v2431, %v2423
  %v3288 = vpack.c.b16 %v2432, %v2424
  %v3289 = vpack.c.b16 %v2441, %v2433
  %v3290 = vpack.c.b16 %v2442, %v2434
  %v3291 = vpack.c.b16 %v2443, %v2435
  %v3292 = vpack.c.b16 %v2444, %v2436
  %v3293 = vpack.c.b16 %v2445, %v2437
  %v3294 = vpack.c.b16 %v2446, %v2438
  %v3295 = vpack.c.b16 %v2447, %v2439
  %v3296 = vpack.c.b16 %v2448, %v2440
  %v3297 = vpack.c.b16 %v2457, %v2449
  %v3298 = vpack.c.b16 %v2458, %v2450
  %v3299 = vpack.c.b16 %v2459, %v2451
  %v3300 = vpack.c.b16 %v2460, %v2452
  %v3301 = vpack.c.b16 %v2461, %v2453
  %v3302 = vpack.c.b16 %v2462, %v2454
  %v3303 = vpack.c.b16 %v2463, %v2455
  %v3304 = vpack.c.b16 %v2464, %v2456
  %v3305 = vpack.c.b16 %v2473, %v2465
  %v3306 = vpack.c.b16 %v2474, %v2466
  %v3307 = vpack.c.b16 %v2475, %v2467
  %v3308 = vpack.c.b16 %v2476, %v2468
  %v3309 = vpack.c.b16 %v2477, %v2469
  %v3310 = vpack.c.b16 %v2478, %v2470
  %v3311 = vpack.c.b16 %v2479, %v2471
  %v3312 = vpack.c.b16 %v2480, %v2472
  %v3313 = vpack.c.b16 %v2489, %v2481
  %v3314 = vpack.c.b16 %v2490, %v2482
  %v3315 = vpack.c.b16 %v2491, %v2483
  %v3316 = vpack.c.b16 %v2492, %v2484
  %v3317 = vpack.c.b16 %v2493, %v2485
  %v3318 = vpack.c.b16 %v2494, %v2486
  %v3319 = vpack.c.b16 %v2495, %v2487
  %v3320 = vpack.c.b16 %v2496, %v2488
  %v3321 = vpack.c.b16 %v2505, %v2497
  %v3322 = vpack.c.b16 %v2506, %v2498
  %v3323 = vpack.c.b16 %v2507, %v2499
  %v3324 = vpack.c.b16 %v2508, %v2500
  %v3325 = vpack.c.b16 %v2509, %v2501
  %v3326 = vpack.c.b16 %v2510, %v2502
  %v3327 = vpack.c.b16 %v2511, %v2503
  %v3328 = vpack.c.b16 %v2512, %v2504
  %v3329 = vpack.c.b16 %v2521, %v2513
  %v3330 = vpack.c.b16 %v2522, %v2514
  %v3331 = vpack.c.b16 %v2523, %v2515
  %v3332 = vpack.c.b16 %v2524, %v2516
  %v3333 = vpack.c.b16 %v2525, %v2517
  %v3334 = vpack.c.b16 %v2526, %v2518
  %v3335 = vpack.c.b16 %v2527, %v2519
  %v3336 = vpack.c.b16 %v2528, %v2520
  %v3337 = vpack.c.b16 %v2537, %v2529
  %v3338 = vpack.c.b16 %v2538, %v2530
  %v3339 = vpack.c.b16 %v2539, %v2531
  %v3340 = vpack.c.b16 %v2540, %v2532
  %v3341 = vpack.c.b16 %v2541, %v2533
  %v3342 = vpack.c.b16 %v2542, %v2534
  %v3343 = vpack.c.b16 %v2543, %v2535
  %v3344 = vpack.c.b16 %v2544, %v2536
  %v3345 = vpack.c.b16 %v2553, %v2545
  %v3346 = vpack.c.b16 %v2554, %v2546
  %v3347 = vpack.c.b16 %v2555, %v2547
  %v3348 = vpack.c.b16 %v2556, %v2548
  %v3349 = vpack.c.b16 %v2557, %v2549
  %v3350 = vpack.c.b16 %v2558, %v2550
  %v3351 = vpack.c.b16 %v2559, %v2551
  %v3352 = vpack.c.b16 %v2560, %v2552
  %v3353 = vpack.c.b16 %v2569, %v2561
  %v3354 = vpack.c.b16 %v2570, %v2562
  %v3355 = vpack.c.b16 %v2571, %v2563
  %v3356 = vpack.c.b16 %v2572, %v2564
  %v3357 = vpack.c.b16 %v2573, %v2565
  %v3358 = vpack.c.b16 %v2574, %v2566
  %v3359 = vpack.c.b16 %v2575, %v2567
  %v3360 = vpack.c.b16 %v2576, %v2568
  %v3361 = vpack.c.b16 %v2585, %v2577
  %v3362 = vpack.c.b16 %v2586, %v2578
  %v3363 = vpack.c.b16 %v2587, %v2579
  %v3364 = vpack.c.b16 %v2588, %v2580
  %v3365 = vpack.c.b16 %v2589, %v2581
  %v3366 = vpack.c.b16 %v2590, %v2582
  %v3367 = vpack.c.b16 %v2591, %v2583
  %v3368 = vpack.c.b16 %v2592, %v2584
  %v3369 = vpack.c.b16 %v2601, %v2593
  %v3370 = vpack.c.b16 %v2602, %v2594
  %v3371 = vpack.c.b16 %v2603, %v2595
  %v3372 = vpack.c.b16 %v2604, %v2596
  %v3373 = vpack.c.b16 %v2605, %v2597
  %v3374 = vpack.c.b16 %v2606, %v2598
  %v3375 = vpack.c.b16 %v2607, %v2599
  %v3376 = vpack.c.b16 %v2608, %v2600
  %v3377 = vpack.c.b16 %v2617, %v2609
  %v3378 = vpack.c.b16 %v2618, %v2610
  %v3379 = vpack.c.b16 %v2619, %v2611
  %v3380 = vpack.c.b16 %v2620, %v2612
  %v3381 = vpack.c.b16 %v2621, %v2613
  %v3382 = vpack.c.b16 %v2622, %v2614
  %v3383 = vpack.c.b16 %v2623, %v2615
  %v3384 = vpack.c.b16 %v2624, %v2616
  %v3385 = vpack.c.b16 %v2633, %v2625
  %v3386 = vpack.c.b16 %v2634, %v2626
  %v3387 = vpack.c.b16 %v2635, %v2627
  %v3388 = vpack.c.b16 %v2636, %v2628
  %v3389 = vpack.c.b16 %v2637, %v2629
  %v3390 = vpack.c.b16 %v2638, %v2630
  %v3391 = vpack.c.b16 %v2639, %v2631
  %v3392 = vpack.c.b16 %v2640, %v2632
  %v3393 = vpack.c.b16 %v2649, %v2641
  %v3394 = vpack.c.b16 %v2650, %v2642
  %v3395 = vpack.c.b16 %v2651, %v2643
  %v3396 = vpack.c.b16 %v2652, %v2644
  %v3397 = vpack.c.b16 %v2653, %v2645
  %v3398 = vpack.c.b16 %v2654, %v2646
  %v3399 = vpack.c.b16 %v2655, %v2647
  %v3400 = vpack.c.b16 %v2656, %v2648
  %v3401 = vpack.c.b16 %v2665, %v2657
  %v3402 = vpack.c.b16 %v2666, %v2658
  %v3403 = vpack.c.b16 %v2667, %v2659
  %v3404 = vpack.c.b16 %v2668, %v2660
  %v3405 = vpack.c.b16 %v2669, %v2661
  %v3406 = vpack.c.b16 %v2670, %v2662
  %v3407 = vpack.c.b16 %v2671, %v2663
  %v3408 = vpack.c.b16 %v2672, %v2664
  %v3409 = vpack.c.b16 %v2681, %v2673
  %v3410 = vpack.c.b16 %v2682, %v2674
  %v3411 = vpack.c.b16 %v2683, %v2675
  %v3412 = vpack.c.b16 %v2684, %v2676
  %v3413 = vpack.c.b16 %v2685, %v2677
  %v3414 = vpack.c.b16 %v2686, %v2678
  %v3415 = vpack.c.b16 %v2687, %v2679
  %v3416 = vpack.c.b16 %v2688, %v2680
  %v3417 = vpack.c.b16 %v2697, %v2689
  %v3418 = vpack.c.b16 %v2698, %v2690
  %v3419 = vpack.c.b16 %v2699, %v2691
  %v3420 = vpack.c.b16 %v2700, %v2692
  %v3421 = vpack.c.b16 %v2701, %v2693
  %v3422 = vpack.c.b16 %v2702, %v2694
  %v3423 = vpack.c.b16 %v2703, %v2695
  %v3424 = vpack.c.b16 %v2704, %v2696
  %v3425 = vpack.c.b16 %v2713, %v2705
  %v3426 = vpack.c.b16 %v2714, %v2706
  %v3427 = vpack.c.b16 %v2715, %v2707
  %v3428 = vpack.c.b16 %v2716, %v2708
  %v3429 = vpack.c.b16 %v2717, %v2709
  %v3430 = vpack.c.b16 %v2718, %v2710
  %v3431 = vpack.c.b16 %v2719, %v2711
  %v3432 = vpack.c.b16 %v2720, %v2712
  %v3433 = vpack.c.b16 %v2729, %v2721
  %v3434 = vpack.c.b16 %v2730, %v2722
  %v3435 = vpack.c.b16 %v2731, %v2723
  %v3436 = vpack.c.b16 %v2732, %v2724
  %v3437 = vpack.c.b16 %v2733, %v2725
  %v3438 = vpack.c.b16 %v2734, %v2726
  %v3439 = vpack.c.b16 %v2735, %v2727
  %v3440 = vpack.c.b16 %v2736, %v2728
  %v3441 = vpack.c.b16 %v2745, %v2737
  %v3442 = vpack.c.b16 %v2746, %v2738
  %v3443 = vpack.c.b16 %v2747, %v2739
  %v3444 = vpack.c.b16 %v2748, %v2740
  %v3445 = vpack.c.b16 %v2749, %v2741
  %v3446 = vpack.c.b16 %v2750, %v2742
  %v3447 = vpack.c.b16 %v2751, %v2743
  %v3448 = vpack.c.b16 %v2752, %v2744
  %v3449 = vpack.c.b16 %v2761, %v2753
  %v3450 = vpack.c.b16 %v2762, %v2754
  %v3451 = vpack.c.b16 %v2763, %v2755
  %v3452 = vpack.c.b16 %v2764, %v2756
  %v3453 = vpack.c.b16 %v2765, %v2757
  %v3454 = vpack.c.b16 %v2766, %v2758
  %v3455 = vpack.c.b16 %v2767, %v2759
  %v3456 = vpack.c.b16 %v2768, %v2760
  %v3457 = vpack.c.b16 %v2777, %v2769
  %v3458 = vpack.c.b16 %v2778, %v2770
  %v3459 = vpack.c.b16 %v2779, %v2771
  %v3460 = vpack.c.b16 %v2780, %v2772
  %v3461 = vpack.c.b16 %v2781, %v2773
  %v3462 = vpack.c.b16 %v2782, %v2774
  %v3463 = vpack.c.b16 %v2783, %v2775
  %v3464 = vpack.c.b16 %v2784, %v2776
  %v3465 = vpack.c.b16 %v2793, %v2785
  %v3466 = vpack.c.b16 %v2794, %v2786
  %v3467 = vpack.c.b16 %v2795, %v2787
  %v3468 = vpack.c.b16 %v2796, %v2788
  %v3469 = vpack.c.b16 %v2797, %v2789
  %v3470 = vpack.c.b16 %v2798, %v2790
  %v3471 = vpack.c.b16 %v2799, %v2791
  %v3472 = vpack.c.b16 %v2800, %v2792
  %v3473 = vpack.c.b16 %v2809, %v2801
  %v3474 = vpack.c.b16 %v2810, %v2802
  %v3475 = vpack.c.b16 %v2811, %v2803
  %v3476 = vpack.c.b16 %v2812, %v2804
  %v3477 = vpack.c.b16 %v2813, %v2805
  %v3478 = vpack.c.b16 %v2814, %v2806
  %v3479 = vpack.c.b16 %v2815, %v2807
  %v3480 = vpack.c.b16 %v2816, %v2808
  %v3481 = vpack.c.b16 %v2825, %v2817
  %v3482 = vpack.c.b16 %v2826, %v2818
  %v3483 = vpack.c.b16 %v2827, %v2819
  %v3484 = vpack.c.b16 %v2828, %v2820
  %v3485 = vpack.c.b16 %v2829, %v2821
  %v3486 = vpack.c.b16 %v2830, %v2822
  %v3487 = vpack.c.b16 %v2831, %v2823
  %v3488 = vpack.c.b16 %v2832, %v2824
  %v3489 = vpack.c.b16 %v2841, %v2833
  %v3490 = vpack.c.b16 %v2842, %v2834
  %v3491 = vpack.c.b16 %v2843, %v2835
  %v3492 = vpack.c.b16 %v2844, %v2836
  %v3493 = vpack.c.b16 %v2845, %v2837
  %v3494 = vpack.c.b16 %v2846, %v2838
  %v3495 = vpack.c.b16 %v2847, %v2839
  %v3496 = vpack.c.b16 %v2848, %v2840
  %v3497 = vpack.c.b16 %v2857, %v2849
  %v3498 = vpack.c.b16 %v2858, %v2850
  %v3499 = vpack.c.b16 %v2859, %v2851
  %v3500 = vpack.c.b16 %v2860, %v2852
  %v3501 = vpack.c.b16 %v2861, %v2853
  %v3502 = vpack.c.b16 %v2862, %v2854
  %v3503 = vpack.c.b16 %v2863, %v2855
  %v3504 = vpack.c.b16 %v2864, %v2856
  %v3505 = vpack.c.b16 %v2873, %v2865
  %v3506 = vpack.c.b16 %v2874, %v2866
  %v3507 = vpack.c.b16 %v2875, %v2867
  %v3508 = vpack.c.b16 %v2876, %v2868
  %v3509 = vpack.c.b16 %v2877, %v2869
  %v3510 = vpack.c.b16 %v2878, %v2870
  %v3511 = vpack.c.b16 %v2879, %v2871
  %v3512 = vpack.c.b16 %v2880, %v2872
  %v3513 = vpack.c.b16 %v2889, %v2881
  %v3514 = vpack.c.b16 %v2890, %v2882
  %v3515 = vpack.c.b16 %v2891, %v2883
  %v3516 = vpack.c.b16 %v2892, %v2884
  %v3517 = vpack.c.b16 %v2893, %v2885
  %v3518 = vpack.c.b16 %v2894, %v2886
  %v3519 = vpack.c.b16 %v2895, %v2887
  %v3520 = vpack.c.b16 %v2896, %v2888
  %v3521 = vpack.c.b16 %v2905, %v2897
  %v3522 = vpack.c.b16 %v2906, %v2898
  %v3523 = vpack.c.b16 %v2907, %v2899
  %v3524 = vpack.c.b16 %v2908, %v2900
  %v3525 = vpack.c.b16 %v2909, %v2901
  %v3526 = vpack.c.b16 %v2910, %v2902
  %v3527 = vpack.c.b16 %v2911, %v2903
  %v3528 = vpack.c.b16 %v2912, %v2904
  %v3529 = vpack.c.b16 %v2921, %v2913
  %v3530 = vpack.c.b16 %v2922, %v2914
  %v3531 = vpack.c.b16 %v2923, %v2915
  %v3532 = vpack.c.b16 %v2924, %v2916
  %v3533 = vpack.c.b16 %v2925, %v2917
  %v3534 = vpack.c.b16 %v2926, %v2918
  %v3535 = vpack.c.b16 %v2927, %v2919
  %v3536 = vpack.c.b16 %v2928, %v2920
  %v3537 = vpack.c.b16 %v2937, %v2929
  %v3538 = vpack.c.b16 %v2938, %v2930
  %v3539 = vpack.c.b16 %v2939, %v2931
  %v3540 = vpack.c.b16 %v2940, %v2932
  %v3541 = vpack.c.b16 %v2941, %v2933
  %v3542 = vpack.c.b16 %v2942, %v2934
  %v3543 = vpack.c.b16 %v2943, %v2935
  %v3544 = vpack.c.b16 %v2944, %v2936
  %v3545 = vpack.c.b16 %v2953, %v2945
  %v3546 = vpack.c.b16 %v2954, %v2946
  %v3547 = vpack.c.b16 %v2955, %v2947
  %v3548 = vpack.c.b16 %v2956, %v2948
  %v3549 = vpack.c.b16 %v2957, %v2949
  %v3550 = vpack.c.b16 %v2958, %v2950
  %v3551 = vpack.c.b16 %v2959, %v2951
  %v3552 = vpack.c.b16 %v2960, %v2952
  %v3553 = vpack.c.b16 %v2969, %v2961
  %v3554 = vpack.c.b16 %v2970, %v2962
  %v3555 = vpack.c.b16 %v2971, %v2963
  %v3556 = vpack.c.b16 %v2972, %v2964
  %v3557 = vpack.c.b16 %v2973, %v2965
  %v3558 = vpack.c.b16 %v2974, %v2966
  %v3559 = vpack.c.b16 %v2975, %v2967
  %v3560 = vpack.c.b16 %v2976, %v2968
  %v3561 = vpack.c.b16 %v2985, %v2977
  %v3562 = vpack.c.b16 %v2986, %v2978
  %v3563 = vpack.c.b16 %v2987, %v2979
  %v3564 = vpack.c.b16 %v2988, %v2980
  %v3565 = vpack.c.b16 %v2989, %v2981
  %v3566 = vpack.c.b16 %v2990, %v2982
  %v3567 = vpack.c.b16 %v2991, %v2983
  %v3568 = vpack.c.b16 %v2992, %v2984
  %v3569 = vpack.c.b16 %v3001, %v2993
  %v3570 = vpack.c.b16 %v3002, %v2994
  %v3571 = vpack.c.b16 %v3003, %v2995
  %v3572 = vpack.c.b16 %v3004, %v2996
  %v3573 = vpack.c.b16 %v3005, %v2997
  %v3574 = vpack.c.b16 %v3006, %v2998
  %v3575 = vpack.c.b16 %v3007, %v2999
  %v3576 = vpack.c.b16 %v3008, %v3000
  %v3577 = vpack.c.b16 %v3017, %v3009
  %v3578 = vpack.c.b16 %v3018, %v3010
  %v3579 = vpack.c.b16 %v3019, %v3011
  %v3580 = vpack.c.b16 %v3020, %v3012
  %v3581 = vpack.c.b16 %v3021, %v3013
  %v3582 = vpack.c.b16 %v3022, %v3014
  %v3583 = vpack.c.b16 %v3023, %v3015
  %v3584 = vpack.c.b16 %v3024, %v3016
  %v3585 = vpack.c.b16 %v3033, %v3025
  %v3586 = vpack.c.b16 %v3034, %v3026
  %v3587 = vpack.c.b16 %v3035, %v3027
  %v3588 = vpack.c.b16 %v3036, %v3028
  %v3589 = vpack.c.b16 %v3037, %v3029
  %v3590 = vpack.c.b16 %v3038, %v3030
  %v3591 = vpack.c.b16 %v3039, %v3031
  %v3592 = vpack.c.b16 %v3040, %v3032
  %v3593 = vpack.c.b16 %v3049, %v3041
  %v3594 = vpack.c.b16 %v3050, %v3042
  %v3595 = vpack.c.b16 %v3051, %v3043
  %v3596 = vpack.c.b16 %v3052, %v3044
  %v3597 = vpack.c.b16 %v3053, %v3045
  %v3598 = vpack.c.b16 %v3054, %v3046
  %v3599 = vpack.c.b16 %v3055, %v3047
  %v3600 = vpack.c.b16 %v3056, %v3048
  %v3601 = vpack.c.b16 %v3065, %v3057
  %v3602 = vpack.c.b16 %v3066, %v3058
  %v3603 = vpack.c.b16 %v3067, %v3059
  %v3604 = vpack.c.b16 %v3068, %v3060
  %v3605 = vpack.c.b16 %v3069, %v3061
  %v3606 = vpack.c.b16 %v3070, %v3062
  %v3607 = vpack.c.b16 %v3071, %v3063
  %v3608 = vpack.c.b16 %v3072, %v3064
  %v3609 = vpack.c.b16 %v3081, %v3073
  %v3610 = vpack.c.b16 %v3082, %v3074
  %v3611 = vpack.c.b16 %v3083, %v3075
  %v3612 = vpack.c.b16 %v3084, %v3076
  %v3613 = vpack.c.b16 %v3085, %v3077
  %v3614 = vpack.c.b16 %v3086, %v3078
  %v3615 = vpack.c.b16 %v3087, %v3079
  %v3616 = vpack.c.b16 %v3088, %v3080
  %v3617 = vpack.c.b16 %v3097, %v3089
  %v3618 = vpack.c.b16 %v3098, %v3090
  %v3619 = vpack.c.b16 %v3099, %v3091
  %v3620 = vpack.c.b16 %v3100, %v3092
  %v3621 = vpack.c.b16 %v3101, %v3093
  %v3622 = vpack.c.b16 %v3102, %v3094
  %v3623 = vpack.c.b16 %v3103, %v3095
  %v3624 = vpack.c.b16 %v3104, %v3096
  %v3625 = vpack.c.b16 %v3113, %v3105
  %v3626 = vpack.c.b16 %v3114, %v3106
  %v3627 = vpack.c.b16 %v3115, %v3107
  %v3628 = vpack.c.b16 %v3116, %v3108
  %v3629 = vpack.c.b16 %v3117, %v3109
  %v3630 = vpack.c.b16 %v3118, %v3110
  %v3631 = vpack.c.b16 %v3119, %v3111
  %v3632 = vpack.c.b16 %v3120, %v3112
  %4145 = vmatpush.bf16.msra.mxu0 %v1016
  %4146 = vmatpush.bf16.msra.mxu0 %v1015
  %4147 = vmatpush.bf16.msra.mxu0 %v1014
  %4148 = vmatpush.bf16.msra.mxu0 %v1013
  %4149 = vmatpush.bf16.msra.mxu0 %v1012
  %4150 = vmatpush.bf16.msra.mxu0 %v1011
  %4151 = vmatpush.bf16.msra.mxu0 %v1010
  %4152 = vmatpush.bf16.msra.mxu0 %v1009
  %4153 = vmatmul.bf16.gmra.mxu0 %v3121
  %v4154 = vpop.f32.mrf.mxu0
  %v4155 = vadd.f32 0.0, %v4154
  %v4156 = vpop.f32.mrf.mxu0
  %v4157 = vadd.f32 0.0, %v4156
  %4158 = vmatmul.bf16.gmra.mxu0 %v3129
  %v4159 = vpop.f32.mrf.mxu0
  %v4160 = vadd.f32 0.0, %v4159
  %v4161 = vpop.f32.mrf.mxu0
  %v4162 = vadd.f32 0.0, %v4161
  %4163 = vmatmul.bf16.gmra.mxu0 %v3137
  %v4164 = vpop.f32.mrf.mxu0
  %v4165 = vadd.f32 0.0, %v4164
  %v4166 = vpop.f32.mrf.mxu0
  %v4167 = vadd.f32 0.0, %v4166
  %4168 = vmatmul.bf16.gmra.mxu0 %v3145
  %v4169 = vpop.f32.mrf.mxu0
  %v4170 = vadd.f32 0.0, %v4169
  %v4171 = vpop.f32.mrf.mxu0
  %v4172 = vadd.f32 0.0, %v4171
  %4173 = vmatmul.bf16.gmra.mxu0 %v3153
  %v4174 = vpop.f32.mrf.mxu0
  %v4175 = vadd.f32 0.0, %v4174
  %v4176 = vpop.f32.mrf.mxu0
  %v4177 = vadd.f32 0.0, %v4176
  %4178 = vmatmul.bf16.gmra.mxu0 %v3161
  %v4179 = vpop.f32.mrf.mxu0
  %v4180 = vadd.f32 0.0, %v4179
  %v4181 = vpop.f32.mrf.mxu0
  %v4182 = vadd.f32 0.0, %v4181
  %4183 = vmatmul.bf16.gmra.mxu0 %v3169
  %v4184 = vpop.f32.mrf.mxu0
  %v4185 = vadd.f32 0.0, %v4184
  %v4186 = vpop.f32.mrf.mxu0
  %v4187 = vadd.f32 0.0, %v4186
  %4188 = vmatmul.bf16.gmra.mxu0 %v3177
  %v4189 = vpop.f32.mrf.mxu0
  %v4190 = vadd.f32 0.0, %v4189
  %v4191 = vpop.f32.mrf.mxu0
  %v4192 = vadd.f32 0.0, %v4191
  %4193 = vmatmul.bf16.gmra.mxu0 %v3185
  %v4194 = vpop.f32.mrf.mxu0
  %v4195 = vadd.f32 0.0, %v4194
  %v4196 = vpop.f32.mrf.mxu0
  %v4197 = vadd.f32 0.0, %v4196
  %4198 = vmatmul.bf16.gmra.mxu0 %v3193
  %v4199 = vpop.f32.mrf.mxu0
  %v4200 = vadd.f32 0.0, %v4199
  %v4201 = vpop.f32.mrf.mxu0
  %v4202 = vadd.f32 0.0, %v4201
  %4203 = vmatmul.bf16.gmra.mxu0 %v3201
  %v4204 = vpop.f32.mrf.mxu0
  %v4205 = vadd.f32 0.0, %v4204
  %v4206 = vpop.f32.mrf.mxu0
  %v4207 = vadd.f32 0.0, %v4206
  %4208 = vmatmul.bf16.gmra.mxu0 %v3209
  %v4209 = vpop.f32.mrf.mxu0
  %v4210 = vadd.f32 0.0, %v4209
  %v4211 = vpop.f32.mrf.mxu0
  %v4212 = vadd.f32 0.0, %v4211
  %4213 = vmatmul.bf16.gmra.mxu0 %v3217
  %v4214 = vpop.f32.mrf.mxu0
  %v4215 = vadd.f32 0.0, %v4214
  %v4216 = vpop.f32.mrf.mxu0
  %v4217 = vadd.f32 0.0, %v4216
  %4218 = vmatmul.bf16.gmra.mxu0 %v3225
  %v4219 = vpop.f32.mrf.mxu0
  %v4220 = vadd.f32 0.0, %v4219
  %v4221 = vpop.f32.mrf.mxu0
  %v4222 = vadd.f32 0.0, %v4221
  %4223 = vmatmul.bf16.gmra.mxu0 %v3233
  %v4224 = vpop.f32.mrf.mxu0
  %v4225 = vadd.f32 0.0, %v4224
  %v4226 = vpop.f32.mrf.mxu0
  %v4227 = vadd.f32 0.0, %v4226
  %4228 = vmatmul.bf16.gmra.mxu0 %v3241
  %v4229 = vpop.f32.mrf.mxu0
  %v4230 = vadd.f32 0.0, %v4229
  %v4231 = vpop.f32.mrf.mxu0
  %v4232 = vadd.f32 0.0, %v4231
  %4233 = vmatmul.bf16.gmra.mxu0 %v3249
  %v4234 = vpop.f32.mrf.mxu0
  %v4235 = vadd.f32 0.0, %v4234
  %v4236 = vpop.f32.mrf.mxu0
  %v4237 = vadd.f32 0.0, %v4236
  %4238 = vmatmul.bf16.gmra.mxu0 %v3257
  %v4239 = vpop.f32.mrf.mxu0
  %v4240 = vadd.f32 0.0, %v4239
  %v4241 = vpop.f32.mrf.mxu0
  %v4242 = vadd.f32 0.0, %v4241
  %4243 = vmatmul.bf16.gmra.mxu0 %v3265
  %v4244 = vpop.f32.mrf.mxu0
  %v4245 = vadd.f32 0.0, %v4244
  %v4246 = vpop.f32.mrf.mxu0
  %v4247 = vadd.f32 0.0, %v4246
  %4248 = vmatmul.bf16.gmra.mxu0 %v3273
  %v4249 = vpop.f32.mrf.mxu0
  %v4250 = vadd.f32 0.0, %v4249
  %v4251 = vpop.f32.mrf.mxu0
  %v4252 = vadd.f32 0.0, %v4251
  %4253 = vmatmul.bf16.gmra.mxu0 %v3281
  %v4254 = vpop.f32.mrf.mxu0
  %v4255 = vadd.f32 0.0, %v4254
  %v4256 = vpop.f32.mrf.mxu0
  %v4257 = vadd.f32 0.0, %v4256
  %4258 = vmatmul.bf16.gmra.mxu0 %v3289
  %v4259 = vpop.f32.mrf.mxu0
  %v4260 = vadd.f32 0.0, %v4259
  %v4261 = vpop.f32.mrf.mxu0
  %v4262 = vadd.f32 0.0, %v4261
  %4263 = vmatmul.bf16.gmra.mxu0 %v3297
  %v4264 = vpop.f32.mrf.mxu0
  %v4265 = vadd.f32 0.0, %v4264
  %v4266 = vpop.f32.mrf.mxu0
  %v4267 = vadd.f32 0.0, %v4266
  %4268 = vmatmul.bf16.gmra.mxu0 %v3305
  %v4269 = vpop.f32.mrf.mxu0
  %v4270 = vadd.f32 0.0, %v4269
  %v4271 = vpop.f32.mrf.mxu0
  %v4272 = vadd.f32 0.0, %v4271
  %4273 = vmatmul.bf16.gmra.mxu0 %v3313
  %v4274 = vpop.f32.mrf.mxu0
  %v4275 = vadd.f32 0.0, %v4274
  %v4276 = vpop.f32.mrf.mxu0
  %v4277 = vadd.f32 0.0, %v4276
  %4278 = vmatmul.bf16.gmra.mxu0 %v3321
  %v4279 = vpop.f32.mrf.mxu0
  %v4280 = vadd.f32 0.0, %v4279
  %v4281 = vpop.f32.mrf.mxu0
  %v4282 = vadd.f32 0.0, %v4281
  %4283 = vmatmul.bf16.gmra.mxu0 %v3329
  %v4284 = vpop.f32.mrf.mxu0
  %v4285 = vadd.f32 0.0, %v4284
  %v4286 = vpop.f32.mrf.mxu0
  %v4287 = vadd.f32 0.0, %v4286
  %4288 = vmatmul.bf16.gmra.mxu0 %v3337
  %v4289 = vpop.f32.mrf.mxu0
  %v4290 = vadd.f32 0.0, %v4289
  %v4291 = vpop.f32.mrf.mxu0
  %v4292 = vadd.f32 0.0, %v4291
  %4293 = vmatmul.bf16.gmra.mxu0 %v3345
  %v4294 = vpop.f32.mrf.mxu0
  %v4295 = vadd.f32 0.0, %v4294
  %v4296 = vpop.f32.mrf.mxu0
  %v4297 = vadd.f32 0.0, %v4296
  %4298 = vmatmul.bf16.gmra.mxu0 %v3353
  %v4299 = vpop.f32.mrf.mxu0
  %v4300 = vadd.f32 0.0, %v4299
  %v4301 = vpop.f32.mrf.mxu0
  %v4302 = vadd.f32 0.0, %v4301
  %4303 = vmatmul.bf16.gmra.mxu0 %v3361
  %v4304 = vpop.f32.mrf.mxu0
  %v4305 = vadd.f32 0.0, %v4304
  %v4306 = vpop.f32.mrf.mxu0
  %v4307 = vadd.f32 0.0, %v4306
  %4308 = vmatmul.bf16.gmra.mxu0 %v3369
  %v4309 = vpop.f32.mrf.mxu0
  %v4310 = vadd.f32 0.0, %v4309
  %v4311 = vpop.f32.mrf.mxu0
  %v4312 = vadd.f32 0.0, %v4311
  %4313 = vmatmul.bf16.gmra.mxu0 %v3377
  %v4314 = vpop.f32.mrf.mxu0
  %v4315 = vadd.f32 0.0, %v4314
  %v4316 = vpop.f32.mrf.mxu0
  %v4317 = vadd.f32 0.0, %v4316
  %4318 = vmatmul.bf16.gmra.mxu0 %v3385
  %v4319 = vpop.f32.mrf.mxu0
  %v4320 = vadd.f32 0.0, %v4319
  %v4321 = vpop.f32.mrf.mxu0
  %v4322 = vadd.f32 0.0, %v4321
  %4323 = vmatmul.bf16.gmra.mxu0 %v3393
  %v4324 = vpop.f32.mrf.mxu0
  %v4325 = vadd.f32 0.0, %v4324
  %v4326 = vpop.f32.mrf.mxu0
  %v4327 = vadd.f32 0.0, %v4326
  %4328 = vmatmul.bf16.gmra.mxu0 %v3401
  %v4329 = vpop.f32.mrf.mxu0
  %v4330 = vadd.f32 0.0, %v4329
  %v4331 = vpop.f32.mrf.mxu0
  %v4332 = vadd.f32 0.0, %v4331
  %4333 = vmatmul.bf16.gmra.mxu0 %v3409
  %v4334 = vpop.f32.mrf.mxu0
  %v4335 = vadd.f32 0.0, %v4334
  %v4336 = vpop.f32.mrf.mxu0
  %v4337 = vadd.f32 0.0, %v4336
  %4338 = vmatmul.bf16.gmra.mxu0 %v3417
  %v4339 = vpop.f32.mrf.mxu0
  %v4340 = vadd.f32 0.0, %v4339
  %v4341 = vpop.f32.mrf.mxu0
  %v4342 = vadd.f32 0.0, %v4341
  %4343 = vmatmul.bf16.gmra.mxu0 %v3425
  %v4344 = vpop.f32.mrf.mxu0
  %v4345 = vadd.f32 0.0, %v4344
  %v4346 = vpop.f32.mrf.mxu0
  %v4347 = vadd.f32 0.0, %v4346
  %4348 = vmatmul.bf16.gmra.mxu0 %v3433
  %v4349 = vpop.f32.mrf.mxu0
  %v4350 = vadd.f32 0.0, %v4349
  %v4351 = vpop.f32.mrf.mxu0
  %v4352 = vadd.f32 0.0, %v4351
  %4353 = vmatmul.bf16.gmra.mxu0 %v3441
  %v4354 = vpop.f32.mrf.mxu0
  %v4355 = vadd.f32 0.0, %v4354
  %v4356 = vpop.f32.mrf.mxu0
  %v4357 = vadd.f32 0.0, %v4356
  %4358 = vmatmul.bf16.gmra.mxu0 %v3449
  %v4359 = vpop.f32.mrf.mxu0
  %v4360 = vadd.f32 0.0, %v4359
  %v4361 = vpop.f32.mrf.mxu0
  %v4362 = vadd.f32 0.0, %v4361
  %4363 = vmatmul.bf16.gmra.mxu0 %v3457
  %v4364 = vpop.f32.mrf.mxu0
  %v4365 = vadd.f32 0.0, %v4364
  %v4366 = vpop.f32.mrf.mxu0
  %v4367 = vadd.f32 0.0, %v4366
  %4368 = vmatmul.bf16.gmra.mxu0 %v3465
  %v4369 = vpop.f32.mrf.mxu0
  %v4370 = vadd.f32 0.0, %v4369
  %v4371 = vpop.f32.mrf.mxu0
  %v4372 = vadd.f32 0.0, %v4371
  %4373 = vmatmul.bf16.gmra.mxu0 %v3473
  %v4374 = vpop.f32.mrf.mxu0
  %v4375 = vadd.f32 0.0, %v4374
  %v4376 = vpop.f32.mrf.mxu0
  %v4377 = vadd.f32 0.0, %v4376
  %4378 = vmatmul.bf16.gmra.mxu0 %v3481
  %v4379 = vpop.f32.mrf.mxu0
  %v4380 = vadd.f32 0.0, %v4379
  %v4381 = vpop.f32.mrf.mxu0
  %v4382 = vadd.f32 0.0, %v4381
  %4383 = vmatmul.bf16.gmra.mxu0 %v3489
  %v4384 = vpop.f32.mrf.mxu0
  %v4385 = vadd.f32 0.0, %v4384
  %v4386 = vpop.f32.mrf.mxu0
  %v4387 = vadd.f32 0.0, %v4386
  %4388 = vmatmul.bf16.gmra.mxu0 %v3497
  %v4389 = vpop.f32.mrf.mxu0
  %v4390 = vadd.f32 0.0, %v4389
  %v4391 = vpop.f32.mrf.mxu0
  %v4392 = vadd.f32 0.0, %v4391
  %4393 = vmatmul.bf16.gmra.mxu0 %v3505
  %v4394 = vpop.f32.mrf.mxu0
  %v4395 = vadd.f32 0.0, %v4394
  %v4396 = vpop.f32.mrf.mxu0
  %v4397 = vadd.f32 0.0, %v4396
  %4398 = vmatmul.bf16.gmra.mxu0 %v3513
  %v4399 = vpop.f32.mrf.mxu0
  %v4400 = vadd.f32 0.0, %v4399
  %v4401 = vpop.f32.mrf.mxu0
  %v4402 = vadd.f32 0.0, %v4401
  %4403 = vmatmul.bf16.gmra.mxu0 %v3521
  %v4404 = vpop.f32.mrf.mxu0
  %v4405 = vadd.f32 0.0, %v4404
  %v4406 = vpop.f32.mrf.mxu0
  %v4407 = vadd.f32 0.0, %v4406
  %4408 = vmatmul.bf16.gmra.mxu0 %v3529
  %v4409 = vpop.f32.mrf.mxu0
  %v4410 = vadd.f32 0.0, %v4409
  %v4411 = vpop.f32.mrf.mxu0
  %v4412 = vadd.f32 0.0, %v4411
  %4413 = vmatmul.bf16.gmra.mxu0 %v3537
  %v4414 = vpop.f32.mrf.mxu0
  %v4415 = vadd.f32 0.0, %v4414
  %v4416 = vpop.f32.mrf.mxu0
  %v4417 = vadd.f32 0.0, %v4416
  %4418 = vmatmul.bf16.gmra.mxu0 %v3545
  %v4419 = vpop.f32.mrf.mxu0
  %v4420 = vadd.f32 0.0, %v4419
  %v4421 = vpop.f32.mrf.mxu0
  %v4422 = vadd.f32 0.0, %v4421
  %4423 = vmatmul.bf16.gmra.mxu0 %v3553
  %v4424 = vpop.f32.mrf.mxu0
  %v4425 = vadd.f32 0.0, %v4424
  %v4426 = vpop.f32.mrf.mxu0
  %v4427 = vadd.f32 0.0, %v4426
  %4428 = vmatmul.bf16.gmra.mxu0 %v3561
  %v4429 = vpop.f32.mrf.mxu0
  %v4430 = vadd.f32 0.0, %v4429
  %v4431 = vpop.f32.mrf.mxu0
  %v4432 = vadd.f32 0.0, %v4431
  %4433 = vmatmul.bf16.gmra.mxu0 %v3569
  %v4434 = vpop.f32.mrf.mxu0
  %v4435 = vadd.f32 0.0, %v4434
  %v4436 = vpop.f32.mrf.mxu0
  %v4437 = vadd.f32 0.0, %v4436
  %4438 = vmatmul.bf16.gmra.mxu0 %v3577
  %v4439 = vpop.f32.mrf.mxu0
  %v4440 = vadd.f32 0.0, %v4439
  %v4441 = vpop.f32.mrf.mxu0
  %v4442 = vadd.f32 0.0, %v4441
  %4443 = vmatmul.bf16.gmra.mxu0 %v3585
  %v4444 = vpop.f32.mrf.mxu0
  %v4445 = vadd.f32 0.0, %v4444
  %v4446 = vpop.f32.mrf.mxu0
  %v4447 = vadd.f32 0.0, %v4446
  %4448 = vmatmul.bf16.gmra.mxu0 %v3593
  %v4449 = vpop.f32.mrf.mxu0
  %v4450 = vadd.f32 0.0, %v4449
  %v4451 = vpop.f32.mrf.mxu0
  %v4452 = vadd.f32 0.0, %v4451
  %4453 = vmatmul.bf16.gmra.mxu0 %v3601
  %v4454 = vpop.f32.mrf.mxu0
  %v4455 = vadd.f32 0.0, %v4454
  %v4456 = vpop.f32.mrf.mxu0
  %v4457 = vadd.f32 0.0, %v4456
  %4458 = vmatmul.bf16.gmra.mxu0 %v3609
  %v4459 = vpop.f32.mrf.mxu0
  %v4460 = vadd.f32 0.0, %v4459
  %v4461 = vpop.f32.mrf.mxu0
  %v4462 = vadd.f32 0.0, %v4461
  %4463 = vmatmul.bf16.gmra.mxu0 %v3617
  %v4464 = vpop.f32.mrf.mxu0
  %v4465 = vadd.f32 0.0, %v4464
  %v4466 = vpop.f32.mrf.mxu0
  %v4467 = vadd.f32 0.0, %v4466
  %4468 = vmatmul.bf16.gmra.mxu0 %v3625
  %v4469 = vpop.f32.mrf.mxu0
  %v4470 = vadd.f32 0.0, %v4469
  %v4471 = vpop.f32.mrf.mxu0
  %v4472 = vadd.f32 0.0, %v4471
  %4473 = vdwg.mxu0
  %4474 = vmatpush.bf16.msra.mxu0 %v1024
  %4475 = vmatpush.bf16.msra.mxu0 %v1023
  %4476 = vmatpush.bf16.msra.mxu0 %v1022
  %4477 = vmatpush.bf16.msra.mxu0 %v1021
  %4478 = vmatpush.bf16.msra.mxu0 %v1020
  %4479 = vmatpush.bf16.msra.mxu0 %v1019
  %4480 = vmatpush.bf16.msra.mxu0 %v1018
  %4481 = vmatpush.bf16.msra.mxu0 %v1017
  %4482 = vmatmul.bf16.gmra.mxu0 %v3122
  %v4483 = vpop.f32.mrf.mxu0
  %v4484 = vadd.f32 %v4155, %v4483
  %v4485 = vpop.f32.mrf.mxu0
  %v4486 = vadd.f32 %v4157, %v4485
  %4487 = vmatmul.bf16.gmra.mxu0 %v3130
  %v4488 = vpop.f32.mrf.mxu0
  %v4489 = vadd.f32 %v4160, %v4488
  %v4490 = vpop.f32.mrf.mxu0
  %v4491 = vadd.f32 %v4162, %v4490
  %4492 = vmatmul.bf16.gmra.mxu0 %v3138
  %v4493 = vpop.f32.mrf.mxu0
  %v4494 = vadd.f32 %v4165, %v4493
  %v4495 = vpop.f32.mrf.mxu0
  %v4496 = vadd.f32 %v4167, %v4495
  %4497 = vmatmul.bf16.gmra.mxu0 %v3146
  %v4498 = vpop.f32.mrf.mxu0
  %v4499 = vadd.f32 %v4170, %v4498
  %v4500 = vpop.f32.mrf.mxu0
  %v4501 = vadd.f32 %v4172, %v4500
  %4502 = vmatmul.bf16.gmra.mxu0 %v3154
  %v4503 = vpop.f32.mrf.mxu0
  %v4504 = vadd.f32 %v4175, %v4503
  %v4505 = vpop.f32.mrf.mxu0
  %v4506 = vadd.f32 %v4177, %v4505
  %4507 = vmatmul.bf16.gmra.mxu0 %v3162
  %v4508 = vpop.f32.mrf.mxu0
  %v4509 = vadd.f32 %v4180, %v4508
  %v4510 = vpop.f32.mrf.mxu0
  %v4511 = vadd.f32 %v4182, %v4510
  %4512 = vmatmul.bf16.gmra.mxu0 %v3170
  %v4513 = vpop.f32.mrf.mxu0
  %v4514 = vadd.f32 %v4185, %v4513
  %v4515 = vpop.f32.mrf.mxu0
  %v4516 = vadd.f32 %v4187, %v4515
  %4517 = vmatmul.bf16.gmra.mxu0 %v3178
  %v4518 = vpop.f32.mrf.mxu0
  %v4519 = vadd.f32 %v4190, %v4518
  %v4520 = vpop.f32.mrf.mxu0
  %v4521 = vadd.f32 %v4192, %v4520
  %4522 = vmatmul.bf16.gmra.mxu0 %v3186
  %v4523 = vpop.f32.mrf.mxu0
  %v4524 = vadd.f32 %v4195, %v4523
  %v4525 = vpop.f32.mrf.mxu0
  %v4526 = vadd.f32 %v4197, %v4525
  %4527 = vmatmul.bf16.gmra.mxu0 %v3194
  %v4528 = vpop.f32.mrf.mxu0
  %v4529 = vadd.f32 %v4200, %v4528
  %v4530 = vpop.f32.mrf.mxu0
  %v4531 = vadd.f32 %v4202, %v4530
  %4532 = vmatmul.bf16.gmra.mxu0 %v3202
  %v4533 = vpop.f32.mrf.mxu0
  %v4534 = vadd.f32 %v4205, %v4533
  %v4535 = vpop.f32.mrf.mxu0
  %v4536 = vadd.f32 %v4207, %v4535
  %4537 = vmatmul.bf16.gmra.mxu0 %v3210
  %v4538 = vpop.f32.mrf.mxu0
  %v4539 = vadd.f32 %v4210, %v4538
  %v4540 = vpop.f32.mrf.mxu0
  %v4541 = vadd.f32 %v4212, %v4540
  %4542 = vmatmul.bf16.gmra.mxu0 %v3218
  %v4543 = vpop.f32.mrf.mxu0
  %v4544 = vadd.f32 %v4215, %v4543
  %v4545 = vpop.f32.mrf.mxu0
  %v4546 = vadd.f32 %v4217, %v4545
  %4547 = vmatmul.bf16.gmra.mxu0 %v3226
  %v4548 = vpop.f32.mrf.mxu0
  %v4549 = vadd.f32 %v4220, %v4548
  %v4550 = vpop.f32.mrf.mxu0
  %v4551 = vadd.f32 %v4222, %v4550
  %4552 = vmatmul.bf16.gmra.mxu0 %v3234
  %v4553 = vpop.f32.mrf.mxu0
  %v4554 = vadd.f32 %v4225, %v4553
  %v4555 = vpop.f32.mrf.mxu0
  %v4556 = vadd.f32 %v4227, %v4555
  %4557 = vmatmul.bf16.gmra.mxu0 %v3242
  %v4558 = vpop.f32.mrf.mxu0
  %v4559 = vadd.f32 %v4230, %v4558
  %v4560 = vpop.f32.mrf.mxu0
  %v4561 = vadd.f32 %v4232, %v4560
  %4562 = vmatmul.bf16.gmra.mxu0 %v3250
  %v4563 = vpop.f32.mrf.mxu0
  %v4564 = vadd.f32 %v4235, %v4563
  %v4565 = vpop.f32.mrf.mxu0
  %v4566 = vadd.f32 %v4237, %v4565
  %4567 = vmatmul.bf16.gmra.mxu0 %v3258
  %v4568 = vpop.f32.mrf.mxu0
  %v4569 = vadd.f32 %v4240, %v4568
  %v4570 = vpop.f32.mrf.mxu0
  %v4571 = vadd.f32 %v4242, %v4570
  %4572 = vmatmul.bf16.gmra.mxu0 %v3266
  %v4573 = vpop.f32.mrf.mxu0
  %v4574 = vadd.f32 %v4245, %v4573
  %v4575 = vpop.f32.mrf.mxu0
  %v4576 = vadd.f32 %v4247, %v4575
  %4577 = vmatmul.bf16.gmra.mxu0 %v3274
  %v4578 = vpop.f32.mrf.mxu0
  %v4579 = vadd.f32 %v4250, %v4578
  %v4580 = vpop.f32.mrf.mxu0
  %v4581 = vadd.f32 %v4252, %v4580
  %4582 = vmatmul.bf16.gmra.mxu0 %v3282
  %v4583 = vpop.f32.mrf.mxu0
  %v4584 = vadd.f32 %v4255, %v4583
  %v4585 = vpop.f32.mrf.mxu0
  %v4586 = vadd.f32 %v4257, %v4585
  %4587 = vmatmul.bf16.gmra.mxu0 %v3290
  %v4588 = vpop.f32.mrf.mxu0
  %v4589 = vadd.f32 %v4260, %v4588
  %v4590 = vpop.f32.mrf.mxu0
  %v4591 = vadd.f32 %v4262, %v4590
  %4592 = vmatmul.bf16.gmra.mxu0 %v3298
  %v4593 = vpop.f32.mrf.mxu0
  %v4594 = vadd.f32 %v4265, %v4593
  %v4595 = vpop.f32.mrf.mxu0
  %v4596 = vadd.f32 %v4267, %v4595
  %4597 = vmatmul.bf16.gmra.mxu0 %v3306
  %v4598 = vpop.f32.mrf.mxu0
  %v4599 = vadd.f32 %v4270, %v4598
  %v4600 = vpop.f32.mrf.mxu0
  %v4601 = vadd.f32 %v4272, %v4600
  %4602 = vmatmul.bf16.gmra.mxu0 %v3314
  %v4603 = vpop.f32.mrf.mxu0
  %v4604 = vadd.f32 %v4275, %v4603
  %v4605 = vpop.f32.mrf.mxu0
  %v4606 = vadd.f32 %v4277, %v4605
  %4607 = vmatmul.bf16.gmra.mxu0 %v3322
  %v4608 = vpop.f32.mrf.mxu0
  %v4609 = vadd.f32 %v4280, %v4608
  %v4610 = vpop.f32.mrf.mxu0
  %v4611 = vadd.f32 %v4282, %v4610
  %4612 = vmatmul.bf16.gmra.mxu0 %v3330
  %v4613 = vpop.f32.mrf.mxu0
  %v4614 = vadd.f32 %v4285, %v4613
  %v4615 = vpop.f32.mrf.mxu0
  %v4616 = vadd.f32 %v4287, %v4615
  %4617 = vmatmul.bf16.gmra.mxu0 %v3338
  %v4618 = vpop.f32.mrf.mxu0
  %v4619 = vadd.f32 %v4290, %v4618
  %v4620 = vpop.f32.mrf.mxu0
  %v4621 = vadd.f32 %v4292, %v4620
  %4622 = vmatmul.bf16.gmra.mxu0 %v3346
  %v4623 = vpop.f32.mrf.mxu0
  %v4624 = vadd.f32 %v4295, %v4623
  %v4625 = vpop.f32.mrf.mxu0
  %v4626 = vadd.f32 %v4297, %v4625
  %4627 = vmatmul.bf16.gmra.mxu0 %v3354
  %v4628 = vpop.f32.mrf.mxu0
  %v4629 = vadd.f32 %v4300, %v4628
  %v4630 = vpop.f32.mrf.mxu0
  %v4631 = vadd.f32 %v4302, %v4630
  %4632 = vmatmul.bf16.gmra.mxu0 %v3362
  %v4633 = vpop.f32.mrf.mxu0
  %v4634 = vadd.f32 %v4305, %v4633
  %v4635 = vpop.f32.mrf.mxu0
  %v4636 = vadd.f32 %v4307, %v4635
  %4637 = vmatmul.bf16.gmra.mxu0 %v3370
  %v4638 = vpop.f32.mrf.mxu0
  %v4639 = vadd.f32 %v4310, %v4638
  %v4640 = vpop.f32.mrf.mxu0
  %v4641 = vadd.f32 %v4312, %v4640
  %4642 = vmatmul.bf16.gmra.mxu0 %v3378
  %v4643 = vpop.f32.mrf.mxu0
  %v4644 = vadd.f32 %v4315, %v4643
  %v4645 = vpop.f32.mrf.mxu0
  %v4646 = vadd.f32 %v4317, %v4645
  %4647 = vmatmul.bf16.gmra.mxu0 %v3386
  %v4648 = vpop.f32.mrf.mxu0
  %v4649 = vadd.f32 %v4320, %v4648
  %v4650 = vpop.f32.mrf.mxu0
  %v4651 = vadd.f32 %v4322, %v4650
  %4652 = vmatmul.bf16.gmra.mxu0 %v3394
  %v4653 = vpop.f32.mrf.mxu0
  %v4654 = vadd.f32 %v4325, %v4653
  %v4655 = vpop.f32.mrf.mxu0
  %v4656 = vadd.f32 %v4327, %v4655
  %4657 = vmatmul.bf16.gmra.mxu0 %v3402
  %v4658 = vpop.f32.mrf.mxu0
  %v4659 = vadd.f32 %v4330, %v4658
  %v4660 = vpop.f32.mrf.mxu0
  %v4661 = vadd.f32 %v4332, %v4660
  %4662 = vmatmul.bf16.gmra.mxu0 %v3410
  %v4663 = vpop.f32.mrf.mxu0
  %v4664 = vadd.f32 %v4335, %v4663
  %v4665 = vpop.f32.mrf.mxu0
  %v4666 = vadd.f32 %v4337, %v4665
  %4667 = vmatmul.bf16.gmra.mxu0 %v3418
  %v4668 = vpop.f32.mrf.mxu0
  %v4669 = vadd.f32 %v4340, %v4668
  %v4670 = vpop.f32.mrf.mxu0
  %v4671 = vadd.f32 %v4342, %v4670
  %4672 = vmatmul.bf16.gmra.mxu0 %v3426
  %v4673 = vpop.f32.mrf.mxu0
  %v4674 = vadd.f32 %v4345, %v4673
  %v4675 = vpop.f32.mrf.mxu0
  %v4676 = vadd.f32 %v4347, %v4675
  %4677 = vmatmul.bf16.gmra.mxu0 %v3434
  %v4678 = vpop.f32.mrf.mxu0
  %v4679 = vadd.f32 %v4350, %v4678
  %v4680 = vpop.f32.mrf.mxu0
  %v4681 = vadd.f32 %v4352, %v4680
  %4682 = vmatmul.bf16.gmra.mxu0 %v3442
  %v4683 = vpop.f32.mrf.mxu0
  %v4684 = vadd.f32 %v4355, %v4683
  %v4685 = vpop.f32.mrf.mxu0
  %v4686 = vadd.f32 %v4357, %v4685
  %4687 = vmatmul.bf16.gmra.mxu0 %v3450
  %v4688 = vpop.f32.mrf.mxu0
  %v4689 = vadd.f32 %v4360, %v4688
  %v4690 = vpop.f32.mrf.mxu0
  %v4691 = vadd.f32 %v4362, %v4690
  %4692 = vmatmul.bf16.gmra.mxu0 %v3458
  %v4693 = vpop.f32.mrf.mxu0
  %v4694 = vadd.f32 %v4365, %v4693
  %v4695 = vpop.f32.mrf.mxu0
  %v4696 = vadd.f32 %v4367, %v4695
  %4697 = vmatmul.bf16.gmra.mxu0 %v3466
  %v4698 = vpop.f32.mrf.mxu0
  %v4699 = vadd.f32 %v4370, %v4698
  %v4700 = vpop.f32.mrf.mxu0
  %v4701 = vadd.f32 %v4372, %v4700
  %4702 = vmatmul.bf16.gmra.mxu0 %v3474
  %v4703 = vpop.f32.mrf.mxu0
  %v4704 = vadd.f32 %v4375, %v4703
  %v4705 = vpop.f32.mrf.mxu0
  %v4706 = vadd.f32 %v4377, %v4705
  %4707 = vmatmul.bf16.gmra.mxu0 %v3482
  %v4708 = vpop.f32.mrf.mxu0
  %v4709 = vadd.f32 %v4380, %v4708
  %v4710 = vpop.f32.mrf.mxu0
  %v4711 = vadd.f32 %v4382, %v4710
  %4712 = vmatmul.bf16.gmra.mxu0 %v3490
  %v4713 = vpop.f32.mrf.mxu0
  %v4714 = vadd.f32 %v4385, %v4713
  %v4715 = vpop.f32.mrf.mxu0
  %v4716 = vadd.f32 %v4387, %v4715
  %4717 = vmatmul.bf16.gmra.mxu0 %v3498
  %v4718 = vpop.f32.mrf.mxu0
  %v4719 = vadd.f32 %v4390, %v4718
  %v4720 = vpop.f32.mrf.mxu0
  %v4721 = vadd.f32 %v4392, %v4720
  %4722 = vmatmul.bf16.gmra.mxu0 %v3506
  %v4723 = vpop.f32.mrf.mxu0
  %v4724 = vadd.f32 %v4395, %v4723
  %v4725 = vpop.f32.mrf.mxu0
  %v4726 = vadd.f32 %v4397, %v4725
  %4727 = vmatmul.bf16.gmra.mxu0 %v3514
  %v4728 = vpop.f32.mrf.mxu0
  %v4729 = vadd.f32 %v4400, %v4728
  %v4730 = vpop.f32.mrf.mxu0
  %v4731 = vadd.f32 %v4402, %v4730
  %4732 = vmatmul.bf16.gmra.mxu0 %v3522
  %v4733 = vpop.f32.mrf.mxu0
  %v4734 = vadd.f32 %v4405, %v4733
  %v4735 = vpop.f32.mrf.mxu0
  %v4736 = vadd.f32 %v4407, %v4735
  %4737 = vmatmul.bf16.gmra.mxu0 %v3530
  %v4738 = vpop.f32.mrf.mxu0
  %v4739 = vadd.f32 %v4410, %v4738
  %v4740 = vpop.f32.mrf.mxu0
  %v4741 = vadd.f32 %v4412, %v4740
  %4742 = vmatmul.bf16.gmra.mxu0 %v3538
  %v4743 = vpop.f32.mrf.mxu0
  %v4744 = vadd.f32 %v4415, %v4743
  %v4745 = vpop.f32.mrf.mxu0
  %v4746 = vadd.f32 %v4417, %v4745
  %4747 = vmatmul.bf16.gmra.mxu0 %v3546
  %v4748 = vpop.f32.mrf.mxu0
  %v4749 = vadd.f32 %v4420, %v4748
  %v4750 = vpop.f32.mrf.mxu0
  %v4751 = vadd.f32 %v4422, %v4750
  %4752 = vmatmul.bf16.gmra.mxu0 %v3554
  %v4753 = vpop.f32.mrf.mxu0
  %v4754 = vadd.f32 %v4425, %v4753
  %v4755 = vpop.f32.mrf.mxu0
  %v4756 = vadd.f32 %v4427, %v4755
  %4757 = vmatmul.bf16.gmra.mxu0 %v3562
  %v4758 = vpop.f32.mrf.mxu0
  %v4759 = vadd.f32 %v4430, %v4758
  %v4760 = vpop.f32.mrf.mxu0
  %v4761 = vadd.f32 %v4432, %v4760
  %4762 = vmatmul.bf16.gmra.mxu0 %v3570
  %v4763 = vpop.f32.mrf.mxu0
  %v4764 = vadd.f32 %v4435, %v4763
  %v4765 = vpop.f32.mrf.mxu0
  %v4766 = vadd.f32 %v4437, %v4765
  %4767 = vmatmul.bf16.gmra.mxu0 %v3578
  %v4768 = vpop.f32.mrf.mxu0
  %v4769 = vadd.f32 %v4440, %v4768
  %v4770 = vpop.f32.mrf.mxu0
  %v4771 = vadd.f32 %v4442, %v4770
  %4772 = vmatmul.bf16.gmra.mxu0 %v3586
  %v4773 = vpop.f32.mrf.mxu0
  %v4774 = vadd.f32 %v4445, %v4773
  %v4775 = vpop.f32.mrf.mxu0
  %v4776 = vadd.f32 %v4447, %v4775
  %4777 = vmatmul.bf16.gmra.mxu0 %v3594
  %v4778 = vpop.f32.mrf.mxu0
  %v4779 = vadd.f32 %v4450, %v4778
  %v4780 = vpop.f32.mrf.mxu0
  %v4781 = vadd.f32 %v4452, %v4780
  %4782 = vmatmul.bf16.gmra.mxu0 %v3602
  %v4783 = vpop.f32.mrf.mxu0
  %v4784 = vadd.f32 %v4455, %v4783
  %v4785 = vpop.f32.mrf.mxu0
  %v4786 = vadd.f32 %v4457, %v4785
  %4787 = vmatmul.bf16.gmra.mxu0 %v3610
  %v4788 = vpop.f32.mrf.mxu0
  %v4789 = vadd.f32 %v4460, %v4788
  %v4790 = vpop.f32.mrf.mxu0
  %v4791 = vadd.f32 %v4462, %v4790
  %4792 = vmatmul.bf16.gmra.mxu0 %v3618
  %v4793 = vpop.f32.mrf.mxu0
  %v4794 = vadd.f32 %v4465, %v4793
  %v4795 = vpop.f32.mrf.mxu0
  %v4796 = vadd.f32 %v4467, %v4795
  %4797 = vmatmul.bf16.gmra.mxu0 %v3626
  %v4798 = vpop.f32.mrf.mxu0
  %v4799 = vadd.f32 %v4470, %v4798
  %v4800 = vpop.f32.mrf.mxu0
  %v4801 = vadd.f32 %v4472, %v4800
  %4802 = vdwg.mxu0
  %4803 = vmatpush.bf16.msra.mxu0 %v1032
  %4804 = vmatpush.bf16.msra.mxu0 %v1031
  %4805 = vmatpush.bf16.msra.mxu0 %v1030
  %4806 = vmatpush.bf16.msra.mxu0 %v1029
  %4807 = vmatpush.bf16.msra.mxu0 %v1028
  %4808 = vmatpush.bf16.msra.mxu0 %v1027
  %4809 = vmatpush.bf16.msra.mxu0 %v1026
  %4810 = vmatpush.bf16.msra.mxu0 %v1025
  %4811 = vmatmul.bf16.gmra.mxu0 %v3123
  %v4812 = vpop.f32.mrf.mxu0
  %v4813 = vadd.f32 %v4484, %v4812
  %v4814 = vpop.f32.mrf.mxu0
  %v4815 = vadd.f32 %v4486, %v4814
  %4816 = vmatmul.bf16.gmra.mxu0 %v3131
  %v4817 = vpop.f32.mrf.mxu0
  %v4818 = vadd.f32 %v4489, %v4817
  %v4819 = vpop.f32.mrf.mxu0
  %v4820 = vadd.f32 %v4491, %v4819
  %4821 = vmatmul.bf16.gmra.mxu0 %v3139
  %v4822 = vpop.f32.mrf.mxu0
  %v4823 = vadd.f32 %v4494, %v4822
  %v4824 = vpop.f32.mrf.mxu0
  %v4825 = vadd.f32 %v4496, %v4824
  %4826 = vmatmul.bf16.gmra.mxu0 %v3147
  %v4827 = vpop.f32.mrf.mxu0
  %v4828 = vadd.f32 %v4499, %v4827
  %v4829 = vpop.f32.mrf.mxu0
  %v4830 = vadd.f32 %v4501, %v4829
  %4831 = vmatmul.bf16.gmra.mxu0 %v3155
  %v4832 = vpop.f32.mrf.mxu0
  %v4833 = vadd.f32 %v4504, %v4832
  %v4834 = vpop.f32.mrf.mxu0
  %v4835 = vadd.f32 %v4506, %v4834
  %4836 = vmatmul.bf16.gmra.mxu0 %v3163
  %v4837 = vpop.f32.mrf.mxu0
  %v4838 = vadd.f32 %v4509, %v4837
  %v4839 = vpop.f32.mrf.mxu0
  %v4840 = vadd.f32 %v4511, %v4839
  %4841 = vmatmul.bf16.gmra.mxu0 %v3171
  %v4842 = vpop.f32.mrf.mxu0
  %v4843 = vadd.f32 %v4514, %v4842
  %v4844 = vpop.f32.mrf.mxu0
  %v4845 = vadd.f32 %v4516, %v4844
  %4846 = vmatmul.bf16.gmra.mxu0 %v3179
  %v4847 = vpop.f32.mrf.mxu0
  %v4848 = vadd.f32 %v4519, %v4847
  %v4849 = vpop.f32.mrf.mxu0
  %v4850 = vadd.f32 %v4521, %v4849
  %4851 = vmatmul.bf16.gmra.mxu0 %v3187
  %v4852 = vpop.f32.mrf.mxu0
  %v4853 = vadd.f32 %v4524, %v4852
  %v4854 = vpop.f32.mrf.mxu0
  %v4855 = vadd.f32 %v4526, %v4854
  %4856 = vmatmul.bf16.gmra.mxu0 %v3195
  %v4857 = vpop.f32.mrf.mxu0
  %v4858 = vadd.f32 %v4529, %v4857
  %v4859 = vpop.f32.mrf.mxu0
  %v4860 = vadd.f32 %v4531, %v4859
  %4861 = vmatmul.bf16.gmra.mxu0 %v3203
  %v4862 = vpop.f32.mrf.mxu0
  %v4863 = vadd.f32 %v4534, %v4862
  %v4864 = vpop.f32.mrf.mxu0
  %v4865 = vadd.f32 %v4536, %v4864
  %4866 = vmatmul.bf16.gmra.mxu0 %v3211
  %v4867 = vpop.f32.mrf.mxu0
  %v4868 = vadd.f32 %v4539, %v4867
  %v4869 = vpop.f32.mrf.mxu0
  %v4870 = vadd.f32 %v4541, %v4869
  %4871 = vmatmul.bf16.gmra.mxu0 %v3219
  %v4872 = vpop.f32.mrf.mxu0
  %v4873 = vadd.f32 %v4544, %v4872
  %v4874 = vpop.f32.mrf.mxu0
  %v4875 = vadd.f32 %v4546, %v4874
  %4876 = vmatmul.bf16.gmra.mxu0 %v3227
  %v4877 = vpop.f32.mrf.mxu0
  %v4878 = vadd.f32 %v4549, %v4877
  %v4879 = vpop.f32.mrf.mxu0
  %v4880 = vadd.f32 %v4551, %v4879
  %4881 = vmatmul.bf16.gmra.mxu0 %v3235
  %v4882 = vpop.f32.mrf.mxu0
  %v4883 = vadd.f32 %v4554, %v4882
  %v4884 = vpop.f32.mrf.mxu0
  %v4885 = vadd.f32 %v4556, %v4884
  %4886 = vmatmul.bf16.gmra.mxu0 %v3243
  %v4887 = vpop.f32.mrf.mxu0
  %v4888 = vadd.f32 %v4559, %v4887
  %v4889 = vpop.f32.mrf.mxu0
  %v4890 = vadd.f32 %v4561, %v4889
  %4891 = vmatmul.bf16.gmra.mxu0 %v3251
  %v4892 = vpop.f32.mrf.mxu0
  %v4893 = vadd.f32 %v4564, %v4892
  %v4894 = vpop.f32.mrf.mxu0
  %v4895 = vadd.f32 %v4566, %v4894
  %4896 = vmatmul.bf16.gmra.mxu0 %v3259
  %v4897 = vpop.f32.mrf.mxu0
  %v4898 = vadd.f32 %v4569, %v4897
  %v4899 = vpop.f32.mrf.mxu0
  %v4900 = vadd.f32 %v4571, %v4899
  %4901 = vmatmul.bf16.gmra.mxu0 %v3267
  %v4902 = vpop.f32.mrf.mxu0
  %v4903 = vadd.f32 %v4574, %v4902
  %v4904 = vpop.f32.mrf.mxu0
  %v4905 = vadd.f32 %v4576, %v4904
  %4906 = vmatmul.bf16.gmra.mxu0 %v3275
  %v4907 = vpop.f32.mrf.mxu0
  %v4908 = vadd.f32 %v4579, %v4907
  %v4909 = vpop.f32.mrf.mxu0
  %v4910 = vadd.f32 %v4581, %v4909
  %4911 = vmatmul.bf16.gmra.mxu0 %v3283
  %v4912 = vpop.f32.mrf.mxu0
  %v4913 = vadd.f32 %v4584, %v4912
  %v4914 = vpop.f32.mrf.mxu0
  %v4915 = vadd.f32 %v4586, %v4914
  %4916 = vmatmul.bf16.gmra.mxu0 %v3291
  %v4917 = vpop.f32.mrf.mxu0
  %v4918 = vadd.f32 %v4589, %v4917
  %v4919 = vpop.f32.mrf.mxu0
  %v4920 = vadd.f32 %v4591, %v4919
  %4921 = vmatmul.bf16.gmra.mxu0 %v3299
  %v4922 = vpop.f32.mrf.mxu0
  %v4923 = vadd.f32 %v4594, %v4922
  %v4924 = vpop.f32.mrf.mxu0
  %v4925 = vadd.f32 %v4596, %v4924
  %4926 = vmatmul.bf16.gmra.mxu0 %v3307
  %v4927 = vpop.f32.mrf.mxu0
  %v4928 = vadd.f32 %v4599, %v4927
  %v4929 = vpop.f32.mrf.mxu0
  %v4930 = vadd.f32 %v4601, %v4929
  %4931 = vmatmul.bf16.gmra.mxu0 %v3315
  %v4932 = vpop.f32.mrf.mxu0
  %v4933 = vadd.f32 %v4604, %v4932
  %v4934 = vpop.f32.mrf.mxu0
  %v4935 = vadd.f32 %v4606, %v4934
  %4936 = vmatmul.bf16.gmra.mxu0 %v3323
  %v4937 = vpop.f32.mrf.mxu0
  %v4938 = vadd.f32 %v4609, %v4937
  %v4939 = vpop.f32.mrf.mxu0
  %v4940 = vadd.f32 %v4611, %v4939
  %4941 = vmatmul.bf16.gmra.mxu0 %v3331
  %v4942 = vpop.f32.mrf.mxu0
  %v4943 = vadd.f32 %v4614, %v4942
  %v4944 = vpop.f32.mrf.mxu0
  %v4945 = vadd.f32 %v4616, %v4944
  %4946 = vmatmul.bf16.gmra.mxu0 %v3339
  %v4947 = vpop.f32.mrf.mxu0
  %v4948 = vadd.f32 %v4619, %v4947
  %v4949 = vpop.f32.mrf.mxu0
  %v4950 = vadd.f32 %v4621, %v4949
  %4951 = vmatmul.bf16.gmra.mxu0 %v3347
  %v4952 = vpop.f32.mrf.mxu0
  %v4953 = vadd.f32 %v4624, %v4952
  %v4954 = vpop.f32.mrf.mxu0
  %v4955 = vadd.f32 %v4626, %v4954
  %4956 = vmatmul.bf16.gmra.mxu0 %v3355
  %v4957 = vpop.f32.mrf.mxu0
  %v4958 = vadd.f32 %v4629, %v4957
  %v4959 = vpop.f32.mrf.mxu0
  %v4960 = vadd.f32 %v4631, %v4959
  %4961 = vmatmul.bf16.gmra.mxu0 %v3363
  %v4962 = vpop.f32.mrf.mxu0
  %v4963 = vadd.f32 %v4634, %v4962
  %v4964 = vpop.f32.mrf.mxu0
  %v4965 = vadd.f32 %v4636, %v4964
  %4966 = vmatmul.bf16.gmra.mxu0 %v3371
  %v4967 = vpop.f32.mrf.mxu0
  %v4968 = vadd.f32 %v4639, %v4967
  %v4969 = vpop.f32.mrf.mxu0
  %v4970 = vadd.f32 %v4641, %v4969
  %4971 = vmatmul.bf16.gmra.mxu0 %v3379
  %v4972 = vpop.f32.mrf.mxu0
  %v4973 = vadd.f32 %v4644, %v4972
  %v4974 = vpop.f32.mrf.mxu0
  %v4975 = vadd.f32 %v4646, %v4974
  %4976 = vmatmul.bf16.gmra.mxu0 %v3387
  %v4977 = vpop.f32.mrf.mxu0
  %v4978 = vadd.f32 %v4649, %v4977
  %v4979 = vpop.f32.mrf.mxu0
  %v4980 = vadd.f32 %v4651, %v4979
  %4981 = vmatmul.bf16.gmra.mxu0 %v3395
  %v4982 = vpop.f32.mrf.mxu0
  %v4983 = vadd.f32 %v4654, %v4982
  %v4984 = vpop.f32.mrf.mxu0
  %v4985 = vadd.f32 %v4656, %v4984
  %4986 = vmatmul.bf16.gmra.mxu0 %v3403
  %v4987 = vpop.f32.mrf.mxu0
  %v4988 = vadd.f32 %v4659, %v4987
  %v4989 = vpop.f32.mrf.mxu0
  %v4990 = vadd.f32 %v4661, %v4989
  %4991 = vmatmul.bf16.gmra.mxu0 %v3411
  %v4992 = vpop.f32.mrf.mxu0
  %v4993 = vadd.f32 %v4664, %v4992
  %v4994 = vpop.f32.mrf.mxu0
  %v4995 = vadd.f32 %v4666, %v4994
  %4996 = vmatmul.bf16.gmra.mxu0 %v3419
  %v4997 = vpop.f32.mrf.mxu0
  %v4998 = vadd.f32 %v4669, %v4997
  %v4999 = vpop.f32.mrf.mxu0
  %v5000 = vadd.f32 %v4671, %v4999
  %5001 = vmatmul.bf16.gmra.mxu0 %v3427
  %v5002 = vpop.f32.mrf.mxu0
  %v5003 = vadd.f32 %v4674, %v5002
  %v5004 = vpop.f32.mrf.mxu0
  %v5005 = vadd.f32 %v4676, %v5004
  %5006 = vmatmul.bf16.gmra.mxu0 %v3435
  %v5007 = vpop.f32.mrf.mxu0
  %v5008 = vadd.f32 %v4679, %v5007
  %v5009 = vpop.f32.mrf.mxu0
  %v5010 = vadd.f32 %v4681, %v5009
  %5011 = vmatmul.bf16.gmra.mxu0 %v3443
  %v5012 = vpop.f32.mrf.mxu0
  %v5013 = vadd.f32 %v4684, %v5012
  %v5014 = vpop.f32.mrf.mxu0
  %v5015 = vadd.f32 %v4686, %v5014
  %5016 = vmatmul.bf16.gmra.mxu0 %v3451
  %v5017 = vpop.f32.mrf.mxu0
  %v5018 = vadd.f32 %v4689, %v5017
  %v5019 = vpop.f32.mrf.mxu0
  %v5020 = vadd.f32 %v4691, %v5019
  %5021 = vmatmul.bf16.gmra.mxu0 %v3459
  %v5022 = vpop.f32.mrf.mxu0
  %v5023 = vadd.f32 %v4694, %v5022
  %v5024 = vpop.f32.mrf.mxu0
  %v5025 = vadd.f32 %v4696, %v5024
  %5026 = vmatmul.bf16.gmra.mxu0 %v3467
  %v5027 = vpop.f32.mrf.mxu0
  %v5028 = vadd.f32 %v4699, %v5027
  %v5029 = vpop.f32.mrf.mxu0
  %v5030 = vadd.f32 %v4701, %v5029
  %5031 = vmatmul.bf16.gmra.mxu0 %v3475
  %v5032 = vpop.f32.mrf.mxu0
  %v5033 = vadd.f32 %v4704, %v5032
  %v5034 = vpop.f32.mrf.mxu0
  %v5035 = vadd.f32 %v4706, %v5034
  %5036 = vmatmul.bf16.gmra.mxu0 %v3483
  %v5037 = vpop.f32.mrf.mxu0
  %v5038 = vadd.f32 %v4709, %v5037
  %v5039 = vpop.f32.mrf.mxu0
  %v5040 = vadd.f32 %v4711, %v5039
  %5041 = vmatmul.bf16.gmra.mxu0 %v3491
  %v5042 = vpop.f32.mrf.mxu0
  %v5043 = vadd.f32 %v4714, %v5042
  %v5044 = vpop.f32.mrf.mxu0
  %v5045 = vadd.f32 %v4716, %v5044
  %5046 = vmatmul.bf16.gmra.mxu0 %v3499
  %v5047 = vpop.f32.mrf.mxu0
  %v5048 = vadd.f32 %v4719, %v5047
  %v5049 = vpop.f32.mrf.mxu0
  %v5050 = vadd.f32 %v4721, %v5049
  %5051 = vmatmul.bf16.gmra.mxu0 %v3507
  %v5052 = vpop.f32.mrf.mxu0
  %v5053 = vadd.f32 %v4724, %v5052
  %v5054 = vpop.f32.mrf.mxu0
  %v5055 = vadd.f32 %v4726, %v5054
  %5056 = vmatmul.bf16.gmra.mxu0 %v3515
  %v5057 = vpop.f32.mrf.mxu0
  %v5058 = vadd.f32 %v4729, %v5057
  %v5059 = vpop.f32.mrf.mxu0
  %v5060 = vadd.f32 %v4731, %v5059
  %5061 = vmatmul.bf16.gmra.mxu0 %v3523
  %v5062 = vpop.f32.mrf.mxu0
  %v5063 = vadd.f32 %v4734, %v5062
  %v5064 = vpop.f32.mrf.mxu0
  %v5065 = vadd.f32 %v4736, %v5064
  %5066 = vmatmul.bf16.gmra.mxu0 %v3531
  %v5067 = vpop.f32.mrf.mxu0
  %v5068 = vadd.f32 %v4739, %v5067
  %v5069 = vpop.f32.mrf.mxu0
  %v5070 = vadd.f32 %v4741, %v5069
  %5071 = vmatmul.bf16.gmra.mxu0 %v3539
  %v5072 = vpop.f32.mrf.mxu0
  %v5073 = vadd.f32 %v4744, %v5072
  %v5074 = vpop.f32.mrf.mxu0
  %v5075 = vadd.f32 %v4746, %v5074
  %5076 = vmatmul.bf16.gmra.mxu0 %v3547
  %v5077 = vpop.f32.mrf.mxu0
  %v5078 = vadd.f32 %v4749, %v5077
  %v5079 = vpop.f32.mrf.mxu0
  %v5080 = vadd.f32 %v4751, %v5079
  %5081 = vmatmul.bf16.gmra.mxu0 %v3555
  %v5082 = vpop.f32.mrf.mxu0
  %v5083 = vadd.f32 %v4754, %v5082
  %v5084 = vpop.f32.mrf.mxu0
  %v5085 = vadd.f32 %v4756, %v5084
  %5086 = vmatmul.bf16.gmra.mxu0 %v3563
  %v5087 = vpop.f32.mrf.mxu0
  %v5088 = vadd.f32 %v4759, %v5087
  %v5089 = vpop.f32.mrf.mxu0
  %v5090 = vadd.f32 %v4761, %v5089
  %5091 = vmatmul.bf16.gmra.mxu0 %v3571
  %v5092 = vpop.f32.mrf.mxu0
  %v5093 = vadd.f32 %v4764, %v5092
  %v5094 = vpop.f32.mrf.mxu0
  %v5095 = vadd.f32 %v4766, %v5094
  %5096 = vmatmul.bf16.gmra.mxu0 %v3579
  %v5097 = vpop.f32.mrf.mxu0
  %v5098 = vadd.f32 %v4769, %v5097
  %v5099 = vpop.f32.mrf.mxu0
  %v5100 = vadd.f32 %v4771, %v5099
  %5101 = vmatmul.bf16.gmra.mxu0 %v3587
  %v5102 = vpop.f32.mrf.mxu0
  %v5103 = vadd.f32 %v4774, %v5102
  %v5104 = vpop.f32.mrf.mxu0
  %v5105 = vadd.f32 %v4776, %v5104
  %5106 = vmatmul.bf16.gmra.mxu0 %v3595
  %v5107 = vpop.f32.mrf.mxu0
  %v5108 = vadd.f32 %v4779, %v5107
  %v5109 = vpop.f32.mrf.mxu0
  %v5110 = vadd.f32 %v4781, %v5109
  %5111 = vmatmul.bf16.gmra.mxu0 %v3603
  %v5112 = vpop.f32.mrf.mxu0
  %v5113 = vadd.f32 %v4784, %v5112
  %v5114 = vpop.f32.mrf.mxu0
  %v5115 = vadd.f32 %v4786, %v5114
  %5116 = vmatmul.bf16.gmra.mxu0 %v3611
  %v5117 = vpop.f32.mrf.mxu0
  %v5118 = vadd.f32 %v4789, %v5117
  %v5119 = vpop.f32.mrf.mxu0
  %v5120 = vadd.f32 %v4791, %v5119
  %5121 = vmatmul.bf16.gmra.mxu0 %v3619
  %v5122 = vpop.f32.mrf.mxu0
  %v5123 = vadd.f32 %v4794, %v5122
  %v5124 = vpop.f32.mrf.mxu0
  %v5125 = vadd.f32 %v4796, %v5124
  %5126 = vmatmul.bf16.gmra.mxu0 %v3627
  %v5127 = vpop.f32.mrf.mxu0
  %v5128 = vadd.f32 %v4799, %v5127
  %v5129 = vpop.f32.mrf.mxu0
  %v5130 = vadd.f32 %v4801, %v5129
  %5131 = vdwg.mxu0
  %5132 = vmatpush.bf16.msra.mxu0 %v1040
  %5133 = vmatpush.bf16.msra.mxu0 %v1039
  %5134 = vmatpush.bf16.msra.mxu0 %v1038
  %5135 = vmatpush.bf16.msra.mxu0 %v1037
  %5136 = vmatpush.bf16.msra.mxu0 %v1036
  %5137 = vmatpush.bf16.msra.mxu0 %v1035
  %5138 = vmatpush.bf16.msra.mxu0 %v1034
  %5139 = vmatpush.bf16.msra.mxu0 %v1033
  %5140 = vmatmul.bf16.gmra.mxu0 %v3124
  %v5141 = vpop.f32.mrf.mxu0
  %v5142 = vadd.f32 %v4813, %v5141
  %v5143 = vpop.f32.mrf.mxu0
  %v5144 = vadd.f32 %v4815, %v5143
  %5145 = vmatmul.bf16.gmra.mxu0 %v3132
  %v5146 = vpop.f32.mrf.mxu0
  %v5147 = vadd.f32 %v4818, %v5146
  %v5148 = vpop.f32.mrf.mxu0
  %v5149 = vadd.f32 %v4820, %v5148
  %5150 = vmatmul.bf16.gmra.mxu0 %v3140
  %v5151 = vpop.f32.mrf.mxu0
  %v5152 = vadd.f32 %v4823, %v5151
  %v5153 = vpop.f32.mrf.mxu0
  %v5154 = vadd.f32 %v4825, %v5153
  %5155 = vmatmul.bf16.gmra.mxu0 %v3148
  %v5156 = vpop.f32.mrf.mxu0
  %v5157 = vadd.f32 %v4828, %v5156
  %v5158 = vpop.f32.mrf.mxu0
  %v5159 = vadd.f32 %v4830, %v5158
  %5160 = vmatmul.bf16.gmra.mxu0 %v3156
  %v5161 = vpop.f32.mrf.mxu0
  %v5162 = vadd.f32 %v4833, %v5161
  %v5163 = vpop.f32.mrf.mxu0
  %v5164 = vadd.f32 %v4835, %v5163
  %5165 = vmatmul.bf16.gmra.mxu0 %v3164
  %v5166 = vpop.f32.mrf.mxu0
  %v5167 = vadd.f32 %v4838, %v5166
  %v5168 = vpop.f32.mrf.mxu0
  %v5169 = vadd.f32 %v4840, %v5168
  %5170 = vmatmul.bf16.gmra.mxu0 %v3172
  %v5171 = vpop.f32.mrf.mxu0
  %v5172 = vadd.f32 %v4843, %v5171
  %v5173 = vpop.f32.mrf.mxu0
  %v5174 = vadd.f32 %v4845, %v5173
  %5175 = vmatmul.bf16.gmra.mxu0 %v3180
  %v5176 = vpop.f32.mrf.mxu0
  %v5177 = vadd.f32 %v4848, %v5176
  %v5178 = vpop.f32.mrf.mxu0
  %v5179 = vadd.f32 %v4850, %v5178
  %5180 = vmatmul.bf16.gmra.mxu0 %v3188
  %v5181 = vpop.f32.mrf.mxu0
  %v5182 = vadd.f32 %v4853, %v5181
  %v5183 = vpop.f32.mrf.mxu0
  %v5184 = vadd.f32 %v4855, %v5183
  %5185 = vmatmul.bf16.gmra.mxu0 %v3196
  %v5186 = vpop.f32.mrf.mxu0
  %v5187 = vadd.f32 %v4858, %v5186
  %v5188 = vpop.f32.mrf.mxu0
  %v5189 = vadd.f32 %v4860, %v5188
  %5190 = vmatmul.bf16.gmra.mxu0 %v3204
  %v5191 = vpop.f32.mrf.mxu0
  %v5192 = vadd.f32 %v4863, %v5191
  %v5193 = vpop.f32.mrf.mxu0
  %v5194 = vadd.f32 %v4865, %v5193
  %5195 = vmatmul.bf16.gmra.mxu0 %v3212
  %v5196 = vpop.f32.mrf.mxu0
  %v5197 = vadd.f32 %v4868, %v5196
  %v5198 = vpop.f32.mrf.mxu0
  %v5199 = vadd.f32 %v4870, %v5198
  %5200 = vmatmul.bf16.gmra.mxu0 %v3220
  %v5201 = vpop.f32.mrf.mxu0
  %v5202 = vadd.f32 %v4873, %v5201
  %v5203 = vpop.f32.mrf.mxu0
  %v5204 = vadd.f32 %v4875, %v5203
  %5205 = vmatmul.bf16.gmra.mxu0 %v3228
  %v5206 = vpop.f32.mrf.mxu0
  %v5207 = vadd.f32 %v4878, %v5206
  %v5208 = vpop.f32.mrf.mxu0
  %v5209 = vadd.f32 %v4880, %v5208
  %5210 = vmatmul.bf16.gmra.mxu0 %v3236
  %v5211 = vpop.f32.mrf.mxu0
  %v5212 = vadd.f32 %v4883, %v5211
  %v5213 = vpop.f32.mrf.mxu0
  %v5214 = vadd.f32 %v4885, %v5213
  %5215 = vmatmul.bf16.gmra.mxu0 %v3244
  %v5216 = vpop.f32.mrf.mxu0
  %v5217 = vadd.f32 %v4888, %v5216
  %v5218 = vpop.f32.mrf.mxu0
  %v5219 = vadd.f32 %v4890, %v5218
  %5220 = vmatmul.bf16.gmra.mxu0 %v3252
  %v5221 = vpop.f32.mrf.mxu0
  %v5222 = vadd.f32 %v4893, %v5221
  %v5223 = vpop.f32.mrf.mxu0
  %v5224 = vadd.f32 %v4895, %v5223
  %5225 = vmatmul.bf16.gmra.mxu0 %v3260
  %v5226 = vpop.f32.mrf.mxu0
  %v5227 = vadd.f32 %v4898, %v5226
  %v5228 = vpop.f32.mrf.mxu0
  %v5229 = vadd.f32 %v4900, %v5228
  %5230 = vmatmul.bf16.gmra.mxu0 %v3268
  %v5231 = vpop.f32.mrf.mxu0
  %v5232 = vadd.f32 %v4903, %v5231
  %v5233 = vpop.f32.mrf.mxu0
  %v5234 = vadd.f32 %v4905, %v5233
  %5235 = vmatmul.bf16.gmra.mxu0 %v3276
  %v5236 = vpop.f32.mrf.mxu0
  %v5237 = vadd.f32 %v4908, %v5236
  %v5238 = vpop.f32.mrf.mxu0
  %v5239 = vadd.f32 %v4910, %v5238
  %5240 = vmatmul.bf16.gmra.mxu0 %v3284
  %v5241 = vpop.f32.mrf.mxu0
  %v5242 = vadd.f32 %v4913, %v5241
  %v5243 = vpop.f32.mrf.mxu0
  %v5244 = vadd.f32 %v4915, %v5243
  %5245 = vmatmul.bf16.gmra.mxu0 %v3292
  %v5246 = vpop.f32.mrf.mxu0
  %v5247 = vadd.f32 %v4918, %v5246
  %v5248 = vpop.f32.mrf.mxu0
  %v5249 = vadd.f32 %v4920, %v5248
  %5250 = vmatmul.bf16.gmra.mxu0 %v3300
  %v5251 = vpop.f32.mrf.mxu0
  %v5252 = vadd.f32 %v4923, %v5251
  %v5253 = vpop.f32.mrf.mxu0
  %v5254 = vadd.f32 %v4925, %v5253
  %5255 = vmatmul.bf16.gmra.mxu0 %v3308
  %v5256 = vpop.f32.mrf.mxu0
  %v5257 = vadd.f32 %v4928, %v5256
  %v5258 = vpop.f32.mrf.mxu0
  %v5259 = vadd.f32 %v4930, %v5258
  %5260 = vmatmul.bf16.gmra.mxu0 %v3316
  %v5261 = vpop.f32.mrf.mxu0
  %v5262 = vadd.f32 %v4933, %v5261
  %v5263 = vpop.f32.mrf.mxu0
  %v5264 = vadd.f32 %v4935, %v5263
  %5265 = vmatmul.bf16.gmra.mxu0 %v3324
  %v5266 = vpop.f32.mrf.mxu0
  %v5267 = vadd.f32 %v4938, %v5266
  %v5268 = vpop.f32.mrf.mxu0
  %v5269 = vadd.f32 %v4940, %v5268
  %5270 = vmatmul.bf16.gmra.mxu0 %v3332
  %v5271 = vpop.f32.mrf.mxu0
  %v5272 = vadd.f32 %v4943, %v5271
  %v5273 = vpop.f32.mrf.mxu0
  %v5274 = vadd.f32 %v4945, %v5273
  %5275 = vmatmul.bf16.gmra.mxu0 %v3340
  %v5276 = vpop.f32.mrf.mxu0
  %v5277 = vadd.f32 %v4948, %v5276
  %v5278 = vpop.f32.mrf.mxu0
  %v5279 = vadd.f32 %v4950, %v5278
  %5280 = vmatmul.bf16.gmra.mxu0 %v3348
  %v5281 = vpop.f32.mrf.mxu0
  %v5282 = vadd.f32 %v4953, %v5281
  %v5283 = vpop.f32.mrf.mxu0
  %v5284 = vadd.f32 %v4955, %v5283
  %5285 = vmatmul.bf16.gmra.mxu0 %v3356
  %v5286 = vpop.f32.mrf.mxu0
  %v5287 = vadd.f32 %v4958, %v5286
  %v5288 = vpop.f32.mrf.mxu0
  %v5289 = vadd.f32 %v4960, %v5288
  %5290 = vmatmul.bf16.gmra.mxu0 %v3364
  %v5291 = vpop.f32.mrf.mxu0
  %v5292 = vadd.f32 %v4963, %v5291
  %v5293 = vpop.f32.mrf.mxu0
  %v5294 = vadd.f32 %v4965, %v5293
  %5295 = vmatmul.bf16.gmra.mxu0 %v3372
  %v5296 = vpop.f32.mrf.mxu0
  %v5297 = vadd.f32 %v4968, %v5296
  %v5298 = vpop.f32.mrf.mxu0
  %v5299 = vadd.f32 %v4970, %v5298
  %5300 = vmatmul.bf16.gmra.mxu0 %v3380
  %v5301 = vpop.f32.mrf.mxu0
  %v5302 = vadd.f32 %v4973, %v5301
  %v5303 = vpop.f32.mrf.mxu0
  %v5304 = vadd.f32 %v4975, %v5303
  %5305 = vmatmul.bf16.gmra.mxu0 %v3388
  %v5306 = vpop.f32.mrf.mxu0
  %v5307 = vadd.f32 %v4978, %v5306
  %v5308 = vpop.f32.mrf.mxu0
  %v5309 = vadd.f32 %v4980, %v5308
  %5310 = vmatmul.bf16.gmra.mxu0 %v3396
  %v5311 = vpop.f32.mrf.mxu0
  %v5312 = vadd.f32 %v4983, %v5311
  %v5313 = vpop.f32.mrf.mxu0
  %v5314 = vadd.f32 %v4985, %v5313
  %5315 = vmatmul.bf16.gmra.mxu0 %v3404
  %v5316 = vpop.f32.mrf.mxu0
  %v5317 = vadd.f32 %v4988, %v5316
  %v5318 = vpop.f32.mrf.mxu0
  %v5319 = vadd.f32 %v4990, %v5318
  %5320 = vmatmul.bf16.gmra.mxu0 %v3412
  %v5321 = vpop.f32.mrf.mxu0
  %v5322 = vadd.f32 %v4993, %v5321
  %v5323 = vpop.f32.mrf.mxu0
  %v5324 = vadd.f32 %v4995, %v5323
  %5325 = vmatmul.bf16.gmra.mxu0 %v3420
  %v5326 = vpop.f32.mrf.mxu0
  %v5327 = vadd.f32 %v4998, %v5326
  %v5328 = vpop.f32.mrf.mxu0
  %v5329 = vadd.f32 %v5000, %v5328
  %5330 = vmatmul.bf16.gmra.mxu0 %v3428
  %v5331 = vpop.f32.mrf.mxu0
  %v5332 = vadd.f32 %v5003, %v5331
  %v5333 = vpop.f32.mrf.mxu0
  %v5334 = vadd.f32 %v5005, %v5333
  %5335 = vmatmul.bf16.gmra.mxu0 %v3436
  %v5336 = vpop.f32.mrf.mxu0
  %v5337 = vadd.f32 %v5008, %v5336
  %v5338 = vpop.f32.mrf.mxu0
  %v5339 = vadd.f32 %v5010, %v5338
  %5340 = vmatmul.bf16.gmra.mxu0 %v3444
  %v5341 = vpop.f32.mrf.mxu0
  %v5342 = vadd.f32 %v5013, %v5341
  %v5343 = vpop.f32.mrf.mxu0
  %v5344 = vadd.f32 %v5015, %v5343
  %5345 = vmatmul.bf16.gmra.mxu0 %v3452
  %v5346 = vpop.f32.mrf.mxu0
  %v5347 = vadd.f32 %v5018, %v5346
  %v5348 = vpop.f32.mrf.mxu0
  %v5349 = vadd.f32 %v5020, %v5348
  %5350 = vmatmul.bf16.gmra.mxu0 %v3460
  %v5351 = vpop.f32.mrf.mxu0
  %v5352 = vadd.f32 %v5023, %v5351
  %v5353 = vpop.f32.mrf.mxu0
  %v5354 = vadd.f32 %v5025, %v5353
  %5355 = vmatmul.bf16.gmra.mxu0 %v3468
  %v5356 = vpop.f32.mrf.mxu0
  %v5357 = vadd.f32 %v5028, %v5356
  %v5358 = vpop.f32.mrf.mxu0
  %v5359 = vadd.f32 %v5030, %v5358
  %5360 = vmatmul.bf16.gmra.mxu0 %v3476
  %v5361 = vpop.f32.mrf.mxu0
  %v5362 = vadd.f32 %v5033, %v5361
  %v5363 = vpop.f32.mrf.mxu0
  %v5364 = vadd.f32 %v5035, %v5363
  %5365 = vmatmul.bf16.gmra.mxu0 %v3484
  %v5366 = vpop.f32.mrf.mxu0
  %v5367 = vadd.f32 %v5038, %v5366
  %v5368 = vpop.f32.mrf.mxu0
  %v5369 = vadd.f32 %v5040, %v5368
  %5370 = vmatmul.bf16.gmra.mxu0 %v3492
  %v5371 = vpop.f32.mrf.mxu0
  %v5372 = vadd.f32 %v5043, %v5371
  %v5373 = vpop.f32.mrf.mxu0
  %v5374 = vadd.f32 %v5045, %v5373
  %5375 = vmatmul.bf16.gmra.mxu0 %v3500
  %v5376 = vpop.f32.mrf.mxu0
  %v5377 = vadd.f32 %v5048, %v5376
  %v5378 = vpop.f32.mrf.mxu0
  %v5379 = vadd.f32 %v5050, %v5378
  %5380 = vmatmul.bf16.gmra.mxu0 %v3508
  %v5381 = vpop.f32.mrf.mxu0
  %v5382 = vadd.f32 %v5053, %v5381
  %v5383 = vpop.f32.mrf.mxu0
  %v5384 = vadd.f32 %v5055, %v5383
  %5385 = vmatmul.bf16.gmra.mxu0 %v3516
  %v5386 = vpop.f32.mrf.mxu0
  %v5387 = vadd.f32 %v5058, %v5386
  %v5388 = vpop.f32.mrf.mxu0
  %v5389 = vadd.f32 %v5060, %v5388
  %5390 = vmatmul.bf16.gmra.mxu0 %v3524
  %v5391 = vpop.f32.mrf.mxu0
  %v5392 = vadd.f32 %v5063, %v5391
  %v5393 = vpop.f32.mrf.mxu0
  %v5394 = vadd.f32 %v5065, %v5393
  %5395 = vmatmul.bf16.gmra.mxu0 %v3532
  %v5396 = vpop.f32.mrf.mxu0
  %v5397 = vadd.f32 %v5068, %v5396
  %v5398 = vpop.f32.mrf.mxu0
  %v5399 = vadd.f32 %v5070, %v5398
  %5400 = vmatmul.bf16.gmra.mxu0 %v3540
  %v5401 = vpop.f32.mrf.mxu0
  %v5402 = vadd.f32 %v5073, %v5401
  %v5403 = vpop.f32.mrf.mxu0
  %v5404 = vadd.f32 %v5075, %v5403
  %5405 = vmatmul.bf16.gmra.mxu0 %v3548
  %v5406 = vpop.f32.mrf.mxu0
  %v5407 = vadd.f32 %v5078, %v5406
  %v5408 = vpop.f32.mrf.mxu0
  %v5409 = vadd.f32 %v5080, %v5408
  %5410 = vmatmul.bf16.gmra.mxu0 %v3556
  %v5411 = vpop.f32.mrf.mxu0
  %v5412 = vadd.f32 %v5083, %v5411
  %v5413 = vpop.f32.mrf.mxu0
  %v5414 = vadd.f32 %v5085, %v5413
  %5415 = vmatmul.bf16.gmra.mxu0 %v3564
  %v5416 = vpop.f32.mrf.mxu0
  %v5417 = vadd.f32 %v5088, %v5416
  %v5418 = vpop.f32.mrf.mxu0
  %v5419 = vadd.f32 %v5090, %v5418
  %5420 = vmatmul.bf16.gmra.mxu0 %v3572
  %v5421 = vpop.f32.mrf.mxu0
  %v5422 = vadd.f32 %v5093, %v5421
  %v5423 = vpop.f32.mrf.mxu0
  %v5424 = vadd.f32 %v5095, %v5423
  %5425 = vmatmul.bf16.gmra.mxu0 %v3580
  %v5426 = vpop.f32.mrf.mxu0
  %v5427 = vadd.f32 %v5098, %v5426
  %v5428 = vpop.f32.mrf.mxu0
  %v5429 = vadd.f32 %v5100, %v5428
  %5430 = vmatmul.bf16.gmra.mxu0 %v3588
  %v5431 = vpop.f32.mrf.mxu0
  %v5432 = vadd.f32 %v5103, %v5431
  %v5433 = vpop.f32.mrf.mxu0
  %v5434 = vadd.f32 %v5105, %v5433
  %5435 = vmatmul.bf16.gmra.mxu0 %v3596
  %v5436 = vpop.f32.mrf.mxu0
  %v5437 = vadd.f32 %v5108, %v5436
  %v5438 = vpop.f32.mrf.mxu0
  %v5439 = vadd.f32 %v5110, %v5438
  %5440 = vmatmul.bf16.gmra.mxu0 %v3604
  %v5441 = vpop.f32.mrf.mxu0
  %v5442 = vadd.f32 %v5113, %v5441
  %v5443 = vpop.f32.mrf.mxu0
  %v5444 = vadd.f32 %v5115, %v5443
  %5445 = vmatmul.bf16.gmra.mxu0 %v3612
  %v5446 = vpop.f32.mrf.mxu0
  %v5447 = vadd.f32 %v5118, %v5446
  %v5448 = vpop.f32.mrf.mxu0
  %v5449 = vadd.f32 %v5120, %v5448
  %5450 = vmatmul.bf16.gmra.mxu0 %v3620
  %v5451 = vpop.f32.mrf.mxu0
  %v5452 = vadd.f32 %v5123, %v5451
  %v5453 = vpop.f32.mrf.mxu0
  %v5454 = vadd.f32 %v5125, %v5453
  %5455 = vmatmul.bf16.gmra.mxu0 %v3628
  %v5456 = vpop.f32.mrf.mxu0
  %v5457 = vadd.f32 %v5128, %v5456
  %v5458 = vpop.f32.mrf.mxu0
  %v5459 = vadd.f32 %v5130, %v5458
  %5460 = vdwg.mxu0
  %5461 = vmatpush.bf16.msra.mxu0 %v1048
  %5462 = vmatpush.bf16.msra.mxu0 %v1047
  %5463 = vmatpush.bf16.msra.mxu0 %v1046
  %5464 = vmatpush.bf16.msra.mxu0 %v1045
  %5465 = vmatpush.bf16.msra.mxu0 %v1044
  %5466 = vmatpush.bf16.msra.mxu0 %v1043
  %5467 = vmatpush.bf16.msra.mxu0 %v1042
  %5468 = vmatpush.bf16.msra.mxu0 %v1041
  %5469 = vmatmul.bf16.gmra.mxu0 %v3125
  %v5470 = vpop.f32.mrf.mxu0
  %v5471 = vadd.f32 %v5142, %v5470
  %v5472 = vpop.f32.mrf.mxu0
  %v5473 = vadd.f32 %v5144, %v5472
  %5474 = vmatmul.bf16.gmra.mxu0 %v3133
  %v5475 = vpop.f32.mrf.mxu0
  %v5476 = vadd.f32 %v5147, %v5475
  %v5477 = vpop.f32.mrf.mxu0
  %v5478 = vadd.f32 %v5149, %v5477
  %5479 = vmatmul.bf16.gmra.mxu0 %v3141
  %v5480 = vpop.f32.mrf.mxu0
  %v5481 = vadd.f32 %v5152, %v5480
  %v5482 = vpop.f32.mrf.mxu0
  %v5483 = vadd.f32 %v5154, %v5482
  %5484 = vmatmul.bf16.gmra.mxu0 %v3149
  %v5485 = vpop.f32.mrf.mxu0
  %v5486 = vadd.f32 %v5157, %v5485
  %v5487 = vpop.f32.mrf.mxu0
  %v5488 = vadd.f32 %v5159, %v5487
  %5489 = vmatmul.bf16.gmra.mxu0 %v3157
  %v5490 = vpop.f32.mrf.mxu0
  %v5491 = vadd.f32 %v5162, %v5490
  %v5492 = vpop.f32.mrf.mxu0
  %v5493 = vadd.f32 %v5164, %v5492
  %5494 = vmatmul.bf16.gmra.mxu0 %v3165
  %v5495 = vpop.f32.mrf.mxu0
  %v5496 = vadd.f32 %v5167, %v5495
  %v5497 = vpop.f32.mrf.mxu0
  %v5498 = vadd.f32 %v5169, %v5497
  %5499 = vmatmul.bf16.gmra.mxu0 %v3173
  %v5500 = vpop.f32.mrf.mxu0
  %v5501 = vadd.f32 %v5172, %v5500
  %v5502 = vpop.f32.mrf.mxu0
  %v5503 = vadd.f32 %v5174, %v5502
  %5504 = vmatmul.bf16.gmra.mxu0 %v3181
  %v5505 = vpop.f32.mrf.mxu0
  %v5506 = vadd.f32 %v5177, %v5505
  %v5507 = vpop.f32.mrf.mxu0
  %v5508 = vadd.f32 %v5179, %v5507
  %5509 = vmatmul.bf16.gmra.mxu0 %v3189
  %v5510 = vpop.f32.mrf.mxu0
  %v5511 = vadd.f32 %v5182, %v5510
  %v5512 = vpop.f32.mrf.mxu0
  %v5513 = vadd.f32 %v5184, %v5512
  %5514 = vmatmul.bf16.gmra.mxu0 %v3197
  %v5515 = vpop.f32.mrf.mxu0
  %v5516 = vadd.f32 %v5187, %v5515
  %v5517 = vpop.f32.mrf.mxu0
  %v5518 = vadd.f32 %v5189, %v5517
  %5519 = vmatmul.bf16.gmra.mxu0 %v3205
  %v5520 = vpop.f32.mrf.mxu0
  %v5521 = vadd.f32 %v5192, %v5520
  %v5522 = vpop.f32.mrf.mxu0
  %v5523 = vadd.f32 %v5194, %v5522
  %5524 = vmatmul.bf16.gmra.mxu0 %v3213
  %v5525 = vpop.f32.mrf.mxu0
  %v5526 = vadd.f32 %v5197, %v5525
  %v5527 = vpop.f32.mrf.mxu0
  %v5528 = vadd.f32 %v5199, %v5527
  %5529 = vmatmul.bf16.gmra.mxu0 %v3221
  %v5530 = vpop.f32.mrf.mxu0
  %v5531 = vadd.f32 %v5202, %v5530
  %v5532 = vpop.f32.mrf.mxu0
  %v5533 = vadd.f32 %v5204, %v5532
  %5534 = vmatmul.bf16.gmra.mxu0 %v3229
  %v5535 = vpop.f32.mrf.mxu0
  %v5536 = vadd.f32 %v5207, %v5535
  %v5537 = vpop.f32.mrf.mxu0
  %v5538 = vadd.f32 %v5209, %v5537
  %5539 = vmatmul.bf16.gmra.mxu0 %v3237
  %v5540 = vpop.f32.mrf.mxu0
  %v5541 = vadd.f32 %v5212, %v5540
  %v5542 = vpop.f32.mrf.mxu0
  %v5543 = vadd.f32 %v5214, %v5542
  %5544 = vmatmul.bf16.gmra.mxu0 %v3245
  %v5545 = vpop.f32.mrf.mxu0
  %v5546 = vadd.f32 %v5217, %v5545
  %v5547 = vpop.f32.mrf.mxu0
  %v5548 = vadd.f32 %v5219, %v5547
  %5549 = vmatmul.bf16.gmra.mxu0 %v3253
  %v5550 = vpop.f32.mrf.mxu0
  %v5551 = vadd.f32 %v5222, %v5550
  %v5552 = vpop.f32.mrf.mxu0
  %v5553 = vadd.f32 %v5224, %v5552
  %5554 = vmatmul.bf16.gmra.mxu0 %v3261
  %v5555 = vpop.f32.mrf.mxu0
  %v5556 = vadd.f32 %v5227, %v5555
  %v5557 = vpop.f32.mrf.mxu0
  %v5558 = vadd.f32 %v5229, %v5557
  %5559 = vmatmul.bf16.gmra.mxu0 %v3269
  %v5560 = vpop.f32.mrf.mxu0
  %v5561 = vadd.f32 %v5232, %v5560
  %v5562 = vpop.f32.mrf.mxu0
  %v5563 = vadd.f32 %v5234, %v5562
  %5564 = vmatmul.bf16.gmra.mxu0 %v3277
  %v5565 = vpop.f32.mrf.mxu0
  %v5566 = vadd.f32 %v5237, %v5565
  %v5567 = vpop.f32.mrf.mxu0
  %v5568 = vadd.f32 %v5239, %v5567
  %5569 = vmatmul.bf16.gmra.mxu0 %v3285
  %v5570 = vpop.f32.mrf.mxu0
  %v5571 = vadd.f32 %v5242, %v5570
  %v5572 = vpop.f32.mrf.mxu0
  %v5573 = vadd.f32 %v5244, %v5572
  %5574 = vmatmul.bf16.gmra.mxu0 %v3293
  %v5575 = vpop.f32.mrf.mxu0
  %v5576 = vadd.f32 %v5247, %v5575
  %v5577 = vpop.f32.mrf.mxu0
  %v5578 = vadd.f32 %v5249, %v5577
  %5579 = vmatmul.bf16.gmra.mxu0 %v3301
  %v5580 = vpop.f32.mrf.mxu0
  %v5581 = vadd.f32 %v5252, %v5580
  %v5582 = vpop.f32.mrf.mxu0
  %v5583 = vadd.f32 %v5254, %v5582
  %5584 = vmatmul.bf16.gmra.mxu0 %v3309
  %v5585 = vpop.f32.mrf.mxu0
  %v5586 = vadd.f32 %v5257, %v5585
  %v5587 = vpop.f32.mrf.mxu0
  %v5588 = vadd.f32 %v5259, %v5587
  %5589 = vmatmul.bf16.gmra.mxu0 %v3317
  %v5590 = vpop.f32.mrf.mxu0
  %v5591 = vadd.f32 %v5262, %v5590
  %v5592 = vpop.f32.mrf.mxu0
  %v5593 = vadd.f32 %v5264, %v5592
  %5594 = vmatmul.bf16.gmra.mxu0 %v3325
  %v5595 = vpop.f32.mrf.mxu0
  %v5596 = vadd.f32 %v5267, %v5595
  %v5597 = vpop.f32.mrf.mxu0
  %v5598 = vadd.f32 %v5269, %v5597
  %5599 = vmatmul.bf16.gmra.mxu0 %v3333
  %v5600 = vpop.f32.mrf.mxu0
  %v5601 = vadd.f32 %v5272, %v5600
  %v5602 = vpop.f32.mrf.mxu0
  %v5603 = vadd.f32 %v5274, %v5602
  %5604 = vmatmul.bf16.gmra.mxu0 %v3341
  %v5605 = vpop.f32.mrf.mxu0
  %v5606 = vadd.f32 %v5277, %v5605
  %v5607 = vpop.f32.mrf.mxu0
  %v5608 = vadd.f32 %v5279, %v5607
  %5609 = vmatmul.bf16.gmra.mxu0 %v3349
  %v5610 = vpop.f32.mrf.mxu0
  %v5611 = vadd.f32 %v5282, %v5610
  %v5612 = vpop.f32.mrf.mxu0
  %v5613 = vadd.f32 %v5284, %v5612
  %5614 = vmatmul.bf16.gmra.mxu0 %v3357
  %v5615 = vpop.f32.mrf.mxu0
  %v5616 = vadd.f32 %v5287, %v5615
  %v5617 = vpop.f32.mrf.mxu0
  %v5618 = vadd.f32 %v5289, %v5617
  %5619 = vmatmul.bf16.gmra.mxu0 %v3365
  %v5620 = vpop.f32.mrf.mxu0
  %v5621 = vadd.f32 %v5292, %v5620
  %v5622 = vpop.f32.mrf.mxu0
  %v5623 = vadd.f32 %v5294, %v5622
  %5624 = vmatmul.bf16.gmra.mxu0 %v3373
  %v5625 = vpop.f32.mrf.mxu0
  %v5626 = vadd.f32 %v5297, %v5625
  %v5627 = vpop.f32.mrf.mxu0
  %v5628 = vadd.f32 %v5299, %v5627
  %5629 = vmatmul.bf16.gmra.mxu0 %v3381
  %v5630 = vpop.f32.mrf.mxu0
  %v5631 = vadd.f32 %v5302, %v5630
  %v5632 = vpop.f32.mrf.mxu0
  %v5633 = vadd.f32 %v5304, %v5632
  %5634 = vmatmul.bf16.gmra.mxu0 %v3389
  %v5635 = vpop.f32.mrf.mxu0
  %v5636 = vadd.f32 %v5307, %v5635
  %v5637 = vpop.f32.mrf.mxu0
  %v5638 = vadd.f32 %v5309, %v5637
  %5639 = vmatmul.bf16.gmra.mxu0 %v3397
  %v5640 = vpop.f32.mrf.mxu0
  %v5641 = vadd.f32 %v5312, %v5640
  %v5642 = vpop.f32.mrf.mxu0
  %v5643 = vadd.f32 %v5314, %v5642
  %5644 = vmatmul.bf16.gmra.mxu0 %v3405
  %v5645 = vpop.f32.mrf.mxu0
  %v5646 = vadd.f32 %v5317, %v5645
  %v5647 = vpop.f32.mrf.mxu0
  %v5648 = vadd.f32 %v5319, %v5647
  %5649 = vmatmul.bf16.gmra.mxu0 %v3413
  %v5650 = vpop.f32.mrf.mxu0
  %v5651 = vadd.f32 %v5322, %v5650
  %v5652 = vpop.f32.mrf.mxu0
  %v5653 = vadd.f32 %v5324, %v5652
  %5654 = vmatmul.bf16.gmra.mxu0 %v3421
  %v5655 = vpop.f32.mrf.mxu0
  %v5656 = vadd.f32 %v5327, %v5655
  %v5657 = vpop.f32.mrf.mxu0
  %v5658 = vadd.f32 %v5329, %v5657
  %5659 = vmatmul.bf16.gmra.mxu0 %v3429
  %v5660 = vpop.f32.mrf.mxu0
  %v5661 = vadd.f32 %v5332, %v5660
  %v5662 = vpop.f32.mrf.mxu0
  %v5663 = vadd.f32 %v5334, %v5662
  %5664 = vmatmul.bf16.gmra.mxu0 %v3437
  %v5665 = vpop.f32.mrf.mxu0
  %v5666 = vadd.f32 %v5337, %v5665
  %v5667 = vpop.f32.mrf.mxu0
  %v5668 = vadd.f32 %v5339, %v5667
  %5669 = vmatmul.bf16.gmra.mxu0 %v3445
  %v5670 = vpop.f32.mrf.mxu0
  %v5671 = vadd.f32 %v5342, %v5670
  %v5672 = vpop.f32.mrf.mxu0
  %v5673 = vadd.f32 %v5344, %v5672
  %5674 = vmatmul.bf16.gmra.mxu0 %v3453
  %v5675 = vpop.f32.mrf.mxu0
  %v5676 = vadd.f32 %v5347, %v5675
  %v5677 = vpop.f32.mrf.mxu0
  %v5678 = vadd.f32 %v5349, %v5677
  %5679 = vmatmul.bf16.gmra.mxu0 %v3461
  %v5680 = vpop.f32.mrf.mxu0
  %v5681 = vadd.f32 %v5352, %v5680
  %v5682 = vpop.f32.mrf.mxu0
  %v5683 = vadd.f32 %v5354, %v5682
  %5684 = vmatmul.bf16.gmra.mxu0 %v3469
  %v5685 = vpop.f32.mrf.mxu0
  %v5686 = vadd.f32 %v5357, %v5685
  %v5687 = vpop.f32.mrf.mxu0
  %v5688 = vadd.f32 %v5359, %v5687
  %5689 = vmatmul.bf16.gmra.mxu0 %v3477
  %v5690 = vpop.f32.mrf.mxu0
  %v5691 = vadd.f32 %v5362, %v5690
  %v5692 = vpop.f32.mrf.mxu0
  %v5693 = vadd.f32 %v5364, %v5692
  %5694 = vmatmul.bf16.gmra.mxu0 %v3485
  %v5695 = vpop.f32.mrf.mxu0
  %v5696 = vadd.f32 %v5367, %v5695
  %v5697 = vpop.f32.mrf.mxu0
  %v5698 = vadd.f32 %v5369, %v5697
  %5699 = vmatmul.bf16.gmra.mxu0 %v3493
  %v5700 = vpop.f32.mrf.mxu0
  %v5701 = vadd.f32 %v5372, %v5700
  %v5702 = vpop.f32.mrf.mxu0
  %v5703 = vadd.f32 %v5374, %v5702
  %5704 = vmatmul.bf16.gmra.mxu0 %v3501
  %v5705 = vpop.f32.mrf.mxu0
  %v5706 = vadd.f32 %v5377, %v5705
  %v5707 = vpop.f32.mrf.mxu0
  %v5708 = vadd.f32 %v5379, %v5707
  %5709 = vmatmul.bf16.gmra.mxu0 %v3509
  %v5710 = vpop.f32.mrf.mxu0
  %v5711 = vadd.f32 %v5382, %v5710
  %v5712 = vpop.f32.mrf.mxu0
  %v5713 = vadd.f32 %v5384, %v5712
  %5714 = vmatmul.bf16.gmra.mxu0 %v3517
  %v5715 = vpop.f32.mrf.mxu0
  %v5716 = vadd.f32 %v5387, %v5715
  %v5717 = vpop.f32.mrf.mxu0
  %v5718 = vadd.f32 %v5389, %v5717
  %5719 = vmatmul.bf16.gmra.mxu0 %v3525
  %v5720 = vpop.f32.mrf.mxu0
  %v5721 = vadd.f32 %v5392, %v5720
  %v5722 = vpop.f32.mrf.mxu0
  %v5723 = vadd.f32 %v5394, %v5722
  %5724 = vmatmul.bf16.gmra.mxu0 %v3533
  %v5725 = vpop.f32.mrf.mxu0
  %v5726 = vadd.f32 %v5397, %v5725
  %v5727 = vpop.f32.mrf.mxu0
  %v5728 = vadd.f32 %v5399, %v5727
  %5729 = vmatmul.bf16.gmra.mxu0 %v3541
  %v5730 = vpop.f32.mrf.mxu0
  %v5731 = vadd.f32 %v5402, %v5730
  %v5732 = vpop.f32.mrf.mxu0
  %v5733 = vadd.f32 %v5404, %v5732
  %5734 = vmatmul.bf16.gmra.mxu0 %v3549
  %v5735 = vpop.f32.mrf.mxu0
  %v5736 = vadd.f32 %v5407, %v5735
  %v5737 = vpop.f32.mrf.mxu0
  %v5738 = vadd.f32 %v5409, %v5737
  %5739 = vmatmul.bf16.gmra.mxu0 %v3557
  %v5740 = vpop.f32.mrf.mxu0
  %v5741 = vadd.f32 %v5412, %v5740
  %v5742 = vpop.f32.mrf.mxu0
  %v5743 = vadd.f32 %v5414, %v5742
  %5744 = vmatmul.bf16.gmra.mxu0 %v3565
  %v5745 = vpop.f32.mrf.mxu0
  %v5746 = vadd.f32 %v5417, %v5745
  %v5747 = vpop.f32.mrf.mxu0
  %v5748 = vadd.f32 %v5419, %v5747
  %5749 = vmatmul.bf16.gmra.mxu0 %v3573
  %v5750 = vpop.f32.mrf.mxu0
  %v5751 = vadd.f32 %v5422, %v5750
  %v5752 = vpop.f32.mrf.mxu0
  %v5753 = vadd.f32 %v5424, %v5752
  %5754 = vmatmul.bf16.gmra.mxu0 %v3581
  %v5755 = vpop.f32.mrf.mxu0
  %v5756 = vadd.f32 %v5427, %v5755
  %v5757 = vpop.f32.mrf.mxu0
  %v5758 = vadd.f32 %v5429, %v5757
  %5759 = vmatmul.bf16.gmra.mxu0 %v3589
  %v5760 = vpop.f32.mrf.mxu0
  %v5761 = vadd.f32 %v5432, %v5760
  %v5762 = vpop.f32.mrf.mxu0
  %v5763 = vadd.f32 %v5434, %v5762
  %5764 = vmatmul.bf16.gmra.mxu0 %v3597
  %v5765 = vpop.f32.mrf.mxu0
  %v5766 = vadd.f32 %v5437, %v5765
  %v5767 = vpop.f32.mrf.mxu0
  %v5768 = vadd.f32 %v5439, %v5767
  %5769 = vmatmul.bf16.gmra.mxu0 %v3605
  %v5770 = vpop.f32.mrf.mxu0
  %v5771 = vadd.f32 %v5442, %v5770
  %v5772 = vpop.f32.mrf.mxu0
  %v5773 = vadd.f32 %v5444, %v5772
  %5774 = vmatmul.bf16.gmra.mxu0 %v3613
  %v5775 = vpop.f32.mrf.mxu0
  %v5776 = vadd.f32 %v5447, %v5775
  %v5777 = vpop.f32.mrf.mxu0
  %v5778 = vadd.f32 %v5449, %v5777
  %5779 = vmatmul.bf16.gmra.mxu0 %v3621
  %v5780 = vpop.f32.mrf.mxu0
  %v5781 = vadd.f32 %v5452, %v5780
  %v5782 = vpop.f32.mrf.mxu0
  %v5783 = vadd.f32 %v5454, %v5782
  %5784 = vmatmul.bf16.gmra.mxu0 %v3629
  %v5785 = vpop.f32.mrf.mxu0
  %v5786 = vadd.f32 %v5457, %v5785
  %v5787 = vpop.f32.mrf.mxu0
  %v5788 = vadd.f32 %v5459, %v5787
  %5789 = vdwg.mxu0
  %5790 = vmatpush.bf16.msra.mxu0 %v1056
  %5791 = vmatpush.bf16.msra.mxu0 %v1055
  %5792 = vmatpush.bf16.msra.mxu0 %v1054
  %5793 = vmatpush.bf16.msra.mxu0 %v1053
  %5794 = vmatpush.bf16.msra.mxu0 %v1052
  %5795 = vmatpush.bf16.msra.mxu0 %v1051
  %5796 = vmatpush.bf16.msra.mxu0 %v1050
  %5797 = vmatpush.bf16.msra.mxu0 %v1049
  %5798 = vmatmul.bf16.gmra.mxu0 %v3126
  %v5799 = vpop.f32.mrf.mxu0
  %v5800 = vadd.f32 %v5471, %v5799
  %v5801 = vpop.f32.mrf.mxu0
  %v5802 = vadd.f32 %v5473, %v5801
  %5803 = vmatmul.bf16.gmra.mxu0 %v3134
  %v5804 = vpop.f32.mrf.mxu0
  %v5805 = vadd.f32 %v5476, %v5804
  %v5806 = vpop.f32.mrf.mxu0
  %v5807 = vadd.f32 %v5478, %v5806
  %5808 = vmatmul.bf16.gmra.mxu0 %v3142
  %v5809 = vpop.f32.mrf.mxu0
  %v5810 = vadd.f32 %v5481, %v5809
  %v5811 = vpop.f32.mrf.mxu0
  %v5812 = vadd.f32 %v5483, %v5811
  %5813 = vmatmul.bf16.gmra.mxu0 %v3150
  %v5814 = vpop.f32.mrf.mxu0
  %v5815 = vadd.f32 %v5486, %v5814
  %v5816 = vpop.f32.mrf.mxu0
  %v5817 = vadd.f32 %v5488, %v5816
  %5818 = vmatmul.bf16.gmra.mxu0 %v3158
  %v5819 = vpop.f32.mrf.mxu0
  %v5820 = vadd.f32 %v5491, %v5819
  %v5821 = vpop.f32.mrf.mxu0
  %v5822 = vadd.f32 %v5493, %v5821
  %5823 = vmatmul.bf16.gmra.mxu0 %v3166
  %v5824 = vpop.f32.mrf.mxu0
  %v5825 = vadd.f32 %v5496, %v5824
  %v5826 = vpop.f32.mrf.mxu0
  %v5827 = vadd.f32 %v5498, %v5826
  %5828 = vmatmul.bf16.gmra.mxu0 %v3174
  %v5829 = vpop.f32.mrf.mxu0
  %v5830 = vadd.f32 %v5501, %v5829
  %v5831 = vpop.f32.mrf.mxu0
  %v5832 = vadd.f32 %v5503, %v5831
  %5833 = vmatmul.bf16.gmra.mxu0 %v3182
  %v5834 = vpop.f32.mrf.mxu0
  %v5835 = vadd.f32 %v5506, %v5834
  %v5836 = vpop.f32.mrf.mxu0
  %v5837 = vadd.f32 %v5508, %v5836
  %5838 = vmatmul.bf16.gmra.mxu0 %v3190
  %v5839 = vpop.f32.mrf.mxu0
  %v5840 = vadd.f32 %v5511, %v5839
  %v5841 = vpop.f32.mrf.mxu0
  %v5842 = vadd.f32 %v5513, %v5841
  %5843 = vmatmul.bf16.gmra.mxu0 %v3198
  %v5844 = vpop.f32.mrf.mxu0
  %v5845 = vadd.f32 %v5516, %v5844
  %v5846 = vpop.f32.mrf.mxu0
  %v5847 = vadd.f32 %v5518, %v5846
  %5848 = vmatmul.bf16.gmra.mxu0 %v3206
  %v5849 = vpop.f32.mrf.mxu0
  %v5850 = vadd.f32 %v5521, %v5849
  %v5851 = vpop.f32.mrf.mxu0
  %v5852 = vadd.f32 %v5523, %v5851
  %5853 = vmatmul.bf16.gmra.mxu0 %v3214
  %v5854 = vpop.f32.mrf.mxu0
  %v5855 = vadd.f32 %v5526, %v5854
  %v5856 = vpop.f32.mrf.mxu0
  %v5857 = vadd.f32 %v5528, %v5856
  %5858 = vmatmul.bf16.gmra.mxu0 %v3222
  %v5859 = vpop.f32.mrf.mxu0
  %v5860 = vadd.f32 %v5531, %v5859
  %v5861 = vpop.f32.mrf.mxu0
  %v5862 = vadd.f32 %v5533, %v5861
  %5863 = vmatmul.bf16.gmra.mxu0 %v3230
  %v5864 = vpop.f32.mrf.mxu0
  %v5865 = vadd.f32 %v5536, %v5864
  %v5866 = vpop.f32.mrf.mxu0
  %v5867 = vadd.f32 %v5538, %v5866
  %5868 = vmatmul.bf16.gmra.mxu0 %v3238
  %v5869 = vpop.f32.mrf.mxu0
  %v5870 = vadd.f32 %v5541, %v5869
  %v5871 = vpop.f32.mrf.mxu0
  %v5872 = vadd.f32 %v5543, %v5871
  %5873 = vmatmul.bf16.gmra.mxu0 %v3246
  %v5874 = vpop.f32.mrf.mxu0
  %v5875 = vadd.f32 %v5546, %v5874
  %v5876 = vpop.f32.mrf.mxu0
  %v5877 = vadd.f32 %v5548, %v5876
  %5878 = vmatmul.bf16.gmra.mxu0 %v3254
  %v5879 = vpop.f32.mrf.mxu0
  %v5880 = vadd.f32 %v5551, %v5879
  %v5881 = vpop.f32.mrf.mxu0
  %v5882 = vadd.f32 %v5553, %v5881
  %5883 = vmatmul.bf16.gmra.mxu0 %v3262
  %v5884 = vpop.f32.mrf.mxu0
  %v5885 = vadd.f32 %v5556, %v5884
  %v5886 = vpop.f32.mrf.mxu0
  %v5887 = vadd.f32 %v5558, %v5886
  %5888 = vmatmul.bf16.gmra.mxu0 %v3270
  %v5889 = vpop.f32.mrf.mxu0
  %v5890 = vadd.f32 %v5561, %v5889
  %v5891 = vpop.f32.mrf.mxu0
  %v5892 = vadd.f32 %v5563, %v5891
  %5893 = vmatmul.bf16.gmra.mxu0 %v3278
  %v5894 = vpop.f32.mrf.mxu0
  %v5895 = vadd.f32 %v5566, %v5894
  %v5896 = vpop.f32.mrf.mxu0
  %v5897 = vadd.f32 %v5568, %v5896
  %5898 = vmatmul.bf16.gmra.mxu0 %v3286
  %v5899 = vpop.f32.mrf.mxu0
  %v5900 = vadd.f32 %v5571, %v5899
  %v5901 = vpop.f32.mrf.mxu0
  %v5902 = vadd.f32 %v5573, %v5901
  %5903 = vmatmul.bf16.gmra.mxu0 %v3294
  %v5904 = vpop.f32.mrf.mxu0
  %v5905 = vadd.f32 %v5576, %v5904
  %v5906 = vpop.f32.mrf.mxu0
  %v5907 = vadd.f32 %v5578, %v5906
  %5908 = vmatmul.bf16.gmra.mxu0 %v3302
  %v5909 = vpop.f32.mrf.mxu0
  %v5910 = vadd.f32 %v5581, %v5909
  %v5911 = vpop.f32.mrf.mxu0
  %v5912 = vadd.f32 %v5583, %v5911
  %5913 = vmatmul.bf16.gmra.mxu0 %v3310
  %v5914 = vpop.f32.mrf.mxu0
  %v5915 = vadd.f32 %v5586, %v5914
  %v5916 = vpop.f32.mrf.mxu0
  %v5917 = vadd.f32 %v5588, %v5916
  %5918 = vmatmul.bf16.gmra.mxu0 %v3318
  %v5919 = vpop.f32.mrf.mxu0
  %v5920 = vadd.f32 %v5591, %v5919
  %v5921 = vpop.f32.mrf.mxu0
  %v5922 = vadd.f32 %v5593, %v5921
  %5923 = vmatmul.bf16.gmra.mxu0 %v3326
  %v5924 = vpop.f32.mrf.mxu0
  %v5925 = vadd.f32 %v5596, %v5924
  %v5926 = vpop.f32.mrf.mxu0
  %v5927 = vadd.f32 %v5598, %v5926
  %5928 = vmatmul.bf16.gmra.mxu0 %v3334
  %v5929 = vpop.f32.mrf.mxu0
  %v5930 = vadd.f32 %v5601, %v5929
  %v5931 = vpop.f32.mrf.mxu0
  %v5932 = vadd.f32 %v5603, %v5931
  %5933 = vmatmul.bf16.gmra.mxu0 %v3342
  %v5934 = vpop.f32.mrf.mxu0
  %v5935 = vadd.f32 %v5606, %v5934
  %v5936 = vpop.f32.mrf.mxu0
  %v5937 = vadd.f32 %v5608, %v5936
  %5938 = vmatmul.bf16.gmra.mxu0 %v3350
  %v5939 = vpop.f32.mrf.mxu0
  %v5940 = vadd.f32 %v5611, %v5939
  %v5941 = vpop.f32.mrf.mxu0
  %v5942 = vadd.f32 %v5613, %v5941
  %5943 = vmatmul.bf16.gmra.mxu0 %v3358
  %v5944 = vpop.f32.mrf.mxu0
  %v5945 = vadd.f32 %v5616, %v5944
  %v5946 = vpop.f32.mrf.mxu0
  %v5947 = vadd.f32 %v5618, %v5946
  %5948 = vmatmul.bf16.gmra.mxu0 %v3366
  %v5949 = vpop.f32.mrf.mxu0
  %v5950 = vadd.f32 %v5621, %v5949
  %v5951 = vpop.f32.mrf.mxu0
  %v5952 = vadd.f32 %v5623, %v5951
  %5953 = vmatmul.bf16.gmra.mxu0 %v3374
  %v5954 = vpop.f32.mrf.mxu0
  %v5955 = vadd.f32 %v5626, %v5954
  %v5956 = vpop.f32.mrf.mxu0
  %v5957 = vadd.f32 %v5628, %v5956
  %5958 = vmatmul.bf16.gmra.mxu0 %v3382
  %v5959 = vpop.f32.mrf.mxu0
  %v5960 = vadd.f32 %v5631, %v5959
  %v5961 = vpop.f32.mrf.mxu0
  %v5962 = vadd.f32 %v5633, %v5961
  %5963 = vmatmul.bf16.gmra.mxu0 %v3390
  %v5964 = vpop.f32.mrf.mxu0
  %v5965 = vadd.f32 %v5636, %v5964
  %v5966 = vpop.f32.mrf.mxu0
  %v5967 = vadd.f32 %v5638, %v5966
  %5968 = vmatmul.bf16.gmra.mxu0 %v3398
  %v5969 = vpop.f32.mrf.mxu0
  %v5970 = vadd.f32 %v5641, %v5969
  %v5971 = vpop.f32.mrf.mxu0
  %v5972 = vadd.f32 %v5643, %v5971
  %5973 = vmatmul.bf16.gmra.mxu0 %v3406
  %v5974 = vpop.f32.mrf.mxu0
  %v5975 = vadd.f32 %v5646, %v5974
  %v5976 = vpop.f32.mrf.mxu0
  %v5977 = vadd.f32 %v5648, %v5976
  %5978 = vmatmul.bf16.gmra.mxu0 %v3414
  %v5979 = vpop.f32.mrf.mxu0
  %v5980 = vadd.f32 %v5651, %v5979
  %v5981 = vpop.f32.mrf.mxu0
  %v5982 = vadd.f32 %v5653, %v5981
  %5983 = vmatmul.bf16.gmra.mxu0 %v3422
  %v5984 = vpop.f32.mrf.mxu0
  %v5985 = vadd.f32 %v5656, %v5984
  %v5986 = vpop.f32.mrf.mxu0
  %v5987 = vadd.f32 %v5658, %v5986
  %5988 = vmatmul.bf16.gmra.mxu0 %v3430
  %v5989 = vpop.f32.mrf.mxu0
  %v5990 = vadd.f32 %v5661, %v5989
  %v5991 = vpop.f32.mrf.mxu0
  %v5992 = vadd.f32 %v5663, %v5991
  %5993 = vmatmul.bf16.gmra.mxu0 %v3438
  %v5994 = vpop.f32.mrf.mxu0
  %v5995 = vadd.f32 %v5666, %v5994
  %v5996 = vpop.f32.mrf.mxu0
  %v5997 = vadd.f32 %v5668, %v5996
  %5998 = vmatmul.bf16.gmra.mxu0 %v3446
  %v5999 = vpop.f32.mrf.mxu0
  %v6000 = vadd.f32 %v5671, %v5999
  %v6001 = vpop.f32.mrf.mxu0
  %v6002 = vadd.f32 %v5673, %v6001
  %6003 = vmatmul.bf16.gmra.mxu0 %v3454
  %v6004 = vpop.f32.mrf.mxu0
  %v6005 = vadd.f32 %v5676, %v6004
  %v6006 = vpop.f32.mrf.mxu0
  %v6007 = vadd.f32 %v5678, %v6006
  %6008 = vmatmul.bf16.gmra.mxu0 %v3462
  %v6009 = vpop.f32.mrf.mxu0
  %v6010 = vadd.f32 %v5681, %v6009
  %v6011 = vpop.f32.mrf.mxu0
  %v6012 = vadd.f32 %v5683, %v6011
  %6013 = vmatmul.bf16.gmra.mxu0 %v3470
  %v6014 = vpop.f32.mrf.mxu0
  %v6015 = vadd.f32 %v5686, %v6014
  %v6016 = vpop.f32.mrf.mxu0
  %v6017 = vadd.f32 %v5688, %v6016
  %6018 = vmatmul.bf16.gmra.mxu0 %v3478
  %v6019 = vpop.f32.mrf.mxu0
  %v6020 = vadd.f32 %v5691, %v6019
  %v6021 = vpop.f32.mrf.mxu0
  %v6022 = vadd.f32 %v5693, %v6021
  %6023 = vmatmul.bf16.gmra.mxu0 %v3486
  %v6024 = vpop.f32.mrf.mxu0
  %v6025 = vadd.f32 %v5696, %v6024
  %v6026 = vpop.f32.mrf.mxu0
  %v6027 = vadd.f32 %v5698, %v6026
  %6028 = vmatmul.bf16.gmra.mxu0 %v3494
  %v6029 = vpop.f32.mrf.mxu0
  %v6030 = vadd.f32 %v5701, %v6029
  %v6031 = vpop.f32.mrf.mxu0
  %v6032 = vadd.f32 %v5703, %v6031
  %6033 = vmatmul.bf16.gmra.mxu0 %v3502
  %v6034 = vpop.f32.mrf.mxu0
  %v6035 = vadd.f32 %v5706, %v6034
  %v6036 = vpop.f32.mrf.mxu0
  %v6037 = vadd.f32 %v5708, %v6036
  %6038 = vmatmul.bf16.gmra.mxu0 %v3510
  %v6039 = vpop.f32.mrf.mxu0
  %v6040 = vadd.f32 %v5711, %v6039
  %v6041 = vpop.f32.mrf.mxu0
  %v6042 = vadd.f32 %v5713, %v6041
  %6043 = vmatmul.bf16.gmra.mxu0 %v3518
  %v6044 = vpop.f32.mrf.mxu0
  %v6045 = vadd.f32 %v5716, %v6044
  %v6046 = vpop.f32.mrf.mxu0
  %v6047 = vadd.f32 %v5718, %v6046
  %6048 = vmatmul.bf16.gmra.mxu0 %v3526
  %v6049 = vpop.f32.mrf.mxu0
  %v6050 = vadd.f32 %v5721, %v6049
  %v6051 = vpop.f32.mrf.mxu0
  %v6052 = vadd.f32 %v5723, %v6051
  %6053 = vmatmul.bf16.gmra.mxu0 %v3534
  %v6054 = vpop.f32.mrf.mxu0
  %v6055 = vadd.f32 %v5726, %v6054
  %v6056 = vpop.f32.mrf.mxu0
  %v6057 = vadd.f32 %v5728, %v6056
  %6058 = vmatmul.bf16.gmra.mxu0 %v3542
  %v6059 = vpop.f32.mrf.mxu0
  %v6060 = vadd.f32 %v5731, %v6059
  %v6061 = vpop.f32.mrf.mxu0
  %v6062 = vadd.f32 %v5733, %v6061
  %6063 = vmatmul.bf16.gmra.mxu0 %v3550
  %v6064 = vpop.f32.mrf.mxu0
  %v6065 = vadd.f32 %v5736, %v6064
  %v6066 = vpop.f32.mrf.mxu0
  %v6067 = vadd.f32 %v5738, %v6066
  %6068 = vmatmul.bf16.gmra.mxu0 %v3558
  %v6069 = vpop.f32.mrf.mxu0
  %v6070 = vadd.f32 %v5741, %v6069
  %v6071 = vpop.f32.mrf.mxu0
  %v6072 = vadd.f32 %v5743, %v6071
  %6073 = vmatmul.bf16.gmra.mxu0 %v3566
  %v6074 = vpop.f32.mrf.mxu0
  %v6075 = vadd.f32 %v5746, %v6074
  %v6076 = vpop.f32.mrf.mxu0
  %v6077 = vadd.f32 %v5748, %v6076
  %6078 = vmatmul.bf16.gmra.mxu0 %v3574
  %v6079 = vpop.f32.mrf.mxu0
  %v6080 = vadd.f32 %v5751, %v6079
  %v6081 = vpop.f32.mrf.mxu0
  %v6082 = vadd.f32 %v5753, %v6081
  %6083 = vmatmul.bf16.gmra.mxu0 %v3582
  %v6084 = vpop.f32.mrf.mxu0
  %v6085 = vadd.f32 %v5756, %v6084
  %v6086 = vpop.f32.mrf.mxu0
  %v6087 = vadd.f32 %v5758, %v6086
  %6088 = vmatmul.bf16.gmra.mxu0 %v3590
  %v6089 = vpop.f32.mrf.mxu0
  %v6090 = vadd.f32 %v5761, %v6089
  %v6091 = vpop.f32.mrf.mxu0
  %v6092 = vadd.f32 %v5763, %v6091
  %6093 = vmatmul.bf16.gmra.mxu0 %v3598
  %v6094 = vpop.f32.mrf.mxu0
  %v6095 = vadd.f32 %v5766, %v6094
  %v6096 = vpop.f32.mrf.mxu0
  %v6097 = vadd.f32 %v5768, %v6096
  %6098 = vmatmul.bf16.gmra.mxu0 %v3606
  %v6099 = vpop.f32.mrf.mxu0
  %v6100 = vadd.f32 %v5771, %v6099
  %v6101 = vpop.f32.mrf.mxu0
  %v6102 = vadd.f32 %v5773, %v6101
  %6103 = vmatmul.bf16.gmra.mxu0 %v3614
  %v6104 = vpop.f32.mrf.mxu0
  %v6105 = vadd.f32 %v5776, %v6104
  %v6106 = vpop.f32.mrf.mxu0
  %v6107 = vadd.f32 %v5778, %v6106
  %6108 = vmatmul.bf16.gmra.mxu0 %v3622
  %v6109 = vpop.f32.mrf.mxu0
  %v6110 = vadd.f32 %v5781, %v6109
  %v6111 = vpop.f32.mrf.mxu0
  %v6112 = vadd.f32 %v5783, %v6111
  %6113 = vmatmul.bf16.gmra.mxu0 %v3630
  %v6114 = vpop.f32.mrf.mxu0
  %v6115 = vadd.f32 %v5786, %v6114
  %v6116 = vpop.f32.mrf.mxu0
  %v6117 = vadd.f32 %v5788, %v6116
  %6118 = vdwg.mxu0
  %6119 = vmatpush.bf16.msra.mxu0 %v1064
  %6120 = vmatpush.bf16.msra.mxu0 %v1063
  %6121 = vmatpush.bf16.msra.mxu0 %v1062
  %6122 = vmatpush.bf16.msra.mxu0 %v1061
  %6123 = vmatpush.bf16.msra.mxu0 %v1060
  %6124 = vmatpush.bf16.msra.mxu0 %v1059
  %6125 = vmatpush.bf16.msra.mxu0 %v1058
  %6126 = vmatpush.bf16.msra.mxu0 %v1057
  %6127 = vmatmul.bf16.gmra.mxu0 %v3127
  %v6128 = vpop.f32.mrf.mxu0
  %v6129 = vadd.f32 %v5800, %v6128
  %v6130 = vpop.f32.mrf.mxu0
  %v6131 = vadd.f32 %v5802, %v6130
  %6132 = vmatmul.bf16.gmra.mxu0 %v3135
  %v6133 = vpop.f32.mrf.mxu0
  %v6134 = vadd.f32 %v5805, %v6133
  %v6135 = vpop.f32.mrf.mxu0
  %v6136 = vadd.f32 %v5807, %v6135
  %6137 = vmatmul.bf16.gmra.mxu0 %v3143
  %v6138 = vpop.f32.mrf.mxu0
  %v6139 = vadd.f32 %v5810, %v6138
  %v6140 = vpop.f32.mrf.mxu0
  %v6141 = vadd.f32 %v5812, %v6140
  %6142 = vmatmul.bf16.gmra.mxu0 %v3151
  %v6143 = vpop.f32.mrf.mxu0
  %v6144 = vadd.f32 %v5815, %v6143
  %v6145 = vpop.f32.mrf.mxu0
  %v6146 = vadd.f32 %v5817, %v6145
  %6147 = vmatmul.bf16.gmra.mxu0 %v3159
  %v6148 = vpop.f32.mrf.mxu0
  %v6149 = vadd.f32 %v5820, %v6148
  %v6150 = vpop.f32.mrf.mxu0
  %v6151 = vadd.f32 %v5822, %v6150
  %6152 = vmatmul.bf16.gmra.mxu0 %v3167
  %v6153 = vpop.f32.mrf.mxu0
  %v6154 = vadd.f32 %v5825, %v6153
  %v6155 = vpop.f32.mrf.mxu0
  %v6156 = vadd.f32 %v5827, %v6155
  %6157 = vmatmul.bf16.gmra.mxu0 %v3175
  %v6158 = vpop.f32.mrf.mxu0
  %v6159 = vadd.f32 %v5830, %v6158
  %v6160 = vpop.f32.mrf.mxu0
  %v6161 = vadd.f32 %v5832, %v6160
  %6162 = vmatmul.bf16.gmra.mxu0 %v3183
  %v6163 = vpop.f32.mrf.mxu0
  %v6164 = vadd.f32 %v5835, %v6163
  %v6165 = vpop.f32.mrf.mxu0
  %v6166 = vadd.f32 %v5837, %v6165
  %6167 = vmatmul.bf16.gmra.mxu0 %v3191
  %v6168 = vpop.f32.mrf.mxu0
  %v6169 = vadd.f32 %v5840, %v6168
  %v6170 = vpop.f32.mrf.mxu0
  %v6171 = vadd.f32 %v5842, %v6170
  %6172 = vmatmul.bf16.gmra.mxu0 %v3199
  %v6173 = vpop.f32.mrf.mxu0
  %v6174 = vadd.f32 %v5845, %v6173
  %v6175 = vpop.f32.mrf.mxu0
  %v6176 = vadd.f32 %v5847, %v6175
  %6177 = vmatmul.bf16.gmra.mxu0 %v3207
  %v6178 = vpop.f32.mrf.mxu0
  %v6179 = vadd.f32 %v5850, %v6178
  %v6180 = vpop.f32.mrf.mxu0
  %v6181 = vadd.f32 %v5852, %v6180
  %6182 = vmatmul.bf16.gmra.mxu0 %v3215
  %v6183 = vpop.f32.mrf.mxu0
  %v6184 = vadd.f32 %v5855, %v6183
  %v6185 = vpop.f32.mrf.mxu0
  %v6186 = vadd.f32 %v5857, %v6185
  %6187 = vmatmul.bf16.gmra.mxu0 %v3223
  %v6188 = vpop.f32.mrf.mxu0
  %v6189 = vadd.f32 %v5860, %v6188
  %v6190 = vpop.f32.mrf.mxu0
  %v6191 = vadd.f32 %v5862, %v6190
  %6192 = vmatmul.bf16.gmra.mxu0 %v3231
  %v6193 = vpop.f32.mrf.mxu0
  %v6194 = vadd.f32 %v5865, %v6193
  %v6195 = vpop.f32.mrf.mxu0
  %v6196 = vadd.f32 %v5867, %v6195
  %6197 = vmatmul.bf16.gmra.mxu0 %v3239
  %v6198 = vpop.f32.mrf.mxu0
  %v6199 = vadd.f32 %v5870, %v6198
  %v6200 = vpop.f32.mrf.mxu0
  %v6201 = vadd.f32 %v5872, %v6200
  %6202 = vmatmul.bf16.gmra.mxu0 %v3247
  %v6203 = vpop.f32.mrf.mxu0
  %v6204 = vadd.f32 %v5875, %v6203
  %v6205 = vpop.f32.mrf.mxu0
  %v6206 = vadd.f32 %v5877, %v6205
  %6207 = vmatmul.bf16.gmra.mxu0 %v3255
  %v6208 = vpop.f32.mrf.mxu0
  %v6209 = vadd.f32 %v5880, %v6208
  %v6210 = vpop.f32.mrf.mxu0
  %v6211 = vadd.f32 %v5882, %v6210
  %6212 = vmatmul.bf16.gmra.mxu0 %v3263
  %v6213 = vpop.f32.mrf.mxu0
  %v6214 = vadd.f32 %v5885, %v6213
  %v6215 = vpop.f32.mrf.mxu0
  %v6216 = vadd.f32 %v5887, %v6215
  %6217 = vmatmul.bf16.gmra.mxu0 %v3271
  %v6218 = vpop.f32.mrf.mxu0
  %v6219 = vadd.f32 %v5890, %v6218
  %v6220 = vpop.f32.mrf.mxu0
  %v6221 = vadd.f32 %v5892, %v6220
  %6222 = vmatmul.bf16.gmra.mxu0 %v3279
  %v6223 = vpop.f32.mrf.mxu0
  %v6224 = vadd.f32 %v5895, %v6223
  %v6225 = vpop.f32.mrf.mxu0
  %v6226 = vadd.f32 %v5897, %v6225
  %6227 = vmatmul.bf16.gmra.mxu0 %v3287
  %v6228 = vpop.f32.mrf.mxu0
  %v6229 = vadd.f32 %v5900, %v6228
  %v6230 = vpop.f32.mrf.mxu0
  %v6231 = vadd.f32 %v5902, %v6230
  %6232 = vmatmul.bf16.gmra.mxu0 %v3295
  %v6233 = vpop.f32.mrf.mxu0
  %v6234 = vadd.f32 %v5905, %v6233
  %v6235 = vpop.f32.mrf.mxu0
  %v6236 = vadd.f32 %v5907, %v6235
  %6237 = vmatmul.bf16.gmra.mxu0 %v3303
  %v6238 = vpop.f32.mrf.mxu0
  %v6239 = vadd.f32 %v5910, %v6238
  %v6240 = vpop.f32.mrf.mxu0
  %v6241 = vadd.f32 %v5912, %v6240
  %6242 = vmatmul.bf16.gmra.mxu0 %v3311
  %v6243 = vpop.f32.mrf.mxu0
  %v6244 = vadd.f32 %v5915, %v6243
  %v6245 = vpop.f32.mrf.mxu0
  %v6246 = vadd.f32 %v5917, %v6245
  %6247 = vmatmul.bf16.gmra.mxu0 %v3319
  %v6248 = vpop.f32.mrf.mxu0
  %v6249 = vadd.f32 %v5920, %v6248
  %v6250 = vpop.f32.mrf.mxu0
  %v6251 = vadd.f32 %v5922, %v6250
  %6252 = vmatmul.bf16.gmra.mxu0 %v3327
  %v6253 = vpop.f32.mrf.mxu0
  %v6254 = vadd.f32 %v5925, %v6253
  %v6255 = vpop.f32.mrf.mxu0
  %v6256 = vadd.f32 %v5927, %v6255
  %6257 = vmatmul.bf16.gmra.mxu0 %v3335
  %v6258 = vpop.f32.mrf.mxu0
  %v6259 = vadd.f32 %v5930, %v6258
  %v6260 = vpop.f32.mrf.mxu0
  %v6261 = vadd.f32 %v5932, %v6260
  %6262 = vmatmul.bf16.gmra.mxu0 %v3343
  %v6263 = vpop.f32.mrf.mxu0
  %v6264 = vadd.f32 %v5935, %v6263
  %v6265 = vpop.f32.mrf.mxu0
  %v6266 = vadd.f32 %v5937, %v6265
  %6267 = vmatmul.bf16.gmra.mxu0 %v3351
  %v6268 = vpop.f32.mrf.mxu0
  %v6269 = vadd.f32 %v5940, %v6268
  %v6270 = vpop.f32.mrf.mxu0
  %v6271 = vadd.f32 %v5942, %v6270
  %6272 = vmatmul.bf16.gmra.mxu0 %v3359
  %v6273 = vpop.f32.mrf.mxu0
  %v6274 = vadd.f32 %v5945, %v6273
  %v6275 = vpop.f32.mrf.mxu0
  %v6276 = vadd.f32 %v5947, %v6275
  %6277 = vmatmul.bf16.gmra.mxu0 %v3367
  %v6278 = vpop.f32.mrf.mxu0
  %v6279 = vadd.f32 %v5950, %v6278
  %v6280 = vpop.f32.mrf.mxu0
  %v6281 = vadd.f32 %v5952, %v6280
  %6282 = vmatmul.bf16.gmra.mxu0 %v3375
  %v6283 = vpop.f32.mrf.mxu0
  %v6284 = vadd.f32 %v5955, %v6283
  %v6285 = vpop.f32.mrf.mxu0
  %v6286 = vadd.f32 %v5957, %v6285
  %6287 = vmatmul.bf16.gmra.mxu0 %v3383
  %v6288 = vpop.f32.mrf.mxu0
  %v6289 = vadd.f32 %v5960, %v6288
  %v6290 = vpop.f32.mrf.mxu0
  %v6291 = vadd.f32 %v5962, %v6290
  %6292 = vmatmul.bf16.gmra.mxu0 %v3391
  %v6293 = vpop.f32.mrf.mxu0
  %v6294 = vadd.f32 %v5965, %v6293
  %v6295 = vpop.f32.mrf.mxu0
  %v6296 = vadd.f32 %v5967, %v6295
  %6297 = vmatmul.bf16.gmra.mxu0 %v3399
  %v6298 = vpop.f32.mrf.mxu0
  %v6299 = vadd.f32 %v5970, %v6298
  %v6300 = vpop.f32.mrf.mxu0
  %v6301 = vadd.f32 %v5972, %v6300
  %6302 = vmatmul.bf16.gmra.mxu0 %v3407
  %v6303 = vpop.f32.mrf.mxu0
  %v6304 = vadd.f32 %v5975, %v6303
  %v6305 = vpop.f32.mrf.mxu0
  %v6306 = vadd.f32 %v5977, %v6305
  %6307 = vmatmul.bf16.gmra.mxu0 %v3415
  %v6308 = vpop.f32.mrf.mxu0
  %v6309 = vadd.f32 %v5980, %v6308
  %v6310 = vpop.f32.mrf.mxu0
  %v6311 = vadd.f32 %v5982, %v6310
  %6312 = vmatmul.bf16.gmra.mxu0 %v3423
  %v6313 = vpop.f32.mrf.mxu0
  %v6314 = vadd.f32 %v5985, %v6313
  %v6315 = vpop.f32.mrf.mxu0
  %v6316 = vadd.f32 %v5987, %v6315
  %6317 = vmatmul.bf16.gmra.mxu0 %v3431
  %v6318 = vpop.f32.mrf.mxu0
  %v6319 = vadd.f32 %v5990, %v6318
  %v6320 = vpop.f32.mrf.mxu0
  %v6321 = vadd.f32 %v5992, %v6320
  %6322 = vmatmul.bf16.gmra.mxu0 %v3439
  %v6323 = vpop.f32.mrf.mxu0
  %v6324 = vadd.f32 %v5995, %v6323
  %v6325 = vpop.f32.mrf.mxu0
  %v6326 = vadd.f32 %v5997, %v6325
  %6327 = vmatmul.bf16.gmra.mxu0 %v3447
  %v6328 = vpop.f32.mrf.mxu0
  %v6329 = vadd.f32 %v6000, %v6328
  %v6330 = vpop.f32.mrf.mxu0
  %v6331 = vadd.f32 %v6002, %v6330
  %6332 = vmatmul.bf16.gmra.mxu0 %v3455
  %v6333 = vpop.f32.mrf.mxu0
  %v6334 = vadd.f32 %v6005, %v6333
  %v6335 = vpop.f32.mrf.mxu0
  %v6336 = vadd.f32 %v6007, %v6335
  %6337 = vmatmul.bf16.gmra.mxu0 %v3463
  %v6338 = vpop.f32.mrf.mxu0
  %v6339 = vadd.f32 %v6010, %v6338
  %v6340 = vpop.f32.mrf.mxu0
  %v6341 = vadd.f32 %v6012, %v6340
  %6342 = vmatmul.bf16.gmra.mxu0 %v3471
  %v6343 = vpop.f32.mrf.mxu0
  %v6344 = vadd.f32 %v6015, %v6343
  %v6345 = vpop.f32.mrf.mxu0
  %v6346 = vadd.f32 %v6017, %v6345
  %6347 = vmatmul.bf16.gmra.mxu0 %v3479
  %v6348 = vpop.f32.mrf.mxu0
  %v6349 = vadd.f32 %v6020, %v6348
  %v6350 = vpop.f32.mrf.mxu0
  %v6351 = vadd.f32 %v6022, %v6350
  %6352 = vmatmul.bf16.gmra.mxu0 %v3487
  %v6353 = vpop.f32.mrf.mxu0
  %v6354 = vadd.f32 %v6025, %v6353
  %v6355 = vpop.f32.mrf.mxu0
  %v6356 = vadd.f32 %v6027, %v6355
  %6357 = vmatmul.bf16.gmra.mxu0 %v3495
  %v6358 = vpop.f32.mrf.mxu0
  %v6359 = vadd.f32 %v6030, %v6358
  %v6360 = vpop.f32.mrf.mxu0
  %v6361 = vadd.f32 %v6032, %v6360
  %6362 = vmatmul.bf16.gmra.mxu0 %v3503
  %v6363 = vpop.f32.mrf.mxu0
  %v6364 = vadd.f32 %v6035, %v6363
  %v6365 = vpop.f32.mrf.mxu0
  %v6366 = vadd.f32 %v6037, %v6365
  %6367 = vmatmul.bf16.gmra.mxu0 %v3511
  %v6368 = vpop.f32.mrf.mxu0
  %v6369 = vadd.f32 %v6040, %v6368
  %v6370 = vpop.f32.mrf.mxu0
  %v6371 = vadd.f32 %v6042, %v6370
  %6372 = vmatmul.bf16.gmra.mxu0 %v3519
  %v6373 = vpop.f32.mrf.mxu0
  %v6374 = vadd.f32 %v6045, %v6373
  %v6375 = vpop.f32.mrf.mxu0
  %v6376 = vadd.f32 %v6047, %v6375
  %6377 = vmatmul.bf16.gmra.mxu0 %v3527
  %v6378 = vpop.f32.mrf.mxu0
  %v6379 = vadd.f32 %v6050, %v6378
  %v6380 = vpop.f32.mrf.mxu0
  %v6381 = vadd.f32 %v6052, %v6380
  %6382 = vmatmul.bf16.gmra.mxu0 %v3535
  %v6383 = vpop.f32.mrf.mxu0
  %v6384 = vadd.f32 %v6055, %v6383
  %v6385 = vpop.f32.mrf.mxu0
  %v6386 = vadd.f32 %v6057, %v6385
  %6387 = vmatmul.bf16.gmra.mxu0 %v3543
  %v6388 = vpop.f32.mrf.mxu0
  %v6389 = vadd.f32 %v6060, %v6388
  %v6390 = vpop.f32.mrf.mxu0
  %v6391 = vadd.f32 %v6062, %v6390
  %6392 = vmatmul.bf16.gmra.mxu0 %v3551
  %v6393 = vpop.f32.mrf.mxu0
  %v6394 = vadd.f32 %v6065, %v6393
  %v6395 = vpop.f32.mrf.mxu0
  %v6396 = vadd.f32 %v6067, %v6395
  %6397 = vmatmul.bf16.gmra.mxu0 %v3559
  %v6398 = vpop.f32.mrf.mxu0
  %v6399 = vadd.f32 %v6070, %v6398
  %v6400 = vpop.f32.mrf.mxu0
  %v6401 = vadd.f32 %v6072, %v6400
  %6402 = vmatmul.bf16.gmra.mxu0 %v3567
  %v6403 = vpop.f32.mrf.mxu0
  %v6404 = vadd.f32 %v6075, %v6403
  %v6405 = vpop.f32.mrf.mxu0
  %v6406 = vadd.f32 %v6077, %v6405
  %6407 = vmatmul.bf16.gmra.mxu0 %v3575
  %v6408 = vpop.f32.mrf.mxu0
  %v6409 = vadd.f32 %v6080, %v6408
  %v6410 = vpop.f32.mrf.mxu0
  %v6411 = vadd.f32 %v6082, %v6410
  %6412 = vmatmul.bf16.gmra.mxu0 %v3583
  %v6413 = vpop.f32.mrf.mxu0
  %v6414 = vadd.f32 %v6085, %v6413
  %v6415 = vpop.f32.mrf.mxu0
  %v6416 = vadd.f32 %v6087, %v6415
  %6417 = vmatmul.bf16.gmra.mxu0 %v3591
  %v6418 = vpop.f32.mrf.mxu0
  %v6419 = vadd.f32 %v6090, %v6418
  %v6420 = vpop.f32.mrf.mxu0
  %v6421 = vadd.f32 %v6092, %v6420
  %6422 = vmatmul.bf16.gmra.mxu0 %v3599
  %v6423 = vpop.f32.mrf.mxu0
  %v6424 = vadd.f32 %v6095, %v6423
  %v6425 = vpop.f32.mrf.mxu0
  %v6426 = vadd.f32 %v6097, %v6425
  %6427 = vmatmul.bf16.gmra.mxu0 %v3607
  %v6428 = vpop.f32.mrf.mxu0
  %v6429 = vadd.f32 %v6100, %v6428
  %v6430 = vpop.f32.mrf.mxu0
  %v6431 = vadd.f32 %v6102, %v6430
  %6432 = vmatmul.bf16.gmra.mxu0 %v3615
  %v6433 = vpop.f32.mrf.mxu0
  %v6434 = vadd.f32 %v6105, %v6433
  %v6435 = vpop.f32.mrf.mxu0
  %v6436 = vadd.f32 %v6107, %v6435
  %6437 = vmatmul.bf16.gmra.mxu0 %v3623
  %v6438 = vpop.f32.mrf.mxu0
  %v6439 = vadd.f32 %v6110, %v6438
  %v6440 = vpop.f32.mrf.mxu0
  %v6441 = vadd.f32 %v6112, %v6440
  %6442 = vmatmul.bf16.gmra.mxu0 %v3631
  %v6443 = vpop.f32.mrf.mxu0
  %v6444 = vadd.f32 %v6115, %v6443
  %v6445 = vpop.f32.mrf.mxu0
  %v6446 = vadd.f32 %v6117, %v6445
  %6447 = vdwg.mxu0
  %6448 = vmatpush.bf16.msra.mxu0 %v1072
  %6449 = vmatpush.bf16.msra.mxu0 %v1071
  %6450 = vmatpush.bf16.msra.mxu0 %v1070
  %6451 = vmatpush.bf16.msra.mxu0 %v1069
  %6452 = vmatpush.bf16.msra.mxu0 %v1068
  %6453 = vmatpush.bf16.msra.mxu0 %v1067
  %6454 = vmatpush.bf16.msra.mxu0 %v1066
  %6455 = vmatpush.bf16.msra.mxu0 %v1065
  %6456 = vmatmul.bf16.gmra.mxu0 %v3128
  %v6457 = vpop.f32.mrf.mxu0
  %v6458 = vadd.f32 %v6129, %v6457
  %v6459 = vpop.f32.mrf.mxu0
  %v6460 = vadd.f32 %v6131, %v6459
  %6461 = vmatmul.bf16.gmra.mxu0 %v3136
  %v6462 = vpop.f32.mrf.mxu0
  %v6463 = vadd.f32 %v6134, %v6462
  %v6464 = vpop.f32.mrf.mxu0
  %v6465 = vadd.f32 %v6136, %v6464
  %6466 = vmatmul.bf16.gmra.mxu0 %v3144
  %v6467 = vpop.f32.mrf.mxu0
  %v6468 = vadd.f32 %v6139, %v6467
  %v6469 = vpop.f32.mrf.mxu0
  %v6470 = vadd.f32 %v6141, %v6469
  %6471 = vmatmul.bf16.gmra.mxu0 %v3152
  %v6472 = vpop.f32.mrf.mxu0
  %v6473 = vadd.f32 %v6144, %v6472
  %v6474 = vpop.f32.mrf.mxu0
  %v6475 = vadd.f32 %v6146, %v6474
  %6476 = vmatmul.bf16.gmra.mxu0 %v3160
  %v6477 = vpop.f32.mrf.mxu0
  %v6478 = vadd.f32 %v6149, %v6477
  %v6479 = vpop.f32.mrf.mxu0
  %v6480 = vadd.f32 %v6151, %v6479
  %6481 = vmatmul.bf16.gmra.mxu0 %v3168
  %v6482 = vpop.f32.mrf.mxu0
  %v6483 = vadd.f32 %v6154, %v6482
  %v6484 = vpop.f32.mrf.mxu0
  %v6485 = vadd.f32 %v6156, %v6484
  %6486 = vmatmul.bf16.gmra.mxu0 %v3176
  %v6487 = vpop.f32.mrf.mxu0
  %v6488 = vadd.f32 %v6159, %v6487
  %v6489 = vpop.f32.mrf.mxu0
  %v6490 = vadd.f32 %v6161, %v6489
  %6491 = vmatmul.bf16.gmra.mxu0 %v3184
  %v6492 = vpop.f32.mrf.mxu0
  %v6493 = vadd.f32 %v6164, %v6492
  %v6494 = vpop.f32.mrf.mxu0
  %v6495 = vadd.f32 %v6166, %v6494
  %6496 = vmatmul.bf16.gmra.mxu0 %v3192
  %v6497 = vpop.f32.mrf.mxu0
  %v6498 = vadd.f32 %v6169, %v6497
  %v6499 = vpop.f32.mrf.mxu0
  %v6500 = vadd.f32 %v6171, %v6499
  %6501 = vmatmul.bf16.gmra.mxu0 %v3200
  %v6502 = vpop.f32.mrf.mxu0
  %v6503 = vadd.f32 %v6174, %v6502
  %v6504 = vpop.f32.mrf.mxu0
  %v6505 = vadd.f32 %v6176, %v6504
  %6506 = vmatmul.bf16.gmra.mxu0 %v3208
  %v6507 = vpop.f32.mrf.mxu0
  %v6508 = vadd.f32 %v6179, %v6507
  %v6509 = vpop.f32.mrf.mxu0
  %v6510 = vadd.f32 %v6181, %v6509
  %6511 = vmatmul.bf16.gmra.mxu0 %v3216
  %v6512 = vpop.f32.mrf.mxu0
  %v6513 = vadd.f32 %v6184, %v6512
  %v6514 = vpop.f32.mrf.mxu0
  %v6515 = vadd.f32 %v6186, %v6514
  %6516 = vmatmul.bf16.gmra.mxu0 %v3224
  %v6517 = vpop.f32.mrf.mxu0
  %v6518 = vadd.f32 %v6189, %v6517
  %v6519 = vpop.f32.mrf.mxu0
  %v6520 = vadd.f32 %v6191, %v6519
  %6521 = vmatmul.bf16.gmra.mxu0 %v3232
  %v6522 = vpop.f32.mrf.mxu0
  %v6523 = vadd.f32 %v6194, %v6522
  %v6524 = vpop.f32.mrf.mxu0
  %v6525 = vadd.f32 %v6196, %v6524
  %6526 = vmatmul.bf16.gmra.mxu0 %v3240
  %v6527 = vpop.f32.mrf.mxu0
  %v6528 = vadd.f32 %v6199, %v6527
  %v6529 = vpop.f32.mrf.mxu0
  %v6530 = vadd.f32 %v6201, %v6529
  %6531 = vmatmul.bf16.gmra.mxu0 %v3248
  %v6532 = vpop.f32.mrf.mxu0
  %v6533 = vadd.f32 %v6204, %v6532
  %v6534 = vpop.f32.mrf.mxu0
  %v6535 = vadd.f32 %v6206, %v6534
  %6536 = vmatmul.bf16.gmra.mxu0 %v3256
  %v6537 = vpop.f32.mrf.mxu0
  %v6538 = vadd.f32 %v6209, %v6537
  %v6539 = vpop.f32.mrf.mxu0
  %v6540 = vadd.f32 %v6211, %v6539
  %6541 = vmatmul.bf16.gmra.mxu0 %v3264
  %v6542 = vpop.f32.mrf.mxu0
  %v6543 = vadd.f32 %v6214, %v6542
  %v6544 = vpop.f32.mrf.mxu0
  %v6545 = vadd.f32 %v6216, %v6544
  %6546 = vmatmul.bf16.gmra.mxu0 %v3272
  %v6547 = vpop.f32.mrf.mxu0
  %v6548 = vadd.f32 %v6219, %v6547
  %v6549 = vpop.f32.mrf.mxu0
  %v6550 = vadd.f32 %v6221, %v6549
  %6551 = vmatmul.bf16.gmra.mxu0 %v3280
  %v6552 = vpop.f32.mrf.mxu0
  %v6553 = vadd.f32 %v6224, %v6552
  %v6554 = vpop.f32.mrf.mxu0
  %v6555 = vadd.f32 %v6226, %v6554
  %6556 = vmatmul.bf16.gmra.mxu0 %v3288
  %v6557 = vpop.f32.mrf.mxu0
  %v6558 = vadd.f32 %v6229, %v6557
  %v6559 = vpop.f32.mrf.mxu0
  %v6560 = vadd.f32 %v6231, %v6559
  %6561 = vmatmul.bf16.gmra.mxu0 %v3296
  %v6562 = vpop.f32.mrf.mxu0
  %v6563 = vadd.f32 %v6234, %v6562
  %v6564 = vpop.f32.mrf.mxu0
  %v6565 = vadd.f32 %v6236, %v6564
  %6566 = vmatmul.bf16.gmra.mxu0 %v3304
  %v6567 = vpop.f32.mrf.mxu0
  %v6568 = vadd.f32 %v6239, %v6567
  %v6569 = vpop.f32.mrf.mxu0
  %v6570 = vadd.f32 %v6241, %v6569
  %6571 = vmatmul.bf16.gmra.mxu0 %v3312
  %v6572 = vpop.f32.mrf.mxu0
  %v6573 = vadd.f32 %v6244, %v6572
  %v6574 = vpop.f32.mrf.mxu0
  %v6575 = vadd.f32 %v6246, %v6574
  %6576 = vmatmul.bf16.gmra.mxu0 %v3320
  %v6577 = vpop.f32.mrf.mxu0
  %v6578 = vadd.f32 %v6249, %v6577
  %v6579 = vpop.f32.mrf.mxu0
  %v6580 = vadd.f32 %v6251, %v6579
  %6581 = vmatmul.bf16.gmra.mxu0 %v3328
  %v6582 = vpop.f32.mrf.mxu0
  %v6583 = vadd.f32 %v6254, %v6582
  %v6584 = vpop.f32.mrf.mxu0
  %v6585 = vadd.f32 %v6256, %v6584
  %6586 = vmatmul.bf16.gmra.mxu0 %v3336
  %v6587 = vpop.f32.mrf.mxu0
  %v6588 = vadd.f32 %v6259, %v6587
  %v6589 = vpop.f32.mrf.mxu0
  %v6590 = vadd.f32 %v6261, %v6589
  %6591 = vmatmul.bf16.gmra.mxu0 %v3344
  %v6592 = vpop.f32.mrf.mxu0
  %v6593 = vadd.f32 %v6264, %v6592
  %v6594 = vpop.f32.mrf.mxu0
  %v6595 = vadd.f32 %v6266, %v6594
  %6596 = vmatmul.bf16.gmra.mxu0 %v3352
  %v6597 = vpop.f32.mrf.mxu0
  %v6598 = vadd.f32 %v6269, %v6597
  %v6599 = vpop.f32.mrf.mxu0
  %v6600 = vadd.f32 %v6271, %v6599
  %6601 = vmatmul.bf16.gmra.mxu0 %v3360
  %v6602 = vpop.f32.mrf.mxu0
  %v6603 = vadd.f32 %v6274, %v6602
  %v6604 = vpop.f32.mrf.mxu0
  %v6605 = vadd.f32 %v6276, %v6604
  %6606 = vmatmul.bf16.gmra.mxu0 %v3368
  %v6607 = vpop.f32.mrf.mxu0
  %v6608 = vadd.f32 %v6279, %v6607
  %v6609 = vpop.f32.mrf.mxu0
  %v6610 = vadd.f32 %v6281, %v6609
  %6611 = vmatmul.bf16.gmra.mxu0 %v3376
  %v6612 = vpop.f32.mrf.mxu0
  %v6613 = vadd.f32 %v6284, %v6612
  %v6614 = vpop.f32.mrf.mxu0
  %v6615 = vadd.f32 %v6286, %v6614
  %6616 = vmatmul.bf16.gmra.mxu0 %v3384
  %v6617 = vpop.f32.mrf.mxu0
  %v6618 = vadd.f32 %v6289, %v6617
  %v6619 = vpop.f32.mrf.mxu0
  %v6620 = vadd.f32 %v6291, %v6619
  %6621 = vmatmul.bf16.gmra.mxu0 %v3392
  %v6622 = vpop.f32.mrf.mxu0
  %v6623 = vadd.f32 %v6294, %v6622
  %v6624 = vpop.f32.mrf.mxu0
  %v6625 = vadd.f32 %v6296, %v6624
  %6626 = vmatmul.bf16.gmra.mxu0 %v3400
  %v6627 = vpop.f32.mrf.mxu0
  %v6628 = vadd.f32 %v6299, %v6627
  %v6629 = vpop.f32.mrf.mxu0
  %v6630 = vadd.f32 %v6301, %v6629
  %6631 = vmatmul.bf16.gmra.mxu0 %v3408
  %v6632 = vpop.f32.mrf.mxu0
  %v6633 = vadd.f32 %v6304, %v6632
  %v6634 = vpop.f32.mrf.mxu0
  %v6635 = vadd.f32 %v6306, %v6634
  %6636 = vmatmul.bf16.gmra.mxu0 %v3416
  %v6637 = vpop.f32.mrf.mxu0
  %v6638 = vadd.f32 %v6309, %v6637
  %v6639 = vpop.f32.mrf.mxu0
  %v6640 = vadd.f32 %v6311, %v6639
  %6641 = vmatmul.bf16.gmra.mxu0 %v3424
  %v6642 = vpop.f32.mrf.mxu0
  %v6643 = vadd.f32 %v6314, %v6642
  %v6644 = vpop.f32.mrf.mxu0
  %v6645 = vadd.f32 %v6316, %v6644
  %6646 = vmatmul.bf16.gmra.mxu0 %v3432
  %v6647 = vpop.f32.mrf.mxu0
  %v6648 = vadd.f32 %v6319, %v6647
  %v6649 = vpop.f32.mrf.mxu0
  %v6650 = vadd.f32 %v6321, %v6649
  %6651 = vmatmul.bf16.gmra.mxu0 %v3440
  %v6652 = vpop.f32.mrf.mxu0
  %v6653 = vadd.f32 %v6324, %v6652
  %v6654 = vpop.f32.mrf.mxu0
  %v6655 = vadd.f32 %v6326, %v6654
  %6656 = vmatmul.bf16.gmra.mxu0 %v3448
  %v6657 = vpop.f32.mrf.mxu0
  %v6658 = vadd.f32 %v6329, %v6657
  %v6659 = vpop.f32.mrf.mxu0
  %v6660 = vadd.f32 %v6331, %v6659
  %6661 = vmatmul.bf16.gmra.mxu0 %v3456
  %v6662 = vpop.f32.mrf.mxu0
  %v6663 = vadd.f32 %v6334, %v6662
  %v6664 = vpop.f32.mrf.mxu0
  %v6665 = vadd.f32 %v6336, %v6664
  %6666 = vmatmul.bf16.gmra.mxu0 %v3464
  %v6667 = vpop.f32.mrf.mxu0
  %v6668 = vadd.f32 %v6339, %v6667
  %v6669 = vpop.f32.mrf.mxu0
  %v6670 = vadd.f32 %v6341, %v6669
  %6671 = vmatmul.bf16.gmra.mxu0 %v3472
  %v6672 = vpop.f32.mrf.mxu0
  %v6673 = vadd.f32 %v6344, %v6672
  %v6674 = vpop.f32.mrf.mxu0
  %v6675 = vadd.f32 %v6346, %v6674
  %6676 = vmatmul.bf16.gmra.mxu0 %v3480
  %v6677 = vpop.f32.mrf.mxu0
  %v6678 = vadd.f32 %v6349, %v6677
  %v6679 = vpop.f32.mrf.mxu0
  %v6680 = vadd.f32 %v6351, %v6679
  %6681 = vmatmul.bf16.gmra.mxu0 %v3488
  %v6682 = vpop.f32.mrf.mxu0
  %v6683 = vadd.f32 %v6354, %v6682
  %v6684 = vpop.f32.mrf.mxu0
  %v6685 = vadd.f32 %v6356, %v6684
  %6686 = vmatmul.bf16.gmra.mxu0 %v3496
  %v6687 = vpop.f32.mrf.mxu0
  %v6688 = vadd.f32 %v6359, %v6687
  %v6689 = vpop.f32.mrf.mxu0
  %v6690 = vadd.f32 %v6361, %v6689
  %6691 = vmatmul.bf16.gmra.mxu0 %v3504
  %v6692 = vpop.f32.mrf.mxu0
  %v6693 = vadd.f32 %v6364, %v6692
  %v6694 = vpop.f32.mrf.mxu0
  %v6695 = vadd.f32 %v6366, %v6694
  %6696 = vmatmul.bf16.gmra.mxu0 %v3512
  %v6697 = vpop.f32.mrf.mxu0
  %v6698 = vadd.f32 %v6369, %v6697
  %v6699 = vpop.f32.mrf.mxu0
  %v6700 = vadd.f32 %v6371, %v6699
  %6701 = vmatmul.bf16.gmra.mxu0 %v3520
  %v6702 = vpop.f32.mrf.mxu0
  %v6703 = vadd.f32 %v6374, %v6702
  %v6704 = vpop.f32.mrf.mxu0
  %v6705 = vadd.f32 %v6376, %v6704
  %6706 = vmatmul.bf16.gmra.mxu0 %v3528
  %v6707 = vpop.f32.mrf.mxu0
  %v6708 = vadd.f32 %v6379, %v6707
  %v6709 = vpop.f32.mrf.mxu0
  %v6710 = vadd.f32 %v6381, %v6709
  %6711 = vmatmul.bf16.gmra.mxu0 %v3536
  %v6712 = vpop.f32.mrf.mxu0
  %v6713 = vadd.f32 %v6384, %v6712
  %v6714 = vpop.f32.mrf.mxu0
  %v6715 = vadd.f32 %v6386, %v6714
  %6716 = vmatmul.bf16.gmra.mxu0 %v3544
  %v6717 = vpop.f32.mrf.mxu0
  %v6718 = vadd.f32 %v6389, %v6717
  %v6719 = vpop.f32.mrf.mxu0
  %v6720 = vadd.f32 %v6391, %v6719
  %6721 = vmatmul.bf16.gmra.mxu0 %v3552
  %v6722 = vpop.f32.mrf.mxu0
  %v6723 = vadd.f32 %v6394, %v6722
  %v6724 = vpop.f32.mrf.mxu0
  %v6725 = vadd.f32 %v6396, %v6724
  %6726 = vmatmul.bf16.gmra.mxu0 %v3560
  %v6727 = vpop.f32.mrf.mxu0
  %v6728 = vadd.f32 %v6399, %v6727
  %v6729 = vpop.f32.mrf.mxu0
  %v6730 = vadd.f32 %v6401, %v6729
  %6731 = vmatmul.bf16.gmra.mxu0 %v3568
  %v6732 = vpop.f32.mrf.mxu0
  %v6733 = vadd.f32 %v6404, %v6732
  %v6734 = vpop.f32.mrf.mxu0
  %v6735 = vadd.f32 %v6406, %v6734
  %6736 = vmatmul.bf16.gmra.mxu0 %v3576
  %v6737 = vpop.f32.mrf.mxu0
  %v6738 = vadd.f32 %v6409, %v6737
  %v6739 = vpop.f32.mrf.mxu0
  %v6740 = vadd.f32 %v6411, %v6739
  %6741 = vmatmul.bf16.gmra.mxu0 %v3584
  %v6742 = vpop.f32.mrf.mxu0
  %v6743 = vadd.f32 %v6414, %v6742
  %v6744 = vpop.f32.mrf.mxu0
  %v6745 = vadd.f32 %v6416, %v6744
  %6746 = vmatmul.bf16.gmra.mxu0 %v3592
  %v6747 = vpop.f32.mrf.mxu0
  %v6748 = vadd.f32 %v6419, %v6747
  %v6749 = vpop.f32.mrf.mxu0
  %v6750 = vadd.f32 %v6421, %v6749
  %6751 = vmatmul.bf16.gmra.mxu0 %v3600
  %v6752 = vpop.f32.mrf.mxu0
  %v6753 = vadd.f32 %v6424, %v6752
  %v6754 = vpop.f32.mrf.mxu0
  %v6755 = vadd.f32 %v6426, %v6754
  %6756 = vmatmul.bf16.gmra.mxu0 %v3608
  %v6757 = vpop.f32.mrf.mxu0
  %v6758 = vadd.f32 %v6429, %v6757
  %v6759 = vpop.f32.mrf.mxu0
  %v6760 = vadd.f32 %v6431, %v6759
  %6761 = vmatmul.bf16.gmra.mxu0 %v3616
  %v6762 = vpop.f32.mrf.mxu0
  %v6763 = vadd.f32 %v6434, %v6762
  %v6764 = vpop.f32.mrf.mxu0
  %v6765 = vadd.f32 %v6436, %v6764
  %6766 = vmatmul.bf16.gmra.mxu0 %v3624
  %v6767 = vpop.f32.mrf.mxu0
  %v6768 = vadd.f32 %v6439, %v6767
  %v6769 = vpop.f32.mrf.mxu0
  %v6770 = vadd.f32 %v6441, %v6769
  %6771 = vmatmul.bf16.gmra.mxu0 %v3632
  %v6772 = vpop.f32.mrf.mxu0
  %v6773 = vadd.f32 %v6444, %v6772
  %v6774 = vpop.f32.mrf.mxu0
  %v6775 = vadd.f32 %v6446, %v6774
  %6776 = vdwg.mxu0
  %v6777 = vmax.f32 %v6458, 0.0
  %v6778 = vmax.f32 %v6460, 0.0
  %v6779 = vmax.f32 %v6463, 0.0
  %v6780 = vmax.f32 %v6465, 0.0
  %v6781 = vmax.f32 %v6468, 0.0
  %v6782 = vmax.f32 %v6470, 0.0
  %v6783 = vmax.f32 %v6473, 0.0
  %v6784 = vmax.f32 %v6475, 0.0
  %v6785 = vmax.f32 %v6478, 0.0
  %v6786 = vmax.f32 %v6480, 0.0
  %v6787 = vmax.f32 %v6483, 0.0
  %v6788 = vmax.f32 %v6485, 0.0
  %v6789 = vmax.f32 %v6488, 0.0
  %v6790 = vmax.f32 %v6490, 0.0
  %v6791 = vmax.f32 %v6493, 0.0
  %v6792 = vmax.f32 %v6495, 0.0
  %v6793 = vmax.f32 %v6498, 0.0
  %v6794 = vmax.f32 %v6500, 0.0
  %v6795 = vmax.f32 %v6503, 0.0
  %v6796 = vmax.f32 %v6505, 0.0
  %v6797 = vmax.f32 %v6508, 0.0
  %v6798 = vmax.f32 %v6510, 0.0
  %v6799 = vmax.f32 %v6513, 0.0
  %v6800 = vmax.f32 %v6515, 0.0
  %v6801 = vmax.f32 %v6518, 0.0
  %v6802 = vmax.f32 %v6520, 0.0
  %v6803 = vmax.f32 %v6523, 0.0
  %v6804 = vmax.f32 %v6525, 0.0
  %v6805 = vmax.f32 %v6528, 0.0
  %v6806 = vmax.f32 %v6530, 0.0
  %v6807 = vmax.f32 %v6533, 0.0
  %v6808 = vmax.f32 %v6535, 0.0
  %v6809 = vmax.f32 %v6538, 0.0
  %v6810 = vmax.f32 %v6540, 0.0
  %v6811 = vmax.f32 %v6543, 0.0
  %v6812 = vmax.f32 %v6545, 0.0
  %v6813 = vmax.f32 %v6548, 0.0
  %v6814 = vmax.f32 %v6550, 0.0
  %v6815 = vmax.f32 %v6553, 0.0
  %v6816 = vmax.f32 %v6555, 0.0
  %v6817 = vmax.f32 %v6558, 0.0
  %v6818 = vmax.f32 %v6560, 0.0
  %v6819 = vmax.f32 %v6563, 0.0
  %v6820 = vmax.f32 %v6565, 0.0
  %v6821 = vmax.f32 %v6568, 0.0
  %v6822 = vmax.f32 %v6570, 0.0
  %v6823 = vmax.f32 %v6573, 0.0
  %v6824 = vmax.f32 %v6575, 0.0
  %v6825 = vmax.f32 %v6578, 0.0
  %v6826 = vmax.f32 %v6580, 0.0
  %v6827 = vmax.f32 %v6583, 0.0
  %v6828 = vmax.f32 %v6585, 0.0
  %v6829 = vmax.f32 %v6588, 0.0
  %v6830 = vmax.f32 %v6590, 0.0
  %v6831 = vmax.f32 %v6593, 0.0
  %v6832 = vmax.f32 %v6595, 0.0
  %v6833 = vmax.f32 %v6598, 0.0
  %v6834 = vmax.f32 %v6600, 0.0
  %v6835 = vmax.f32 %v6603, 0.0
  %v6836 = vmax.f32 %v6605, 0.0
  %v6837 = vmax.f32 %v6608, 0.0
  %v6838 = vmax.f32 %v6610, 0.0
  %v6839 = vmax.f32 %v6613, 0.0
  %v6840 = vmax.f32 %v6615, 0.0
  %v6841 = vmax.f32 %v6618, 0.0
  %v6842 = vmax.f32 %v6620, 0.0
  %v6843 = vmax.f32 %v6623, 0.0
  %v6844 = vmax.f32 %v6625, 0.0
  %v6845 = vmax.f32 %v6628, 0.0
  %v6846 = vmax.f32 %v6630, 0.0
  %v6847 = vmax.f32 %v6633, 0.0
  %v6848 = vmax.f32 %v6635, 0.0
  %v6849 = vmax.f32 %v6638, 0.0
  %v6850 = vmax.f32 %v6640, 0.0
  %v6851 = vmax.f32 %v6643, 0.0
  %v6852 = vmax.f32 %v6645, 0.0
  %v6853 = vmax.f32 %v6648, 0.0
  %v6854 = vmax.f32 %v6650, 0.0
  %v6855 = vmax.f32 %v6653, 0.0
  %v6856 = vmax.f32 %v6655, 0.0
  %v6857 = vmax.f32 %v6658, 0.0
  %v6858 = vmax.f32 %v6660, 0.0
  %v6859 = vmax.f32 %v6663, 0.0
  %v6860 = vmax.f32 %v6665, 0.0
  %v6861 = vmax.f32 %v6668, 0.0
  %v6862 = vmax.f32 %v6670, 0.0
  %v6863 = vmax.f32 %v6673, 0.0
  %v6864 = vmax.f32 %v6675, 0.0
  %v6865 = vmax.f32 %v6678, 0.0
  %v6866 = vmax.f32 %v6680, 0.0
  %v6867 = vmax.f32 %v6683, 0.0
  %v6868 = vmax.f32 %v6685, 0.0
  %v6869 = vmax.f32 %v6688, 0.0
  %v6870 = vmax.f32 %v6690, 0.0
  %v6871 = vmax.f32 %v6693, 0.0
  %v6872 = vmax.f32 %v6695, 0.0
  %v6873 = vmax.f32 %v6698, 0.0
  %v6874 = vmax.f32 %v6700, 0.0
  %v6875 = vmax.f32 %v6703, 0.0
  %v6876 = vmax.f32 %v6705, 0.0
  %v6877 = vmax.f32 %v6708, 0.0
  %v6878 = vmax.f32 %v6710, 0.0
  %v6879 = vmax.f32 %v6713, 0.0
  %v6880 = vmax.f32 %v6715, 0.0
  %v6881 = vmax.f32 %v6718, 0.0
  %v6882 = vmax.f32 %v6720, 0.0
  %v6883 = vmax.f32 %v6723, 0.0
  %v6884 = vmax.f32 %v6725, 0.0
  %v6885 = vmax.f32 %v6728, 0.0
  %v6886 = vmax.f32 %v6730, 0.0
  %v6887 = vmax.f32 %v6733, 0.0
  %v6888 = vmax.f32 %v6735, 0.0
  %v6889 = vmax.f32 %v6738, 0.0
  %v6890 = vmax.f32 %v6740, 0.0
  %v6891 = vmax.f32 %v6743, 0.0
  %v6892 = vmax.f32 %v6745, 0.0
  %v6893 = vmax.f32 %v6748, 0.0
  %v6894 = vmax.f32 %v6750, 0.0
  %v6895 = vmax.f32 %v6753, 0.0
  %v6896 = vmax.f32 %v6755, 0.0
  %v6897 = vmax.f32 %v6758, 0.0
  %v6898 = vmax.f32 %v6760, 0.0
  %v6899 = vmax.f32 %v6763, 0.0
  %v6900 = vmax.f32 %v6765, 0.0
  %v6901 = vmax.f32 %v6768, 0.0
  %v6902 = vmax.f32 %v6770, 0.0
  %v6903 = vmax.f32 %v6773, 0.0
  %v6904 = vmax.f32 %v6775, 0.0
  %v6905 = vld [vmem:[%s4] sm:$0xf]
  %v6906 = vld [vmem:[%s4 + $0x4] sm:$0xf]
  %v6907 = vld [vmem:[%s4 + $0x8] sm:$0xf]
  %v6908 = vld [vmem:[%s4 + $0xc] sm:$0xf]
  %v6909 = vld [vmem:[%s4 + $0x10] sm:$0xf]
  %v6910 = vld [vmem:[%s4 + $0x14] sm:$0xf]
  %v6911 = vld [vmem:[%s4 + $0x18] sm:$0xf]
  %v6912 = vld [vmem:[%s4 + $0x1c] sm:$0xf]
  %v6913 = vld [vmem:[%s4 + $0x20] sm:$0xf]
  %v6914 = vld [vmem:[%s4 + $0x24] sm:$0xf]
  %v6915 = vld [vmem:[%s4 + $0x28] sm:$0xf]
  %v6916 = vld [vmem:[%s4 + $0x2c] sm:$0xf]
  %v6917 = vld [vmem:[%s4 + $0x30] sm:$0xf]
  %v6918 = vld [vmem:[%s4 + $0x34] sm:$0xf]
  %v6919 = vld [vmem:[%s4 + $0x38] sm:$0xf]
  %v6920 = vld [vmem:[%s4 + $0x3c] sm:$0xf]
  %v6921 = vld [vmem:[%s4 + $0x40] sm:$0xf]
  %v6922 = vld [vmem:[%s4 + $0x44] sm:$0xf]
  %v6923 = vld [vmem:[%s4 + $0x48] sm:$0xf]
  %v6924 = vld [vmem:[%s4 + $0x4c] sm:$0xf]
  %v6925 = vld [vmem:[%s4 + $0x50] sm:$0xf]
  %v6926 = vld [vmem:[%s4 + $0x54] sm:$0xf]
  %v6927 = vld [vmem:[%s4 + $0x58] sm:$0xf]
  %v6928 = vld [vmem:[%s4 + $0x5c] sm:$0xf]
  %v6929 = vld [vmem:[%s4 + $0x60] sm:$0xf]
  %v6930 = vld [vmem:[%s4 + $0x64] sm:$0xf]
  %v6931 = vld [vmem:[%s4 + $0x68] sm:$0xf]
  %v6932 = vld [vmem:[%s4 + $0x6c] sm:$0xf]
  %v6933 = vld [vmem:[%s4 + $0x70] sm:$0xf]
  %v6934 = vld [vmem:[%s4 + $0x74] sm:$0xf]
  %v6935 = vld [vmem:[%s4 + $0x78] sm:$0xf]
  %v6936 = vld [vmem:[%s4 + $0x7c] sm:$0xf]
  %v6937 = vld [vmem:[%s4 + $0x80] sm:$0xf]
  %v6938 = vld [vmem:[%s4 + $0x84] sm:$0xf]
  %v6939 = vld [vmem:[%s4 + $0x88] sm:$0xf]
  %v6940 = vld [vmem:[%s4 + $0x8c] sm:$0xf]
  %v6941 = vld [vmem:[%s4 + $0x90] sm:$0xf]
  %v6942 = vld [vmem:[%s4 + $0x94] sm:$0xf]
  %v6943 = vld [vmem:[%s4 + $0x98] sm:$0xf]
  %v6944 = vld [vmem:[%s4 + $0x9c] sm:$0xf]
  %v6945 = vld [vmem:[%s4 + $0xa0] sm:$0xf]
  %v6946 = vld [vmem:[%s4 + $0xa4] sm:$0xf]
  %v6947 = vld [vmem:[%s4 + $0xa8] sm:$0xf]
  %v6948 = vld [vmem:[%s4 + $0xac] sm:$0xf]
  %v6949 = vld [vmem:[%s4 + $0xb0] sm:$0xf]
  %v6950 = vld [vmem:[%s4 + $0xb4] sm:$0xf]
  %v6951 = vld [vmem:[%s4 + $0xb8] sm:$0xf]
  %v6952 = vld [vmem:[%s4 + $0xbc] sm:$0xf]
  %v6953 = vld [vmem:[%s4 + $0xc0] sm:$0xf]
  %v6954 = vld [vmem:[%s4 + $0xc4] sm:$0xf]
  %v6955 = vld [vmem:[%s4 + $0xc8] sm:$0xf]
  %v6956 = vld [vmem:[%s4 + $0xcc] sm:$0xf]
  %v6957 = vld [vmem:[%s4 + $0xd0] sm:$0xf]
  %v6958 = vld [vmem:[%s4 + $0xd4] sm:$0xf]
  %v6959 = vld [vmem:[%s4 + $0xd8] sm:$0xf]
  %v6960 = vld [vmem:[%s4 + $0xdc] sm:$0xf]
  %v6961 = vld [vmem:[%s4 + $0xe0] sm:$0xf]
  %v6962 = vld [vmem:[%s4 + $0xe4] sm:$0xf]
  %v6963 = vld [vmem:[%s4 + $0xe8] sm:$0xf]
  %v6964 = vld [vmem:[%s4 + $0xec] sm:$0xf]
  %v6965 = vld [vmem:[%s4 + $0xf0] sm:$0xf]
  %v6966 = vld [vmem:[%s4 + $0xf4] sm:$0xf]
  %v6967 = vld [vmem:[%s4 + $0xf8] sm:$0xf]
  %v6968 = vld [vmem:[%s4 + $0xfc] sm:$0xf]
  %v6969 = vld [vmem:[%s4 + $0x100] sm:$0xf]
  %v6970 = vld [vmem:[%s4 + $0x104] sm:$0xf]
  %v6971 = vld [vmem:[%s4 + $0x108] sm:$0xf]
  %v6972 = vld [vmem:[%s4 + $0x10c] sm:$0xf]
  %v6973 = vld [vmem:[%s4 + $0x110] sm:$0xf]
  %v6974 = vld [vmem:[%s4 + $0x114] sm:$0xf]
  %v6975 = vld [vmem:[%s4 + $0x118] sm:$0xf]
  %v6976 = vld [vmem:[%s4 + $0x11c] sm:$0xf]
  %v6977 = vld [vmem:[%s4 + $0x120] sm:$0xf]
  %v6978 = vld [vmem:[%s4 + $0x124] sm:$0xf]
  %v6979 = vld [vmem:[%s4 + $0x128] sm:$0xf]
  %v6980 = vld [vmem:[%s4 + $0x12c] sm:$0xf]
  %v6981 = vld [vmem:[%s4 + $0x130] sm:$0xf]
  %v6982 = vld [vmem:[%s4 + $0x134] sm:$0xf]
  %v6983 = vld [vmem:[%s4 + $0x138] sm:$0xf]
  %v6984 = vld [vmem:[%s4 + $0x13c] sm:$0xf]
  %v6985 = vld [vmem:[%s4 + $0x140] sm:$0xf]
  %v6986 = vld [vmem:[%s4 + $0x144] sm:$0xf]
  %v6987 = vld [vmem:[%s4 + $0x148] sm:$0xf]
  %v6988 = vld [vmem:[%s4 + $0x14c] sm:$0xf]
  %v6989 = vld [vmem:[%s4 + $0x150] sm:$0xf]
  %v6990 = vld [vmem:[%s4 + $0x154] sm:$0xf]
  %v6991 = vld [vmem:[%s4 + $0x158] sm:$0xf]
  %v6992 = vld [vmem:[%s4 + $0x15c] sm:$0xf]
  %v6993 = vld [vmem:[%s4 + $0x160] sm:$0xf]
  %v6994 = vld [vmem:[%s4 + $0x164] sm:$0xf]
  %v6995 = vld [vmem:[%s4 + $0x168] sm:$0xf]
  %v6996 = vld [vmem:[%s4 + $0x16c] sm:$0xf]
  %v6997 = vld [vmem:[%s4 + $0x170] sm:$0xf]
  %v6998 = vld [vmem:[%s4 + $0x174] sm:$0xf]
  %v6999 = vld [vmem:[%s4 + $0x178] sm:$0xf]
  %v7000 = vld [vmem:[%s4 + $0x17c] sm:$0xf]
  %v7001 = vld [vmem:[%s4 + $0x180] sm:$0xf]
  %v7002 = vld [vmem:[%s4 + $0x184] sm:$0xf]
  %v7003 = vld [vmem:[%s4 + $0x188] sm:$0xf]
  %v7004 = vld [vmem:[%s4 + $0x18c] sm:$0xf]
  %v7005 = vld [vmem:[%s4 + $0x190] sm:$0xf]
  %v7006 = vld [vmem:[%s4 + $0x194] sm:$0xf]
  %v7007 = vld [vmem:[%s4 + $0x198] sm:$0xf]
  %v7008 = vld [vmem:[%s4 + $0x19c] sm:$0xf]
  %v7009 = vld [vmem:[%s4 + $0x1a0] sm:$0xf]
  %v7010 = vld [vmem:[%s4 + $0x1a4] sm:$0xf]
  %v7011 = vld [vmem:[%s4 + $0x1a8] sm:$0xf]
  %v7012 = vld [vmem:[%s4 + $0x1ac] sm:$0xf]
  %v7013 = vld [vmem:[%s4 + $0x1b0] sm:$0xf]
  %v7014 = vld [vmem:[%s4 + $0x1b4] sm:$0xf]
  %v7015 = vld [vmem:[%s4 + $0x1b8] sm:$0xf]
  %v7016 = vld [vmem:[%s4 + $0x1bc] sm:$0xf]
  %v7017 = vld [vmem:[%s4 + $0x1c0] sm:$0xf]
  %v7018 = vld [vmem:[%s4 + $0x1c4] sm:$0xf]
  %v7019 = vld [vmem:[%s4 + $0x1c8] sm:$0xf]
  %v7020 = vld [vmem:[%s4 + $0x1cc] sm:$0xf]
  %v7021 = vld [vmem:[%s4 + $0x1d0] sm:$0xf]
  %v7022 = vld [vmem:[%s4 + $0x1d4] sm:$0xf]
  %v7023 = vld [vmem:[%s4 + $0x1d8] sm:$0xf]
  %v7024 = vld [vmem:[%s4 + $0x1dc] sm:$0xf]
  %v7025 = vld [vmem:[%s4 + $0x1e0] sm:$0xf]
  %v7026 = vld [vmem:[%s4 + $0x1e4] sm:$0xf]
  %v7027 = vld [vmem:[%s4 + $0x1e8] sm:$0xf]
  %v7028 = vld [vmem:[%s4 + $0x1ec] sm:$0xf]
  %v7029 = vld [vmem:[%s4 + $0x1f0] sm:$0xf]
  %v7030 = vld [vmem:[%s4 + $0x1f4] sm:$0xf]
  %v7031 = vld [vmem:[%s4 + $0x1f8] sm:$0xf]
  %v7032 = vld [vmem:[%s4 + $0x1fc] sm:$0xf]
  %v7033 = vunpack.c.l.bf16 %v6905
  %v7034 = vunpack.c.l.bf16 %v6906
  %v7035 = vunpack.c.l.bf16 %v6907
  %v7036 = vunpack.c.l.bf16 %v6908
  %v7037 = vunpack.c.l.bf16 %v6909
  %v7038 = vunpack.c.l.bf16 %v6910
  %v7039 = vunpack.c.l.bf16 %v6911
  %v7040 = vunpack.c.l.bf16 %v6912
  %v7041 = vunpack.c.l.bf16 %v6913
  %v7042 = vunpack.c.l.bf16 %v6914
  %v7043 = vunpack.c.l.bf16 %v6915
  %v7044 = vunpack.c.l.bf16 %v6916
  %v7045 = vunpack.c.l.bf16 %v6917
  %v7046 = vunpack.c.l.bf16 %v6918
  %v7047 = vunpack.c.l.bf16 %v6919
  %v7048 = vunpack.c.l.bf16 %v6920
  %v7049 = vunpack.c.l.bf16 %v6921
  %v7050 = vunpack.c.l.bf16 %v6922
  %v7051 = vunpack.c.l.bf16 %v6923
  %v7052 = vunpack.c.l.bf16 %v6924
  %v7053 = vunpack.c.l.bf16 %v6925
  %v7054 = vunpack.c.l.bf16 %v6926
  %v7055 = vunpack.c.l.bf16 %v6927
  %v7056 = vunpack.c.l.bf16 %v6928
  %v7057 = vunpack.c.l.bf16 %v6929
  %v7058 = vunpack.c.l.bf16 %v6930
  %v7059 = vunpack.c.l.bf16 %v6931
  %v7060 = vunpack.c.l.bf16 %v6932
  %v7061 = vunpack.c.l.bf16 %v6933
  %v7062 = vunpack.c.l.bf16 %v6934
  %v7063 = vunpack.c.l.bf16 %v6935
  %v7064 = vunpack.c.l.bf16 %v6936
  %v7065 = vunpack.c.l.bf16 %v6937
  %v7066 = vunpack.c.l.bf16 %v6938
  %v7067 = vunpack.c.l.bf16 %v6939
  %v7068 = vunpack.c.l.bf16 %v6940
  %v7069 = vunpack.c.l.bf16 %v6941
  %v7070 = vunpack.c.l.bf16 %v6942
  %v7071 = vunpack.c.l.bf16 %v6943
  %v7072 = vunpack.c.l.bf16 %v6944
  %v7073 = vunpack.c.l.bf16 %v6945
  %v7074 = vunpack.c.l.bf16 %v6946
  %v7075 = vunpack.c.l.bf16 %v6947
  %v7076 = vunpack.c.l.bf16 %v6948
  %v7077 = vunpack.c.l.bf16 %v6949
  %v7078 = vunpack.c.l.bf16 %v6950
  %v7079 = vunpack.c.l.bf16 %v6951
  %v7080 = vunpack.c.l.bf16 %v6952
  %v7081 = vunpack.c.l.bf16 %v6953
  %v7082 = vunpack.c.l.bf16 %v6954
  %v7083 = vunpack.c.l.bf16 %v6955
  %v7084 = vunpack.c.l.bf16 %v6956
  %v7085 = vunpack.c.l.bf16 %v6957
  %v7086 = vunpack.c.l.bf16 %v6958
  %v7087 = vunpack.c.l.bf16 %v6959
  %v7088 = vunpack.c.l.bf16 %v6960
  %v7089 = vunpack.c.l.bf16 %v6961
  %v7090 = vunpack.c.l.bf16 %v6962
  %v7091 = vunpack.c.l.bf16 %v6963
  %v7092 = vunpack.c.l.bf16 %v6964
  %v7093 = vunpack.c.l.bf16 %v6965
  %v7094 = vunpack.c.l.bf16 %v6966
  %v7095 = vunpack.c.l.bf16 %v6967
  %v7096 = vunpack.c.l.bf16 %v6968
  %v7097 = vunpack.c.l.bf16 %v6969
  %v7098 = vunpack.c.l.bf16 %v6970
  %v7099 = vunpack.c.l.bf16 %v6971
  %v7100 = vunpack.c.l.bf16 %v6972
  %v7101 = vunpack.c.l.bf16 %v6973
  %v7102 = vunpack.c.l.bf16 %v6974
  %v7103 = vunpack.c.l.bf16 %v6975
  %v7104 = vunpack.c.l.bf16 %v6976
  %v7105 = vunpack.c.l.bf16 %v6977
  %v7106 = vunpack.c.l.bf16 %v6978
  %v7107 = vunpack.c.l.bf16 %v6979
  %v7108 = vunpack.c.l.bf16 %v6980
  %v7109 = vunpack.c.l.bf16 %v6981
  %v7110 = vunpack.c.l.bf16 %v6982
  %v7111 = vunpack.c.l.bf16 %v6983
  %v7112 = vunpack.c.l.bf16 %v6984
  %v7113 = vunpack.c.l.bf16 %v6985
  %v7114 = vunpack.c.l.bf16 %v6986
  %v7115 = vunpack.c.l.bf16 %v6987
  %v7116 = vunpack.c.l.bf16 %v6988
  %v7117 = vunpack.c.l.bf16 %v6989
  %v7118 = vunpack.c.l.bf16 %v6990
  %v7119 = vunpack.c.l.bf16 %v6991
  %v7120 = vunpack.c.l.bf16 %v6992
  %v7121 = vunpack.c.l.bf16 %v6993
  %v7122 = vunpack.c.l.bf16 %v6994
  %v7123 = vunpack.c.l.bf16 %v6995
  %v7124 = vunpack.c.l.bf16 %v6996
  %v7125 = vunpack.c.l.bf16 %v6997
  %v7126 = vunpack.c.l.bf16 %v6998
  %v7127 = vunpack.c.l.bf16 %v6999
  %v7128 = vunpack.c.l.bf16 %v7000
  %v7129 = vunpack.c.l.bf16 %v7001
  %v7130 = vunpack.c.l.bf16 %v7002
  %v7131 = vunpack.c.l.bf16 %v7003
  %v7132 = vunpack.c.l.bf16 %v7004
  %v7133 = vunpack.c.l.bf16 %v7005
  %v7134 = vunpack.c.l.bf16 %v7006
  %v7135 = vunpack.c.l.bf16 %v7007
  %v7136 = vunpack.c.l.bf16 %v7008
  %v7137 = vunpack.c.l.bf16 %v7009
  %v7138 = vunpack.c.l.bf16 %v7010
  %v7139 = vunpack.c.l.bf16 %v7011
  %v7140 = vunpack.c.l.bf16 %v7012
  %v7141 = vunpack.c.l.bf16 %v7013
  %v7142 = vunpack.c.l.bf16 %v7014
  %v7143 = vunpack.c.l.bf16 %v7015
  %v7144 = vunpack.c.l.bf16 %v7016
  %v7145 = vunpack.c.l.bf16 %v7017
  %v7146 = vunpack.c.l.bf16 %v7018
  %v7147 = vunpack.c.l.bf16 %v7019
  %v7148 = vunpack.c.l.bf16 %v7020
  %v7149 = vunpack.c.l.bf16 %v7021
  %v7150 = vunpack.c.l.bf16 %v7022
  %v7151 = vunpack.c.l.bf16 %v7023
  %v7152 = vunpack.c.l.bf16 %v7024
  %v7153 = vunpack.c.l.bf16 %v7025
  %v7154 = vunpack.c.l.bf16 %v7026
  %v7155 = vunpack.c.l.bf16 %v7027
  %v7156 = vunpack.c.l.bf16 %v7028
  %v7157 = vunpack.c.l.bf16 %v7029
  %v7158 = vunpack.c.l.bf16 %v7030
  %v7159 = vunpack.c.l.bf16 %v7031
  %v7160 = vunpack.c.l.bf16 %v7032
  %v7161 = vmul.f32 %v6777, %v7033
  %v7162 = vmul.f32 %v6778, %v7034
  %v7163 = vmul.f32 %v6779, %v7035
  %v7164 = vmul.f32 %v6780, %v7036
  %v7165 = vmul.f32 %v6781, %v7037
  %v7166 = vmul.f32 %v6782, %v7038
  %v7167 = vmul.f32 %v6783, %v7039
  %v7168 = vmul.f32 %v6784, %v7040
  %v7169 = vmul.f32 %v6785, %v7041
  %v7170 = vmul.f32 %v6786, %v7042
  %v7171 = vmul.f32 %v6787, %v7043
  %v7172 = vmul.f32 %v6788, %v7044
  %v7173 = vmul.f32 %v6789, %v7045
  %v7174 = vmul.f32 %v6790, %v7046
  %v7175 = vmul.f32 %v6791, %v7047
  %v7176 = vmul.f32 %v6792, %v7048
  %v7177 = vmul.f32 %v6793, %v7049
  %v7178 = vmul.f32 %v6794, %v7050
  %v7179 = vmul.f32 %v6795, %v7051
  %v7180 = vmul.f32 %v6796, %v7052
  %v7181 = vmul.f32 %v6797, %v7053
  %v7182 = vmul.f32 %v6798, %v7054
  %v7183 = vmul.f32 %v6799, %v7055
  %v7184 = vmul.f32 %v6800, %v7056
  %v7185 = vmul.f32 %v6801, %v7057
  %v7186 = vmul.f32 %v6802, %v7058
  %v7187 = vmul.f32 %v6803, %v7059
  %v7188 = vmul.f32 %v6804, %v7060
  %v7189 = vmul.f32 %v6805, %v7061
  %v7190 = vmul.f32 %v6806, %v7062
  %v7191 = vmul.f32 %v6807, %v7063
  %v7192 = vmul.f32 %v6808, %v7064
  %v7193 = vmul.f32 %v6809, %v7065
  %v7194 = vmul.f32 %v6810, %v7066
  %v7195 = vmul.f32 %v6811, %v7067
  %v7196 = vmul.f32 %v6812, %v7068
  %v7197 = vmul.f32 %v6813, %v7069
  %v7198 = vmul.f32 %v6814, %v7070
  %v7199 = vmul.f32 %v6815, %v7071
  %v7200 = vmul.f32 %v6816, %v7072
  %v7201 = vmul.f32 %v6817, %v7073
  %v7202 = vmul.f32 %v6818, %v7074
  %v7203 = vmul.f32 %v6819, %v7075
  %v7204 = vmul.f32 %v6820, %v7076
  %v7205 = vmul.f32 %v6821, %v7077
  %v7206 = vmul.f32 %v6822, %v7078
  %v7207 = vmul.f32 %v6823, %v7079
  %v7208 = vmul.f32 %v6824, %v7080
  %v7209 = vmul.f32 %v6825, %v7081
  %v7210 = vmul.f32 %v6826, %v7082
  %v7211 = vmul.f32 %v6827, %v7083
  %v7212 = vmul.f32 %v6828, %v7084
  %v7213 = vmul.f32 %v6829, %v7085
  %v7214 = vmul.f32 %v6830, %v7086
  %v7215 = vmul.f32 %v6831, %v7087
  %v7216 = vmul.f32 %v6832, %v7088
  %v7217 = vmul.f32 %v6833, %v7089
  %v7218 = vmul.f32 %v6834, %v7090
  %v7219 = vmul.f32 %v6835, %v7091
  %v7220 = vmul.f32 %v6836, %v7092
  %v7221 = vmul.f32 %v6837, %v7093
  %v7222 = vmul.f32 %v6838, %v7094
  %v7223 = vmul.f32 %v6839, %v7095
  %v7224 = vmul.f32 %v6840, %v7096
  %v7225 = vmul.f32 %v6841, %v7097
  %v7226 = vmul.f32 %v6842, %v7098
  %v7227 = vmul.f32 %v6843, %v7099
  %v7228 = vmul.f32 %v6844, %v7100
  %v7229 = vmul.f32 %v6845, %v7101
  %v7230 = vmul.f32 %v6846, %v7102
  %v7231 = vmul.f32 %v6847, %v7103
  %v7232 = vmul.f32 %v6848, %v7104
  %v7233 = vmul.f32 %v6849, %v7105
  %v7234 = vmul.f32 %v6850, %v7106
  %v7235 = vmul.f32 %v6851, %v7107
  %v7236 = vmul.f32 %v6852, %v7108
  %v7237 = vmul.f32 %v6853, %v7109
  %v7238 = vmul.f32 %v6854, %v7110
  %v7239 = vmul.f32 %v6855, %v7111
  %v7240 = vmul.f32 %v6856, %v7112
  %v7241 = vmul.f32 %v6857, %v7113
  %v7242 = vmul.f32 %v6858, %v7114
  %v7243 = vmul.f32 %v6859, %v7115
  %v7244 = vmul.f32 %v6860, %v7116
  %v7245 = vmul.f32 %v6861, %v7117
  %v7246 = vmul.f32 %v6862, %v7118
  %v7247 = vmul.f32 %v6863, %v7119
  %v7248 = vmul.f32 %v6864, %v7120
  %v7249 = vmul.f32 %v6865, %v7121
  %v7250 = vmul.f32 %v6866, %v7122
  %v7251 = vmul.f32 %v6867, %v7123
  %v7252 = vmul.f32 %v6868, %v7124
  %v7253 = vmul.f32 %v6869, %v7125
  %v7254 = vmul.f32 %v6870, %v7126
  %v7255 = vmul.f32 %v6871, %v7127
  %v7256 = vmul.f32 %v6872, %v7128
  %v7257 = vmul.f32 %v6873, %v7129
  %v7258 = vmul.f32 %v6874, %v7130
  %v7259 = vmul.f32 %v6875, %v7131
  %v7260 = vmul.f32 %v6876, %v7132
  %v7261 = vmul.f32 %v6877, %v7133
  %v7262 = vmul.f32 %v6878, %v7134
  %v7263 = vmul.f32 %v6879, %v7135
  %v7264 = vmul.f32 %v6880, %v7136
  %v7265 = vmul.f32 %v6881, %v7137
  %v7266 = vmul.f32 %v6882, %v7138
  %v7267 = vmul.f32 %v6883, %v7139
  %v7268 = vmul.f32 %v6884, %v7140
  %v7269 = vmul.f32 %v6885, %v7141
  %v7270 = vmul.f32 %v6886, %v7142
  %v7271 = vmul.f32 %v6887, %v7143
  %v7272 = vmul.f32 %v6888, %v7144
  %v7273 = vmul.f32 %v6889, %v7145
  %v7274 = vmul.f32 %v6890, %v7146
  %v7275 = vmul.f32 %v6891, %v7147
  %v7276 = vmul.f32 %v6892, %v7148
  %v7277 = vmul.f32 %v6893, %v7149
  %v7278 = vmul.f32 %v6894, %v7150
  %v7279 = vmul.f32 %v6895, %v7151
  %v7280 = vmul.f32 %v6896, %v7152
  %v7281 = vmul.f32 %v6897, %v7153
  %v7282 = vmul.f32 %v6898, %v7154
  %v7283 = vmul.f32 %v6899, %v7155
  %v7284 = vmul.f32 %v6900, %v7156
  %v7285 = vmul.f32 %v6901, %v7157
  %v7286 = vmul.f32 %v6902, %v7158
  %v7287 = vmul.f32 %v6903, %v7159
  %v7288 = vmul.f32 %v6904, %v7160
  %v7289 = vpack.c.bf16 %v7162, %v7161
  %v7290 = vpack.c.bf16 %v7164, %v7163
  %v7291 = vpack.c.bf16 %v7166, %v7165
  %v7292 = vpack.c.bf16 %v7168, %v7167
  %v7293 = vpack.c.bf16 %v7170, %v7169
  %v7294 = vpack.c.bf16 %v7172, %v7171
  %v7295 = vpack.c.bf16 %v7174, %v7173
  %v7296 = vpack.c.bf16 %v7176, %v7175
  %v7297 = vpack.c.bf16 %v7178, %v7177
  %v7298 = vpack.c.bf16 %v7180, %v7179
  %v7299 = vpack.c.bf16 %v7182, %v7181
  %v7300 = vpack.c.bf16 %v7184, %v7183
  %v7301 = vpack.c.bf16 %v7186, %v7185
  %v7302 = vpack.c.bf16 %v7188, %v7187
  %v7303 = vpack.c.bf16 %v7190, %v7189
  %v7304 = vpack.c.bf16 %v7192, %v7191
  %v7305 = vpack.c.bf16 %v7194, %v7193
  %v7306 = vpack.c.bf16 %v7196, %v7195
  %v7307 = vpack.c.bf16 %v7198, %v7197
  %v7308 = vpack.c.bf16 %v7200, %v7199
  %v7309 = vpack.c.bf16 %v7202, %v7201
  %v7310 = vpack.c.bf16 %v7204, %v7203
  %v7311 = vpack.c.bf16 %v7206, %v7205
  %v7312 = vpack.c.bf16 %v7208, %v7207
  %v7313 = vpack.c.bf16 %v7210, %v7209
  %v7314 = vpack.c.bf16 %v7212, %v7211
  %v7315 = vpack.c.bf16 %v7214, %v7213
  %v7316 = vpack.c.bf16 %v7216, %v7215
  %v7317 = vpack.c.bf16 %v7218, %v7217
  %v7318 = vpack.c.bf16 %v7220, %v7219
  %v7319 = vpack.c.bf16 %v7222, %v7221
  %v7320 = vpack.c.bf16 %v7224, %v7223
  %v7321 = vpack.c.bf16 %v7226, %v7225
  %v7322 = vpack.c.bf16 %v7228, %v7227
  %v7323 = vpack.c.bf16 %v7230, %v7229
  %v7324 = vpack.c.bf16 %v7232, %v7231
  %v7325 = vpack.c.bf16 %v7234, %v7233
  %v7326 = vpack.c.bf16 %v7236, %v7235
  %v7327 = vpack.c.bf16 %v7238, %v7237
  %v7328 = vpack.c.bf16 %v7240, %v7239
  %v7329 = vpack.c.bf16 %v7242, %v7241
  %v7330 = vpack.c.bf16 %v7244, %v7243
  %v7331 = vpack.c.bf16 %v7246, %v7245
  %v7332 = vpack.c.bf16 %v7248, %v7247
  %v7333 = vpack.c.bf16 %v7250, %v7249
  %v7334 = vpack.c.bf16 %v7252, %v7251
  %v7335 = vpack.c.bf16 %v7254, %v7253
  %v7336 = vpack.c.bf16 %v7256, %v7255
  %v7337 = vpack.c.bf16 %v7258, %v7257
  %v7338 = vpack.c.bf16 %v7260, %v7259
  %v7339 = vpack.c.bf16 %v7262, %v7261
  %v7340 = vpack.c.bf16 %v7264, %v7263
  %v7341 = vpack.c.bf16 %v7266, %v7265
  %v7342 = vpack.c.bf16 %v7268, %v7267
  %v7343 = vpack.c.bf16 %v7270, %v7269
  %v7344 = vpack.c.bf16 %v7272, %v7271
  %v7345 = vpack.c.bf16 %v7274, %v7273
  %v7346 = vpack.c.bf16 %v7276, %v7275
  %v7347 = vpack.c.bf16 %v7278, %v7277
  %v7348 = vpack.c.bf16 %v7280, %v7279
  %v7349 = vpack.c.bf16 %v7282, %v7281
  %v7350 = vpack.c.bf16 %v7284, %v7283
  %v7351 = vpack.c.bf16 %v7286, %v7285
  %v7352 = vpack.c.bf16 %v7288, %v7287
  %v7353 = vld [vmem:[%s5] sm:$0xf]
  %v7354 = vld [vmem:[%s5 + $0x4] sm:$0xf]
  %v7355 = vld [vmem:[%s5 + $0x8] sm:$0xf]
  %v7356 = vld [vmem:[%s5 + $0xc] sm:$0xf]
  %v7357 = vld [vmem:[%s5 + $0x10] sm:$0xf]
  %v7358 = vld [vmem:[%s5 + $0x14] sm:$0xf]
  %v7359 = vld [vmem:[%s5 + $0x18] sm:$0xf]
  %v7360 = vld [vmem:[%s5 + $0x1c] sm:$0xf]
  %v7361 = vld [vmem:[%s5 + $0x20] sm:$0xf]
  %v7362 = vld [vmem:[%s5 + $0x24] sm:$0xf]
  %v7363 = vld [vmem:[%s5 + $0x28] sm:$0xf]
  %v7364 = vld [vmem:[%s5 + $0x2c] sm:$0xf]
  %v7365 = vld [vmem:[%s5 + $0x30] sm:$0xf]
  %v7366 = vld [vmem:[%s5 + $0x34] sm:$0xf]
  %v7367 = vld [vmem:[%s5 + $0x38] sm:$0xf]
  %v7368 = vld [vmem:[%s5 + $0x3c] sm:$0xf]
  %v7369 = vld [vmem:[%s6] sm:$0x1]
  %v7371 = vperm.slane %v7369, 0
  %v7389 = vunpack.c.l.b16 %v7353
  %v7390 = vunpack.c.l.b16 %v7354
  %v7391 = vunpack.c.l.b16 %v7355
  %v7392 = vunpack.c.l.b16 %v7356
  %v7393 = vunpack.c.l.b16 %v7357
  %v7394 = vunpack.c.l.b16 %v7358
  %v7395 = vunpack.c.l.b16 %v7359
  %v7396 = vunpack.c.l.b16 %v7360
  %v7397 = vunpack.c.l.b16 %v7361
  %v7398 = vunpack.c.l.b16 %v7362
  %v7399 = vunpack.c.l.b16 %v7363
  %v7400 = vunpack.c.l.b16 %v7364
  %v7401 = vunpack.c.l.b16 %v7365
  %v7402 = vunpack.c.l.b16 %v7366
  %v7403 = vunpack.c.l.b16 %v7367
  %v7404 = vunpack.c.l.b16 %v7368
  %v7405 = vpack.c.b16 %v7390, %v7389
  %v7406 = vpack.c.b16 %v7392, %v7391
  %v7407 = vpack.c.b16 %v7394, %v7393
  %v7408 = vpack.c.b16 %v7396, %v7395
  %v7409 = vpack.c.b16 %v7398, %v7397
  %v7410 = vpack.c.b16 %v7400, %v7399
  %v7411 = vpack.c.b16 %v7402, %v7401
  %v7412 = vpack.c.b16 %v7404, %v7403
  %7421 = vmatpush.bf16.msra.mxu0 %v7412
  %7422 = vmatpush.bf16.msra.mxu0 %v7411
  %7423 = vmatpush.bf16.msra.mxu0 %v7410
  %7424 = vmatpush.bf16.msra.mxu0 %v7409
  %7425 = vmatpush.bf16.msra.mxu0 %v7408
  %7426 = vmatpush.bf16.msra.mxu0 %v7407
  %7427 = vmatpush.bf16.msra.mxu0 %v7406
  %7428 = vmatpush.bf16.msra.mxu0 %v7405
  %7429 = vmatmul.bf16.gmra.mxu0 %v7289
  %v7430 = vpop.f32.mrf.mxu0
  %v7431 = vadd.f32 %v7371, %v7430
  %v7432 = vpop.f32.mrf.mxu0
  %v7433 = vadd.f32 %v7371, %v7432
  %7434 = vmatmul.bf16.gmra.mxu0 %v7290
  %v7435 = vpop.f32.mrf.mxu0
  %v7436 = vadd.f32 %v7371, %v7435
  %v7437 = vpop.f32.mrf.mxu0
  %v7438 = vadd.f32 %v7371, %v7437
  %7439 = vmatmul.bf16.gmra.mxu0 %v7291
  %v7440 = vpop.f32.mrf.mxu0
  %v7441 = vadd.f32 %v7371, %v7440
  %v7442 = vpop.f32.mrf.mxu0
  %v7443 = vadd.f32 %v7371, %v7442
  %7444 = vmatmul.bf16.gmra.mxu0 %v7292
  %v7445 = vpop.f32.mrf.mxu0
  %v7446 = vadd.f32 %v7371, %v7445
  %v7447 = vpop.f32.mrf.mxu0
  %v7448 = vadd.f32 %v7371, %v7447
  %7449 = vmatmul.bf16.gmra.mxu0 %v7293
  %v7450 = vpop.f32.mrf.mxu0
  %v7451 = vadd.f32 %v7371, %v7450
  %v7452 = vpop.f32.mrf.mxu0
  %v7453 = vadd.f32 %v7371, %v7452
  %7454 = vmatmul.bf16.gmra.mxu0 %v7294
  %v7455 = vpop.f32.mrf.mxu0
  %v7456 = vadd.f32 %v7371, %v7455
  %v7457 = vpop.f32.mrf.mxu0
  %v7458 = vadd.f32 %v7371, %v7457
  %7459 = vmatmul.bf16.gmra.mxu0 %v7295
  %v7460 = vpop.f32.mrf.mxu0
  %v7461 = vadd.f32 %v7371, %v7460
  %v7462 = vpop.f32.mrf.mxu0
  %v7463 = vadd.f32 %v7371, %v7462
  %7464 = vmatmul.bf16.gmra.mxu0 %v7296
  %v7465 = vpop.f32.mrf.mxu0
  %v7466 = vadd.f32 %v7371, %v7465
  %v7467 = vpop.f32.mrf.mxu0
  %v7468 = vadd.f32 %v7371, %v7467
  %7469 = vmatmul.bf16.gmra.mxu0 %v7297
  %v7470 = vpop.f32.mrf.mxu0
  %v7471 = vadd.f32 %v7371, %v7470
  %v7472 = vpop.f32.mrf.mxu0
  %v7473 = vadd.f32 %v7371, %v7472
  %7474 = vmatmul.bf16.gmra.mxu0 %v7298
  %v7475 = vpop.f32.mrf.mxu0
  %v7476 = vadd.f32 %v7371, %v7475
  %v7477 = vpop.f32.mrf.mxu0
  %v7478 = vadd.f32 %v7371, %v7477
  %7479 = vmatmul.bf16.gmra.mxu0 %v7299
  %v7480 = vpop.f32.mrf.mxu0
  %v7481 = vadd.f32 %v7371, %v7480
  %v7482 = vpop.f32.mrf.mxu0
  %v7483 = vadd.f32 %v7371, %v7482
  %7484 = vmatmul.bf16.gmra.mxu0 %v7300
  %v7485 = vpop.f32.mrf.mxu0
  %v7486 = vadd.f32 %v7371, %v7485
  %v7487 = vpop.f32.mrf.mxu0
  %v7488 = vadd.f32 %v7371, %v7487
  %7489 = vmatmul.bf16.gmra.mxu0 %v7301
  %v7490 = vpop.f32.mrf.mxu0
  %v7491 = vadd.f32 %v7371, %v7490
  %v7492 = vpop.f32.mrf.mxu0
  %v7493 = vadd.f32 %v7371, %v7492
  %7494 = vmatmul.bf16.gmra.mxu0 %v7302
  %v7495 = vpop.f32.mrf.mxu0
  %v7496 = vadd.f32 %v7371, %v7495
  %v7497 = vpop.f32.mrf.mxu0
  %v7498 = vadd.f32 %v7371, %v7497
  %7499 = vmatmul.bf16.gmra.mxu0 %v7303
  %v7500 = vpop.f32.mrf.mxu0
  %v7501 = vadd.f32 %v7371, %v7500
  %v7502 = vpop.f32.mrf.mxu0
  %v7503 = vadd.f32 %v7371, %v7502
  %7504 = vmatmul.bf16.gmra.mxu0 %v7304
  %v7505 = vpop.f32.mrf.mxu0
  %v7506 = vadd.f32 %v7371, %v7505
  %v7507 = vpop.f32.mrf.mxu0
  %v7508 = vadd.f32 %v7371, %v7507
  %7509 = vmatmul.bf16.gmra.mxu0 %v7305
  %v7510 = vpop.f32.mrf.mxu0
  %v7511 = vadd.f32 %v7371, %v7510
  %v7512 = vpop.f32.mrf.mxu0
  %v7513 = vadd.f32 %v7371, %v7512
  %7514 = vmatmul.bf16.gmra.mxu0 %v7306
  %v7515 = vpop.f32.mrf.mxu0
  %v7516 = vadd.f32 %v7371, %v7515
  %v7517 = vpop.f32.mrf.mxu0
  %v7518 = vadd.f32 %v7371, %v7517
  %7519 = vmatmul.bf16.gmra.mxu0 %v7307
  %v7520 = vpop.f32.mrf.mxu0
  %v7521 = vadd.f32 %v7371, %v7520
  %v7522 = vpop.f32.mrf.mxu0
  %v7523 = vadd.f32 %v7371, %v7522
  %7524 = vmatmul.bf16.gmra.mxu0 %v7308
  %v7525 = vpop.f32.mrf.mxu0
  %v7526 = vadd.f32 %v7371, %v7525
  %v7527 = vpop.f32.mrf.mxu0
  %v7528 = vadd.f32 %v7371, %v7527
  %7529 = vmatmul.bf16.gmra.mxu0 %v7309
  %v7530 = vpop.f32.mrf.mxu0
  %v7531 = vadd.f32 %v7371, %v7530
  %v7532 = vpop.f32.mrf.mxu0
  %v7533 = vadd.f32 %v7371, %v7532
  %7534 = vmatmul.bf16.gmra.mxu0 %v7310
  %v7535 = vpop.f32.mrf.mxu0
  %v7536 = vadd.f32 %v7371, %v7535
  %v7537 = vpop.f32.mrf.mxu0
  %v7538 = vadd.f32 %v7371, %v7537
  %7539 = vmatmul.bf16.gmra.mxu0 %v7311
  %v7540 = vpop.f32.mrf.mxu0
  %v7541 = vadd.f32 %v7371, %v7540
  %v7542 = vpop.f32.mrf.mxu0
  %v7543 = vadd.f32 %v7371, %v7542
  %7544 = vmatmul.bf16.gmra.mxu0 %v7312
  %v7545 = vpop.f32.mrf.mxu0
  %v7546 = vadd.f32 %v7371, %v7545
  %v7547 = vpop.f32.mrf.mxu0
  %v7548 = vadd.f32 %v7371, %v7547
  %7549 = vmatmul.bf16.gmra.mxu0 %v7313
  %v7550 = vpop.f32.mrf.mxu0
  %v7551 = vadd.f32 %v7371, %v7550
  %v7552 = vpop.f32.mrf.mxu0
  %v7553 = vadd.f32 %v7371, %v7552
  %7554 = vmatmul.bf16.gmra.mxu0 %v7314
  %v7555 = vpop.f32.mrf.mxu0
  %v7556 = vadd.f32 %v7371, %v7555
  %v7557 = vpop.f32.mrf.mxu0
  %v7558 = vadd.f32 %v7371, %v7557
  %7559 = vmatmul.bf16.gmra.mxu0 %v7315
  %v7560 = vpop.f32.mrf.mxu0
  %v7561 = vadd.f32 %v7371, %v7560
  %v7562 = vpop.f32.mrf.mxu0
  %v7563 = vadd.f32 %v7371, %v7562
  %7564 = vmatmul.bf16.gmra.mxu0 %v7316
  %v7565 = vpop.f32.mrf.mxu0
  %v7566 = vadd.f32 %v7371, %v7565
  %v7567 = vpop.f32.mrf.mxu0
  %v7568 = vadd.f32 %v7371, %v7567
  %7569 = vmatmul.bf16.gmra.mxu0 %v7317
  %v7570 = vpop.f32.mrf.mxu0
  %v7571 = vadd.f32 %v7371, %v7570
  %v7572 = vpop.f32.mrf.mxu0
  %v7573 = vadd.f32 %v7371, %v7572
  %7574 = vmatmul.bf16.gmra.mxu0 %v7318
  %v7575 = vpop.f32.mrf.mxu0
  %v7576 = vadd.f32 %v7371, %v7575
  %v7577 = vpop.f32.mrf.mxu0
  %v7578 = vadd.f32 %v7371, %v7577
  %7579 = vmatmul.bf16.gmra.mxu0 %v7319
  %v7580 = vpop.f32.mrf.mxu0
  %v7581 = vadd.f32 %v7371, %v7580
  %v7582 = vpop.f32.mrf.mxu0
  %v7583 = vadd.f32 %v7371, %v7582
  %7584 = vmatmul.bf16.gmra.mxu0 %v7320
  %v7585 = vpop.f32.mrf.mxu0
  %v7586 = vadd.f32 %v7371, %v7585
  %v7587 = vpop.f32.mrf.mxu0
  %v7588 = vadd.f32 %v7371, %v7587
  %7589 = vmatmul.bf16.gmra.mxu0 %v7321
  %v7590 = vpop.f32.mrf.mxu0
  %v7591 = vadd.f32 %v7371, %v7590
  %v7592 = vpop.f32.mrf.mxu0
  %v7593 = vadd.f32 %v7371, %v7592
  %7594 = vmatmul.bf16.gmra.mxu0 %v7322
  %v7595 = vpop.f32.mrf.mxu0
  %v7596 = vadd.f32 %v7371, %v7595
  %v7597 = vpop.f32.mrf.mxu0
  %v7598 = vadd.f32 %v7371, %v7597
  %7599 = vmatmul.bf16.gmra.mxu0 %v7323
  %v7600 = vpop.f32.mrf.mxu0
  %v7601 = vadd.f32 %v7371, %v7600
  %v7602 = vpop.f32.mrf.mxu0
  %v7603 = vadd.f32 %v7371, %v7602
  %7604 = vmatmul.bf16.gmra.mxu0 %v7324
  %v7605 = vpop.f32.mrf.mxu0
  %v7606 = vadd.f32 %v7371, %v7605
  %v7607 = vpop.f32.mrf.mxu0
  %v7608 = vadd.f32 %v7371, %v7607
  %7609 = vmatmul.bf16.gmra.mxu0 %v7325
  %v7610 = vpop.f32.mrf.mxu0
  %v7611 = vadd.f32 %v7371, %v7610
  %v7612 = vpop.f32.mrf.mxu0
  %v7613 = vadd.f32 %v7371, %v7612
  %7614 = vmatmul.bf16.gmra.mxu0 %v7326
  %v7615 = vpop.f32.mrf.mxu0
  %v7616 = vadd.f32 %v7371, %v7615
  %v7617 = vpop.f32.mrf.mxu0
  %v7618 = vadd.f32 %v7371, %v7617
  %7619 = vmatmul.bf16.gmra.mxu0 %v7327
  %v7620 = vpop.f32.mrf.mxu0
  %v7621 = vadd.f32 %v7371, %v7620
  %v7622 = vpop.f32.mrf.mxu0
  %v7623 = vadd.f32 %v7371, %v7622
  %7624 = vmatmul.bf16.gmra.mxu0 %v7328
  %v7625 = vpop.f32.mrf.mxu0
  %v7626 = vadd.f32 %v7371, %v7625
  %v7627 = vpop.f32.mrf.mxu0
  %v7628 = vadd.f32 %v7371, %v7627
  %7629 = vmatmul.bf16.gmra.mxu0 %v7329
  %v7630 = vpop.f32.mrf.mxu0
  %v7631 = vadd.f32 %v7371, %v7630
  %v7632 = vpop.f32.mrf.mxu0
  %v7633 = vadd.f32 %v7371, %v7632
  %7634 = vmatmul.bf16.gmra.mxu0 %v7330
  %v7635 = vpop.f32.mrf.mxu0
  %v7636 = vadd.f32 %v7371, %v7635
  %v7637 = vpop.f32.mrf.mxu0
  %v7638 = vadd.f32 %v7371, %v7637
  %7639 = vmatmul.bf16.gmra.mxu0 %v7331
  %v7640 = vpop.f32.mrf.mxu0
  %v7641 = vadd.f32 %v7371, %v7640
  %v7642 = vpop.f32.mrf.mxu0
  %v7643 = vadd.f32 %v7371, %v7642
  %7644 = vmatmul.bf16.gmra.mxu0 %v7332
  %v7645 = vpop.f32.mrf.mxu0
  %v7646 = vadd.f32 %v7371, %v7645
  %v7647 = vpop.f32.mrf.mxu0
  %v7648 = vadd.f32 %v7371, %v7647
  %7649 = vmatmul.bf16.gmra.mxu0 %v7333
  %v7650 = vpop.f32.mrf.mxu0
  %v7651 = vadd.f32 %v7371, %v7650
  %v7652 = vpop.f32.mrf.mxu0
  %v7653 = vadd.f32 %v7371, %v7652
  %7654 = vmatmul.bf16.gmra.mxu0 %v7334
  %v7655 = vpop.f32.mrf.mxu0
  %v7656 = vadd.f32 %v7371, %v7655
  %v7657 = vpop.f32.mrf.mxu0
  %v7658 = vadd.f32 %v7371, %v7657
  %7659 = vmatmul.bf16.gmra.mxu0 %v7335
  %v7660 = vpop.f32.mrf.mxu0
  %v7661 = vadd.f32 %v7371, %v7660
  %v7662 = vpop.f32.mrf.mxu0
  %v7663 = vadd.f32 %v7371, %v7662
  %7664 = vmatmul.bf16.gmra.mxu0 %v7336
  %v7665 = vpop.f32.mrf.mxu0
  %v7666 = vadd.f32 %v7371, %v7665
  %v7667 = vpop.f32.mrf.mxu0
  %v7668 = vadd.f32 %v7371, %v7667
  %7669 = vmatmul.bf16.gmra.mxu0 %v7337
  %v7670 = vpop.f32.mrf.mxu0
  %v7671 = vadd.f32 %v7371, %v7670
  %v7672 = vpop.f32.mrf.mxu0
  %v7673 = vadd.f32 %v7371, %v7672
  %7674 = vmatmul.bf16.gmra.mxu0 %v7338
  %v7675 = vpop.f32.mrf.mxu0
  %v7676 = vadd.f32 %v7371, %v7675
  %v7677 = vpop.f32.mrf.mxu0
  %v7678 = vadd.f32 %v7371, %v7677
  %7679 = vmatmul.bf16.gmra.mxu0 %v7339
  %v7680 = vpop.f32.mrf.mxu0
  %v7681 = vadd.f32 %v7371, %v7680
  %v7682 = vpop.f32.mrf.mxu0
  %v7683 = vadd.f32 %v7371, %v7682
  %7684 = vmatmul.bf16.gmra.mxu0 %v7340
  %v7685 = vpop.f32.mrf.mxu0
  %v7686 = vadd.f32 %v7371, %v7685
  %v7687 = vpop.f32.mrf.mxu0
  %v7688 = vadd.f32 %v7371, %v7687
  %7689 = vmatmul.bf16.gmra.mxu0 %v7341
  %v7690 = vpop.f32.mrf.mxu0
  %v7691 = vadd.f32 %v7371, %v7690
  %v7692 = vpop.f32.mrf.mxu0
  %v7693 = vadd.f32 %v7371, %v7692
  %7694 = vmatmul.bf16.gmra.mxu0 %v7342
  %v7695 = vpop.f32.mrf.mxu0
  %v7696 = vadd.f32 %v7371, %v7695
  %v7697 = vpop.f32.mrf.mxu0
  %v7698 = vadd.f32 %v7371, %v7697
  %7699 = vmatmul.bf16.gmra.mxu0 %v7343
  %v7700 = vpop.f32.mrf.mxu0
  %v7701 = vadd.f32 %v7371, %v7700
  %v7702 = vpop.f32.mrf.mxu0
  %v7703 = vadd.f32 %v7371, %v7702
  %7704 = vmatmul.bf16.gmra.mxu0 %v7344
  %v7705 = vpop.f32.mrf.mxu0
  %v7706 = vadd.f32 %v7371, %v7705
  %v7707 = vpop.f32.mrf.mxu0
  %v7708 = vadd.f32 %v7371, %v7707
  %7709 = vmatmul.bf16.gmra.mxu0 %v7345
  %v7710 = vpop.f32.mrf.mxu0
  %v7711 = vadd.f32 %v7371, %v7710
  %v7712 = vpop.f32.mrf.mxu0
  %v7713 = vadd.f32 %v7371, %v7712
  %7714 = vmatmul.bf16.gmra.mxu0 %v7346
  %v7715 = vpop.f32.mrf.mxu0
  %v7716 = vadd.f32 %v7371, %v7715
  %v7717 = vpop.f32.mrf.mxu0
  %v7718 = vadd.f32 %v7371, %v7717
  %7719 = vmatmul.bf16.gmra.mxu0 %v7347
  %v7720 = vpop.f32.mrf.mxu0
  %v7721 = vadd.f32 %v7371, %v7720
  %v7722 = vpop.f32.mrf.mxu0
  %v7723 = vadd.f32 %v7371, %v7722
  %7724 = vmatmul.bf16.gmra.mxu0 %v7348
  %v7725 = vpop.f32.mrf.mxu0
  %v7726 = vadd.f32 %v7371, %v7725
  %v7727 = vpop.f32.mrf.mxu0
  %v7728 = vadd.f32 %v7371, %v7727
  %7729 = vmatmul.bf16.gmra.mxu0 %v7349
  %v7730 = vpop.f32.mrf.mxu0
  %v7731 = vadd.f32 %v7371, %v7730
  %v7732 = vpop.f32.mrf.mxu0
  %v7733 = vadd.f32 %v7371, %v7732
  %7734 = vmatmul.bf16.gmra.mxu0 %v7350
  %v7735 = vpop.f32.mrf.mxu0
  %v7736 = vadd.f32 %v7371, %v7735
  %v7737 = vpop.f32.mrf.mxu0
  %v7738 = vadd.f32 %v7371, %v7737
  %7739 = vmatmul.bf16.gmra.mxu0 %v7351
  %v7740 = vpop.f32.mrf.mxu0
  %v7741 = vadd.f32 %v7371, %v7740
  %v7742 = vpop.f32.mrf.mxu0
  %v7743 = vadd.f32 %v7371, %v7742
  %7744 = vmatmul.bf16.gmra.mxu0 %v7352
  %v7745 = vpop.f32.mrf.mxu0
  %v7746 = vadd.f32 %v7371, %v7745
  %v7747 = vpop.f32.mrf.mxu0
  %v7748 = vadd.f32 %v7371, %v7747
  %7749 = vdwg.mxu0
  %v7750 = vpack.c.bf16 %v7433, %v7431
  %v7751 = vpack.c.bf16 %v7438, %v7436
  %v7752 = vpack.c.bf16 %v7443, %v7441
  %v7753 = vpack.c.bf16 %v7448, %v7446
  %v7754 = vpack.c.bf16 %v7453, %v7451
  %v7755 = vpack.c.bf16 %v7458, %v7456
  %v7756 = vpack.c.bf16 %v7463, %v7461
  %v7757 = vpack.c.bf16 %v7468, %v7466
  %v7758 = vpack.c.bf16 %v7473, %v7471
  %v7759 = vpack.c.bf16 %v7478, %v7476
  %v7760 = vpack.c.bf16 %v7483, %v7481
  %v7761 = vpack.c.bf16 %v7488, %v7486
  %v7762 = vpack.c.bf16 %v7493, %v7491
  %v7763 = vpack.c.bf16 %v7498, %v7496
  %v7764 = vpack.c.bf16 %v7503, %v7501
  %v7765 = vpack.c.bf16 %v7508, %v7506
  %v7766 = vpack.c.bf16 %v7513, %v7511
  %v7767 = vpack.c.bf16 %v7518, %v7516
  %v7768 = vpack.c.bf16 %v7523, %v7521
  %v7769 = vpack.c.bf16 %v7528, %v7526
  %v7770 = vpack.c.bf16 %v7533, %v7531
  %v7771 = vpack.c.bf16 %v7538, %v7536
  %v7772 = vpack.c.bf16 %v7543, %v7541
  %v7773 = vpack.c.bf16 %v7548, %v7546
  %v7774 = vpack.c.bf16 %v7553, %v7551
  %v7775 = vpack.c.bf16 %v7558, %v7556
  %v7776 = vpack.c.bf16 %v7563, %v7561
  %v7777 = vpack.c.bf16 %v7568, %v7566
  %v7778 = vpack.c.bf16 %v7573, %v7571
  %v7779 = vpack.c.bf16 %v7578, %v7576
  %v7780 = vpack.c.bf16 %v7583, %v7581
  %v7781 = vpack.c.bf16 %v7588, %v7586
  %v7782 = vpack.c.bf16 %v7593, %v7591
  %v7783 = vpack.c.bf16 %v7598, %v7596
  %v7784 = vpack.c.bf16 %v7603, %v7601
  %v7785 = vpack.c.bf16 %v7608, %v7606
  %v7786 = vpack.c.bf16 %v7613, %v7611
  %v7787 = vpack.c.bf16 %v7618, %v7616
  %v7788 = vpack.c.bf16 %v7623, %v7621
  %v7789 = vpack.c.bf16 %v7628, %v7626
  %v7790 = vpack.c.bf16 %v7633, %v7631
  %v7791 = vpack.c.bf16 %v7638, %v7636
  %v7792 = vpack.c.bf16 %v7643, %v7641
  %v7793 = vpack.c.bf16 %v7648, %v7646
  %v7794 = vpack.c.bf16 %v7653, %v7651
  %v7795 = vpack.c.bf16 %v7658, %v7656
  %v7796 = vpack.c.bf16 %v7663, %v7661
  %v7797 = vpack.c.bf16 %v7668, %v7666
  %v7798 = vpack.c.bf16 %v7673, %v7671
  %v7799 = vpack.c.bf16 %v7678, %v7676
  %v7800 = vpack.c.bf16 %v7683, %v7681
  %v7801 = vpack.c.bf16 %v7688, %v7686
  %v7802 = vpack.c.bf16 %v7693, %v7691
  %v7803 = vpack.c.bf16 %v7698, %v7696
  %v7804 = vpack.c.bf16 %v7703, %v7701
  %v7805 = vpack.c.bf16 %v7708, %v7706
  %v7806 = vpack.c.bf16 %v7713, %v7711
  %v7807 = vpack.c.bf16 %v7718, %v7716
  %v7808 = vpack.c.bf16 %v7723, %v7721
  %v7809 = vpack.c.bf16 %v7728, %v7726
  %v7810 = vpack.c.bf16 %v7733, %v7731
  %v7811 = vpack.c.bf16 %v7738, %v7736
  %v7812 = vpack.c.bf16 %v7743, %v7741
  %v7813 = vpack.c.bf16 %v7748, %v7746
  %7814 = vmatpush.bf16.msra.mxu0 %v7757
  %7815 = vmatpush.bf16.msra.mxu0 %v7756
  %7816 = vmatpush.bf16.msra.mxu0 %v7755
  %7817 = vmatpush.bf16.msra.mxu0 %v7754
  %7818 = vmatpush.bf16.msra.mxu0 %v7753
  %7819 = vmatpush.bf16.msra.mxu0 %v7752
  %7820 = vmatpush.bf16.msra.mxu0 %v7751
  %7821 = vmatpush.bf16.msra.mxu0 %v7750
  %7822 = vmatmul.bf16.gmra.mxu0 %v3121
  %v7823 = vpop.f32.mrf.mxu0
  %v7824 = vadd.f32 0.0, %v7823
  %v7825 = vpop.f32.mrf.mxu0
  %v7826 = vadd.f32 0.0, %v7825
  %7827 = vmatmul.bf16.gmra.mxu0 %v3129
  %v7828 = vpop.f32.mrf.mxu0
  %v7829 = vadd.f32 0.0, %v7828
  %v7830 = vpop.f32.mrf.mxu0
  %v7831 = vadd.f32 0.0, %v7830
  %7832 = vmatmul.bf16.gmra.mxu0 %v3137
  %v7833 = vpop.f32.mrf.mxu0
  %v7834 = vadd.f32 0.0, %v7833
  %v7835 = vpop.f32.mrf.mxu0
  %v7836 = vadd.f32 0.0, %v7835
  %7837 = vmatmul.bf16.gmra.mxu0 %v3145
  %v7838 = vpop.f32.mrf.mxu0
  %v7839 = vadd.f32 0.0, %v7838
  %v7840 = vpop.f32.mrf.mxu0
  %v7841 = vadd.f32 0.0, %v7840
  %7842 = vmatmul.bf16.gmra.mxu0 %v3153
  %v7843 = vpop.f32.mrf.mxu0
  %v7844 = vadd.f32 0.0, %v7843
  %v7845 = vpop.f32.mrf.mxu0
  %v7846 = vadd.f32 0.0, %v7845
  %7847 = vmatmul.bf16.gmra.mxu0 %v3161
  %v7848 = vpop.f32.mrf.mxu0
  %v7849 = vadd.f32 0.0, %v7848
  %v7850 = vpop.f32.mrf.mxu0
  %v7851 = vadd.f32 0.0, %v7850
  %7852 = vmatmul.bf16.gmra.mxu0 %v3169
  %v7853 = vpop.f32.mrf.mxu0
  %v7854 = vadd.f32 0.0, %v7853
  %v7855 = vpop.f32.mrf.mxu0
  %v7856 = vadd.f32 0.0, %v7855
  %7857 = vmatmul.bf16.gmra.mxu0 %v3177
  %v7858 = vpop.f32.mrf.mxu0
  %v7859 = vadd.f32 0.0, %v7858
  %v7860 = vpop.f32.mrf.mxu0
  %v7861 = vadd.f32 0.0, %v7860
  %7862 = vmatmul.bf16.gmra.mxu0 %v3185
  %v7863 = vpop.f32.mrf.mxu0
  %v7864 = vadd.f32 0.0, %v7863
  %v7865 = vpop.f32.mrf.mxu0
  %v7866 = vadd.f32 0.0, %v7865
  %7867 = vmatmul.bf16.gmra.mxu0 %v3193
  %v7868 = vpop.f32.mrf.mxu0
  %v7869 = vadd.f32 0.0, %v7868
  %v7870 = vpop.f32.mrf.mxu0
  %v7871 = vadd.f32 0.0, %v7870
  %7872 = vmatmul.bf16.gmra.mxu0 %v3201
  %v7873 = vpop.f32.mrf.mxu0
  %v7874 = vadd.f32 0.0, %v7873
  %v7875 = vpop.f32.mrf.mxu0
  %v7876 = vadd.f32 0.0, %v7875
  %7877 = vmatmul.bf16.gmra.mxu0 %v3209
  %v7878 = vpop.f32.mrf.mxu0
  %v7879 = vadd.f32 0.0, %v7878
  %v7880 = vpop.f32.mrf.mxu0
  %v7881 = vadd.f32 0.0, %v7880
  %7882 = vmatmul.bf16.gmra.mxu0 %v3217
  %v7883 = vpop.f32.mrf.mxu0
  %v7884 = vadd.f32 0.0, %v7883
  %v7885 = vpop.f32.mrf.mxu0
  %v7886 = vadd.f32 0.0, %v7885
  %7887 = vmatmul.bf16.gmra.mxu0 %v3225
  %v7888 = vpop.f32.mrf.mxu0
  %v7889 = vadd.f32 0.0, %v7888
  %v7890 = vpop.f32.mrf.mxu0
  %v7891 = vadd.f32 0.0, %v7890
  %7892 = vmatmul.bf16.gmra.mxu0 %v3233
  %v7893 = vpop.f32.mrf.mxu0
  %v7894 = vadd.f32 0.0, %v7893
  %v7895 = vpop.f32.mrf.mxu0
  %v7896 = vadd.f32 0.0, %v7895
  %7897 = vmatmul.bf16.gmra.mxu0 %v3241
  %v7898 = vpop.f32.mrf.mxu0
  %v7899 = vadd.f32 0.0, %v7898
  %v7900 = vpop.f32.mrf.mxu0
  %v7901 = vadd.f32 0.0, %v7900
  %7902 = vmatmul.bf16.gmra.mxu0 %v3249
  %v7903 = vpop.f32.mrf.mxu0
  %v7904 = vadd.f32 0.0, %v7903
  %v7905 = vpop.f32.mrf.mxu0
  %v7906 = vadd.f32 0.0, %v7905
  %7907 = vmatmul.bf16.gmra.mxu0 %v3257
  %v7908 = vpop.f32.mrf.mxu0
  %v7909 = vadd.f32 0.0, %v7908
  %v7910 = vpop.f32.mrf.mxu0
  %v7911 = vadd.f32 0.0, %v7910
  %7912 = vmatmul.bf16.gmra.mxu0 %v3265
  %v7913 = vpop.f32.mrf.mxu0
  %v7914 = vadd.f32 0.0, %v7913
  %v7915 = vpop.f32.mrf.mxu0
  %v7916 = vadd.f32 0.0, %v7915
  %7917 = vmatmul.bf16.gmra.mxu0 %v3273
  %v7918 = vpop.f32.mrf.mxu0
  %v7919 = vadd.f32 0.0, %v7918
  %v7920 = vpop.f32.mrf.mxu0
  %v7921 = vadd.f32 0.0, %v7920
  %7922 = vmatmul.bf16.gmra.mxu0 %v3281
  %v7923 = vpop.f32.mrf.mxu0
  %v7924 = vadd.f32 0.0, %v7923
  %v7925 = vpop.f32.mrf.mxu0
  %v7926 = vadd.f32 0.0, %v7925
  %7927 = vmatmul.bf16.gmra.mxu0 %v3289
  %v7928 = vpop.f32.mrf.mxu0
  %v7929 = vadd.f32 0.0, %v7928
  %v7930 = vpop.f32.mrf.mxu0
  %v7931 = vadd.f32 0.0, %v7930
  %7932 = vmatmul.bf16.gmra.mxu0 %v3297
  %v7933 = vpop.f32.mrf.mxu0
  %v7934 = vadd.f32 0.0, %v7933
  %v7935 = vpop.f32.mrf.mxu0
  %v7936 = vadd.f32 0.0, %v7935
  %7937 = vmatmul.bf16.gmra.mxu0 %v3305
  %v7938 = vpop.f32.mrf.mxu0
  %v7939 = vadd.f32 0.0, %v7938
  %v7940 = vpop.f32.mrf.mxu0
  %v7941 = vadd.f32 0.0, %v7940
  %7942 = vmatmul.bf16.gmra.mxu0 %v3313
  %v7943 = vpop.f32.mrf.mxu0
  %v7944 = vadd.f32 0.0, %v7943
  %v7945 = vpop.f32.mrf.mxu0
  %v7946 = vadd.f32 0.0, %v7945
  %7947 = vmatmul.bf16.gmra.mxu0 %v3321
  %v7948 = vpop.f32.mrf.mxu0
  %v7949 = vadd.f32 0.0, %v7948
  %v7950 = vpop.f32.mrf.mxu0
  %v7951 = vadd.f32 0.0, %v7950
  %7952 = vmatmul.bf16.gmra.mxu0 %v3329
  %v7953 = vpop.f32.mrf.mxu0
  %v7954 = vadd.f32 0.0, %v7953
  %v7955 = vpop.f32.mrf.mxu0
  %v7956 = vadd.f32 0.0, %v7955
  %7957 = vmatmul.bf16.gmra.mxu0 %v3337
  %v7958 = vpop.f32.mrf.mxu0
  %v7959 = vadd.f32 0.0, %v7958
  %v7960 = vpop.f32.mrf.mxu0
  %v7961 = vadd.f32 0.0, %v7960
  %7962 = vmatmul.bf16.gmra.mxu0 %v3345
  %v7963 = vpop.f32.mrf.mxu0
  %v7964 = vadd.f32 0.0, %v7963
  %v7965 = vpop.f32.mrf.mxu0
  %v7966 = vadd.f32 0.0, %v7965
  %7967 = vmatmul.bf16.gmra.mxu0 %v3353
  %v7968 = vpop.f32.mrf.mxu0
  %v7969 = vadd.f32 0.0, %v7968
  %v7970 = vpop.f32.mrf.mxu0
  %v7971 = vadd.f32 0.0, %v7970
  %7972 = vmatmul.bf16.gmra.mxu0 %v3361
  %v7973 = vpop.f32.mrf.mxu0
  %v7974 = vadd.f32 0.0, %v7973
  %v7975 = vpop.f32.mrf.mxu0
  %v7976 = vadd.f32 0.0, %v7975
  %7977 = vmatmul.bf16.gmra.mxu0 %v3369
  %v7978 = vpop.f32.mrf.mxu0
  %v7979 = vadd.f32 0.0, %v7978
  %v7980 = vpop.f32.mrf.mxu0
  %v7981 = vadd.f32 0.0, %v7980
  %7982 = vmatmul.bf16.gmra.mxu0 %v3377
  %v7983 = vpop.f32.mrf.mxu0
  %v7984 = vadd.f32 0.0, %v7983
  %v7985 = vpop.f32.mrf.mxu0
  %v7986 = vadd.f32 0.0, %v7985
  %7987 = vmatmul.bf16.gmra.mxu0 %v3385
  %v7988 = vpop.f32.mrf.mxu0
  %v7989 = vadd.f32 0.0, %v7988
  %v7990 = vpop.f32.mrf.mxu0
  %v7991 = vadd.f32 0.0, %v7990
  %7992 = vmatmul.bf16.gmra.mxu0 %v3393
  %v7993 = vpop.f32.mrf.mxu0
  %v7994 = vadd.f32 0.0, %v7993
  %v7995 = vpop.f32.mrf.mxu0
  %v7996 = vadd.f32 0.0, %v7995
  %7997 = vmatmul.bf16.gmra.mxu0 %v3401
  %v7998 = vpop.f32.mrf.mxu0
  %v7999 = vadd.f32 0.0, %v7998
  %v8000 = vpop.f32.mrf.mxu0
  %v8001 = vadd.f32 0.0, %v8000
  %8002 = vmatmul.bf16.gmra.mxu0 %v3409
  %v8003 = vpop.f32.mrf.mxu0
  %v8004 = vadd.f32 0.0, %v8003
  %v8005 = vpop.f32.mrf.mxu0
  %v8006 = vadd.f32 0.0, %v8005
  %8007 = vmatmul.bf16.gmra.mxu0 %v3417
  %v8008 = vpop.f32.mrf.mxu0
  %v8009 = vadd.f32 0.0, %v8008
  %v8010 = vpop.f32.mrf.mxu0
  %v8011 = vadd.f32 0.0, %v8010
  %8012 = vmatmul.bf16.gmra.mxu0 %v3425
  %v8013 = vpop.f32.mrf.mxu0
  %v8014 = vadd.f32 0.0, %v8013
  %v8015 = vpop.f32.mrf.mxu0
  %v8016 = vadd.f32 0.0, %v8015
  %8017 = vmatmul.bf16.gmra.mxu0 %v3433
  %v8018 = vpop.f32.mrf.mxu0
  %v8019 = vadd.f32 0.0, %v8018
  %v8020 = vpop.f32.mrf.mxu0
  %v8021 = vadd.f32 0.0, %v8020
  %8022 = vmatmul.bf16.gmra.mxu0 %v3441
  %v8023 = vpop.f32.mrf.mxu0
  %v8024 = vadd.f32 0.0, %v8023
  %v8025 = vpop.f32.mrf.mxu0
  %v8026 = vadd.f32 0.0, %v8025
  %8027 = vmatmul.bf16.gmra.mxu0 %v3449
  %v8028 = vpop.f32.mrf.mxu0
  %v8029 = vadd.f32 0.0, %v8028
  %v8030 = vpop.f32.mrf.mxu0
  %v8031 = vadd.f32 0.0, %v8030
  %8032 = vmatmul.bf16.gmra.mxu0 %v3457
  %v8033 = vpop.f32.mrf.mxu0
  %v8034 = vadd.f32 0.0, %v8033
  %v8035 = vpop.f32.mrf.mxu0
  %v8036 = vadd.f32 0.0, %v8035
  %8037 = vmatmul.bf16.gmra.mxu0 %v3465
  %v8038 = vpop.f32.mrf.mxu0
  %v8039 = vadd.f32 0.0, %v8038
  %v8040 = vpop.f32.mrf.mxu0
  %v8041 = vadd.f32 0.0, %v8040
  %8042 = vmatmul.bf16.gmra.mxu0 %v3473
  %v8043 = vpop.f32.mrf.mxu0
  %v8044 = vadd.f32 0.0, %v8043
  %v8045 = vpop.f32.mrf.mxu0
  %v8046 = vadd.f32 0.0, %v8045
  %8047 = vmatmul.bf16.gmra.mxu0 %v3481
  %v8048 = vpop.f32.mrf.mxu0
  %v8049 = vadd.f32 0.0, %v8048
  %v8050 = vpop.f32.mrf.mxu0
  %v8051 = vadd.f32 0.0, %v8050
  %8052 = vmatmul.bf16.gmra.mxu0 %v3489
  %v8053 = vpop.f32.mrf.mxu0
  %v8054 = vadd.f32 0.0, %v8053
  %v8055 = vpop.f32.mrf.mxu0
  %v8056 = vadd.f32 0.0, %v8055
  %8057 = vmatmul.bf16.gmra.mxu0 %v3497
  %v8058 = vpop.f32.mrf.mxu0
  %v8059 = vadd.f32 0.0, %v8058
  %v8060 = vpop.f32.mrf.mxu0
  %v8061 = vadd.f32 0.0, %v8060
  %8062 = vmatmul.bf16.gmra.mxu0 %v3505
  %v8063 = vpop.f32.mrf.mxu0
  %v8064 = vadd.f32 0.0, %v8063
  %v8065 = vpop.f32.mrf.mxu0
  %v8066 = vadd.f32 0.0, %v8065
  %8067 = vmatmul.bf16.gmra.mxu0 %v3513
  %v8068 = vpop.f32.mrf.mxu0
  %v8069 = vadd.f32 0.0, %v8068
  %v8070 = vpop.f32.mrf.mxu0
  %v8071 = vadd.f32 0.0, %v8070
  %8072 = vmatmul.bf16.gmra.mxu0 %v3521
  %v8073 = vpop.f32.mrf.mxu0
  %v8074 = vadd.f32 0.0, %v8073
  %v8075 = vpop.f32.mrf.mxu0
  %v8076 = vadd.f32 0.0, %v8075
  %8077 = vmatmul.bf16.gmra.mxu0 %v3529
  %v8078 = vpop.f32.mrf.mxu0
  %v8079 = vadd.f32 0.0, %v8078
  %v8080 = vpop.f32.mrf.mxu0
  %v8081 = vadd.f32 0.0, %v8080
  %8082 = vmatmul.bf16.gmra.mxu0 %v3537
  %v8083 = vpop.f32.mrf.mxu0
  %v8084 = vadd.f32 0.0, %v8083
  %v8085 = vpop.f32.mrf.mxu0
  %v8086 = vadd.f32 0.0, %v8085
  %8087 = vmatmul.bf16.gmra.mxu0 %v3545
  %v8088 = vpop.f32.mrf.mxu0
  %v8089 = vadd.f32 0.0, %v8088
  %v8090 = vpop.f32.mrf.mxu0
  %v8091 = vadd.f32 0.0, %v8090
  %8092 = vmatmul.bf16.gmra.mxu0 %v3553
  %v8093 = vpop.f32.mrf.mxu0
  %v8094 = vadd.f32 0.0, %v8093
  %v8095 = vpop.f32.mrf.mxu0
  %v8096 = vadd.f32 0.0, %v8095
  %8097 = vmatmul.bf16.gmra.mxu0 %v3561
  %v8098 = vpop.f32.mrf.mxu0
  %v8099 = vadd.f32 0.0, %v8098
  %v8100 = vpop.f32.mrf.mxu0
  %v8101 = vadd.f32 0.0, %v8100
  %8102 = vmatmul.bf16.gmra.mxu0 %v3569
  %v8103 = vpop.f32.mrf.mxu0
  %v8104 = vadd.f32 0.0, %v8103
  %v8105 = vpop.f32.mrf.mxu0
  %v8106 = vadd.f32 0.0, %v8105
  %8107 = vmatmul.bf16.gmra.mxu0 %v3577
  %v8108 = vpop.f32.mrf.mxu0
  %v8109 = vadd.f32 0.0, %v8108
  %v8110 = vpop.f32.mrf.mxu0
  %v8111 = vadd.f32 0.0, %v8110
  %8112 = vmatmul.bf16.gmra.mxu0 %v3585
  %v8113 = vpop.f32.mrf.mxu0
  %v8114 = vadd.f32 0.0, %v8113
  %v8115 = vpop.f32.mrf.mxu0
  %v8116 = vadd.f32 0.0, %v8115
  %8117 = vmatmul.bf16.gmra.mxu0 %v3593
  %v8118 = vpop.f32.mrf.mxu0
  %v8119 = vadd.f32 0.0, %v8118
  %v8120 = vpop.f32.mrf.mxu0
  %v8121 = vadd.f32 0.0, %v8120
  %8122 = vmatmul.bf16.gmra.mxu0 %v3601
  %v8123 = vpop.f32.mrf.mxu0
  %v8124 = vadd.f32 0.0, %v8123
  %v8125 = vpop.f32.mrf.mxu0
  %v8126 = vadd.f32 0.0, %v8125
  %8127 = vmatmul.bf16.gmra.mxu0 %v3609
  %v8128 = vpop.f32.mrf.mxu0
  %v8129 = vadd.f32 0.0, %v8128
  %v8130 = vpop.f32.mrf.mxu0
  %v8131 = vadd.f32 0.0, %v8130
  %8132 = vmatmul.bf16.gmra.mxu0 %v3617
  %v8133 = vpop.f32.mrf.mxu0
  %v8134 = vadd.f32 0.0, %v8133
  %v8135 = vpop.f32.mrf.mxu0
  %v8136 = vadd.f32 0.0, %v8135
  %8137 = vmatmul.bf16.gmra.mxu0 %v3625
  %v8138 = vpop.f32.mrf.mxu0
  %v8139 = vadd.f32 0.0, %v8138
  %v8140 = vpop.f32.mrf.mxu0
  %v8141 = vadd.f32 0.0, %v8140
  %8142 = vdwg.mxu0
  %8143 = vmatpush.bf16.msra.mxu0 %v7765
  %8144 = vmatpush.bf16.msra.mxu0 %v7764
  %8145 = vmatpush.bf16.msra.mxu0 %v7763
  %8146 = vmatpush.bf16.msra.mxu0 %v7762
  %8147 = vmatpush.bf16.msra.mxu0 %v7761
  %8148 = vmatpush.bf16.msra.mxu0 %v7760
  %8149 = vmatpush.bf16.msra.mxu0 %v7759
  %8150 = vmatpush.bf16.msra.mxu0 %v7758
  %8151 = vmatmul.bf16.gmra.mxu0 %v3122
  %v8152 = vpop.f32.mrf.mxu0
  %v8153 = vadd.f32 %v7824, %v8152
  %v8154 = vpop.f32.mrf.mxu0
  %v8155 = vadd.f32 %v7826, %v8154
  %8156 = vmatmul.bf16.gmra.mxu0 %v3130
  %v8157 = vpop.f32.mrf.mxu0
  %v8158 = vadd.f32 %v7829, %v8157
  %v8159 = vpop.f32.mrf.mxu0
  %v8160 = vadd.f32 %v7831, %v8159
  %8161 = vmatmul.bf16.gmra.mxu0 %v3138
  %v8162 = vpop.f32.mrf.mxu0
  %v8163 = vadd.f32 %v7834, %v8162
  %v8164 = vpop.f32.mrf.mxu0
  %v8165 = vadd.f32 %v7836, %v8164
  %8166 = vmatmul.bf16.gmra.mxu0 %v3146
  %v8167 = vpop.f32.mrf.mxu0
  %v8168 = vadd.f32 %v7839, %v8167
  %v8169 = vpop.f32.mrf.mxu0
  %v8170 = vadd.f32 %v7841, %v8169
  %8171 = vmatmul.bf16.gmra.mxu0 %v3154
  %v8172 = vpop.f32.mrf.mxu0
  %v8173 = vadd.f32 %v7844, %v8172
  %v8174 = vpop.f32.mrf.mxu0
  %v8175 = vadd.f32 %v7846, %v8174
  %8176 = vmatmul.bf16.gmra.mxu0 %v3162
  %v8177 = vpop.f32.mrf.mxu0
  %v8178 = vadd.f32 %v7849, %v8177
  %v8179 = vpop.f32.mrf.mxu0
  %v8180 = vadd.f32 %v7851, %v8179
  %8181 = vmatmul.bf16.gmra.mxu0 %v3170
  %v8182 = vpop.f32.mrf.mxu0
  %v8183 = vadd.f32 %v7854, %v8182
  %v8184 = vpop.f32.mrf.mxu0
  %v8185 = vadd.f32 %v7856, %v8184
  %8186 = vmatmul.bf16.gmra.mxu0 %v3178
  %v8187 = vpop.f32.mrf.mxu0
  %v8188 = vadd.f32 %v7859, %v8187
  %v8189 = vpop.f32.mrf.mxu0
  %v8190 = vadd.f32 %v7861, %v8189
  %8191 = vmatmul.bf16.gmra.mxu0 %v3186
  %v8192 = vpop.f32.mrf.mxu0
  %v8193 = vadd.f32 %v7864, %v8192
  %v8194 = vpop.f32.mrf.mxu0
  %v8195 = vadd.f32 %v7866, %v8194
  %8196 = vmatmul.bf16.gmra.mxu0 %v3194
  %v8197 = vpop.f32.mrf.mxu0
  %v8198 = vadd.f32 %v7869, %v8197
  %v8199 = vpop.f32.mrf.mxu0
  %v8200 = vadd.f32 %v7871, %v8199
  %8201 = vmatmul.bf16.gmra.mxu0 %v3202
  %v8202 = vpop.f32.mrf.mxu0
  %v8203 = vadd.f32 %v7874, %v8202
  %v8204 = vpop.f32.mrf.mxu0
  %v8205 = vadd.f32 %v7876, %v8204
  %8206 = vmatmul.bf16.gmra.mxu0 %v3210
  %v8207 = vpop.f32.mrf.mxu0
  %v8208 = vadd.f32 %v7879, %v8207
  %v8209 = vpop.f32.mrf.mxu0
  %v8210 = vadd.f32 %v7881, %v8209
  %8211 = vmatmul.bf16.gmra.mxu0 %v3218
  %v8212 = vpop.f32.mrf.mxu0
  %v8213 = vadd.f32 %v7884, %v8212
  %v8214 = vpop.f32.mrf.mxu0
  %v8215 = vadd.f32 %v7886, %v8214
  %8216 = vmatmul.bf16.gmra.mxu0 %v3226
  %v8217 = vpop.f32.mrf.mxu0
  %v8218 = vadd.f32 %v7889, %v8217
  %v8219 = vpop.f32.mrf.mxu0
  %v8220 = vadd.f32 %v7891, %v8219
  %8221 = vmatmul.bf16.gmra.mxu0 %v3234
  %v8222 = vpop.f32.mrf.mxu0
  %v8223 = vadd.f32 %v7894, %v8222
  %v8224 = vpop.f32.mrf.mxu0
  %v8225 = vadd.f32 %v7896, %v8224
  %8226 = vmatmul.bf16.gmra.mxu0 %v3242
  %v8227 = vpop.f32.mrf.mxu0
  %v8228 = vadd.f32 %v7899, %v8227
  %v8229 = vpop.f32.mrf.mxu0
  %v8230 = vadd.f32 %v7901, %v8229
  %8231 = vmatmul.bf16.gmra.mxu0 %v3250
  %v8232 = vpop.f32.mrf.mxu0
  %v8233 = vadd.f32 %v7904, %v8232
  %v8234 = vpop.f32.mrf.mxu0
  %v8235 = vadd.f32 %v7906, %v8234
  %8236 = vmatmul.bf16.gmra.mxu0 %v3258
  %v8237 = vpop.f32.mrf.mxu0
  %v8238 = vadd.f32 %v7909, %v8237
  %v8239 = vpop.f32.mrf.mxu0
  %v8240 = vadd.f32 %v7911, %v8239
  %8241 = vmatmul.bf16.gmra.mxu0 %v3266
  %v8242 = vpop.f32.mrf.mxu0
  %v8243 = vadd.f32 %v7914, %v8242
  %v8244 = vpop.f32.mrf.mxu0
  %v8245 = vadd.f32 %v7916, %v8244
  %8246 = vmatmul.bf16.gmra.mxu0 %v3274
  %v8247 = vpop.f32.mrf.mxu0
  %v8248 = vadd.f32 %v7919, %v8247
  %v8249 = vpop.f32.mrf.mxu0
  %v8250 = vadd.f32 %v7921, %v8249
  %8251 = vmatmul.bf16.gmra.mxu0 %v3282
  %v8252 = vpop.f32.mrf.mxu0
  %v8253 = vadd.f32 %v7924, %v8252
  %v8254 = vpop.f32.mrf.mxu0
  %v8255 = vadd.f32 %v7926, %v8254
  %8256 = vmatmul.bf16.gmra.mxu0 %v3290
  %v8257 = vpop.f32.mrf.mxu0
  %v8258 = vadd.f32 %v7929, %v8257
  %v8259 = vpop.f32.mrf.mxu0
  %v8260 = vadd.f32 %v7931, %v8259
  %8261 = vmatmul.bf16.gmra.mxu0 %v3298
  %v8262 = vpop.f32.mrf.mxu0
  %v8263 = vadd.f32 %v7934, %v8262
  %v8264 = vpop.f32.mrf.mxu0
  %v8265 = vadd.f32 %v7936, %v8264
  %8266 = vmatmul.bf16.gmra.mxu0 %v3306
  %v8267 = vpop.f32.mrf.mxu0
  %v8268 = vadd.f32 %v7939, %v8267
  %v8269 = vpop.f32.mrf.mxu0
  %v8270 = vadd.f32 %v7941, %v8269
  %8271 = vmatmul.bf16.gmra.mxu0 %v3314
  %v8272 = vpop.f32.mrf.mxu0
  %v8273 = vadd.f32 %v7944, %v8272
  %v8274 = vpop.f32.mrf.mxu0
  %v8275 = vadd.f32 %v7946, %v8274
  %8276 = vmatmul.bf16.gmra.mxu0 %v3322
  %v8277 = vpop.f32.mrf.mxu0
  %v8278 = vadd.f32 %v7949, %v8277
  %v8279 = vpop.f32.mrf.mxu0
  %v8280 = vadd.f32 %v7951, %v8279
  %8281 = vmatmul.bf16.gmra.mxu0 %v3330
  %v8282 = vpop.f32.mrf.mxu0
  %v8283 = vadd.f32 %v7954, %v8282
  %v8284 = vpop.f32.mrf.mxu0
  %v8285 = vadd.f32 %v7956, %v8284
  %8286 = vmatmul.bf16.gmra.mxu0 %v3338
  %v8287 = vpop.f32.mrf.mxu0
  %v8288 = vadd.f32 %v7959, %v8287
  %v8289 = vpop.f32.mrf.mxu0
  %v8290 = vadd.f32 %v7961, %v8289
  %8291 = vmatmul.bf16.gmra.mxu0 %v3346
  %v8292 = vpop.f32.mrf.mxu0
  %v8293 = vadd.f32 %v7964, %v8292
  %v8294 = vpop.f32.mrf.mxu0
  %v8295 = vadd.f32 %v7966, %v8294
  %8296 = vmatmul.bf16.gmra.mxu0 %v3354
  %v8297 = vpop.f32.mrf.mxu0
  %v8298 = vadd.f32 %v7969, %v8297
  %v8299 = vpop.f32.mrf.mxu0
  %v8300 = vadd.f32 %v7971, %v8299
  %8301 = vmatmul.bf16.gmra.mxu0 %v3362
  %v8302 = vpop.f32.mrf.mxu0
  %v8303 = vadd.f32 %v7974, %v8302
  %v8304 = vpop.f32.mrf.mxu0
  %v8305 = vadd.f32 %v7976, %v8304
  %8306 = vmatmul.bf16.gmra.mxu0 %v3370
  %v8307 = vpop.f32.mrf.mxu0
  %v8308 = vadd.f32 %v7979, %v8307
  %v8309 = vpop.f32.mrf.mxu0
  %v8310 = vadd.f32 %v7981, %v8309
  %8311 = vmatmul.bf16.gmra.mxu0 %v3378
  %v8312 = vpop.f32.mrf.mxu0
  %v8313 = vadd.f32 %v7984, %v8312
  %v8314 = vpop.f32.mrf.mxu0
  %v8315 = vadd.f32 %v7986, %v8314
  %8316 = vmatmul.bf16.gmra.mxu0 %v3386
  %v8317 = vpop.f32.mrf.mxu0
  %v8318 = vadd.f32 %v7989, %v8317
  %v8319 = vpop.f32.mrf.mxu0
  %v8320 = vadd.f32 %v7991, %v8319
  %8321 = vmatmul.bf16.gmra.mxu0 %v3394
  %v8322 = vpop.f32.mrf.mxu0
  %v8323 = vadd.f32 %v7994, %v8322
  %v8324 = vpop.f32.mrf.mxu0
  %v8325 = vadd.f32 %v7996, %v8324
  %8326 = vmatmul.bf16.gmra.mxu0 %v3402
  %v8327 = vpop.f32.mrf.mxu0
  %v8328 = vadd.f32 %v7999, %v8327
  %v8329 = vpop.f32.mrf.mxu0
  %v8330 = vadd.f32 %v8001, %v8329
  %8331 = vmatmul.bf16.gmra.mxu0 %v3410
  %v8332 = vpop.f32.mrf.mxu0
  %v8333 = vadd.f32 %v8004, %v8332
  %v8334 = vpop.f32.mrf.mxu0
  %v8335 = vadd.f32 %v8006, %v8334
  %8336 = vmatmul.bf16.gmra.mxu0 %v3418
  %v8337 = vpop.f32.mrf.mxu0
  %v8338 = vadd.f32 %v8009, %v8337
  %v8339 = vpop.f32.mrf.mxu0
  %v8340 = vadd.f32 %v8011, %v8339
  %8341 = vmatmul.bf16.gmra.mxu0 %v3426
  %v8342 = vpop.f32.mrf.mxu0
  %v8343 = vadd.f32 %v8014, %v8342
  %v8344 = vpop.f32.mrf.mxu0
  %v8345 = vadd.f32 %v8016, %v8344
  %8346 = vmatmul.bf16.gmra.mxu0 %v3434
  %v8347 = vpop.f32.mrf.mxu0
  %v8348 = vadd.f32 %v8019, %v8347
  %v8349 = vpop.f32.mrf.mxu0
  %v8350 = vadd.f32 %v8021, %v8349
  %8351 = vmatmul.bf16.gmra.mxu0 %v3442
  %v8352 = vpop.f32.mrf.mxu0
  %v8353 = vadd.f32 %v8024, %v8352
  %v8354 = vpop.f32.mrf.mxu0
  %v8355 = vadd.f32 %v8026, %v8354
  %8356 = vmatmul.bf16.gmra.mxu0 %v3450
  %v8357 = vpop.f32.mrf.mxu0
  %v8358 = vadd.f32 %v8029, %v8357
  %v8359 = vpop.f32.mrf.mxu0
  %v8360 = vadd.f32 %v8031, %v8359
  %8361 = vmatmul.bf16.gmra.mxu0 %v3458
  %v8362 = vpop.f32.mrf.mxu0
  %v8363 = vadd.f32 %v8034, %v8362
  %v8364 = vpop.f32.mrf.mxu0
  %v8365 = vadd.f32 %v8036, %v8364
  %8366 = vmatmul.bf16.gmra.mxu0 %v3466
  %v8367 = vpop.f32.mrf.mxu0
  %v8368 = vadd.f32 %v8039, %v8367
  %v8369 = vpop.f32.mrf.mxu0
  %v8370 = vadd.f32 %v8041, %v8369
  %8371 = vmatmul.bf16.gmra.mxu0 %v3474
  %v8372 = vpop.f32.mrf.mxu0
  %v8373 = vadd.f32 %v8044, %v8372
  %v8374 = vpop.f32.mrf.mxu0
  %v8375 = vadd.f32 %v8046, %v8374
  %8376 = vmatmul.bf16.gmra.mxu0 %v3482
  %v8377 = vpop.f32.mrf.mxu0
  %v8378 = vadd.f32 %v8049, %v8377
  %v8379 = vpop.f32.mrf.mxu0
  %v8380 = vadd.f32 %v8051, %v8379
  %8381 = vmatmul.bf16.gmra.mxu0 %v3490
  %v8382 = vpop.f32.mrf.mxu0
  %v8383 = vadd.f32 %v8054, %v8382
  %v8384 = vpop.f32.mrf.mxu0
  %v8385 = vadd.f32 %v8056, %v8384
  %8386 = vmatmul.bf16.gmra.mxu0 %v3498
  %v8387 = vpop.f32.mrf.mxu0
  %v8388 = vadd.f32 %v8059, %v8387
  %v8389 = vpop.f32.mrf.mxu0
  %v8390 = vadd.f32 %v8061, %v8389
  %8391 = vmatmul.bf16.gmra.mxu0 %v3506
  %v8392 = vpop.f32.mrf.mxu0
  %v8393 = vadd.f32 %v8064, %v8392
  %v8394 = vpop.f32.mrf.mxu0
  %v8395 = vadd.f32 %v8066, %v8394
  %8396 = vmatmul.bf16.gmra.mxu0 %v3514
  %v8397 = vpop.f32.mrf.mxu0
  %v8398 = vadd.f32 %v8069, %v8397
  %v8399 = vpop.f32.mrf.mxu0
  %v8400 = vadd.f32 %v8071, %v8399
  %8401 = vmatmul.bf16.gmra.mxu0 %v3522
  %v8402 = vpop.f32.mrf.mxu0
  %v8403 = vadd.f32 %v8074, %v8402
  %v8404 = vpop.f32.mrf.mxu0
  %v8405 = vadd.f32 %v8076, %v8404
  %8406 = vmatmul.bf16.gmra.mxu0 %v3530
  %v8407 = vpop.f32.mrf.mxu0
  %v8408 = vadd.f32 %v8079, %v8407
  %v8409 = vpop.f32.mrf.mxu0
  %v8410 = vadd.f32 %v8081, %v8409
  %8411 = vmatmul.bf16.gmra.mxu0 %v3538
  %v8412 = vpop.f32.mrf.mxu0
  %v8413 = vadd.f32 %v8084, %v8412
  %v8414 = vpop.f32.mrf.mxu0
  %v8415 = vadd.f32 %v8086, %v8414
  %8416 = vmatmul.bf16.gmra.mxu0 %v3546
  %v8417 = vpop.f32.mrf.mxu0
  %v8418 = vadd.f32 %v8089, %v8417
  %v8419 = vpop.f32.mrf.mxu0
  %v8420 = vadd.f32 %v8091, %v8419
  %8421 = vmatmul.bf16.gmra.mxu0 %v3554
  %v8422 = vpop.f32.mrf.mxu0
  %v8423 = vadd.f32 %v8094, %v8422
  %v8424 = vpop.f32.mrf.mxu0
  %v8425 = vadd.f32 %v8096, %v8424
  %8426 = vmatmul.bf16.gmra.mxu0 %v3562
  %v8427 = vpop.f32.mrf.mxu0
  %v8428 = vadd.f32 %v8099, %v8427
  %v8429 = vpop.f32.mrf.mxu0
  %v8430 = vadd.f32 %v8101, %v8429
  %8431 = vmatmul.bf16.gmra.mxu0 %v3570
  %v8432 = vpop.f32.mrf.mxu0
  %v8433 = vadd.f32 %v8104, %v8432
  %v8434 = vpop.f32.mrf.mxu0
  %v8435 = vadd.f32 %v8106, %v8434
  %8436 = vmatmul.bf16.gmra.mxu0 %v3578
  %v8437 = vpop.f32.mrf.mxu0
  %v8438 = vadd.f32 %v8109, %v8437
  %v8439 = vpop.f32.mrf.mxu0
  %v8440 = vadd.f32 %v8111, %v8439
  %8441 = vmatmul.bf16.gmra.mxu0 %v3586
  %v8442 = vpop.f32.mrf.mxu0
  %v8443 = vadd.f32 %v8114, %v8442
  %v8444 = vpop.f32.mrf.mxu0
  %v8445 = vadd.f32 %v8116, %v8444
  %8446 = vmatmul.bf16.gmra.mxu0 %v3594
  %v8447 = vpop.f32.mrf.mxu0
  %v8448 = vadd.f32 %v8119, %v8447
  %v8449 = vpop.f32.mrf.mxu0
  %v8450 = vadd.f32 %v8121, %v8449
  %8451 = vmatmul.bf16.gmra.mxu0 %v3602
  %v8452 = vpop.f32.mrf.mxu0
  %v8453 = vadd.f32 %v8124, %v8452
  %v8454 = vpop.f32.mrf.mxu0
  %v8455 = vadd.f32 %v8126, %v8454
  %8456 = vmatmul.bf16.gmra.mxu0 %v3610
  %v8457 = vpop.f32.mrf.mxu0
  %v8458 = vadd.f32 %v8129, %v8457
  %v8459 = vpop.f32.mrf.mxu0
  %v8460 = vadd.f32 %v8131, %v8459
  %8461 = vmatmul.bf16.gmra.mxu0 %v3618
  %v8462 = vpop.f32.mrf.mxu0
  %v8463 = vadd.f32 %v8134, %v8462
  %v8464 = vpop.f32.mrf.mxu0
  %v8465 = vadd.f32 %v8136, %v8464
  %8466 = vmatmul.bf16.gmra.mxu0 %v3626
  %v8467 = vpop.f32.mrf.mxu0
  %v8468 = vadd.f32 %v8139, %v8467
  %v8469 = vpop.f32.mrf.mxu0
  %v8470 = vadd.f32 %v8141, %v8469
  %8471 = vdwg.mxu0
  %8472 = vmatpush.bf16.msra.mxu0 %v7773
  %8473 = vmatpush.bf16.msra.mxu0 %v7772
  %8474 = vmatpush.bf16.msra.mxu0 %v7771
  %8475 = vmatpush.bf16.msra.mxu0 %v7770
  %8476 = vmatpush.bf16.msra.mxu0 %v7769
  %8477 = vmatpush.bf16.msra.mxu0 %v7768
  %8478 = vmatpush.bf16.msra.mxu0 %v7767
  %8479 = vmatpush.bf16.msra.mxu0 %v7766
  %8480 = vmatmul.bf16.gmra.mxu0 %v3123
  %v8481 = vpop.f32.mrf.mxu0
  %v8482 = vadd.f32 %v8153, %v8481
  %v8483 = vpop.f32.mrf.mxu0
  %v8484 = vadd.f32 %v8155, %v8483
  %8485 = vmatmul.bf16.gmra.mxu0 %v3131
  %v8486 = vpop.f32.mrf.mxu0
  %v8487 = vadd.f32 %v8158, %v8486
  %v8488 = vpop.f32.mrf.mxu0
  %v8489 = vadd.f32 %v8160, %v8488
  %8490 = vmatmul.bf16.gmra.mxu0 %v3139
  %v8491 = vpop.f32.mrf.mxu0
  %v8492 = vadd.f32 %v8163, %v8491
  %v8493 = vpop.f32.mrf.mxu0
  %v8494 = vadd.f32 %v8165, %v8493
  %8495 = vmatmul.bf16.gmra.mxu0 %v3147
  %v8496 = vpop.f32.mrf.mxu0
  %v8497 = vadd.f32 %v8168, %v8496
  %v8498 = vpop.f32.mrf.mxu0
  %v8499 = vadd.f32 %v8170, %v8498
  %8500 = vmatmul.bf16.gmra.mxu0 %v3155
  %v8501 = vpop.f32.mrf.mxu0
  %v8502 = vadd.f32 %v8173, %v8501
  %v8503 = vpop.f32.mrf.mxu0
  %v8504 = vadd.f32 %v8175, %v8503
  %8505 = vmatmul.bf16.gmra.mxu0 %v3163
  %v8506 = vpop.f32.mrf.mxu0
  %v8507 = vadd.f32 %v8178, %v8506
  %v8508 = vpop.f32.mrf.mxu0
  %v8509 = vadd.f32 %v8180, %v8508
  %8510 = vmatmul.bf16.gmra.mxu0 %v3171
  %v8511 = vpop.f32.mrf.mxu0
  %v8512 = vadd.f32 %v8183, %v8511
  %v8513 = vpop.f32.mrf.mxu0
  %v8514 = vadd.f32 %v8185, %v8513
  %8515 = vmatmul.bf16.gmra.mxu0 %v3179
  %v8516 = vpop.f32.mrf.mxu0
  %v8517 = vadd.f32 %v8188, %v8516
  %v8518 = vpop.f32.mrf.mxu0
  %v8519 = vadd.f32 %v8190, %v8518
  %8520 = vmatmul.bf16.gmra.mxu0 %v3187
  %v8521 = vpop.f32.mrf.mxu0
  %v8522 = vadd.f32 %v8193, %v8521
  %v8523 = vpop.f32.mrf.mxu0
  %v8524 = vadd.f32 %v8195, %v8523
  %8525 = vmatmul.bf16.gmra.mxu0 %v3195
  %v8526 = vpop.f32.mrf.mxu0
  %v8527 = vadd.f32 %v8198, %v8526
  %v8528 = vpop.f32.mrf.mxu0
  %v8529 = vadd.f32 %v8200, %v8528
  %8530 = vmatmul.bf16.gmra.mxu0 %v3203
  %v8531 = vpop.f32.mrf.mxu0
  %v8532 = vadd.f32 %v8203, %v8531
  %v8533 = vpop.f32.mrf.mxu0
  %v8534 = vadd.f32 %v8205, %v8533
  %8535 = vmatmul.bf16.gmra.mxu0 %v3211
  %v8536 = vpop.f32.mrf.mxu0
  %v8537 = vadd.f32 %v8208, %v8536
  %v8538 = vpop.f32.mrf.mxu0
  %v8539 = vadd.f32 %v8210, %v8538
  %8540 = vmatmul.bf16.gmra.mxu0 %v3219
  %v8541 = vpop.f32.mrf.mxu0
  %v8542 = vadd.f32 %v8213, %v8541
  %v8543 = vpop.f32.mrf.mxu0
  %v8544 = vadd.f32 %v8215, %v8543
  %8545 = vmatmul.bf16.gmra.mxu0 %v3227
  %v8546 = vpop.f32.mrf.mxu0
  %v8547 = vadd.f32 %v8218, %v8546
  %v8548 = vpop.f32.mrf.mxu0
  %v8549 = vadd.f32 %v8220, %v8548
  %8550 = vmatmul.bf16.gmra.mxu0 %v3235
  %v8551 = vpop.f32.mrf.mxu0
  %v8552 = vadd.f32 %v8223, %v8551
  %v8553 = vpop.f32.mrf.mxu0
  %v8554 = vadd.f32 %v8225, %v8553
  %8555 = vmatmul.bf16.gmra.mxu0 %v3243
  %v8556 = vpop.f32.mrf.mxu0
  %v8557 = vadd.f32 %v8228, %v8556
  %v8558 = vpop.f32.mrf.mxu0
  %v8559 = vadd.f32 %v8230, %v8558
  %8560 = vmatmul.bf16.gmra.mxu0 %v3251
  %v8561 = vpop.f32.mrf.mxu0
  %v8562 = vadd.f32 %v8233, %v8561
  %v8563 = vpop.f32.mrf.mxu0
  %v8564 = vadd.f32 %v8235, %v8563
  %8565 = vmatmul.bf16.gmra.mxu0 %v3259
  %v8566 = vpop.f32.mrf.mxu0
  %v8567 = vadd.f32 %v8238, %v8566
  %v8568 = vpop.f32.mrf.mxu0
  %v8569 = vadd.f32 %v8240, %v8568
  %8570 = vmatmul.bf16.gmra.mxu0 %v3267
  %v8571 = vpop.f32.mrf.mxu0
  %v8572 = vadd.f32 %v8243, %v8571
  %v8573 = vpop.f32.mrf.mxu0
  %v8574 = vadd.f32 %v8245, %v8573
  %8575 = vmatmul.bf16.gmra.mxu0 %v3275
  %v8576 = vpop.f32.mrf.mxu0
  %v8577 = vadd.f32 %v8248, %v8576
  %v8578 = vpop.f32.mrf.mxu0
  %v8579 = vadd.f32 %v8250, %v8578
  %8580 = vmatmul.bf16.gmra.mxu0 %v3283
  %v8581 = vpop.f32.mrf.mxu0
  %v8582 = vadd.f32 %v8253, %v8581
  %v8583 = vpop.f32.mrf.mxu0
  %v8584 = vadd.f32 %v8255, %v8583
  %8585 = vmatmul.bf16.gmra.mxu0 %v3291
  %v8586 = vpop.f32.mrf.mxu0
  %v8587 = vadd.f32 %v8258, %v8586
  %v8588 = vpop.f32.mrf.mxu0
  %v8589 = vadd.f32 %v8260, %v8588
  %8590 = vmatmul.bf16.gmra.mxu0 %v3299
  %v8591 = vpop.f32.mrf.mxu0
  %v8592 = vadd.f32 %v8263, %v8591
  %v8593 = vpop.f32.mrf.mxu0
  %v8594 = vadd.f32 %v8265, %v8593
  %8595 = vmatmul.bf16.gmra.mxu0 %v3307
  %v8596 = vpop.f32.mrf.mxu0
  %v8597 = vadd.f32 %v8268, %v8596
  %v8598 = vpop.f32.mrf.mxu0
  %v8599 = vadd.f32 %v8270, %v8598
  %8600 = vmatmul.bf16.gmra.mxu0 %v3315
  %v8601 = vpop.f32.mrf.mxu0
  %v8602 = vadd.f32 %v8273, %v8601
  %v8603 = vpop.f32.mrf.mxu0
  %v8604 = vadd.f32 %v8275, %v8603
  %8605 = vmatmul.bf16.gmra.mxu0 %v3323
  %v8606 = vpop.f32.mrf.mxu0
  %v8607 = vadd.f32 %v8278, %v8606
  %v8608 = vpop.f32.mrf.mxu0
  %v8609 = vadd.f32 %v8280, %v8608
  %8610 = vmatmul.bf16.gmra.mxu0 %v3331
  %v8611 = vpop.f32.mrf.mxu0
  %v8612 = vadd.f32 %v8283, %v8611
  %v8613 = vpop.f32.mrf.mxu0
  %v8614 = vadd.f32 %v8285, %v8613
  %8615 = vmatmul.bf16.gmra.mxu0 %v3339
  %v8616 = vpop.f32.mrf.mxu0
  %v8617 = vadd.f32 %v8288, %v8616
  %v8618 = vpop.f32.mrf.mxu0
  %v8619 = vadd.f32 %v8290, %v8618
  %8620 = vmatmul.bf16.gmra.mxu0 %v3347
  %v8621 = vpop.f32.mrf.mxu0
  %v8622 = vadd.f32 %v8293, %v8621
  %v8623 = vpop.f32.mrf.mxu0
  %v8624 = vadd.f32 %v8295, %v8623
  %8625 = vmatmul.bf16.gmra.mxu0 %v3355
  %v8626 = vpop.f32.mrf.mxu0
  %v8627 = vadd.f32 %v8298, %v8626
  %v8628 = vpop.f32.mrf.mxu0
  %v8629 = vadd.f32 %v8300, %v8628
  %8630 = vmatmul.bf16.gmra.mxu0 %v3363
  %v8631 = vpop.f32.mrf.mxu0
  %v8632 = vadd.f32 %v8303, %v8631
  %v8633 = vpop.f32.mrf.mxu0
  %v8634 = vadd.f32 %v8305, %v8633
  %8635 = vmatmul.bf16.gmra.mxu0 %v3371
  %v8636 = vpop.f32.mrf.mxu0
  %v8637 = vadd.f32 %v8308, %v8636
  %v8638 = vpop.f32.mrf.mxu0
  %v8639 = vadd.f32 %v8310, %v8638
  %8640 = vmatmul.bf16.gmra.mxu0 %v3379
  %v8641 = vpop.f32.mrf.mxu0
  %v8642 = vadd.f32 %v8313, %v8641
  %v8643 = vpop.f32.mrf.mxu0
  %v8644 = vadd.f32 %v8315, %v8643
  %8645 = vmatmul.bf16.gmra.mxu0 %v3387
  %v8646 = vpop.f32.mrf.mxu0
  %v8647 = vadd.f32 %v8318, %v8646
  %v8648 = vpop.f32.mrf.mxu0
  %v8649 = vadd.f32 %v8320, %v8648
  %8650 = vmatmul.bf16.gmra.mxu0 %v3395
  %v8651 = vpop.f32.mrf.mxu0
  %v8652 = vadd.f32 %v8323, %v8651
  %v8653 = vpop.f32.mrf.mxu0
  %v8654 = vadd.f32 %v8325, %v8653
  %8655 = vmatmul.bf16.gmra.mxu0 %v3403
  %v8656 = vpop.f32.mrf.mxu0
  %v8657 = vadd.f32 %v8328, %v8656
  %v8658 = vpop.f32.mrf.mxu0
  %v8659 = vadd.f32 %v8330, %v8658
  %8660 = vmatmul.bf16.gmra.mxu0 %v3411
  %v8661 = vpop.f32.mrf.mxu0
  %v8662 = vadd.f32 %v8333, %v8661
  %v8663 = vpop.f32.mrf.mxu0
  %v8664 = vadd.f32 %v8335, %v8663
  %8665 = vmatmul.bf16.gmra.mxu0 %v3419
  %v8666 = vpop.f32.mrf.mxu0
  %v8667 = vadd.f32 %v8338, %v8666
  %v8668 = vpop.f32.mrf.mxu0
  %v8669 = vadd.f32 %v8340, %v8668
  %8670 = vmatmul.bf16.gmra.mxu0 %v3427
  %v8671 = vpop.f32.mrf.mxu0
  %v8672 = vadd.f32 %v8343, %v8671
  %v8673 = vpop.f32.mrf.mxu0
  %v8674 = vadd.f32 %v8345, %v8673
  %8675 = vmatmul.bf16.gmra.mxu0 %v3435
  %v8676 = vpop.f32.mrf.mxu0
  %v8677 = vadd.f32 %v8348, %v8676
  %v8678 = vpop.f32.mrf.mxu0
  %v8679 = vadd.f32 %v8350, %v8678
  %8680 = vmatmul.bf16.gmra.mxu0 %v3443
  %v8681 = vpop.f32.mrf.mxu0
  %v8682 = vadd.f32 %v8353, %v8681
  %v8683 = vpop.f32.mrf.mxu0
  %v8684 = vadd.f32 %v8355, %v8683
  %8685 = vmatmul.bf16.gmra.mxu0 %v3451
  %v8686 = vpop.f32.mrf.mxu0
  %v8687 = vadd.f32 %v8358, %v8686
  %v8688 = vpop.f32.mrf.mxu0
  %v8689 = vadd.f32 %v8360, %v8688
  %8690 = vmatmul.bf16.gmra.mxu0 %v3459
  %v8691 = vpop.f32.mrf.mxu0
  %v8692 = vadd.f32 %v8363, %v8691
  %v8693 = vpop.f32.mrf.mxu0
  %v8694 = vadd.f32 %v8365, %v8693
  %8695 = vmatmul.bf16.gmra.mxu0 %v3467
  %v8696 = vpop.f32.mrf.mxu0
  %v8697 = vadd.f32 %v8368, %v8696
  %v8698 = vpop.f32.mrf.mxu0
  %v8699 = vadd.f32 %v8370, %v8698
  %8700 = vmatmul.bf16.gmra.mxu0 %v3475
  %v8701 = vpop.f32.mrf.mxu0
  %v8702 = vadd.f32 %v8373, %v8701
  %v8703 = vpop.f32.mrf.mxu0
  %v8704 = vadd.f32 %v8375, %v8703
  %8705 = vmatmul.bf16.gmra.mxu0 %v3483
  %v8706 = vpop.f32.mrf.mxu0
  %v8707 = vadd.f32 %v8378, %v8706
  %v8708 = vpop.f32.mrf.mxu0
  %v8709 = vadd.f32 %v8380, %v8708
  %8710 = vmatmul.bf16.gmra.mxu0 %v3491
  %v8711 = vpop.f32.mrf.mxu0
  %v8712 = vadd.f32 %v8383, %v8711
  %v8713 = vpop.f32.mrf.mxu0
  %v8714 = vadd.f32 %v8385, %v8713
  %8715 = vmatmul.bf16.gmra.mxu0 %v3499
  %v8716 = vpop.f32.mrf.mxu0
  %v8717 = vadd.f32 %v8388, %v8716
  %v8718 = vpop.f32.mrf.mxu0
  %v8719 = vadd.f32 %v8390, %v8718
  %8720 = vmatmul.bf16.gmra.mxu0 %v3507
  %v8721 = vpop.f32.mrf.mxu0
  %v8722 = vadd.f32 %v8393, %v8721
  %v8723 = vpop.f32.mrf.mxu0
  %v8724 = vadd.f32 %v8395, %v8723
  %8725 = vmatmul.bf16.gmra.mxu0 %v3515
  %v8726 = vpop.f32.mrf.mxu0
  %v8727 = vadd.f32 %v8398, %v8726
  %v8728 = vpop.f32.mrf.mxu0
  %v8729 = vadd.f32 %v8400, %v8728
  %8730 = vmatmul.bf16.gmra.mxu0 %v3523
  %v8731 = vpop.f32.mrf.mxu0
  %v8732 = vadd.f32 %v8403, %v8731
  %v8733 = vpop.f32.mrf.mxu0
  %v8734 = vadd.f32 %v8405, %v8733
  %8735 = vmatmul.bf16.gmra.mxu0 %v3531
  %v8736 = vpop.f32.mrf.mxu0
  %v8737 = vadd.f32 %v8408, %v8736
  %v8738 = vpop.f32.mrf.mxu0
  %v8739 = vadd.f32 %v8410, %v8738
  %8740 = vmatmul.bf16.gmra.mxu0 %v3539
  %v8741 = vpop.f32.mrf.mxu0
  %v8742 = vadd.f32 %v8413, %v8741
  %v8743 = vpop.f32.mrf.mxu0
  %v8744 = vadd.f32 %v8415, %v8743
  %8745 = vmatmul.bf16.gmra.mxu0 %v3547
  %v8746 = vpop.f32.mrf.mxu0
  %v8747 = vadd.f32 %v8418, %v8746
  %v8748 = vpop.f32.mrf.mxu0
  %v8749 = vadd.f32 %v8420, %v8748
  %8750 = vmatmul.bf16.gmra.mxu0 %v3555
  %v8751 = vpop.f32.mrf.mxu0
  %v8752 = vadd.f32 %v8423, %v8751
  %v8753 = vpop.f32.mrf.mxu0
  %v8754 = vadd.f32 %v8425, %v8753
  %8755 = vmatmul.bf16.gmra.mxu0 %v3563
  %v8756 = vpop.f32.mrf.mxu0
  %v8757 = vadd.f32 %v8428, %v8756
  %v8758 = vpop.f32.mrf.mxu0
  %v8759 = vadd.f32 %v8430, %v8758
  %8760 = vmatmul.bf16.gmra.mxu0 %v3571
  %v8761 = vpop.f32.mrf.mxu0
  %v8762 = vadd.f32 %v8433, %v8761
  %v8763 = vpop.f32.mrf.mxu0
  %v8764 = vadd.f32 %v8435, %v8763
  %8765 = vmatmul.bf16.gmra.mxu0 %v3579
  %v8766 = vpop.f32.mrf.mxu0
  %v8767 = vadd.f32 %v8438, %v8766
  %v8768 = vpop.f32.mrf.mxu0
  %v8769 = vadd.f32 %v8440, %v8768
  %8770 = vmatmul.bf16.gmra.mxu0 %v3587
  %v8771 = vpop.f32.mrf.mxu0
  %v8772 = vadd.f32 %v8443, %v8771
  %v8773 = vpop.f32.mrf.mxu0
  %v8774 = vadd.f32 %v8445, %v8773
  %8775 = vmatmul.bf16.gmra.mxu0 %v3595
  %v8776 = vpop.f32.mrf.mxu0
  %v8777 = vadd.f32 %v8448, %v8776
  %v8778 = vpop.f32.mrf.mxu0
  %v8779 = vadd.f32 %v8450, %v8778
  %8780 = vmatmul.bf16.gmra.mxu0 %v3603
  %v8781 = vpop.f32.mrf.mxu0
  %v8782 = vadd.f32 %v8453, %v8781
  %v8783 = vpop.f32.mrf.mxu0
  %v8784 = vadd.f32 %v8455, %v8783
  %8785 = vmatmul.bf16.gmra.mxu0 %v3611
  %v8786 = vpop.f32.mrf.mxu0
  %v8787 = vadd.f32 %v8458, %v8786
  %v8788 = vpop.f32.mrf.mxu0
  %v8789 = vadd.f32 %v8460, %v8788
  %8790 = vmatmul.bf16.gmra.mxu0 %v3619
  %v8791 = vpop.f32.mrf.mxu0
  %v8792 = vadd.f32 %v8463, %v8791
  %v8793 = vpop.f32.mrf.mxu0
  %v8794 = vadd.f32 %v8465, %v8793
  %8795 = vmatmul.bf16.gmra.mxu0 %v3627
  %v8796 = vpop.f32.mrf.mxu0
  %v8797 = vadd.f32 %v8468, %v8796
  %v8798 = vpop.f32.mrf.mxu0
  %v8799 = vadd.f32 %v8470, %v8798
  %8800 = vdwg.mxu0
  %8801 = vmatpush.bf16.msra.mxu0 %v7781
  %8802 = vmatpush.bf16.msra.mxu0 %v7780
  %8803 = vmatpush.bf16.msra.mxu0 %v7779
  %8804 = vmatpush.bf16.msra.mxu0 %v7778
  %8805 = vmatpush.bf16.msra.mxu0 %v7777
  %8806 = vmatpush.bf16.msra.mxu0 %v7776
  %8807 = vmatpush.bf16.msra.mxu0 %v7775
  %8808 = vmatpush.bf16.msra.mxu0 %v7774
  %8809 = vmatmul.bf16.gmra.mxu0 %v3124
  %v8810 = vpop.f32.mrf.mxu0
  %v8811 = vadd.f32 %v8482, %v8810
  %v8812 = vpop.f32.mrf.mxu0
  %v8813 = vadd.f32 %v8484, %v8812
  %8814 = vmatmul.bf16.gmra.mxu0 %v3132
  %v8815 = vpop.f32.mrf.mxu0
  %v8816 = vadd.f32 %v8487, %v8815
  %v8817 = vpop.f32.mrf.mxu0
  %v8818 = vadd.f32 %v8489, %v8817
  %8819 = vmatmul.bf16.gmra.mxu0 %v3140
  %v8820 = vpop.f32.mrf.mxu0
  %v8821 = vadd.f32 %v8492, %v8820
  %v8822 = vpop.f32.mrf.mxu0
  %v8823 = vadd.f32 %v8494, %v8822
  %8824 = vmatmul.bf16.gmra.mxu0 %v3148
  %v8825 = vpop.f32.mrf.mxu0
  %v8826 = vadd.f32 %v8497, %v8825
  %v8827 = vpop.f32.mrf.mxu0
  %v8828 = vadd.f32 %v8499, %v8827
  %8829 = vmatmul.bf16.gmra.mxu0 %v3156
  %v8830 = vpop.f32.mrf.mxu0
  %v8831 = vadd.f32 %v8502, %v8830
  %v8832 = vpop.f32.mrf.mxu0
  %v8833 = vadd.f32 %v8504, %v8832
  %8834 = vmatmul.bf16.gmra.mxu0 %v3164
  %v8835 = vpop.f32.mrf.mxu0
  %v8836 = vadd.f32 %v8507, %v8835
  %v8837 = vpop.f32.mrf.mxu0
  %v8838 = vadd.f32 %v8509, %v8837
  %8839 = vmatmul.bf16.gmra.mxu0 %v3172
  %v8840 = vpop.f32.mrf.mxu0
  %v8841 = vadd.f32 %v8512, %v8840
  %v8842 = vpop.f32.mrf.mxu0
  %v8843 = vadd.f32 %v8514, %v8842
  %8844 = vmatmul.bf16.gmra.mxu0 %v3180
  %v8845 = vpop.f32.mrf.mxu0
  %v8846 = vadd.f32 %v8517, %v8845
  %v8847 = vpop.f32.mrf.mxu0
  %v8848 = vadd.f32 %v8519, %v8847
  %8849 = vmatmul.bf16.gmra.mxu0 %v3188
  %v8850 = vpop.f32.mrf.mxu0
  %v8851 = vadd.f32 %v8522, %v8850
  %v8852 = vpop.f32.mrf.mxu0
  %v8853 = vadd.f32 %v8524, %v8852
  %8854 = vmatmul.bf16.gmra.mxu0 %v3196
  %v8855 = vpop.f32.mrf.mxu0
  %v8856 = vadd.f32 %v8527, %v8855
  %v8857 = vpop.f32.mrf.mxu0
  %v8858 = vadd.f32 %v8529, %v8857
  %8859 = vmatmul.bf16.gmra.mxu0 %v3204
  %v8860 = vpop.f32.mrf.mxu0
  %v8861 = vadd.f32 %v8532, %v8860
  %v8862 = vpop.f32.mrf.mxu0
  %v8863 = vadd.f32 %v8534, %v8862
  %8864 = vmatmul.bf16.gmra.mxu0 %v3212
  %v8865 = vpop.f32.mrf.mxu0
  %v8866 = vadd.f32 %v8537, %v8865
  %v8867 = vpop.f32.mrf.mxu0
  %v8868 = vadd.f32 %v8539, %v8867
  %8869 = vmatmul.bf16.gmra.mxu0 %v3220
  %v8870 = vpop.f32.mrf.mxu0
  %v8871 = vadd.f32 %v8542, %v8870
  %v8872 = vpop.f32.mrf.mxu0
  %v8873 = vadd.f32 %v8544, %v8872
  %8874 = vmatmul.bf16.gmra.mxu0 %v3228
  %v8875 = vpop.f32.mrf.mxu0
  %v8876 = vadd.f32 %v8547, %v8875
  %v8877 = vpop.f32.mrf.mxu0
  %v8878 = vadd.f32 %v8549, %v8877
  %8879 = vmatmul.bf16.gmra.mxu0 %v3236
  %v8880 = vpop.f32.mrf.mxu0
  %v8881 = vadd.f32 %v8552, %v8880
  %v8882 = vpop.f32.mrf.mxu0
  %v8883 = vadd.f32 %v8554, %v8882
  %8884 = vmatmul.bf16.gmra.mxu0 %v3244
  %v8885 = vpop.f32.mrf.mxu0
  %v8886 = vadd.f32 %v8557, %v8885
  %v8887 = vpop.f32.mrf.mxu0
  %v8888 = vadd.f32 %v8559, %v8887
  %8889 = vmatmul.bf16.gmra.mxu0 %v3252
  %v8890 = vpop.f32.mrf.mxu0
  %v8891 = vadd.f32 %v8562, %v8890
  %v8892 = vpop.f32.mrf.mxu0
  %v8893 = vadd.f32 %v8564, %v8892
  %8894 = vmatmul.bf16.gmra.mxu0 %v3260
  %v8895 = vpop.f32.mrf.mxu0
  %v8896 = vadd.f32 %v8567, %v8895
  %v8897 = vpop.f32.mrf.mxu0
  %v8898 = vadd.f32 %v8569, %v8897
  %8899 = vmatmul.bf16.gmra.mxu0 %v3268
  %v8900 = vpop.f32.mrf.mxu0
  %v8901 = vadd.f32 %v8572, %v8900
  %v8902 = vpop.f32.mrf.mxu0
  %v8903 = vadd.f32 %v8574, %v8902
  %8904 = vmatmul.bf16.gmra.mxu0 %v3276
  %v8905 = vpop.f32.mrf.mxu0
  %v8906 = vadd.f32 %v8577, %v8905
  %v8907 = vpop.f32.mrf.mxu0
  %v8908 = vadd.f32 %v8579, %v8907
  %8909 = vmatmul.bf16.gmra.mxu0 %v3284
  %v8910 = vpop.f32.mrf.mxu0
  %v8911 = vadd.f32 %v8582, %v8910
  %v8912 = vpop.f32.mrf.mxu0
  %v8913 = vadd.f32 %v8584, %v8912
  %8914 = vmatmul.bf16.gmra.mxu0 %v3292
  %v8915 = vpop.f32.mrf.mxu0
  %v8916 = vadd.f32 %v8587, %v8915
  %v8917 = vpop.f32.mrf.mxu0
  %v8918 = vadd.f32 %v8589, %v8917
  %8919 = vmatmul.bf16.gmra.mxu0 %v3300
  %v8920 = vpop.f32.mrf.mxu0
  %v8921 = vadd.f32 %v8592, %v8920
  %v8922 = vpop.f32.mrf.mxu0
  %v8923 = vadd.f32 %v8594, %v8922
  %8924 = vmatmul.bf16.gmra.mxu0 %v3308
  %v8925 = vpop.f32.mrf.mxu0
  %v8926 = vadd.f32 %v8597, %v8925
  %v8927 = vpop.f32.mrf.mxu0
  %v8928 = vadd.f32 %v8599, %v8927
  %8929 = vmatmul.bf16.gmra.mxu0 %v3316
  %v8930 = vpop.f32.mrf.mxu0
  %v8931 = vadd.f32 %v8602, %v8930
  %v8932 = vpop.f32.mrf.mxu0
  %v8933 = vadd.f32 %v8604, %v8932
  %8934 = vmatmul.bf16.gmra.mxu0 %v3324
  %v8935 = vpop.f32.mrf.mxu0
  %v8936 = vadd.f32 %v8607, %v8935
  %v8937 = vpop.f32.mrf.mxu0
  %v8938 = vadd.f32 %v8609, %v8937
  %8939 = vmatmul.bf16.gmra.mxu0 %v3332
  %v8940 = vpop.f32.mrf.mxu0
  %v8941 = vadd.f32 %v8612, %v8940
  %v8942 = vpop.f32.mrf.mxu0
  %v8943 = vadd.f32 %v8614, %v8942
  %8944 = vmatmul.bf16.gmra.mxu0 %v3340
  %v8945 = vpop.f32.mrf.mxu0
  %v8946 = vadd.f32 %v8617, %v8945
  %v8947 = vpop.f32.mrf.mxu0
  %v8948 = vadd.f32 %v8619, %v8947
  %8949 = vmatmul.bf16.gmra.mxu0 %v3348
  %v8950 = vpop.f32.mrf.mxu0
  %v8951 = vadd.f32 %v8622, %v8950
  %v8952 = vpop.f32.mrf.mxu0
  %v8953 = vadd.f32 %v8624, %v8952
  %8954 = vmatmul.bf16.gmra.mxu0 %v3356
  %v8955 = vpop.f32.mrf.mxu0
  %v8956 = vadd.f32 %v8627, %v8955
  %v8957 = vpop.f32.mrf.mxu0
  %v8958 = vadd.f32 %v8629, %v8957
  %8959 = vmatmul.bf16.gmra.mxu0 %v3364
  %v8960 = vpop.f32.mrf.mxu0
  %v8961 = vadd.f32 %v8632, %v8960
  %v8962 = vpop.f32.mrf.mxu0
  %v8963 = vadd.f32 %v8634, %v8962
  %8964 = vmatmul.bf16.gmra.mxu0 %v3372
  %v8965 = vpop.f32.mrf.mxu0
  %v8966 = vadd.f32 %v8637, %v8965
  %v8967 = vpop.f32.mrf.mxu0
  %v8968 = vadd.f32 %v8639, %v8967
  %8969 = vmatmul.bf16.gmra.mxu0 %v3380
  %v8970 = vpop.f32.mrf.mxu0
  %v8971 = vadd.f32 %v8642, %v8970
  %v8972 = vpop.f32.mrf.mxu0
  %v8973 = vadd.f32 %v8644, %v8972
  %8974 = vmatmul.bf16.gmra.mxu0 %v3388
  %v8975 = vpop.f32.mrf.mxu0
  %v8976 = vadd.f32 %v8647, %v8975
  %v8977 = vpop.f32.mrf.mxu0
  %v8978 = vadd.f32 %v8649, %v8977
  %8979 = vmatmul.bf16.gmra.mxu0 %v3396
  %v8980 = vpop.f32.mrf.mxu0
  %v8981 = vadd.f32 %v8652, %v8980
  %v8982 = vpop.f32.mrf.mxu0
  %v8983 = vadd.f32 %v8654, %v8982
  %8984 = vmatmul.bf16.gmra.mxu0 %v3404
  %v8985 = vpop.f32.mrf.mxu0
  %v8986 = vadd.f32 %v8657, %v8985
  %v8987 = vpop.f32.mrf.mxu0
  %v8988 = vadd.f32 %v8659, %v8987
  %8989 = vmatmul.bf16.gmra.mxu0 %v3412
  %v8990 = vpop.f32.mrf.mxu0
  %v8991 = vadd.f32 %v8662, %v8990
  %v8992 = vpop.f32.mrf.mxu0
  %v8993 = vadd.f32 %v8664, %v8992
  %8994 = vmatmul.bf16.gmra.mxu0 %v3420
  %v8995 = vpop.f32.mrf.mxu0
  %v8996 = vadd.f32 %v8667, %v8995
  %v8997 = vpop.f32.mrf.mxu0
  %v8998 = vadd.f32 %v8669, %v8997
  %8999 = vmatmul.bf16.gmra.mxu0 %v3428
  %v9000 = vpop.f32.mrf.mxu0
  %v9001 = vadd.f32 %v8672, %v9000
  %v9002 = vpop.f32.mrf.mxu0
  %v9003 = vadd.f32 %v8674, %v9002
  %9004 = vmatmul.bf16.gmra.mxu0 %v3436
  %v9005 = vpop.f32.mrf.mxu0
  %v9006 = vadd.f32 %v8677, %v9005
  %v9007 = vpop.f32.mrf.mxu0
  %v9008 = vadd.f32 %v8679, %v9007
  %9009 = vmatmul.bf16.gmra.mxu0 %v3444
  %v9010 = vpop.f32.mrf.mxu0
  %v9011 = vadd.f32 %v8682, %v9010
  %v9012 = vpop.f32.mrf.mxu0
  %v9013 = vadd.f32 %v8684, %v9012
  %9014 = vmatmul.bf16.gmra.mxu0 %v3452
  %v9015 = vpop.f32.mrf.mxu0
  %v9016 = vadd.f32 %v8687, %v9015
  %v9017 = vpop.f32.mrf.mxu0
  %v9018 = vadd.f32 %v8689, %v9017
  %9019 = vmatmul.bf16.gmra.mxu0 %v3460
  %v9020 = vpop.f32.mrf.mxu0
  %v9021 = vadd.f32 %v8692, %v9020
  %v9022 = vpop.f32.mrf.mxu0
  %v9023 = vadd.f32 %v8694, %v9022
  %9024 = vmatmul.bf16.gmra.mxu0 %v3468
  %v9025 = vpop.f32.mrf.mxu0
  %v9026 = vadd.f32 %v8697, %v9025
  %v9027 = vpop.f32.mrf.mxu0
  %v9028 = vadd.f32 %v8699, %v9027
  %9029 = vmatmul.bf16.gmra.mxu0 %v3476
  %v9030 = vpop.f32.mrf.mxu0
  %v9031 = vadd.f32 %v8702, %v9030
  %v9032 = vpop.f32.mrf.mxu0
  %v9033 = vadd.f32 %v8704, %v9032
  %9034 = vmatmul.bf16.gmra.mxu0 %v3484
  %v9035 = vpop.f32.mrf.mxu0
  %v9036 = vadd.f32 %v8707, %v9035
  %v9037 = vpop.f32.mrf.mxu0
  %v9038 = vadd.f32 %v8709, %v9037
  %9039 = vmatmul.bf16.gmra.mxu0 %v3492
  %v9040 = vpop.f32.mrf.mxu0
  %v9041 = vadd.f32 %v8712, %v9040
  %v9042 = vpop.f32.mrf.mxu0
  %v9043 = vadd.f32 %v8714, %v9042
  %9044 = vmatmul.bf16.gmra.mxu0 %v3500
  %v9045 = vpop.f32.mrf.mxu0
  %v9046 = vadd.f32 %v8717, %v9045
  %v9047 = vpop.f32.mrf.mxu0
  %v9048 = vadd.f32 %v8719, %v9047
  %9049 = vmatmul.bf16.gmra.mxu0 %v3508
  %v9050 = vpop.f32.mrf.mxu0
  %v9051 = vadd.f32 %v8722, %v9050
  %v9052 = vpop.f32.mrf.mxu0
  %v9053 = vadd.f32 %v8724, %v9052
  %9054 = vmatmul.bf16.gmra.mxu0 %v3516
  %v9055 = vpop.f32.mrf.mxu0
  %v9056 = vadd.f32 %v8727, %v9055
  %v9057 = vpop.f32.mrf.mxu0
  %v9058 = vadd.f32 %v8729, %v9057
  %9059 = vmatmul.bf16.gmra.mxu0 %v3524
  %v9060 = vpop.f32.mrf.mxu0
  %v9061 = vadd.f32 %v8732, %v9060
  %v9062 = vpop.f32.mrf.mxu0
  %v9063 = vadd.f32 %v8734, %v9062
  %9064 = vmatmul.bf16.gmra.mxu0 %v3532
  %v9065 = vpop.f32.mrf.mxu0
  %v9066 = vadd.f32 %v8737, %v9065
  %v9067 = vpop.f32.mrf.mxu0
  %v9068 = vadd.f32 %v8739, %v9067
  %9069 = vmatmul.bf16.gmra.mxu0 %v3540
  %v9070 = vpop.f32.mrf.mxu0
  %v9071 = vadd.f32 %v8742, %v9070
  %v9072 = vpop.f32.mrf.mxu0
  %v9073 = vadd.f32 %v8744, %v9072
  %9074 = vmatmul.bf16.gmra.mxu0 %v3548
  %v9075 = vpop.f32.mrf.mxu0
  %v9076 = vadd.f32 %v8747, %v9075
  %v9077 = vpop.f32.mrf.mxu0
  %v9078 = vadd.f32 %v8749, %v9077
  %9079 = vmatmul.bf16.gmra.mxu0 %v3556
  %v9080 = vpop.f32.mrf.mxu0
  %v9081 = vadd.f32 %v8752, %v9080
  %v9082 = vpop.f32.mrf.mxu0
  %v9083 = vadd.f32 %v8754, %v9082
  %9084 = vmatmul.bf16.gmra.mxu0 %v3564
  %v9085 = vpop.f32.mrf.mxu0
  %v9086 = vadd.f32 %v8757, %v9085
  %v9087 = vpop.f32.mrf.mxu0
  %v9088 = vadd.f32 %v8759, %v9087
  %9089 = vmatmul.bf16.gmra.mxu0 %v3572
  %v9090 = vpop.f32.mrf.mxu0
  %v9091 = vadd.f32 %v8762, %v9090
  %v9092 = vpop.f32.mrf.mxu0
  %v9093 = vadd.f32 %v8764, %v9092
  %9094 = vmatmul.bf16.gmra.mxu0 %v3580
  %v9095 = vpop.f32.mrf.mxu0
  %v9096 = vadd.f32 %v8767, %v9095
  %v9097 = vpop.f32.mrf.mxu0
  %v9098 = vadd.f32 %v8769, %v9097
  %9099 = vmatmul.bf16.gmra.mxu0 %v3588
  %v9100 = vpop.f32.mrf.mxu0
  %v9101 = vadd.f32 %v8772, %v9100
  %v9102 = vpop.f32.mrf.mxu0
  %v9103 = vadd.f32 %v8774, %v9102
  %9104 = vmatmul.bf16.gmra.mxu0 %v3596
  %v9105 = vpop.f32.mrf.mxu0
  %v9106 = vadd.f32 %v8777, %v9105
  %v9107 = vpop.f32.mrf.mxu0
  %v9108 = vadd.f32 %v8779, %v9107
  %9109 = vmatmul.bf16.gmra.mxu0 %v3604
  %v9110 = vpop.f32.mrf.mxu0
  %v9111 = vadd.f32 %v8782, %v9110
  %v9112 = vpop.f32.mrf.mxu0
  %v9113 = vadd.f32 %v8784, %v9112
  %9114 = vmatmul.bf16.gmra.mxu0 %v3612
  %v9115 = vpop.f32.mrf.mxu0
  %v9116 = vadd.f32 %v8787, %v9115
  %v9117 = vpop.f32.mrf.mxu0
  %v9118 = vadd.f32 %v8789, %v9117
  %9119 = vmatmul.bf16.gmra.mxu0 %v3620
  %v9120 = vpop.f32.mrf.mxu0
  %v9121 = vadd.f32 %v8792, %v9120
  %v9122 = vpop.f32.mrf.mxu0
  %v9123 = vadd.f32 %v8794, %v9122
  %9124 = vmatmul.bf16.gmra.mxu0 %v3628
  %v9125 = vpop.f32.mrf.mxu0
  %v9126 = vadd.f32 %v8797, %v9125
  %v9127 = vpop.f32.mrf.mxu0
  %v9128 = vadd.f32 %v8799, %v9127
  %9129 = vdwg.mxu0
  %9130 = vmatpush.bf16.msra.mxu0 %v7789
  %9131 = vmatpush.bf16.msra.mxu0 %v7788
  %9132 = vmatpush.bf16.msra.mxu0 %v7787
  %9133 = vmatpush.bf16.msra.mxu0 %v7786
  %9134 = vmatpush.bf16.msra.mxu0 %v7785
  %9135 = vmatpush.bf16.msra.mxu0 %v7784
  %9136 = vmatpush.bf16.msra.mxu0 %v7783
  %9137 = vmatpush.bf16.msra.mxu0 %v7782
  %9138 = vmatmul.bf16.gmra.mxu0 %v3125
  %v9139 = vpop.f32.mrf.mxu0
  %v9140 = vadd.f32 %v8811, %v9139
  %v9141 = vpop.f32.mrf.mxu0
  %v9142 = vadd.f32 %v8813, %v9141
  %9143 = vmatmul.bf16.gmra.mxu0 %v3133
  %v9144 = vpop.f32.mrf.mxu0
  %v9145 = vadd.f32 %v8816, %v9144
  %v9146 = vpop.f32.mrf.mxu0
  %v9147 = vadd.f32 %v8818, %v9146
  %9148 = vmatmul.bf16.gmra.mxu0 %v3141
  %v9149 = vpop.f32.mrf.mxu0
  %v9150 = vadd.f32 %v8821, %v9149
  %v9151 = vpop.f32.mrf.mxu0
  %v9152 = vadd.f32 %v8823, %v9151
  %9153 = vmatmul.bf16.gmra.mxu0 %v3149
  %v9154 = vpop.f32.mrf.mxu0
  %v9155 = vadd.f32 %v8826, %v9154
  %v9156 = vpop.f32.mrf.mxu0
  %v9157 = vadd.f32 %v8828, %v9156
  %9158 = vmatmul.bf16.gmra.mxu0 %v3157
  %v9159 = vpop.f32.mrf.mxu0
  %v9160 = vadd.f32 %v8831, %v9159
  %v9161 = vpop.f32.mrf.mxu0
  %v9162 = vadd.f32 %v8833, %v9161
  %9163 = vmatmul.bf16.gmra.mxu0 %v3165
  %v9164 = vpop.f32.mrf.mxu0
  %v9165 = vadd.f32 %v8836, %v9164
  %v9166 = vpop.f32.mrf.mxu0
  %v9167 = vadd.f32 %v8838, %v9166
  %9168 = vmatmul.bf16.gmra.mxu0 %v3173
  %v9169 = vpop.f32.mrf.mxu0
  %v9170 = vadd.f32 %v8841, %v9169
  %v9171 = vpop.f32.mrf.mxu0
  %v9172 = vadd.f32 %v8843, %v9171
  %9173 = vmatmul.bf16.gmra.mxu0 %v3181
  %v9174 = vpop.f32.mrf.mxu0
  %v9175 = vadd.f32 %v8846, %v9174
  %v9176 = vpop.f32.mrf.mxu0
  %v9177 = vadd.f32 %v8848, %v9176
  %9178 = vmatmul.bf16.gmra.mxu0 %v3189
  %v9179 = vpop.f32.mrf.mxu0
  %v9180 = vadd.f32 %v8851, %v9179
  %v9181 = vpop.f32.mrf.mxu0
  %v9182 = vadd.f32 %v8853, %v9181
  %9183 = vmatmul.bf16.gmra.mxu0 %v3197
  %v9184 = vpop.f32.mrf.mxu0
  %v9185 = vadd.f32 %v8856, %v9184
  %v9186 = vpop.f32.mrf.mxu0
  %v9187 = vadd.f32 %v8858, %v9186
  %9188 = vmatmul.bf16.gmra.mxu0 %v3205
  %v9189 = vpop.f32.mrf.mxu0
  %v9190 = vadd.f32 %v8861, %v9189
  %v9191 = vpop.f32.mrf.mxu0
  %v9192 = vadd.f32 %v8863, %v9191
  %9193 = vmatmul.bf16.gmra.mxu0 %v3213
  %v9194 = vpop.f32.mrf.mxu0
  %v9195 = vadd.f32 %v8866, %v9194
  %v9196 = vpop.f32.mrf.mxu0
  %v9197 = vadd.f32 %v8868, %v9196
  %9198 = vmatmul.bf16.gmra.mxu0 %v3221
  %v9199 = vpop.f32.mrf.mxu0
  %v9200 = vadd.f32 %v8871, %v9199
  %v9201 = vpop.f32.mrf.mxu0
  %v9202 = vadd.f32 %v8873, %v9201
  %9203 = vmatmul.bf16.gmra.mxu0 %v3229
  %v9204 = vpop.f32.mrf.mxu0
  %v9205 = vadd.f32 %v8876, %v9204
  %v9206 = vpop.f32.mrf.mxu0
  %v9207 = vadd.f32 %v8878, %v9206
  %9208 = vmatmul.bf16.gmra.mxu0 %v3237
  %v9209 = vpop.f32.mrf.mxu0
  %v9210 = vadd.f32 %v8881, %v9209
  %v9211 = vpop.f32.mrf.mxu0
  %v9212 = vadd.f32 %v8883, %v9211
  %9213 = vmatmul.bf16.gmra.mxu0 %v3245
  %v9214 = vpop.f32.mrf.mxu0
  %v9215 = vadd.f32 %v8886, %v9214
  %v9216 = vpop.f32.mrf.mxu0
  %v9217 = vadd.f32 %v8888, %v9216
  %9218 = vmatmul.bf16.gmra.mxu0 %v3253
  %v9219 = vpop.f32.mrf.mxu0
  %v9220 = vadd.f32 %v8891, %v9219
  %v9221 = vpop.f32.mrf.mxu0
  %v9222 = vadd.f32 %v8893, %v9221
  %9223 = vmatmul.bf16.gmra.mxu0 %v3261
  %v9224 = vpop.f32.mrf.mxu0
  %v9225 = vadd.f32 %v8896, %v9224
  %v9226 = vpop.f32.mrf.mxu0
  %v9227 = vadd.f32 %v8898, %v9226
  %9228 = vmatmul.bf16.gmra.mxu0 %v3269
  %v9229 = vpop.f32.mrf.mxu0
  %v9230 = vadd.f32 %v8901, %v9229
  %v9231 = vpop.f32.mrf.mxu0
  %v9232 = vadd.f32 %v8903, %v9231
  %9233 = vmatmul.bf16.gmra.mxu0 %v3277
  %v9234 = vpop.f32.mrf.mxu0
  %v9235 = vadd.f32 %v8906, %v9234
  %v9236 = vpop.f32.mrf.mxu0
  %v9237 = vadd.f32 %v8908, %v9236
  %9238 = vmatmul.bf16.gmra.mxu0 %v3285
  %v9239 = vpop.f32.mrf.mxu0
  %v9240 = vadd.f32 %v8911, %v9239
  %v9241 = vpop.f32.mrf.mxu0
  %v9242 = vadd.f32 %v8913, %v9241
  %9243 = vmatmul.bf16.gmra.mxu0 %v3293
  %v9244 = vpop.f32.mrf.mxu0
  %v9245 = vadd.f32 %v8916, %v9244
  %v9246 = vpop.f32.mrf.mxu0
  %v9247 = vadd.f32 %v8918, %v9246
  %9248 = vmatmul.bf16.gmra.mxu0 %v3301
  %v9249 = vpop.f32.mrf.mxu0
  %v9250 = vadd.f32 %v8921, %v9249
  %v9251 = vpop.f32.mrf.mxu0
  %v9252 = vadd.f32 %v8923, %v9251
  %9253 = vmatmul.bf16.gmra.mxu0 %v3309
  %v9254 = vpop.f32.mrf.mxu0
  %v9255 = vadd.f32 %v8926, %v9254
  %v9256 = vpop.f32.mrf.mxu0
  %v9257 = vadd.f32 %v8928, %v9256
  %9258 = vmatmul.bf16.gmra.mxu0 %v3317
  %v9259 = vpop.f32.mrf.mxu0
  %v9260 = vadd.f32 %v8931, %v9259
  %v9261 = vpop.f32.mrf.mxu0
  %v9262 = vadd.f32 %v8933, %v9261
  %9263 = vmatmul.bf16.gmra.mxu0 %v3325
  %v9264 = vpop.f32.mrf.mxu0
  %v9265 = vadd.f32 %v8936, %v9264
  %v9266 = vpop.f32.mrf.mxu0
  %v9267 = vadd.f32 %v8938, %v9266
  %9268 = vmatmul.bf16.gmra.mxu0 %v3333
  %v9269 = vpop.f32.mrf.mxu0
  %v9270 = vadd.f32 %v8941, %v9269
  %v9271 = vpop.f32.mrf.mxu0
  %v9272 = vadd.f32 %v8943, %v9271
  %9273 = vmatmul.bf16.gmra.mxu0 %v3341
  %v9274 = vpop.f32.mrf.mxu0
  %v9275 = vadd.f32 %v8946, %v9274
  %v9276 = vpop.f32.mrf.mxu0
  %v9277 = vadd.f32 %v8948, %v9276
  %9278 = vmatmul.bf16.gmra.mxu0 %v3349
  %v9279 = vpop.f32.mrf.mxu0
  %v9280 = vadd.f32 %v8951, %v9279
  %v9281 = vpop.f32.mrf.mxu0
  %v9282 = vadd.f32 %v8953, %v9281
  %9283 = vmatmul.bf16.gmra.mxu0 %v3357
  %v9284 = vpop.f32.mrf.mxu0
  %v9285 = vadd.f32 %v8956, %v9284
  %v9286 = vpop.f32.mrf.mxu0
  %v9287 = vadd.f32 %v8958, %v9286
  %9288 = vmatmul.bf16.gmra.mxu0 %v3365
  %v9289 = vpop.f32.mrf.mxu0
  %v9290 = vadd.f32 %v8961, %v9289
  %v9291 = vpop.f32.mrf.mxu0
  %v9292 = vadd.f32 %v8963, %v9291
  %9293 = vmatmul.bf16.gmra.mxu0 %v3373
  %v9294 = vpop.f32.mrf.mxu0
  %v9295 = vadd.f32 %v8966, %v9294
  %v9296 = vpop.f32.mrf.mxu0
  %v9297 = vadd.f32 %v8968, %v9296
  %9298 = vmatmul.bf16.gmra.mxu0 %v3381
  %v9299 = vpop.f32.mrf.mxu0
  %v9300 = vadd.f32 %v8971, %v9299
  %v9301 = vpop.f32.mrf.mxu0
  %v9302 = vadd.f32 %v8973, %v9301
  %9303 = vmatmul.bf16.gmra.mxu0 %v3389
  %v9304 = vpop.f32.mrf.mxu0
  %v9305 = vadd.f32 %v8976, %v9304
  %v9306 = vpop.f32.mrf.mxu0
  %v9307 = vadd.f32 %v8978, %v9306
  %9308 = vmatmul.bf16.gmra.mxu0 %v3397
  %v9309 = vpop.f32.mrf.mxu0
  %v9310 = vadd.f32 %v8981, %v9309
  %v9311 = vpop.f32.mrf.mxu0
  %v9312 = vadd.f32 %v8983, %v9311
  %9313 = vmatmul.bf16.gmra.mxu0 %v3405
  %v9314 = vpop.f32.mrf.mxu0
  %v9315 = vadd.f32 %v8986, %v9314
  %v9316 = vpop.f32.mrf.mxu0
  %v9317 = vadd.f32 %v8988, %v9316
  %9318 = vmatmul.bf16.gmra.mxu0 %v3413
  %v9319 = vpop.f32.mrf.mxu0
  %v9320 = vadd.f32 %v8991, %v9319
  %v9321 = vpop.f32.mrf.mxu0
  %v9322 = vadd.f32 %v8993, %v9321
  %9323 = vmatmul.bf16.gmra.mxu0 %v3421
  %v9324 = vpop.f32.mrf.mxu0
  %v9325 = vadd.f32 %v8996, %v9324
  %v9326 = vpop.f32.mrf.mxu0
  %v9327 = vadd.f32 %v8998, %v9326
  %9328 = vmatmul.bf16.gmra.mxu0 %v3429
  %v9329 = vpop.f32.mrf.mxu0
  %v9330 = vadd.f32 %v9001, %v9329
  %v9331 = vpop.f32.mrf.mxu0
  %v9332 = vadd.f32 %v9003, %v9331
  %9333 = vmatmul.bf16.gmra.mxu0 %v3437
  %v9334 = vpop.f32.mrf.mxu0
  %v9335 = vadd.f32 %v9006, %v9334
  %v9336 = vpop.f32.mrf.mxu0
  %v9337 = vadd.f32 %v9008, %v9336
  %9338 = vmatmul.bf16.gmra.mxu0 %v3445
  %v9339 = vpop.f32.mrf.mxu0
  %v9340 = vadd.f32 %v9011, %v9339
  %v9341 = vpop.f32.mrf.mxu0
  %v9342 = vadd.f32 %v9013, %v9341
  %9343 = vmatmul.bf16.gmra.mxu0 %v3453
  %v9344 = vpop.f32.mrf.mxu0
  %v9345 = vadd.f32 %v9016, %v9344
  %v9346 = vpop.f32.mrf.mxu0
  %v9347 = vadd.f32 %v9018, %v9346
  %9348 = vmatmul.bf16.gmra.mxu0 %v3461
  %v9349 = vpop.f32.mrf.mxu0
  %v9350 = vadd.f32 %v9021, %v9349
  %v9351 = vpop.f32.mrf.mxu0
  %v9352 = vadd.f32 %v9023, %v9351
  %9353 = vmatmul.bf16.gmra.mxu0 %v3469
  %v9354 = vpop.f32.mrf.mxu0
  %v9355 = vadd.f32 %v9026, %v9354
  %v9356 = vpop.f32.mrf.mxu0
  %v9357 = vadd.f32 %v9028, %v9356
  %9358 = vmatmul.bf16.gmra.mxu0 %v3477
  %v9359 = vpop.f32.mrf.mxu0
  %v9360 = vadd.f32 %v9031, %v9359
  %v9361 = vpop.f32.mrf.mxu0
  %v9362 = vadd.f32 %v9033, %v9361
  %9363 = vmatmul.bf16.gmra.mxu0 %v3485
  %v9364 = vpop.f32.mrf.mxu0
  %v9365 = vadd.f32 %v9036, %v9364
  %v9366 = vpop.f32.mrf.mxu0
  %v9367 = vadd.f32 %v9038, %v9366
  %9368 = vmatmul.bf16.gmra.mxu0 %v3493
  %v9369 = vpop.f32.mrf.mxu0
  %v9370 = vadd.f32 %v9041, %v9369
  %v9371 = vpop.f32.mrf.mxu0
  %v9372 = vadd.f32 %v9043, %v9371
  %9373 = vmatmul.bf16.gmra.mxu0 %v3501
  %v9374 = vpop.f32.mrf.mxu0
  %v9375 = vadd.f32 %v9046, %v9374
  %v9376 = vpop.f32.mrf.mxu0
  %v9377 = vadd.f32 %v9048, %v9376
  %9378 = vmatmul.bf16.gmra.mxu0 %v3509
  %v9379 = vpop.f32.mrf.mxu0
  %v9380 = vadd.f32 %v9051, %v9379
  %v9381 = vpop.f32.mrf.mxu0
  %v9382 = vadd.f32 %v9053, %v9381
  %9383 = vmatmul.bf16.gmra.mxu0 %v3517
  %v9384 = vpop.f32.mrf.mxu0
  %v9385 = vadd.f32 %v9056, %v9384
  %v9386 = vpop.f32.mrf.mxu0
  %v9387 = vadd.f32 %v9058, %v9386
  %9388 = vmatmul.bf16.gmra.mxu0 %v3525
  %v9389 = vpop.f32.mrf.mxu0
  %v9390 = vadd.f32 %v9061, %v9389
  %v9391 = vpop.f32.mrf.mxu0
  %v9392 = vadd.f32 %v9063, %v9391
  %9393 = vmatmul.bf16.gmra.mxu0 %v3533
  %v9394 = vpop.f32.mrf.mxu0
  %v9395 = vadd.f32 %v9066, %v9394
  %v9396 = vpop.f32.mrf.mxu0
  %v9397 = vadd.f32 %v9068, %v9396
  %9398 = vmatmul.bf16.gmra.mxu0 %v3541
  %v9399 = vpop.f32.mrf.mxu0
  %v9400 = vadd.f32 %v9071, %v9399
  %v9401 = vpop.f32.mrf.mxu0
  %v9402 = vadd.f32 %v9073, %v9401
  %9403 = vmatmul.bf16.gmra.mxu0 %v3549
  %v9404 = vpop.f32.mrf.mxu0
  %v9405 = vadd.f32 %v9076, %v9404
  %v9406 = vpop.f32.mrf.mxu0
  %v9407 = vadd.f32 %v9078, %v9406
  %9408 = vmatmul.bf16.gmra.mxu0 %v3557
  %v9409 = vpop.f32.mrf.mxu0
  %v9410 = vadd.f32 %v9081, %v9409
  %v9411 = vpop.f32.mrf.mxu0
  %v9412 = vadd.f32 %v9083, %v9411
  %9413 = vmatmul.bf16.gmra.mxu0 %v3565
  %v9414 = vpop.f32.mrf.mxu0
  %v9415 = vadd.f32 %v9086, %v9414
  %v9416 = vpop.f32.mrf.mxu0
  %v9417 = vadd.f32 %v9088, %v9416
  %9418 = vmatmul.bf16.gmra.mxu0 %v3573
  %v9419 = vpop.f32.mrf.mxu0
  %v9420 = vadd.f32 %v9091, %v9419
  %v9421 = vpop.f32.mrf.mxu0
  %v9422 = vadd.f32 %v9093, %v9421
  %9423 = vmatmul.bf16.gmra.mxu0 %v3581
  %v9424 = vpop.f32.mrf.mxu0
  %v9425 = vadd.f32 %v9096, %v9424
  %v9426 = vpop.f32.mrf.mxu0
  %v9427 = vadd.f32 %v9098, %v9426
  %9428 = vmatmul.bf16.gmra.mxu0 %v3589
  %v9429 = vpop.f32.mrf.mxu0
  %v9430 = vadd.f32 %v9101, %v9429
  %v9431 = vpop.f32.mrf.mxu0
  %v9432 = vadd.f32 %v9103, %v9431
  %9433 = vmatmul.bf16.gmra.mxu0 %v3597
  %v9434 = vpop.f32.mrf.mxu0
  %v9435 = vadd.f32 %v9106, %v9434
  %v9436 = vpop.f32.mrf.mxu0
  %v9437 = vadd.f32 %v9108, %v9436
  %9438 = vmatmul.bf16.gmra.mxu0 %v3605
  %v9439 = vpop.f32.mrf.mxu0
  %v9440 = vadd.f32 %v9111, %v9439
  %v9441 = vpop.f32.mrf.mxu0
  %v9442 = vadd.f32 %v9113, %v9441
  %9443 = vmatmul.bf16.gmra.mxu0 %v3613
  %v9444 = vpop.f32.mrf.mxu0
  %v9445 = vadd.f32 %v9116, %v9444
  %v9446 = vpop.f32.mrf.mxu0
  %v9447 = vadd.f32 %v9118, %v9446
  %9448 = vmatmul.bf16.gmra.mxu0 %v3621
  %v9449 = vpop.f32.mrf.mxu0
  %v9450 = vadd.f32 %v9121, %v9449
  %v9451 = vpop.f32.mrf.mxu0
  %v9452 = vadd.f32 %v9123, %v9451
  %9453 = vmatmul.bf16.gmra.mxu0 %v3629
  %v9454 = vpop.f32.mrf.mxu0
  %v9455 = vadd.f32 %v9126, %v9454
  %v9456 = vpop.f32.mrf.mxu0
  %v9457 = vadd.f32 %v9128, %v9456
  %9458 = vdwg.mxu0
  %9459 = vmatpush.bf16.msra.mxu0 %v7797
  %9460 = vmatpush.bf16.msra.mxu0 %v7796
  %9461 = vmatpush.bf16.msra.mxu0 %v7795
  %9462 = vmatpush.bf16.msra.mxu0 %v7794
  %9463 = vmatpush.bf16.msra.mxu0 %v7793
  %9464 = vmatpush.bf16.msra.mxu0 %v7792
  %9465 = vmatpush.bf16.msra.mxu0 %v7791
  %9466 = vmatpush.bf16.msra.mxu0 %v7790
  %9467 = vmatmul.bf16.gmra.mxu0 %v3126
  %v9468 = vpop.f32.mrf.mxu0
  %v9469 = vadd.f32 %v9140, %v9468
  %v9470 = vpop.f32.mrf.mxu0
  %v9471 = vadd.f32 %v9142, %v9470
  %9472 = vmatmul.bf16.gmra.mxu0 %v3134
  %v9473 = vpop.f32.mrf.mxu0
  %v9474 = vadd.f32 %v9145, %v9473
  %v9475 = vpop.f32.mrf.mxu0
  %v9476 = vadd.f32 %v9147, %v9475
  %9477 = vmatmul.bf16.gmra.mxu0 %v3142
  %v9478 = vpop.f32.mrf.mxu0
  %v9479 = vadd.f32 %v9150, %v9478
  %v9480 = vpop.f32.mrf.mxu0
  %v9481 = vadd.f32 %v9152, %v9480
  %9482 = vmatmul.bf16.gmra.mxu0 %v3150
  %v9483 = vpop.f32.mrf.mxu0
  %v9484 = vadd.f32 %v9155, %v9483
  %v9485 = vpop.f32.mrf.mxu0
  %v9486 = vadd.f32 %v9157, %v9485
  %9487 = vmatmul.bf16.gmra.mxu0 %v3158
  %v9488 = vpop.f32.mrf.mxu0
  %v9489 = vadd.f32 %v9160, %v9488
  %v9490 = vpop.f32.mrf.mxu0
  %v9491 = vadd.f32 %v9162, %v9490
  %9492 = vmatmul.bf16.gmra.mxu0 %v3166
  %v9493 = vpop.f32.mrf.mxu0
  %v9494 = vadd.f32 %v9165, %v9493
  %v9495 = vpop.f32.mrf.mxu0
  %v9496 = vadd.f32 %v9167, %v9495
  %9497 = vmatmul.bf16.gmra.mxu0 %v3174
  %v9498 = vpop.f32.mrf.mxu0
  %v9499 = vadd.f32 %v9170, %v9498
  %v9500 = vpop.f32.mrf.mxu0
  %v9501 = vadd.f32 %v9172, %v9500
  %9502 = vmatmul.bf16.gmra.mxu0 %v3182
  %v9503 = vpop.f32.mrf.mxu0
  %v9504 = vadd.f32 %v9175, %v9503
  %v9505 = vpop.f32.mrf.mxu0
  %v9506 = vadd.f32 %v9177, %v9505
  %9507 = vmatmul.bf16.gmra.mxu0 %v3190
  %v9508 = vpop.f32.mrf.mxu0
  %v9509 = vadd.f32 %v9180, %v9508
  %v9510 = vpop.f32.mrf.mxu0
  %v9511 = vadd.f32 %v9182, %v9510
  %9512 = vmatmul.bf16.gmra.mxu0 %v3198
  %v9513 = vpop.f32.mrf.mxu0
  %v9514 = vadd.f32 %v9185, %v9513
  %v9515 = vpop.f32.mrf.mxu0
  %v9516 = vadd.f32 %v9187, %v9515
  %9517 = vmatmul.bf16.gmra.mxu0 %v3206
  %v9518 = vpop.f32.mrf.mxu0
  %v9519 = vadd.f32 %v9190, %v9518
  %v9520 = vpop.f32.mrf.mxu0
  %v9521 = vadd.f32 %v9192, %v9520
  %9522 = vmatmul.bf16.gmra.mxu0 %v3214
  %v9523 = vpop.f32.mrf.mxu0
  %v9524 = vadd.f32 %v9195, %v9523
  %v9525 = vpop.f32.mrf.mxu0
  %v9526 = vadd.f32 %v9197, %v9525
  %9527 = vmatmul.bf16.gmra.mxu0 %v3222
  %v9528 = vpop.f32.mrf.mxu0
  %v9529 = vadd.f32 %v9200, %v9528
  %v9530 = vpop.f32.mrf.mxu0
  %v9531 = vadd.f32 %v9202, %v9530
  %9532 = vmatmul.bf16.gmra.mxu0 %v3230
  %v9533 = vpop.f32.mrf.mxu0
  %v9534 = vadd.f32 %v9205, %v9533
  %v9535 = vpop.f32.mrf.mxu0
  %v9536 = vadd.f32 %v9207, %v9535
  %9537 = vmatmul.bf16.gmra.mxu0 %v3238
  %v9538 = vpop.f32.mrf.mxu0
  %v9539 = vadd.f32 %v9210, %v9538
  %v9540 = vpop.f32.mrf.mxu0
  %v9541 = vadd.f32 %v9212, %v9540
  %9542 = vmatmul.bf16.gmra.mxu0 %v3246
  %v9543 = vpop.f32.mrf.mxu0
  %v9544 = vadd.f32 %v9215, %v9543
  %v9545 = vpop.f32.mrf.mxu0
  %v9546 = vadd.f32 %v9217, %v9545
  %9547 = vmatmul.bf16.gmra.mxu0 %v3254
  %v9548 = vpop.f32.mrf.mxu0
  %v9549 = vadd.f32 %v9220, %v9548
  %v9550 = vpop.f32.mrf.mxu0
  %v9551 = vadd.f32 %v9222, %v9550
  %9552 = vmatmul.bf16.gmra.mxu0 %v3262
  %v9553 = vpop.f32.mrf.mxu0
  %v9554 = vadd.f32 %v9225, %v9553
  %v9555 = vpop.f32.mrf.mxu0
  %v9556 = vadd.f32 %v9227, %v9555
  %9557 = vmatmul.bf16.gmra.mxu0 %v3270
  %v9558 = vpop.f32.mrf.mxu0
  %v9559 = vadd.f32 %v9230, %v9558
  %v9560 = vpop.f32.mrf.mxu0
  %v9561 = vadd.f32 %v9232, %v9560
  %9562 = vmatmul.bf16.gmra.mxu0 %v3278
  %v9563 = vpop.f32.mrf.mxu0
  %v9564 = vadd.f32 %v9235, %v9563
  %v9565 = vpop.f32.mrf.mxu0
  %v9566 = vadd.f32 %v9237, %v9565
  %9567 = vmatmul.bf16.gmra.mxu0 %v3286
  %v9568 = vpop.f32.mrf.mxu0
  %v9569 = vadd.f32 %v9240, %v9568
  %v9570 = vpop.f32.mrf.mxu0
  %v9571 = vadd.f32 %v9242, %v9570
  %9572 = vmatmul.bf16.gmra.mxu0 %v3294
  %v9573 = vpop.f32.mrf.mxu0
  %v9574 = vadd.f32 %v9245, %v9573
  %v9575 = vpop.f32.mrf.mxu0
  %v9576 = vadd.f32 %v9247, %v9575
  %9577 = vmatmul.bf16.gmra.mxu0 %v3302
  %v9578 = vpop.f32.mrf.mxu0
  %v9579 = vadd.f32 %v9250, %v9578
  %v9580 = vpop.f32.mrf.mxu0
  %v9581 = vadd.f32 %v9252, %v9580
  %9582 = vmatmul.bf16.gmra.mxu0 %v3310
  %v9583 = vpop.f32.mrf.mxu0
  %v9584 = vadd.f32 %v9255, %v9583
  %v9585 = vpop.f32.mrf.mxu0
  %v9586 = vadd.f32 %v9257, %v9585
  %9587 = vmatmul.bf16.gmra.mxu0 %v3318
  %v9588 = vpop.f32.mrf.mxu0
  %v9589 = vadd.f32 %v9260, %v9588
  %v9590 = vpop.f32.mrf.mxu0
  %v9591 = vadd.f32 %v9262, %v9590
  %9592 = vmatmul.bf16.gmra.mxu0 %v3326
  %v9593 = vpop.f32.mrf.mxu0
  %v9594 = vadd.f32 %v9265, %v9593
  %v9595 = vpop.f32.mrf.mxu0
  %v9596 = vadd.f32 %v9267, %v9595
  %9597 = vmatmul.bf16.gmra.mxu0 %v3334
  %v9598 = vpop.f32.mrf.mxu0
  %v9599 = vadd.f32 %v9270, %v9598
  %v9600 = vpop.f32.mrf.mxu0
  %v9601 = vadd.f32 %v9272, %v9600
  %9602 = vmatmul.bf16.gmra.mxu0 %v3342
  %v9603 = vpop.f32.mrf.mxu0
  %v9604 = vadd.f32 %v9275, %v9603
  %v9605 = vpop.f32.mrf.mxu0
  %v9606 = vadd.f32 %v9277, %v9605
  %9607 = vmatmul.bf16.gmra.mxu0 %v3350
  %v9608 = vpop.f32.mrf.mxu0
  %v9609 = vadd.f32 %v9280, %v9608
  %v9610 = vpop.f32.mrf.mxu0
  %v9611 = vadd.f32 %v9282, %v9610
  %9612 = vmatmul.bf16.gmra.mxu0 %v3358
  %v9613 = vpop.f32.mrf.mxu0
  %v9614 = vadd.f32 %v9285, %v9613
  %v9615 = vpop.f32.mrf.mxu0
  %v9616 = vadd.f32 %v9287, %v9615
  %9617 = vmatmul.bf16.gmra.mxu0 %v3366
  %v9618 = vpop.f32.mrf.mxu0
  %v9619 = vadd.f32 %v9290, %v9618
  %v9620 = vpop.f32.mrf.mxu0
  %v9621 = vadd.f32 %v9292, %v9620
  %9622 = vmatmul.bf16.gmra.mxu0 %v3374
  %v9623 = vpop.f32.mrf.mxu0
  %v9624 = vadd.f32 %v9295, %v9623
  %v9625 = vpop.f32.mrf.mxu0
  %v9626 = vadd.f32 %v9297, %v9625
  %9627 = vmatmul.bf16.gmra.mxu0 %v3382
  %v9628 = vpop.f32.mrf.mxu0
  %v9629 = vadd.f32 %v9300, %v9628
  %v9630 = vpop.f32.mrf.mxu0
  %v9631 = vadd.f32 %v9302, %v9630
  %9632 = vmatmul.bf16.gmra.mxu0 %v3390
  %v9633 = vpop.f32.mrf.mxu0
  %v9634 = vadd.f32 %v9305, %v9633
  %v9635 = vpop.f32.mrf.mxu0
  %v9636 = vadd.f32 %v9307, %v9635
  %9637 = vmatmul.bf16.gmra.mxu0 %v3398
  %v9638 = vpop.f32.mrf.mxu0
  %v9639 = vadd.f32 %v9310, %v9638
  %v9640 = vpop.f32.mrf.mxu0
  %v9641 = vadd.f32 %v9312, %v9640
  %9642 = vmatmul.bf16.gmra.mxu0 %v3406
  %v9643 = vpop.f32.mrf.mxu0
  %v9644 = vadd.f32 %v9315, %v9643
  %v9645 = vpop.f32.mrf.mxu0
  %v9646 = vadd.f32 %v9317, %v9645
  %9647 = vmatmul.bf16.gmra.mxu0 %v3414
  %v9648 = vpop.f32.mrf.mxu0
  %v9649 = vadd.f32 %v9320, %v9648
  %v9650 = vpop.f32.mrf.mxu0
  %v9651 = vadd.f32 %v9322, %v9650
  %9652 = vmatmul.bf16.gmra.mxu0 %v3422
  %v9653 = vpop.f32.mrf.mxu0
  %v9654 = vadd.f32 %v9325, %v9653
  %v9655 = vpop.f32.mrf.mxu0
  %v9656 = vadd.f32 %v9327, %v9655
  %9657 = vmatmul.bf16.gmra.mxu0 %v3430
  %v9658 = vpop.f32.mrf.mxu0
  %v9659 = vadd.f32 %v9330, %v9658
  %v9660 = vpop.f32.mrf.mxu0
  %v9661 = vadd.f32 %v9332, %v9660
  %9662 = vmatmul.bf16.gmra.mxu0 %v3438
  %v9663 = vpop.f32.mrf.mxu0
  %v9664 = vadd.f32 %v9335, %v9663
  %v9665 = vpop.f32.mrf.mxu0
  %v9666 = vadd.f32 %v9337, %v9665
  %9667 = vmatmul.bf16.gmra.mxu0 %v3446
  %v9668 = vpop.f32.mrf.mxu0
  %v9669 = vadd.f32 %v9340, %v9668
  %v9670 = vpop.f32.mrf.mxu0
  %v9671 = vadd.f32 %v9342, %v9670
  %9672 = vmatmul.bf16.gmra.mxu0 %v3454
  %v9673 = vpop.f32.mrf.mxu0
  %v9674 = vadd.f32 %v9345, %v9673
  %v9675 = vpop.f32.mrf.mxu0
  %v9676 = vadd.f32 %v9347, %v9675
  %9677 = vmatmul.bf16.gmra.mxu0 %v3462
  %v9678 = vpop.f32.mrf.mxu0
  %v9679 = vadd.f32 %v9350, %v9678
  %v9680 = vpop.f32.mrf.mxu0
  %v9681 = vadd.f32 %v9352, %v9680
  %9682 = vmatmul.bf16.gmra.mxu0 %v3470
  %v9683 = vpop.f32.mrf.mxu0
  %v9684 = vadd.f32 %v9355, %v9683
  %v9685 = vpop.f32.mrf.mxu0
  %v9686 = vadd.f32 %v9357, %v9685
  %9687 = vmatmul.bf16.gmra.mxu0 %v3478
  %v9688 = vpop.f32.mrf.mxu0
  %v9689 = vadd.f32 %v9360, %v9688
  %v9690 = vpop.f32.mrf.mxu0
  %v9691 = vadd.f32 %v9362, %v9690
  %9692 = vmatmul.bf16.gmra.mxu0 %v3486
  %v9693 = vpop.f32.mrf.mxu0
  %v9694 = vadd.f32 %v9365, %v9693
  %v9695 = vpop.f32.mrf.mxu0
  %v9696 = vadd.f32 %v9367, %v9695
  %9697 = vmatmul.bf16.gmra.mxu0 %v3494
  %v9698 = vpop.f32.mrf.mxu0
  %v9699 = vadd.f32 %v9370, %v9698
  %v9700 = vpop.f32.mrf.mxu0
  %v9701 = vadd.f32 %v9372, %v9700
  %9702 = vmatmul.bf16.gmra.mxu0 %v3502
  %v9703 = vpop.f32.mrf.mxu0
  %v9704 = vadd.f32 %v9375, %v9703
  %v9705 = vpop.f32.mrf.mxu0
  %v9706 = vadd.f32 %v9377, %v9705
  %9707 = vmatmul.bf16.gmra.mxu0 %v3510
  %v9708 = vpop.f32.mrf.mxu0
  %v9709 = vadd.f32 %v9380, %v9708
  %v9710 = vpop.f32.mrf.mxu0
  %v9711 = vadd.f32 %v9382, %v9710
  %9712 = vmatmul.bf16.gmra.mxu0 %v3518
  %v9713 = vpop.f32.mrf.mxu0
  %v9714 = vadd.f32 %v9385, %v9713
  %v9715 = vpop.f32.mrf.mxu0
  %v9716 = vadd.f32 %v9387, %v9715
  %9717 = vmatmul.bf16.gmra.mxu0 %v3526
  %v9718 = vpop.f32.mrf.mxu0
  %v9719 = vadd.f32 %v9390, %v9718
  %v9720 = vpop.f32.mrf.mxu0
  %v9721 = vadd.f32 %v9392, %v9720
  %9722 = vmatmul.bf16.gmra.mxu0 %v3534
  %v9723 = vpop.f32.mrf.mxu0
  %v9724 = vadd.f32 %v9395, %v9723
  %v9725 = vpop.f32.mrf.mxu0
  %v9726 = vadd.f32 %v9397, %v9725
  %9727 = vmatmul.bf16.gmra.mxu0 %v3542
  %v9728 = vpop.f32.mrf.mxu0
  %v9729 = vadd.f32 %v9400, %v9728
  %v9730 = vpop.f32.mrf.mxu0
  %v9731 = vadd.f32 %v9402, %v9730
  %9732 = vmatmul.bf16.gmra.mxu0 %v3550
  %v9733 = vpop.f32.mrf.mxu0
  %v9734 = vadd.f32 %v9405, %v9733
  %v9735 = vpop.f32.mrf.mxu0
  %v9736 = vadd.f32 %v9407, %v9735
  %9737 = vmatmul.bf16.gmra.mxu0 %v3558
  %v9738 = vpop.f32.mrf.mxu0
  %v9739 = vadd.f32 %v9410, %v9738
  %v9740 = vpop.f32.mrf.mxu0
  %v9741 = vadd.f32 %v9412, %v9740
  %9742 = vmatmul.bf16.gmra.mxu0 %v3566
  %v9743 = vpop.f32.mrf.mxu0
  %v9744 = vadd.f32 %v9415, %v9743
  %v9745 = vpop.f32.mrf.mxu0
  %v9746 = vadd.f32 %v9417, %v9745
  %9747 = vmatmul.bf16.gmra.mxu0 %v3574
  %v9748 = vpop.f32.mrf.mxu0
  %v9749 = vadd.f32 %v9420, %v9748
  %v9750 = vpop.f32.mrf.mxu0
  %v9751 = vadd.f32 %v9422, %v9750
  %9752 = vmatmul.bf16.gmra.mxu0 %v3582
  %v9753 = vpop.f32.mrf.mxu0
  %v9754 = vadd.f32 %v9425, %v9753
  %v9755 = vpop.f32.mrf.mxu0
  %v9756 = vadd.f32 %v9427, %v9755
  %9757 = vmatmul.bf16.gmra.mxu0 %v3590
  %v9758 = vpop.f32.mrf.mxu0
  %v9759 = vadd.f32 %v9430, %v9758
  %v9760 = vpop.f32.mrf.mxu0
  %v9761 = vadd.f32 %v9432, %v9760
  %9762 = vmatmul.bf16.gmra.mxu0 %v3598
  %v9763 = vpop.f32.mrf.mxu0
  %v9764 = vadd.f32 %v9435, %v9763
  %v9765 = vpop.f32.mrf.mxu0
  %v9766 = vadd.f32 %v9437, %v9765
  %9767 = vmatmul.bf16.gmra.mxu0 %v3606
  %v9768 = vpop.f32.mrf.mxu0
  %v9769 = vadd.f32 %v9440, %v9768
  %v9770 = vpop.f32.mrf.mxu0
  %v9771 = vadd.f32 %v9442, %v9770
  %9772 = vmatmul.bf16.gmra.mxu0 %v3614
  %v9773 = vpop.f32.mrf.mxu0
  %v9774 = vadd.f32 %v9445, %v9773
  %v9775 = vpop.f32.mrf.mxu0
  %v9776 = vadd.f32 %v9447, %v9775
  %9777 = vmatmul.bf16.gmra.mxu0 %v3622
  %v9778 = vpop.f32.mrf.mxu0
  %v9779 = vadd.f32 %v9450, %v9778
  %v9780 = vpop.f32.mrf.mxu0
  %v9781 = vadd.f32 %v9452, %v9780
  %9782 = vmatmul.bf16.gmra.mxu0 %v3630
  %v9783 = vpop.f32.mrf.mxu0
  %v9784 = vadd.f32 %v9455, %v9783
  %v9785 = vpop.f32.mrf.mxu0
  %v9786 = vadd.f32 %v9457, %v9785
  %9787 = vdwg.mxu0
  %9788 = vmatpush.bf16.msra.mxu0 %v7805
  %9789 = vmatpush.bf16.msra.mxu0 %v7804
  %9790 = vmatpush.bf16.msra.mxu0 %v7803
  %9791 = vmatpush.bf16.msra.mxu0 %v7802
  %9792 = vmatpush.bf16.msra.mxu0 %v7801
  %9793 = vmatpush.bf16.msra.mxu0 %v7800
  %9794 = vmatpush.bf16.msra.mxu0 %v7799
  %9795 = vmatpush.bf16.msra.mxu0 %v7798
  %9796 = vmatmul.bf16.gmra.mxu0 %v3127
  %v9797 = vpop.f32.mrf.mxu0
  %v9798 = vadd.f32 %v9469, %v9797
  %v9799 = vpop.f32.mrf.mxu0
  %v9800 = vadd.f32 %v9471, %v9799
  %9801 = vmatmul.bf16.gmra.mxu0 %v3135
  %v9802 = vpop.f32.mrf.mxu0
  %v9803 = vadd.f32 %v9474, %v9802
  %v9804 = vpop.f32.mrf.mxu0
  %v9805 = vadd.f32 %v9476, %v9804
  %9806 = vmatmul.bf16.gmra.mxu0 %v3143
  %v9807 = vpop.f32.mrf.mxu0
  %v9808 = vadd.f32 %v9479, %v9807
  %v9809 = vpop.f32.mrf.mxu0
  %v9810 = vadd.f32 %v9481, %v9809
  %9811 = vmatmul.bf16.gmra.mxu0 %v3151
  %v9812 = vpop.f32.mrf.mxu0
  %v9813 = vadd.f32 %v9484, %v9812
  %v9814 = vpop.f32.mrf.mxu0
  %v9815 = vadd.f32 %v9486, %v9814
  %9816 = vmatmul.bf16.gmra.mxu0 %v3159
  %v9817 = vpop.f32.mrf.mxu0
  %v9818 = vadd.f32 %v9489, %v9817
  %v9819 = vpop.f32.mrf.mxu0
  %v9820 = vadd.f32 %v9491, %v9819
  %9821 = vmatmul.bf16.gmra.mxu0 %v3167
  %v9822 = vpop.f32.mrf.mxu0
  %v9823 = vadd.f32 %v9494, %v9822
  %v9824 = vpop.f32.mrf.mxu0
  %v9825 = vadd.f32 %v9496, %v9824
  %9826 = vmatmul.bf16.gmra.mxu0 %v3175
  %v9827 = vpop.f32.mrf.mxu0
  %v9828 = vadd.f32 %v9499, %v9827
  %v9829 = vpop.f32.mrf.mxu0
  %v9830 = vadd.f32 %v9501, %v9829
  %9831 = vmatmul.bf16.gmra.mxu0 %v3183
  %v9832 = vpop.f32.mrf.mxu0
  %v9833 = vadd.f32 %v9504, %v9832
  %v9834 = vpop.f32.mrf.mxu0
  %v9835 = vadd.f32 %v9506, %v9834
  %9836 = vmatmul.bf16.gmra.mxu0 %v3191
  %v9837 = vpop.f32.mrf.mxu0
  %v9838 = vadd.f32 %v9509, %v9837
  %v9839 = vpop.f32.mrf.mxu0
  %v9840 = vadd.f32 %v9511, %v9839
  %9841 = vmatmul.bf16.gmra.mxu0 %v3199
  %v9842 = vpop.f32.mrf.mxu0
  %v9843 = vadd.f32 %v9514, %v9842
  %v9844 = vpop.f32.mrf.mxu0
  %v9845 = vadd.f32 %v9516, %v9844
  %9846 = vmatmul.bf16.gmra.mxu0 %v3207
  %v9847 = vpop.f32.mrf.mxu0
  %v9848 = vadd.f32 %v9519, %v9847
  %v9849 = vpop.f32.mrf.mxu0
  %v9850 = vadd.f32 %v9521, %v9849
  %9851 = vmatmul.bf16.gmra.mxu0 %v3215
  %v9852 = vpop.f32.mrf.mxu0
  %v9853 = vadd.f32 %v9524, %v9852
  %v9854 = vpop.f32.mrf.mxu0
  %v9855 = vadd.f32 %v9526, %v9854
  %9856 = vmatmul.bf16.gmra.mxu0 %v3223
  %v9857 = vpop.f32.mrf.mxu0
  %v9858 = vadd.f32 %v9529, %v9857
  %v9859 = vpop.f32.mrf.mxu0
  %v9860 = vadd.f32 %v9531, %v9859
  %9861 = vmatmul.bf16.gmra.mxu0 %v3231
  %v9862 = vpop.f32.mrf.mxu0
  %v9863 = vadd.f32 %v9534, %v9862
  %v9864 = vpop.f32.mrf.mxu0
  %v9865 = vadd.f32 %v9536, %v9864
  %9866 = vmatmul.bf16.gmra.mxu0 %v3239
  %v9867 = vpop.f32.mrf.mxu0
  %v9868 = vadd.f32 %v9539, %v9867
  %v9869 = vpop.f32.mrf.mxu0
  %v9870 = vadd.f32 %v9541, %v9869
  %9871 = vmatmul.bf16.gmra.mxu0 %v3247
  %v9872 = vpop.f32.mrf.mxu0
  %v9873 = vadd.f32 %v9544, %v9872
  %v9874 = vpop.f32.mrf.mxu0
  %v9875 = vadd.f32 %v9546, %v9874
  %9876 = vmatmul.bf16.gmra.mxu0 %v3255
  %v9877 = vpop.f32.mrf.mxu0
  %v9878 = vadd.f32 %v9549, %v9877
  %v9879 = vpop.f32.mrf.mxu0
  %v9880 = vadd.f32 %v9551, %v9879
  %9881 = vmatmul.bf16.gmra.mxu0 %v3263
  %v9882 = vpop.f32.mrf.mxu0
  %v9883 = vadd.f32 %v9554, %v9882
  %v9884 = vpop.f32.mrf.mxu0
  %v9885 = vadd.f32 %v9556, %v9884
  %9886 = vmatmul.bf16.gmra.mxu0 %v3271
  %v9887 = vpop.f32.mrf.mxu0
  %v9888 = vadd.f32 %v9559, %v9887
  %v9889 = vpop.f32.mrf.mxu0
  %v9890 = vadd.f32 %v9561, %v9889
  %9891 = vmatmul.bf16.gmra.mxu0 %v3279
  %v9892 = vpop.f32.mrf.mxu0
  %v9893 = vadd.f32 %v9564, %v9892
  %v9894 = vpop.f32.mrf.mxu0
  %v9895 = vadd.f32 %v9566, %v9894
  %9896 = vmatmul.bf16.gmra.mxu0 %v3287
  %v9897 = vpop.f32.mrf.mxu0
  %v9898 = vadd.f32 %v9569, %v9897
  %v9899 = vpop.f32.mrf.mxu0
  %v9900 = vadd.f32 %v9571, %v9899
  %9901 = vmatmul.bf16.gmra.mxu0 %v3295
  %v9902 = vpop.f32.mrf.mxu0
  %v9903 = vadd.f32 %v9574, %v9902
  %v9904 = vpop.f32.mrf.mxu0
  %v9905 = vadd.f32 %v9576, %v9904
  %9906 = vmatmul.bf16.gmra.mxu0 %v3303
  %v9907 = vpop.f32.mrf.mxu0
  %v9908 = vadd.f32 %v9579, %v9907
  %v9909 = vpop.f32.mrf.mxu0
  %v9910 = vadd.f32 %v9581, %v9909
  %9911 = vmatmul.bf16.gmra.mxu0 %v3311
  %v9912 = vpop.f32.mrf.mxu0
  %v9913 = vadd.f32 %v9584, %v9912
  %v9914 = vpop.f32.mrf.mxu0
  %v9915 = vadd.f32 %v9586, %v9914
  %9916 = vmatmul.bf16.gmra.mxu0 %v3319
  %v9917 = vpop.f32.mrf.mxu0
  %v9918 = vadd.f32 %v9589, %v9917
  %v9919 = vpop.f32.mrf.mxu0
  %v9920 = vadd.f32 %v9591, %v9919
  %9921 = vmatmul.bf16.gmra.mxu0 %v3327
  %v9922 = vpop.f32.mrf.mxu0
  %v9923 = vadd.f32 %v9594, %v9922
  %v9924 = vpop.f32.mrf.mxu0
  %v9925 = vadd.f32 %v9596, %v9924
  %9926 = vmatmul.bf16.gmra.mxu0 %v3335
  %v9927 = vpop.f32.mrf.mxu0
  %v9928 = vadd.f32 %v9599, %v9927
  %v9929 = vpop.f32.mrf.mxu0
  %v9930 = vadd.f32 %v9601, %v9929
  %9931 = vmatmul.bf16.gmra.mxu0 %v3343
  %v9932 = vpop.f32.mrf.mxu0
  %v9933 = vadd.f32 %v9604, %v9932
  %v9934 = vpop.f32.mrf.mxu0
  %v9935 = vadd.f32 %v9606, %v9934
  %9936 = vmatmul.bf16.gmra.mxu0 %v3351
  %v9937 = vpop.f32.mrf.mxu0
  %v9938 = vadd.f32 %v9609, %v9937
  %v9939 = vpop.f32.mrf.mxu0
  %v9940 = vadd.f32 %v9611, %v9939
  %9941 = vmatmul.bf16.gmra.mxu0 %v3359
  %v9942 = vpop.f32.mrf.mxu0
  %v9943 = vadd.f32 %v9614, %v9942
  %v9944 = vpop.f32.mrf.mxu0
  %v9945 = vadd.f32 %v9616, %v9944
  %9946 = vmatmul.bf16.gmra.mxu0 %v3367
  %v9947 = vpop.f32.mrf.mxu0
  %v9948 = vadd.f32 %v9619, %v9947
  %v9949 = vpop.f32.mrf.mxu0
  %v9950 = vadd.f32 %v9621, %v9949
  %9951 = vmatmul.bf16.gmra.mxu0 %v3375
  %v9952 = vpop.f32.mrf.mxu0
  %v9953 = vadd.f32 %v9624, %v9952
  %v9954 = vpop.f32.mrf.mxu0
  %v9955 = vadd.f32 %v9626, %v9954
  %9956 = vmatmul.bf16.gmra.mxu0 %v3383
  %v9957 = vpop.f32.mrf.mxu0
  %v9958 = vadd.f32 %v9629, %v9957
  %v9959 = vpop.f32.mrf.mxu0
  %v9960 = vadd.f32 %v9631, %v9959
  %9961 = vmatmul.bf16.gmra.mxu0 %v3391
  %v9962 = vpop.f32.mrf.mxu0
  %v9963 = vadd.f32 %v9634, %v9962
  %v9964 = vpop.f32.mrf.mxu0
  %v9965 = vadd.f32 %v9636, %v9964
  %9966 = vmatmul.bf16.gmra.mxu0 %v3399
  %v9967 = vpop.f32.mrf.mxu0
  %v9968 = vadd.f32 %v9639, %v9967
  %v9969 = vpop.f32.mrf.mxu0
  %v9970 = vadd.f32 %v9641, %v9969
  %9971 = vmatmul.bf16.gmra.mxu0 %v3407
  %v9972 = vpop.f32.mrf.mxu0
  %v9973 = vadd.f32 %v9644, %v9972
  %v9974 = vpop.f32.mrf.mxu0
  %v9975 = vadd.f32 %v9646, %v9974
  %9976 = vmatmul.bf16.gmra.mxu0 %v3415
  %v9977 = vpop.f32.mrf.mxu0
  %v9978 = vadd.f32 %v9649, %v9977
  %v9979 = vpop.f32.mrf.mxu0
  %v9980 = vadd.f32 %v9651, %v9979
  %9981 = vmatmul.bf16.gmra.mxu0 %v3423
  %v9982 = vpop.f32.mrf.mxu0
  %v9983 = vadd.f32 %v9654, %v9982
  %v9984 = vpop.f32.mrf.mxu0
  %v9985 = vadd.f32 %v9656, %v9984
  %9986 = vmatmul.bf16.gmra.mxu0 %v3431
  %v9987 = vpop.f32.mrf.mxu0
  %v9988 = vadd.f32 %v9659, %v9987
  %v9989 = vpop.f32.mrf.mxu0
  %v9990 = vadd.f32 %v9661, %v9989
  %9991 = vmatmul.bf16.gmra.mxu0 %v3439
  %v9992 = vpop.f32.mrf.mxu0
  %v9993 = vadd.f32 %v9664, %v9992
  %v9994 = vpop.f32.mrf.mxu0
  %v9995 = vadd.f32 %v9666, %v9994
  %9996 = vmatmul.bf16.gmra.mxu0 %v3447
  %v9997 = vpop.f32.mrf.mxu0
  %v9998 = vadd.f32 %v9669, %v9997
  %v9999 = vpop.f32.mrf.mxu0
  %v10000 = vadd.f32 %v9671, %v9999
  %10001 = vmatmul.bf16.gmra.mxu0 %v3455
  %v10002 = vpop.f32.mrf.mxu0
  %v10003 = vadd.f32 %v9674, %v10002
  %v10004 = vpop.f32.mrf.mxu0
  %v10005 = vadd.f32 %v9676, %v10004
  %10006 = vmatmul.bf16.gmra.mxu0 %v3463
  %v10007 = vpop.f32.mrf.mxu0
  %v10008 = vadd.f32 %v9679, %v10007
  %v10009 = vpop.f32.mrf.mxu0
  %v10010 = vadd.f32 %v9681, %v10009
  %10011 = vmatmul.bf16.gmra.mxu0 %v3471
  %v10012 = vpop.f32.mrf.mxu0
  %v10013 = vadd.f32 %v9684, %v10012
  %v10014 = vpop.f32.mrf.mxu0
  %v10015 = vadd.f32 %v9686, %v10014
  %10016 = vmatmul.bf16.gmra.mxu0 %v3479
  %v10017 = vpop.f32.mrf.mxu0
  %v10018 = vadd.f32 %v9689, %v10017
  %v10019 = vpop.f32.mrf.mxu0
  %v10020 = vadd.f32 %v9691, %v10019
  %10021 = vmatmul.bf16.gmra.mxu0 %v3487
  %v10022 = vpop.f32.mrf.mxu0
  %v10023 = vadd.f32 %v9694, %v10022
  %v10024 = vpop.f32.mrf.mxu0
  %v10025 = vadd.f32 %v9696, %v10024
  %10026 = vmatmul.bf16.gmra.mxu0 %v3495
  %v10027 = vpop.f32.mrf.mxu0
  %v10028 = vadd.f32 %v9699, %v10027
  %v10029 = vpop.f32.mrf.mxu0
  %v10030 = vadd.f32 %v9701, %v10029
  %10031 = vmatmul.bf16.gmra.mxu0 %v3503
  %v10032 = vpop.f32.mrf.mxu0
  %v10033 = vadd.f32 %v9704, %v10032
  %v10034 = vpop.f32.mrf.mxu0
  %v10035 = vadd.f32 %v9706, %v10034
  %10036 = vmatmul.bf16.gmra.mxu0 %v3511
  %v10037 = vpop.f32.mrf.mxu0
  %v10038 = vadd.f32 %v9709, %v10037
  %v10039 = vpop.f32.mrf.mxu0
  %v10040 = vadd.f32 %v9711, %v10039
  %10041 = vmatmul.bf16.gmra.mxu0 %v3519
  %v10042 = vpop.f32.mrf.mxu0
  %v10043 = vadd.f32 %v9714, %v10042
  %v10044 = vpop.f32.mrf.mxu0
  %v10045 = vadd.f32 %v9716, %v10044
  %10046 = vmatmul.bf16.gmra.mxu0 %v3527
  %v10047 = vpop.f32.mrf.mxu0
  %v10048 = vadd.f32 %v9719, %v10047
  %v10049 = vpop.f32.mrf.mxu0
  %v10050 = vadd.f32 %v9721, %v10049
  %10051 = vmatmul.bf16.gmra.mxu0 %v3535
  %v10052 = vpop.f32.mrf.mxu0
  %v10053 = vadd.f32 %v9724, %v10052
  %v10054 = vpop.f32.mrf.mxu0
  %v10055 = vadd.f32 %v9726, %v10054
  %10056 = vmatmul.bf16.gmra.mxu0 %v3543
  %v10057 = vpop.f32.mrf.mxu0
  %v10058 = vadd.f32 %v9729, %v10057
  %v10059 = vpop.f32.mrf.mxu0
  %v10060 = vadd.f32 %v9731, %v10059
  %10061 = vmatmul.bf16.gmra.mxu0 %v3551
  %v10062 = vpop.f32.mrf.mxu0
  %v10063 = vadd.f32 %v9734, %v10062
  %v10064 = vpop.f32.mrf.mxu0
  %v10065 = vadd.f32 %v9736, %v10064
  %10066 = vmatmul.bf16.gmra.mxu0 %v3559
  %v10067 = vpop.f32.mrf.mxu0
  %v10068 = vadd.f32 %v9739, %v10067
  %v10069 = vpop.f32.mrf.mxu0
  %v10070 = vadd.f32 %v9741, %v10069
  %10071 = vmatmul.bf16.gmra.mxu0 %v3567
  %v10072 = vpop.f32.mrf.mxu0
  %v10073 = vadd.f32 %v9744, %v10072
  %v10074 = vpop.f32.mrf.mxu0
  %v10075 = vadd.f32 %v9746, %v10074
  %10076 = vmatmul.bf16.gmra.mxu0 %v3575
  %v10077 = vpop.f32.mrf.mxu0
  %v10078 = vadd.f32 %v9749, %v10077
  %v10079 = vpop.f32.mrf.mxu0
  %v10080 = vadd.f32 %v9751, %v10079
  %10081 = vmatmul.bf16.gmra.mxu0 %v3583
  %v10082 = vpop.f32.mrf.mxu0
  %v10083 = vadd.f32 %v9754, %v10082
  %v10084 = vpop.f32.mrf.mxu0
  %v10085 = vadd.f32 %v9756, %v10084
  %10086 = vmatmul.bf16.gmra.mxu0 %v3591
  %v10087 = vpop.f32.mrf.mxu0
  %v10088 = vadd.f32 %v9759, %v10087
  %v10089 = vpop.f32.mrf.mxu0
  %v10090 = vadd.f32 %v9761, %v10089
  %10091 = vmatmul.bf16.gmra.mxu0 %v3599
  %v10092 = vpop.f32.mrf.mxu0
  %v10093 = vadd.f32 %v9764, %v10092
  %v10094 = vpop.f32.mrf.mxu0
  %v10095 = vadd.f32 %v9766, %v10094
  %10096 = vmatmul.bf16.gmra.mxu0 %v3607
  %v10097 = vpop.f32.mrf.mxu0
  %v10098 = vadd.f32 %v9769, %v10097
  %v10099 = vpop.f32.mrf.mxu0
  %v10100 = vadd.f32 %v9771, %v10099
  %10101 = vmatmul.bf16.gmra.mxu0 %v3615
  %v10102 = vpop.f32.mrf.mxu0
  %v10103 = vadd.f32 %v9774, %v10102
  %v10104 = vpop.f32.mrf.mxu0
  %v10105 = vadd.f32 %v9776, %v10104
  %10106 = vmatmul.bf16.gmra.mxu0 %v3623
  %v10107 = vpop.f32.mrf.mxu0
  %v10108 = vadd.f32 %v9779, %v10107
  %v10109 = vpop.f32.mrf.mxu0
  %v10110 = vadd.f32 %v9781, %v10109
  %10111 = vmatmul.bf16.gmra.mxu0 %v3631
  %v10112 = vpop.f32.mrf.mxu0
  %v10113 = vadd.f32 %v9784, %v10112
  %v10114 = vpop.f32.mrf.mxu0
  %v10115 = vadd.f32 %v9786, %v10114
  %10116 = vdwg.mxu0
  %10117 = vmatpush.bf16.msra.mxu0 %v7813
  %10118 = vmatpush.bf16.msra.mxu0 %v7812
  %10119 = vmatpush.bf16.msra.mxu0 %v7811
  %10120 = vmatpush.bf16.msra.mxu0 %v7810
  %10121 = vmatpush.bf16.msra.mxu0 %v7809
  %10122 = vmatpush.bf16.msra.mxu0 %v7808
  %10123 = vmatpush.bf16.msra.mxu0 %v7807
  %10124 = vmatpush.bf16.msra.mxu0 %v7806
  %10125 = vmatmul.bf16.gmra.mxu0 %v3128
  %v10126 = vpop.f32.mrf.mxu0
  %v10127 = vadd.f32 %v9798, %v10126
  %v10128 = vpop.f32.mrf.mxu0
  %v10129 = vadd.f32 %v9800, %v10128
  %10130 = vmatmul.bf16.gmra.mxu0 %v3136
  %v10131 = vpop.f32.mrf.mxu0
  %v10132 = vadd.f32 %v9803, %v10131
  %v10133 = vpop.f32.mrf.mxu0
  %v10134 = vadd.f32 %v9805, %v10133
  %10135 = vmatmul.bf16.gmra.mxu0 %v3144
  %v10136 = vpop.f32.mrf.mxu0
  %v10137 = vadd.f32 %v9808, %v10136
  %v10138 = vpop.f32.mrf.mxu0
  %v10139 = vadd.f32 %v9810, %v10138
  %10140 = vmatmul.bf16.gmra.mxu0 %v3152
  %v10141 = vpop.f32.mrf.mxu0
  %v10142 = vadd.f32 %v9813, %v10141
  %v10143 = vpop.f32.mrf.mxu0
  %v10144 = vadd.f32 %v9815, %v10143
  %10145 = vmatmul.bf16.gmra.mxu0 %v3160
  %v10146 = vpop.f32.mrf.mxu0
  %v10147 = vadd.f32 %v9818, %v10146
  %v10148 = vpop.f32.mrf.mxu0
  %v10149 = vadd.f32 %v9820, %v10148
  %10150 = vmatmul.bf16.gmra.mxu0 %v3168
  %v10151 = vpop.f32.mrf.mxu0
  %v10152 = vadd.f32 %v9823, %v10151
  %v10153 = vpop.f32.mrf.mxu0
  %v10154 = vadd.f32 %v9825, %v10153
  %10155 = vmatmul.bf16.gmra.mxu0 %v3176
  %v10156 = vpop.f32.mrf.mxu0
  %v10157 = vadd.f32 %v9828, %v10156
  %v10158 = vpop.f32.mrf.mxu0
  %v10159 = vadd.f32 %v9830, %v10158
  %10160 = vmatmul.bf16.gmra.mxu0 %v3184
  %v10161 = vpop.f32.mrf.mxu0
  %v10162 = vadd.f32 %v9833, %v10161
  %v10163 = vpop.f32.mrf.mxu0
  %v10164 = vadd.f32 %v9835, %v10163
  %10165 = vmatmul.bf16.gmra.mxu0 %v3192
  %v10166 = vpop.f32.mrf.mxu0
  %v10167 = vadd.f32 %v9838, %v10166
  %v10168 = vpop.f32.mrf.mxu0
  %v10169 = vadd.f32 %v9840, %v10168
  %10170 = vmatmul.bf16.gmra.mxu0 %v3200
  %v10171 = vpop.f32.mrf.mxu0
  %v10172 = vadd.f32 %v9843, %v10171
  %v10173 = vpop.f32.mrf.mxu0
  %v10174 = vadd.f32 %v9845, %v10173
  %10175 = vmatmul.bf16.gmra.mxu0 %v3208
  %v10176 = vpop.f32.mrf.mxu0
  %v10177 = vadd.f32 %v9848, %v10176
  %v10178 = vpop.f32.mrf.mxu0
  %v10179 = vadd.f32 %v9850, %v10178
  %10180 = vmatmul.bf16.gmra.mxu0 %v3216
  %v10181 = vpop.f32.mrf.mxu0
  %v10182 = vadd.f32 %v9853, %v10181
  %v10183 = vpop.f32.mrf.mxu0
  %v10184 = vadd.f32 %v9855, %v10183
  %10185 = vmatmul.bf16.gmra.mxu0 %v3224
  %v10186 = vpop.f32.mrf.mxu0
  %v10187 = vadd.f32 %v9858, %v10186
  %v10188 = vpop.f32.mrf.mxu0
  %v10189 = vadd.f32 %v9860, %v10188
  %10190 = vmatmul.bf16.gmra.mxu0 %v3232
  %v10191 = vpop.f32.mrf.mxu0
  %v10192 = vadd.f32 %v9863, %v10191
  %v10193 = vpop.f32.mrf.mxu0
  %v10194 = vadd.f32 %v9865, %v10193
  %10195 = vmatmul.bf16.gmra.mxu0 %v3240
  %v10196 = vpop.f32.mrf.mxu0
  %v10197 = vadd.f32 %v9868, %v10196
  %v10198 = vpop.f32.mrf.mxu0
  %v10199 = vadd.f32 %v9870, %v10198
  %10200 = vmatmul.bf16.gmra.mxu0 %v3248
  %v10201 = vpop.f32.mrf.mxu0
  %v10202 = vadd.f32 %v9873, %v10201
  %v10203 = vpop.f32.mrf.mxu0
  %v10204 = vadd.f32 %v9875, %v10203
  %10205 = vmatmul.bf16.gmra.mxu0 %v3256
  %v10206 = vpop.f32.mrf.mxu0
  %v10207 = vadd.f32 %v9878, %v10206
  %v10208 = vpop.f32.mrf.mxu0
  %v10209 = vadd.f32 %v9880, %v10208
  %10210 = vmatmul.bf16.gmra.mxu0 %v3264
  %v10211 = vpop.f32.mrf.mxu0
  %v10212 = vadd.f32 %v9883, %v10211
  %v10213 = vpop.f32.mrf.mxu0
  %v10214 = vadd.f32 %v9885, %v10213
  %10215 = vmatmul.bf16.gmra.mxu0 %v3272
  %v10216 = vpop.f32.mrf.mxu0
  %v10217 = vadd.f32 %v9888, %v10216
  %v10218 = vpop.f32.mrf.mxu0
  %v10219 = vadd.f32 %v9890, %v10218
  %10220 = vmatmul.bf16.gmra.mxu0 %v3280
  %v10221 = vpop.f32.mrf.mxu0
  %v10222 = vadd.f32 %v9893, %v10221
  %v10223 = vpop.f32.mrf.mxu0
  %v10224 = vadd.f32 %v9895, %v10223
  %10225 = vmatmul.bf16.gmra.mxu0 %v3288
  %v10226 = vpop.f32.mrf.mxu0
  %v10227 = vadd.f32 %v9898, %v10226
  %v10228 = vpop.f32.mrf.mxu0
  %v10229 = vadd.f32 %v9900, %v10228
  %10230 = vmatmul.bf16.gmra.mxu0 %v3296
  %v10231 = vpop.f32.mrf.mxu0
  %v10232 = vadd.f32 %v9903, %v10231
  %v10233 = vpop.f32.mrf.mxu0
  %v10234 = vadd.f32 %v9905, %v10233
  %10235 = vmatmul.bf16.gmra.mxu0 %v3304
  %v10236 = vpop.f32.mrf.mxu0
  %v10237 = vadd.f32 %v9908, %v10236
  %v10238 = vpop.f32.mrf.mxu0
  %v10239 = vadd.f32 %v9910, %v10238
  %10240 = vmatmul.bf16.gmra.mxu0 %v3312
  %v10241 = vpop.f32.mrf.mxu0
  %v10242 = vadd.f32 %v9913, %v10241
  %v10243 = vpop.f32.mrf.mxu0
  %v10244 = vadd.f32 %v9915, %v10243
  %10245 = vmatmul.bf16.gmra.mxu0 %v3320
  %v10246 = vpop.f32.mrf.mxu0
  %v10247 = vadd.f32 %v9918, %v10246
  %v10248 = vpop.f32.mrf.mxu0
  %v10249 = vadd.f32 %v9920, %v10248
  %10250 = vmatmul.bf16.gmra.mxu0 %v3328
  %v10251 = vpop.f32.mrf.mxu0
  %v10252 = vadd.f32 %v9923, %v10251
  %v10253 = vpop.f32.mrf.mxu0
  %v10254 = vadd.f32 %v9925, %v10253
  %10255 = vmatmul.bf16.gmra.mxu0 %v3336
  %v10256 = vpop.f32.mrf.mxu0
  %v10257 = vadd.f32 %v9928, %v10256
  %v10258 = vpop.f32.mrf.mxu0
  %v10259 = vadd.f32 %v9930, %v10258
  %10260 = vmatmul.bf16.gmra.mxu0 %v3344
  %v10261 = vpop.f32.mrf.mxu0
  %v10262 = vadd.f32 %v9933, %v10261
  %v10263 = vpop.f32.mrf.mxu0
  %v10264 = vadd.f32 %v9935, %v10263
  %10265 = vmatmul.bf16.gmra.mxu0 %v3352
  %v10266 = vpop.f32.mrf.mxu0
  %v10267 = vadd.f32 %v9938, %v10266
  %v10268 = vpop.f32.mrf.mxu0
  %v10269 = vadd.f32 %v9940, %v10268
  %10270 = vmatmul.bf16.gmra.mxu0 %v3360
  %v10271 = vpop.f32.mrf.mxu0
  %v10272 = vadd.f32 %v9943, %v10271
  %v10273 = vpop.f32.mrf.mxu0
  %v10274 = vadd.f32 %v9945, %v10273
  %10275 = vmatmul.bf16.gmra.mxu0 %v3368
  %v10276 = vpop.f32.mrf.mxu0
  %v10277 = vadd.f32 %v9948, %v10276
  %v10278 = vpop.f32.mrf.mxu0
  %v10279 = vadd.f32 %v9950, %v10278
  %10280 = vmatmul.bf16.gmra.mxu0 %v3376
  %v10281 = vpop.f32.mrf.mxu0
  %v10282 = vadd.f32 %v9953, %v10281
  %v10283 = vpop.f32.mrf.mxu0
  %v10284 = vadd.f32 %v9955, %v10283
  %10285 = vmatmul.bf16.gmra.mxu0 %v3384
  %v10286 = vpop.f32.mrf.mxu0
  %v10287 = vadd.f32 %v9958, %v10286
  %v10288 = vpop.f32.mrf.mxu0
  %v10289 = vadd.f32 %v9960, %v10288
  %10290 = vmatmul.bf16.gmra.mxu0 %v3392
  %v10291 = vpop.f32.mrf.mxu0
  %v10292 = vadd.f32 %v9963, %v10291
  %v10293 = vpop.f32.mrf.mxu0
  %v10294 = vadd.f32 %v9965, %v10293
  %10295 = vmatmul.bf16.gmra.mxu0 %v3400
  %v10296 = vpop.f32.mrf.mxu0
  %v10297 = vadd.f32 %v9968, %v10296
  %v10298 = vpop.f32.mrf.mxu0
  %v10299 = vadd.f32 %v9970, %v10298
  %10300 = vmatmul.bf16.gmra.mxu0 %v3408
  %v10301 = vpop.f32.mrf.mxu0
  %v10302 = vadd.f32 %v9973, %v10301
  %v10303 = vpop.f32.mrf.mxu0
  %v10304 = vadd.f32 %v9975, %v10303
  %10305 = vmatmul.bf16.gmra.mxu0 %v3416
  %v10306 = vpop.f32.mrf.mxu0
  %v10307 = vadd.f32 %v9978, %v10306
  %v10308 = vpop.f32.mrf.mxu0
  %v10309 = vadd.f32 %v9980, %v10308
  %10310 = vmatmul.bf16.gmra.mxu0 %v3424
  %v10311 = vpop.f32.mrf.mxu0
  %v10312 = vadd.f32 %v9983, %v10311
  %v10313 = vpop.f32.mrf.mxu0
  %v10314 = vadd.f32 %v9985, %v10313
  %10315 = vmatmul.bf16.gmra.mxu0 %v3432
  %v10316 = vpop.f32.mrf.mxu0
  %v10317 = vadd.f32 %v9988, %v10316
  %v10318 = vpop.f32.mrf.mxu0
  %v10319 = vadd.f32 %v9990, %v10318
  %10320 = vmatmul.bf16.gmra.mxu0 %v3440
  %v10321 = vpop.f32.mrf.mxu0
  %v10322 = vadd.f32 %v9993, %v10321
  %v10323 = vpop.f32.mrf.mxu0
  %v10324 = vadd.f32 %v9995, %v10323
  %10325 = vmatmul.bf16.gmra.mxu0 %v3448
  %v10326 = vpop.f32.mrf.mxu0
  %v10327 = vadd.f32 %v9998, %v10326
  %v10328 = vpop.f32.mrf.mxu0
  %v10329 = vadd.f32 %v10000, %v10328
  %10330 = vmatmul.bf16.gmra.mxu0 %v3456
  %v10331 = vpop.f32.mrf.mxu0
  %v10332 = vadd.f32 %v10003, %v10331
  %v10333 = vpop.f32.mrf.mxu0
  %v10334 = vadd.f32 %v10005, %v10333
  %10335 = vmatmul.bf16.gmra.mxu0 %v3464
  %v10336 = vpop.f32.mrf.mxu0
  %v10337 = vadd.f32 %v10008, %v10336
  %v10338 = vpop.f32.mrf.mxu0
  %v10339 = vadd.f32 %v10010, %v10338
  %10340 = vmatmul.bf16.gmra.mxu0 %v3472
  %v10341 = vpop.f32.mrf.mxu0
  %v10342 = vadd.f32 %v10013, %v10341
  %v10343 = vpop.f32.mrf.mxu0
  %v10344 = vadd.f32 %v10015, %v10343
  %10345 = vmatmul.bf16.gmra.mxu0 %v3480
  %v10346 = vpop.f32.mrf.mxu0
  %v10347 = vadd.f32 %v10018, %v10346
  %v10348 = vpop.f32.mrf.mxu0
  %v10349 = vadd.f32 %v10020, %v10348
  %10350 = vmatmul.bf16.gmra.mxu0 %v3488
  %v10351 = vpop.f32.mrf.mxu0
  %v10352 = vadd.f32 %v10023, %v10351
  %v10353 = vpop.f32.mrf.mxu0
  %v10354 = vadd.f32 %v10025, %v10353
  %10355 = vmatmul.bf16.gmra.mxu0 %v3496
  %v10356 = vpop.f32.mrf.mxu0
  %v10357 = vadd.f32 %v10028, %v10356
  %v10358 = vpop.f32.mrf.mxu0
  %v10359 = vadd.f32 %v10030, %v10358
  %10360 = vmatmul.bf16.gmra.mxu0 %v3504
  %v10361 = vpop.f32.mrf.mxu0
  %v10362 = vadd.f32 %v10033, %v10361
  %v10363 = vpop.f32.mrf.mxu0
  %v10364 = vadd.f32 %v10035, %v10363
  %10365 = vmatmul.bf16.gmra.mxu0 %v3512
  %v10366 = vpop.f32.mrf.mxu0
  %v10367 = vadd.f32 %v10038, %v10366
  %v10368 = vpop.f32.mrf.mxu0
  %v10369 = vadd.f32 %v10040, %v10368
  %10370 = vmatmul.bf16.gmra.mxu0 %v3520
  %v10371 = vpop.f32.mrf.mxu0
  %v10372 = vadd.f32 %v10043, %v10371
  %v10373 = vpop.f32.mrf.mxu0
  %v10374 = vadd.f32 %v10045, %v10373
  %10375 = vmatmul.bf16.gmra.mxu0 %v3528
  %v10376 = vpop.f32.mrf.mxu0
  %v10377 = vadd.f32 %v10048, %v10376
  %v10378 = vpop.f32.mrf.mxu0
  %v10379 = vadd.f32 %v10050, %v10378
  %10380 = vmatmul.bf16.gmra.mxu0 %v3536
  %v10381 = vpop.f32.mrf.mxu0
  %v10382 = vadd.f32 %v10053, %v10381
  %v10383 = vpop.f32.mrf.mxu0
  %v10384 = vadd.f32 %v10055, %v10383
  %10385 = vmatmul.bf16.gmra.mxu0 %v3544
  %v10386 = vpop.f32.mrf.mxu0
  %v10387 = vadd.f32 %v10058, %v10386
  %v10388 = vpop.f32.mrf.mxu0
  %v10389 = vadd.f32 %v10060, %v10388
  %10390 = vmatmul.bf16.gmra.mxu0 %v3552
  %v10391 = vpop.f32.mrf.mxu0
  %v10392 = vadd.f32 %v10063, %v10391
  %v10393 = vpop.f32.mrf.mxu0
  %v10394 = vadd.f32 %v10065, %v10393
  %10395 = vmatmul.bf16.gmra.mxu0 %v3560
  %v10396 = vpop.f32.mrf.mxu0
  %v10397 = vadd.f32 %v10068, %v10396
  %v10398 = vpop.f32.mrf.mxu0
  %v10399 = vadd.f32 %v10070, %v10398
  %10400 = vmatmul.bf16.gmra.mxu0 %v3568
  %v10401 = vpop.f32.mrf.mxu0
  %v10402 = vadd.f32 %v10073, %v10401
  %v10403 = vpop.f32.mrf.mxu0
  %v10404 = vadd.f32 %v10075, %v10403
  %10405 = vmatmul.bf16.gmra.mxu0 %v3576
  %v10406 = vpop.f32.mrf.mxu0
  %v10407 = vadd.f32 %v10078, %v10406
  %v10408 = vpop.f32.mrf.mxu0
  %v10409 = vadd.f32 %v10080, %v10408
  %10410 = vmatmul.bf16.gmra.mxu0 %v3584
  %v10411 = vpop.f32.mrf.mxu0
  %v10412 = vadd.f32 %v10083, %v10411
  %v10413 = vpop.f32.mrf.mxu0
  %v10414 = vadd.f32 %v10085, %v10413
  %10415 = vmatmul.bf16.gmra.mxu0 %v3592
  %v10416 = vpop.f32.mrf.mxu0
  %v10417 = vadd.f32 %v10088, %v10416
  %v10418 = vpop.f32.mrf.mxu0
  %v10419 = vadd.f32 %v10090, %v10418
  %10420 = vmatmul.bf16.gmra.mxu0 %v3600
  %v10421 = vpop.f32.mrf.mxu0
  %v10422 = vadd.f32 %v10093, %v10421
  %v10423 = vpop.f32.mrf.mxu0
  %v10424 = vadd.f32 %v10095, %v10423
  %10425 = vmatmul.bf16.gmra.mxu0 %v3608
  %v10426 = vpop.f32.mrf.mxu0
  %v10427 = vadd.f32 %v10098, %v10426
  %v10428 = vpop.f32.mrf.mxu0
  %v10429 = vadd.f32 %v10100, %v10428
  %10430 = vmatmul.bf16.gmra.mxu0 %v3616
  %v10431 = vpop.f32.mrf.mxu0
  %v10432 = vadd.f32 %v10103, %v10431
  %v10433 = vpop.f32.mrf.mxu0
  %v10434 = vadd.f32 %v10105, %v10433
  %10435 = vmatmul.bf16.gmra.mxu0 %v3624
  %v10436 = vpop.f32.mrf.mxu0
  %v10437 = vadd.f32 %v10108, %v10436
  %v10438 = vpop.f32.mrf.mxu0
  %v10439 = vadd.f32 %v10110, %v10438
  %10440 = vmatmul.bf16.gmra.mxu0 %v3632
  %v10441 = vpop.f32.mrf.mxu0
  %v10442 = vadd.f32 %v10113, %v10441
  %v10443 = vpop.f32.mrf.mxu0
  %v10444 = vadd.f32 %v10115, %v10443
  %10445 = vdwg.mxu0
  %10446 = vst [vmem:[%s7] sm:$0xff] %v10127
  %10447 = vst [vmem:[%s7 + $0x8] sm:$0xff] %v10129
  %10448 = vst [vmem:[%s7 + $0x10] sm:$0xff] %v10132
  %10449 = vst [vmem:[%s7 + $0x18] sm:$0xff] %v10134
  %10450 = vst [vmem:[%s7 + $0x20] sm:$0xff] %v10137
  %10451 = vst [vmem:[%s7 + $0x28] sm:$0xff] %v10139
  %10452 = vst [vmem:[%s7 + $0x30] sm:$0xff] %v10142
  %10453 = vst [vmem:[%s7 + $0x38] sm:$0xff] %v10144
  %10454 = vst [vmem:[%s7 + $0x40] sm:$0xff] %v10147
  %10455 = vst [vmem:[%s7 + $0x48] sm:$0xff] %v10149
  %10456 = vst [vmem:[%s7 + $0x50] sm:$0xff] %v10152
  %10457 = vst [vmem:[%s7 + $0x58] sm:$0xff] %v10154
  %10458 = vst [vmem:[%s7 + $0x60] sm:$0xff] %v10157
  %10459 = vst [vmem:[%s7 + $0x68] sm:$0xff] %v10159
  %10460 = vst [vmem:[%s7 + $0x70] sm:$0xff] %v10162
  %10461 = vst [vmem:[%s7 + $0x78] sm:$0xff] %v10164
  %10462 = vst [vmem:[%s7 + $0x80] sm:$0xff] %v10167
  %10463 = vst [vmem:[%s7 + $0x88] sm:$0xff] %v10169
  %10464 = vst [vmem:[%s7 + $0x90] sm:$0xff] %v10172
  %10465 = vst [vmem:[%s7 + $0x98] sm:$0xff] %v10174
  %10466 = vst [vmem:[%s7 + $0xa0] sm:$0xff] %v10177
  %10467 = vst [vmem:[%s7 + $0xa8] sm:$0xff] %v10179
  %10468 = vst [vmem:[%s7 + $0xb0] sm:$0xff] %v10182
  %10469 = vst [vmem:[%s7 + $0xb8] sm:$0xff] %v10184
  %10470 = vst [vmem:[%s7 + $0xc0] sm:$0xff] %v10187
  %10471 = vst [vmem:[%s7 + $0xc8] sm:$0xff] %v10189
  %10472 = vst [vmem:[%s7 + $0xd0] sm:$0xff] %v10192
  %10473 = vst [vmem:[%s7 + $0xd8] sm:$0xff] %v10194
  %10474 = vst [vmem:[%s7 + $0xe0] sm:$0xff] %v10197
  %10475 = vst [vmem:[%s7 + $0xe8] sm:$0xff] %v10199
  %10476 = vst [vmem:[%s7 + $0xf0] sm:$0xff] %v10202
  %10477 = vst [vmem:[%s7 + $0xf8] sm:$0xff] %v10204
  %10478 = vst [vmem:[%s7 + $0x100] sm:$0xff] %v10207
  %10479 = vst [vmem:[%s7 + $0x108] sm:$0xff] %v10209
  %10480 = vst [vmem:[%s7 + $0x110] sm:$0xff] %v10212
  %10481 = vst [vmem:[%s7 + $0x118] sm:$0xff] %v10214
  %10482 = vst [vmem:[%s7 + $0x120] sm:$0xff] %v10217
  %10483 = vst [vmem:[%s7 + $0x128] sm:$0xff] %v10219
  %10484 = vst [vmem:[%s7 + $0x130] sm:$0xff] %v10222
  %10485 = vst [vmem:[%s7 + $0x138] sm:$0xff] %v10224
  %10486 = vst [vmem:[%s7 + $0x140] sm:$0xff] %v10227
  %10487 = vst [vmem:[%s7 + $0x148] sm:$0xff] %v10229
  %10488 = vst [vmem:[%s7 + $0x150] sm:$0xff] %v10232
  %10489 = vst [vmem:[%s7 + $0x158] sm:$0xff] %v10234
  %10490 = vst [vmem:[%s7 + $0x160] sm:$0xff] %v10237
  %10491 = vst [vmem:[%s7 + $0x168] sm:$0xff] %v10239
  %10492 = vst [vmem:[%s7 + $0x170] sm:$0xff] %v10242
  %10493 = vst [vmem:[%s7 + $0x178] sm:$0xff] %v10244
  %10494 = vst [vmem:[%s7 + $0x180] sm:$0xff] %v10247
  %10495 = vst [vmem:[%s7 + $0x188] sm:$0xff] %v10249
  %10496 = vst [vmem:[%s7 + $0x190] sm:$0xff] %v10252
  %10497 = vst [vmem:[%s7 + $0x198] sm:$0xff] %v10254
  %10498 = vst [vmem:[%s7 + $0x1a0] sm:$0xff] %v10257
  %10499 = vst [vmem:[%s7 + $0x1a8] sm:$0xff] %v10259
  %10500 = vst [vmem:[%s7 + $0x1b0] sm:$0xff] %v10262
  %10501 = vst [vmem:[%s7 + $0x1b8] sm:$0xff] %v10264
  %10502 = vst [vmem:[%s7 + $0x1c0] sm:$0xff] %v10267
  %10503 = vst [vmem:[%s7 + $0x1c8] sm:$0xff] %v10269
  %10504 = vst [vmem:[%s7 + $0x1d0] sm:$0xff] %v10272
  %10505 = vst [vmem:[%s7 + $0x1d8] sm:$0xff] %v10274
  %10506 = vst [vmem:[%s7 + $0x1e0] sm:$0xff] %v10277
  %10507 = vst [vmem:[%s7 + $0x1e8] sm:$0xff] %v10279
  %10508 = vst [vmem:[%s7 + $0x1f0] sm:$0xff] %v10282
  %10509 = vst [vmem:[%s7 + $0x1f8] sm:$0xff] %v10284
  %10510 = vst [vmem:[%s7 + $0x200] sm:$0xff] %v10287
  %10511 = vst [vmem:[%s7 + $0x208] sm:$0xff] %v10289
  %10512 = vst [vmem:[%s7 + $0x210] sm:$0xff] %v10292
  %10513 = vst [vmem:[%s7 + $0x218] sm:$0xff] %v10294
  %10514 = vst [vmem:[%s7 + $0x220] sm:$0xff] %v10297
  %10515 = vst [vmem:[%s7 + $0x228] sm:$0xff] %v10299
  %10516 = vst [vmem:[%s7 + $0x230] sm:$0xff] %v10302
  %10517 = vst [vmem:[%s7 + $0x238] sm:$0xff] %v10304
  %10518 = vst [vmem:[%s7 + $0x240] sm:$0xff] %v10307
  %10519 = vst [vmem:[%s7 + $0x248] sm:$0xff] %v10309
  %10520 = vst [vmem:[%s7 + $0x250] sm:$0xff] %v10312
  %10521 = vst [vmem:[%s7 + $0x258] sm:$0xff] %v10314
  %10522 = vst [vmem:[%s7 + $0x260] sm:$0xff] %v10317
  %10523 = vst [vmem:[%s7 + $0x268] sm:$0xff] %v10319
  %10524 = vst [vmem:[%s7 + $0x270] sm:$0xff] %v10322
  %10525 = vst [vmem:[%s7 + $0x278] sm:$0xff] %v10324
  %10526 = vst [vmem:[%s7 + $0x280] sm:$0xff] %v10327
  %10527 = vst [vmem:[%s7 + $0x288] sm:$0xff] %v10329
  %10528 = vst [vmem:[%s7 + $0x290] sm:$0xff] %v10332
  %10529 = vst [vmem:[%s7 + $0x298] sm:$0xff] %v10334
  %10530 = vst [vmem:[%s7 + $0x2a0] sm:$0xff] %v10337
  %10531 = vst [vmem:[%s7 + $0x2a8] sm:$0xff] %v10339
  %10532 = vst [vmem:[%s7 + $0x2b0] sm:$0xff] %v10342
  %10533 = vst [vmem:[%s7 + $0x2b8] sm:$0xff] %v10344
  %10534 = vst [vmem:[%s7 + $0x2c0] sm:$0xff] %v10347
  %10535 = vst [vmem:[%s7 + $0x2c8] sm:$0xff] %v10349
  %10536 = vst [vmem:[%s7 + $0x2d0] sm:$0xff] %v10352
  %10537 = vst [vmem:[%s7 + $0x2d8] sm:$0xff] %v10354
  %10538 = vst [vmem:[%s7 + $0x2e0] sm:$0xff] %v10357
  %10539 = vst [vmem:[%s7 + $0x2e8] sm:$0xff] %v10359
  %10540 = vst [vmem:[%s7 + $0x2f0] sm:$0xff] %v10362
  %10541 = vst [vmem:[%s7 + $0x2f8] sm:$0xff] %v10364
  %10542 = vst [vmem:[%s7 + $0x300] sm:$0xff] %v10367
  %10543 = vst [vmem:[%s7 + $0x308] sm:$0xff] %v10369
  %10544 = vst [vmem:[%s7 + $0x310] sm:$0xff] %v10372
  %10545 = vst [vmem:[%s7 + $0x318] sm:$0xff] %v10374
  %10546 = vst [vmem:[%s7 + $0x320] sm:$0xff] %v10377
  %10547 = vst [vmem:[%s7 + $0x328] sm:$0xff] %v10379
  %10548 = vst [vmem:[%s7 + $0x330] sm:$0xff] %v10382
  %10549 = vst [vmem:[%s7 + $0x338] sm:$0xff] %v10384
  %10550 = vst [vmem:[%s7 + $0x340] sm:$0xff] %v10387
  %10551 = vst [vmem:[%s7 + $0x348] sm:$0xff] %v10389
  %10552 = vst [vmem:[%s7 + $0x350] sm:$0xff] %v10392
  %10553 = vst [vmem:[%s7 + $0x358] sm:$0xff] %v10394
  %10554 = vst [vmem:[%s7 + $0x360] sm:$0xff] %v10397
  %10555 = vst [vmem:[%s7 + $0x368] sm:$0xff] %v10399
  %10556 = vst [vmem:[%s7 + $0x370] sm:$0xff] %v10402
  %10557 = vst [vmem:[%s7 + $0x378] sm:$0xff] %v10404
  %10558 = vst [vmem:[%s7 + $0x380] sm:$0xff] %v10407
  %10559 = vst [vmem:[%s7 + $0x388] sm:$0xff] %v10409
  %10560 = vst [vmem:[%s7 + $0x390] sm:$0xff] %v10412
  %10561 = vst [vmem:[%s7 + $0x398] sm:$0xff] %v10414
  %10562 = vst [vmem:[%s7 + $0x3a0] sm:$0xff] %v10417
  %10563 = vst [vmem:[%s7 + $0x3a8] sm:$0xff] %v10419
  %10564 = vst [vmem:[%s7 + $0x3b0] sm:$0xff] %v10422
  %10565 = vst [vmem:[%s7 + $0x3b8] sm:$0xff] %v10424
  %10566 = vst [vmem:[%s7 + $0x3c0] sm:$0xff] %v10427
  %10567 = vst [vmem:[%s7 + $0x3c8] sm:$0xff] %v10429
  %10568 = vst [vmem:[%s7 + $0x3d0] sm:$0xff] %v10432
  %10569 = vst [vmem:[%s7 + $0x3d8] sm:$0xff] %v10434
  %10570 = vst [vmem:[%s7 + $0x3e0] sm:$0xff] %v10437
  %10571 = vst [vmem:[%s7 + $0x3e8] sm:$0xff] %v10439
  %10572 = vst [vmem:[%s7 + $0x3f0] sm:$0xff] %v10442
  %10573 = vst [vmem:[%s7 + $0x3f8] sm:$0xff] %v10444
  // Predicated region
  $region30: #{hgnn_forward.1} parent=0 // pred_check
    _
  $region31: #{hgnn_forward.1} parent=0 // pred_check_branch
    %10575 = sbr.rel (0) target = $region33
  $region32: #{hgnn_forward.1} parent=0 // pred_region
    _
  $region33: #{hgnn_forward.1} parent=0 // pred_fallthru
    _
  // Predicated region
  $region34: #{hgnn_forward.1} parent=0 // pred_check
    _
  $region35: #{hgnn_forward.1} parent=0 // pred_check_branch
    %10577 = sbr.rel (0) target = $region37
  $region36: #{hgnn_forward.1} parent=0 // pred_region
    _
  $region37: #{hgnn_forward.1} parent=0 // pred_fallthru
    _

</llo_original>
